<compile_context>
chip_gen: v6e
topology: v6e:2x2x1
jax: 0.10.0
libtpu: 0.0.40
codegen_flags: <defaults>
</compile_context>

<pallas_src>
import jax
import jax.numpy as jnp
from jax import lax
from jax.experimental import pallas as pl
from jax.experimental.pallas import tpu as pltpu

BN_EPS = 1e-5  # nn.BatchNorm3d default


# --------------------------------------------------------------------------
# Pass 1: conv (3 matmuls / depth plane) + per-batch BN partial statistics
# --------------------------------------------------------------------------
def _conv_stats_kernel(x_ref, w_ref, conv_ref, stats_ref):
    # x_ref    : (1, 9*Cin, (D+2)*HW) bf16 -- im2col'd slab for batch n
    # w_ref    : (3, Cout, 9*Cin)     bf16 -- one (Cout, 9*Cin) slab per kd
    # conv_ref : (1, Cout, D*HW)      bf16 -- lane-dense conv output for batch n
    # stats_ref: (1, 2*Cout, 128)     f32  -- [sum ; sum_sq] per channel
    Cout = conv_ref.shape[1]
    cols = conv_ref.shape[2]                 # D * HW
    HW = (x_ref.shape[2] - cols) // 2        # (D+2)*HW - D*HW = 2*HW
    D = cols // HW

    # Weight slabs stay resident in vregs across the whole per-n loop.
    w0 = w_ref[0]
    w1 = w_ref[1]
    w2 = w_ref[2]

    s = jnp.zeros((Cout, 1), jnp.float32)
    ssq = jnp.zeros((Cout, 1), jnp.float32)

    # Static (fully unrolled) loop over output depth planes.  Every slice is
    # lane-aligned (offsets are multiples of HW, itself a multiple of 128).
    for d in range(D):
        acc = jnp.dot(w0, x_ref[0, :, pl.ds(d * HW, HW)],
                      preferred_element_type=jnp.float32)
        acc = acc + jnp.dot(w1, x_ref[0, :, pl.ds((d + 1) * HW, HW)],
                            preferred_element_type=jnp.float32)
        acc = acc + jnp.dot(w2, x_ref[0, :, pl.ds((d + 2) * HW, HW)],
                            preferred_element_type=jnp.float32)
        conv_ref[0, :, pl.ds(d * HW, HW)] = acc.astype(conv_ref.dtype)
        # BN partials from the f32 accumulator (before the bf16 rounding).
        s = s + jnp.sum(acc, axis=1, keepdims=True)
        ssq = ssq + jnp.sum(acc * acc, axis=1, keepdims=True)

    # One lane-dense stats store per batch element.
    stats_ref[0, :Cout, :] = jnp.broadcast_to(s, (Cout, 128))
    stats_ref[0, Cout:, :] = jnp.broadcast_to(ssq, (Cout, 128))


# --------------------------------------------------------------------------
# Final-layer epilogue: folded BN scale/shift + ReLU (f32 elementwise)
# --------------------------------------------------------------------------
def _bn_relu_kernel(conv_ref, scale_ref, shift_ref, out_ref):
    # conv_ref: (1, Cout, D*HW) bf16 ; scale/shift: (Cout, 1) f32
    y = conv_ref[0].astype(jnp.float32) * scale_ref[...] + shift_ref[...]
    out_ref[0] = jnp.maximum(y, 0.0)


# --------------------------------------------------------------------------
# XLA glue
# --------------------------------------------------------------------------
def _build_im2col(a):
    """(N, C, D, H, W) -> (N, 9*C, (D+2)*H*W) bf16, lane-dense.

    Rows are ordered (kh, kw, c); the flattened lane axis is (d', h, w) over
    the depth-padded volume, so the kernel picks the kd shift with a
    lane-aligned slice of width D*H*W at offset kd*H*W.
    """
    N, C, D, H, W = a.shape
    ap = jnp.pad(a.astype(jnp.bfloat16),
                 ((0, 0), (0, 0), (1, 1), (1, 1), (1, 1)))   # (N, C, D+2, H+2, W+2)
    pieces = []
    for kh in range(3):
        for kw in range(3):
            pieces.append(ap[:, :, :, kh:kh + H, kw:kw + W]
                          .reshape(N, C, (D + 2) * H * W))
    return jnp.concatenate(pieces, axis=1)                   # (N, 9*C, (D+2)*HW)


def _prep_weight(w):
    """(3, 3, 3, Cin, Cout) -> (3, Cout, 9*Cin) bf16, columns ordered (kh, kw, ci)."""
    Cin, Cout = w.shape[3], w.shape[4]
    return jnp.transpose(w.reshape(3, 9 * Cin, Cout), (0, 2, 1)).astype(jnp.bfloat16)


def _conv_pass(xim, w_r, D, HW):
    """Pallas pass 1 for one layer. Returns conv (N, Cout, D*HW) bf16 and stats."""
    N = xim.shape[0]
    nine_cin = xim.shape[1]
    Cout = w_r.shape[1]
    K = 3 * nine_cin

    cost = pl.CostEstimate(
        flops=2 * N * D * HW * K * Cout,
        transcendentals=0,
        bytes_accessed=(xim.size * 2 + w_r.size * 2
                        + N * Cout * D * HW * 2 + N * 2 * Cout * 128 * 4),
    )

    conv_flat, stats = pl.pallas_call(
        _conv_stats_kernel,
        grid=(N,),
        in_specs=[
            pl.BlockSpec((1, nine_cin, (D + 2) * HW), lambda n: (n, 0, 0)),
            pl.BlockSpec((3, Cout, nine_cin), lambda n: (0, 0, 0)),
        ],
        out_specs=[
            pl.BlockSpec((1, Cout, D * HW), lambda n: (n, 0, 0)),
            pl.BlockSpec((1, 2 * Cout, 128), lambda n: (n, 0, 0)),
        ],
        out_shape=[
            jax.ShapeDtypeStruct((N, Cout, D * HW), jnp.bfloat16),
            jax.ShapeDtypeStruct((N, 2 * Cout, 128), jnp.float32),
        ],
        compiler_params=pltpu.CompilerParams(dimension_semantics=("parallel",)),
        cost_estimate=cost,
    )(xim, w_r)
    return conv_flat, stats


def _bn_scale_shift(stats, gamma, beta, count):
    """Finish the BN reduction and fold gamma/beta into scale/shift."""
    Cout = gamma.shape[0]
    sums = jnp.sum(stats[:, :, 0], axis=0)                 # (2*Cout,)
    mean = sums[:Cout] / count
    var = jnp.maximum(sums[Cout:] / count - mean * mean, 0.0)   # biased, clamped >= 0
    scale = gamma * lax.rsqrt(var + BN_EPS)
    shift = beta - mean * scale                            # conv bias cancels exactly
    return scale.reshape(Cout, 1), shift.reshape(Cout, 1)


# --------------------------------------------------------------------------
# Encoder block forward
# --------------------------------------------------------------------------
def encoder_block_forward(x, params):
    """x: (N, Cin, D, H, W) f32 (NCDHW, like PyTorch). Returns (N, Cout, D, H, W) f32."""
    N, Cin, D, H, W = x.shape
    HW = H * W
    Cout = params["g1"].shape[0]
    count = N * D * HW

    # ---- layer 1: conv + stats ----
    xim1 = _build_im2col(x)
    conv1, stats1 = _conv_pass(xim1, _prep_weight(params["w1"]), D, HW)
    scale1, shift1 = _bn_scale_shift(stats1, params["g1"], params["be1"], count)

    # ---- layer-1 BN+ReLU fused into layer-2's im2col construction ----
    # (pure elementwise on the bf16 conv intermediate; XLA fuses it into the
    #  pad/shift/concat producers, so there is no standalone BN pass here)
    a1 = jnp.maximum(conv1.astype(jnp.float32) * scale1.reshape(1, Cout, 1)
                     + shift1.reshape(1, Cout, 1), 0.0)
    xim2 = _build_im2col(a1.reshape(N, Cout, D, H, W))

    # ---- layer 2: conv + stats ----
    conv2, stats2 = _conv_pass(xim2, _prep_weight(params["w2"]), D, HW)
    scale2, shift2 = _bn_scale_shift(stats2, params["g2"], params["be2"], count)

    # ---- final BN + ReLU epilogue (Pallas) ----
    cost2 = pl.CostEstimate(
        flops=2 * N * Cout * D * HW,
        transcendentals=0,
        bytes_accessed=N * Cout * D * HW * (2 + 4) + 2 * Cout * 4,
    )
    y = pl.pallas_call(
        _bn_relu_kernel,
        grid=(N,),
        in_specs=[
            pl.BlockSpec((1, Cout, D * HW), lambda n: (n, 0, 0)),
            pl.BlockSpec((Cout, 1), lambda n: (0, 0)),
            pl.BlockSpec((Cout, 1), lambda n: (0, 0)),
        ],
        out_specs=pl.BlockSpec((1, Cout, D * HW), lambda n: (n, 0, 0)),
        out_shape=jax.ShapeDtypeStruct((N, Cout, D * HW), jnp.float32),
        compiler_params=pltpu.CompilerParams(dimension_semantics=("parallel",)),
        cost_estimate=cost2,
    )(conv2, scale2, shift2)

    # Columns are (d, h, w)-major -> plain reshape gives NCDHW (no transpose).
    return y.reshape(N, Cout, D, H, W)


def init_params(key, in_channels, out_channels):
    """Deterministic synthetic params matching the nn.Module's shapes."""
    k0, k1, k2, k3 = jax.random.split(key, 4)
    fan1 = in_channels * 27
    fan2 = out_channels * 27
    s1 = 1.0 / jnp.sqrt(jnp.float32(fan1))
    s2 = 1.0 / jnp.sqrt(jnp.float32(fan2))
    return {
        # conv weights stored as (kD, kH, kW, Cin, Cout)
        "w1": jax.random.uniform(k0, (3, 3, 3, in_channels, out_channels),
                                 jnp.float32, -s1, s1),
        "w2": jax.random.uniform(k2, (3, 3, 3, out_channels, out_channels),
                                 jnp.float32, -s2, s2),
        # Conv biases: kept for parity with nn.Conv3d; they cancel exactly under
        # training-mode BatchNorm (mean subtraction) and are not used.
        "b1": jax.random.uniform(k1, (out_channels,), jnp.float32, -s1, s1),
        "b2": jax.random.uniform(k3, (out_channels,), jnp.float32, -s2, s2),
        # BatchNorm default init: weight=1, bias=0
        "g1": jnp.ones((out_channels,), jnp.float32),
        "be1": jnp.zeros((out_channels,), jnp.float32),
        "g2": jnp.ones((out_channels,), jnp.float32),
        "be2": jnp.zeros((out_channels,), jnp.float32),
    }


def _reference_forward(x, params):
    """Pure-XLA reference (rounding points mirror the kernel: bf16 matmul
    operands and a bf16 conv intermediate; BN stats from the f32 conv)."""
    def layer(x, w, gamma, beta):
        xb = x.astype(jnp.bfloat16).astype(jnp.float32)
        wb = w.astype(jnp.bfloat16).astype(jnp.float32)
        y = lax.conv_general_dilated(
            xb, wb, window_strides=(1, 1, 1),
            padding=((1, 1), (1, 1), (1, 1)),
            dimension_numbers=("NCDHW", "DHWIO", "NCDHW"),
            preferred_element_type=jnp.float32)
        mean = jnp.mean(y, axis=(0, 2, 3, 4), keepdims=True)
        var = jnp.mean((y - mean) ** 2, axis=(0, 2, 3, 4), keepdims=True)
        yq = y.astype(jnp.bfloat16).astype(jnp.float32)   # bf16 conv intermediate
        out = (yq - mean) * lax.rsqrt(var + BN_EPS)
        out = out * gamma.reshape(1, -1, 1, 1, 1) + beta.reshape(1, -1, 1, 1, 1)
        return jnp.maximum(out, 0.0)
    h = layer(x, params["w1"], params["g1"], params["be1"])
    h = layer(h, params["w2"], params["g2"], params["be2"])
    return h


if __name__ == "__main__":
    key = jax.random.PRNGKey(0)
    kx, kp = jax.random.split(key)

    N, Cin, Cout, D, H, W = 2, 4, 16, 8, 16, 16
    x = jax.random.normal(kx, (N, Cin, D, H, W), jnp.float32)   # NCDHW, like PyTorch
    params = init_params(kp, Cin, Cout)

    fwd = jax.jit(encoder_block_forward)
    out = jax.block_until_ready(fwd(x, params))

    assert out.shape == (N, Cout, D, H, W), out.shape
    assert bool(jnp.all(jnp.isfinite(out)))
    assert bool(jnp.all(out >= 0.0))  # ReLU output

    ref = jax.block_until_ready(_reference_forward(x, params))
    max_diff = float(jnp.max(jnp.abs(out - ref)))
    assert max_diff < 2e-2, f"mismatch vs XLA reference: {max_diff}"

    print("KERNEL_OK")
</pallas_src>

<mosaic_0001>
module attributes {stable_mosaic.version = 11 : i64} {
  func.func @_conv_stats_kernel(%arg0: i32, %arg1: memref<1x36x2560xbf16, #tpu.memory_space<vmem>>, %arg2: memref<3x16x36xbf16, #tpu.memory_space<vmem>>, %arg3: memref<1x16x2048xbf16, #tpu.memory_space<vmem>>, %arg4: memref<1x32x128xf32, #tpu.memory_space<vmem>>) attributes {dimension_semantics = [#tpu.dimension_semantics<parallel>], iteration_bounds = array<i64: 2>, scalar_prefetch = 0 : i64, scratch_operands = 0 : i64, tpu.core_type = #tpu.core_type<tc>, window_params = [{transform_indices = @transform_0, window_bounds = array<i64: 1, 36, 2560>}, {pipeline_mode = #tpu.pipeline_mode<synchronous>, transform_indices = @transform_1, window_bounds = array<i64: 3, 16, 36>}, {transform_indices = @transform_2, window_bounds = array<i64: 1, 16, 2048>}, {transform_indices = @transform_3, window_bounds = array<i64: 1, 32, 128>}]} {
    %c0 = arith.constant 0 : index
    %c0_0 = arith.constant 0 : index
    %c0_1 = arith.constant 0 : index
    %0 = vector.load %arg2[%c0, %c0_0, %c0_1] : memref<3x16x36xbf16, #tpu.memory_space<vmem>>, vector<1x16x36xbf16>
    %1 = vector.shape_cast %0 : vector<1x16x36xbf16> to vector<16x36xbf16>
    %c1 = arith.constant 1 : index
    %c0_2 = arith.constant 0 : index
    %c0_3 = arith.constant 0 : index
    %2 = vector.load %arg2[%c1, %c0_2, %c0_3] : memref<3x16x36xbf16, #tpu.memory_space<vmem>>, vector<1x16x36xbf16>
    %3 = vector.shape_cast %2 : vector<1x16x36xbf16> to vector<16x36xbf16>
    %c2 = arith.constant 2 : index
    %c0_4 = arith.constant 0 : index
    %c0_5 = arith.constant 0 : index
    %4 = vector.load %arg2[%c2, %c0_4, %c0_5] : memref<3x16x36xbf16, #tpu.memory_space<vmem>>, vector<1x16x36xbf16>
    %5 = vector.shape_cast %4 : vector<1x16x36xbf16> to vector<16x36xbf16>
    %cst = arith.constant 0.000000e+00 : f32
    %6 = vector.broadcast %cst : f32 to vector<16x1xf32>
    %cst_6 = arith.constant 0.000000e+00 : f32
    %7 = vector.broadcast %cst_6 : f32 to vector<16x1xf32>
    %c0_7 = arith.constant 0 : index
    %c0_8 = arith.constant 0 : index
    %c0_9 = arith.constant 0 : index
    %8 = vector.load %arg1[%c0_7, %c0_8, %c0_9] : memref<1x36x2560xbf16, #tpu.memory_space<vmem>>, vector<1x36x256xbf16>
    %9 = vector.shape_cast %8 : vector<1x36x256xbf16> to vector<36x256xbf16>
    %cst_10 = arith.constant dense<0.000000e+00> : vector<16x256xf32>
    %10 = tpu.matmul %1, %9, %cst_10 {dimension_numbers = #tpu.dot_dimension_numbers<[1], [0], [0], [1], [0, 0, 1, 1], [], []>} : vector<16x36xbf16>, vector<36x256xbf16>, vector<16x256xf32> -> vector<16x256xf32>
    %c0_11 = arith.constant 0 : index
    %c0_12 = arith.constant 0 : index
    %c256 = arith.constant 256 : index
    %11 = vector.load %arg1[%c0_11, %c0_12, %c256] : memref<1x36x2560xbf16, #tpu.memory_space<vmem>>, vector<1x36x256xbf16>
    %12 = vector.shape_cast %11 : vector<1x36x256xbf16> to vector<36x256xbf16>
    %cst_13 = arith.constant dense<0.000000e+00> : vector<16x256xf32>
    %13 = tpu.matmul %3, %12, %cst_13 {dimension_numbers = #tpu.dot_dimension_numbers<[1], [0], [0], [1], [0, 0, 1, 1], [], []>} : vector<16x36xbf16>, vector<36x256xbf16>, vector<16x256xf32> -> vector<16x256xf32>
    %14 = arith.addf %10, %13 : vector<16x256xf32>
    %c0_14 = arith.constant 0 : index
    %c0_15 = arith.constant 0 : index
    %c512 = arith.constant 512 : index
    %15 = vector.load %arg1[%c0_14, %c0_15, %c512] : memref<1x36x2560xbf16, #tpu.memory_space<vmem>>, vector<1x36x256xbf16>
    %16 = vector.shape_cast %15 : vector<1x36x256xbf16> to vector<36x256xbf16>
    %cst_16 = arith.constant dense<0.000000e+00> : vector<16x256xf32>
    %17 = tpu.matmul %5, %16, %cst_16 {dimension_numbers = #tpu.dot_dimension_numbers<[1], [0], [0], [1], [0, 0, 1, 1], [], []>} : vector<16x36xbf16>, vector<36x256xbf16>, vector<16x256xf32> -> vector<16x256xf32>
    %18 = arith.addf %14, %17 : vector<16x256xf32>
    %19 = arith.truncf %18 : vector<16x256xf32> to vector<16x256xbf16>
    %c0_17 = arith.constant 0 : index
    %c0_18 = arith.constant 0 : index
    %c0_19 = arith.constant 0 : index
    %20 = vector.load %arg3[%c0_17, %c0_18, %c0_19] : memref<1x16x2048xbf16, #tpu.memory_space<vmem>>, vector<1x16x256xbf16>
    %21 = vector.shape_cast %20 : vector<1x16x256xbf16> to vector<16x256xbf16>
    %22 = vector.shape_cast %19 : vector<16x256xbf16> to vector<1x16x256xbf16>
    tpu.vector_store %arg3[%c0_17, %c0_18, %c0_19], %22 {strides = array<i32>} : memref<1x16x2048xbf16, #tpu.memory_space<vmem>>, vector<1x16x256xbf16>,
    %cst_20 = arith.constant dense<0.000000e+00> : vector<16xf32>
    %23 = vector.multi_reduction <add>, %18, %cst_20 [1] : vector<16x256xf32> to vector<16xf32>
    %24 = vector.shape_cast %23 : vector<16xf32> to vector<16x1xf32>
    %25 = arith.addf %6, %24 : vector<16x1xf32>
    %26 = arith.mulf %18, %18 : vector<16x256xf32>
    %cst_21 = arith.constant dense<0.000000e+00> : vector<16xf32>
    %27 = vector.multi_reduction <add>, %26, %cst_21 [1] : vector<16x256xf32> to vector<16xf32>
    %28 = vector.shape_cast %27 : vector<16xf32> to vector<16x1xf32>
    %29 = arith.addf %7, %28 : vector<16x1xf32>
    %c0_22 = arith.constant 0 : index
    %c0_23 = arith.constant 0 : index
    %c256_24 = arith.constant 256 : index
    %30 = vector.load %arg1[%c0_22, %c0_23, %c256_24] : memref<1x36x2560xbf16, #tpu.memory_space<vmem>>, vector<1x36x256xbf16>
    %31 = vector.shape_cast %30 : vector<1x36x256xbf16> to vector<36x256xbf16>
    %cst_25 = arith.constant dense<0.000000e+00> : vector<16x256xf32>
    %32 = tpu.matmul %1, %31, %cst_25 {dimension_numbers = #tpu.dot_dimension_numbers<[1], [0], [0], [1], [0, 0, 1, 1], [], []>} : vector<16x36xbf16>, vector<36x256xbf16>, vector<16x256xf32> -> vector<16x256xf32>
    %c0_26 = arith.constant 0 : index
    %c0_27 = arith.constant 0 : index
    %c512_28 = arith.constant 512 : index
    %33 = vector.load %arg1[%c0_26, %c0_27, %c512_28] : memref<1x36x2560xbf16, #tpu.memory_space<vmem>>, vector<1x36x256xbf16>
    %34 = vector.shape_cast %33 : vector<1x36x256xbf16> to vector<36x256xbf16>
    %cst_29 = arith.constant dense<0.000000e+00> : vector<16x256xf32>
    %35 = tpu.matmul %3, %34, %cst_29 {dimension_numbers = #tpu.dot_dimension_numbers<[1], [0], [0], [1], [0, 0, 1, 1], [], []>} : vector<16x36xbf16>, vector<36x256xbf16>, vector<16x256xf32> -> vector<16x256xf32>
    %36 = arith.addf %32, %35 : vector<16x256xf32>
    %c0_30 = arith.constant 0 : index
    %c0_31 = arith.constant 0 : index
    %c768 = arith.constant 768 : index
    %37 = vector.load %arg1[%c0_30, %c0_31, %c768] : memref<1x36x2560xbf16, #tpu.memory_space<vmem>>, vector<1x36x256xbf16>
    %38 = vector.shape_cast %37 : vector<1x36x256xbf16> to vector<36x256xbf16>
    %cst_32 = arith.constant dense<0.000000e+00> : vector<16x256xf32>
    %39 = tpu.matmul %5, %38, %cst_32 {dimension_numbers = #tpu.dot_dimension_numbers<[1], [0], [0], [1], [0, 0, 1, 1], [], []>} : vector<16x36xbf16>, vector<36x256xbf16>, vector<16x256xf32> -> vector<16x256xf32>
    %40 = arith.addf %36, %39 : vector<16x256xf32>
    %41 = arith.truncf %40 : vector<16x256xf32> to vector<16x256xbf16>
    %c0_33 = arith.constant 0 : index
    %c0_34 = arith.constant 0 : index
    %c256_35 = arith.constant 256 : index
    %42 = vector.load %arg3[%c0_33, %c0_34, %c256_35] : memref<1x16x2048xbf16, #tpu.memory_space<vmem>>, vector<1x16x256xbf16>
    %43 = vector.shape_cast %42 : vector<1x16x256xbf16> to vector<16x256xbf16>
    %44 = vector.shape_cast %41 : vector<16x256xbf16> to vector<1x16x256xbf16>
    tpu.vector_store %arg3[%c0_33, %c0_34, %c256_35], %44 {strides = array<i32>} : memref<1x16x2048xbf16, #tpu.memory_space<vmem>>, vector<1x16x256xbf16>,
    %cst_36 = arith.constant dense<0.000000e+00> : vector<16xf32>
    %45 = vector.multi_reduction <add>, %40, %cst_36 [1] : vector<16x256xf32> to vector<16xf32>
    %46 = vector.shape_cast %45 : vector<16xf32> to vector<16x1xf32>
    %47 = arith.addf %25, %46 : vector<16x1xf32>
    %48 = arith.mulf %40, %40 : vector<16x256xf32>
    %cst_37 = arith.constant dense<0.000000e+00> : vector<16xf32>
    %49 = vector.multi_reduction <add>, %48, %cst_37 [1] : vector<16x256xf32> to vector<16xf32>
    %50 = vector.shape_cast %49 : vector<16xf32> to vector<16x1xf32>
    %51 = arith.addf %29, %50 : vector<16x1xf32>
    %c0_38 = arith.constant 0 : index
    %c0_39 = arith.constant 0 : index
    %c512_40 = arith.constant 512 : index
    %52 = vector.load %arg1[%c0_38, %c0_39, %c512_40] : memref<1x36x2560xbf16, #tpu.memory_space<vmem>>, vector<1x36x256xbf16>
    %53 = vector.shape_cast %52 : vector<1x36x256xbf16> to vector<36x256xbf16>
    %cst_41 = arith.constant dense<0.000000e+00> : vector<16x256xf32>
    %54 = tpu.matmul %1, %53, %cst_41 {dimension_numbers = #tpu.dot_dimension_numbers<[1], [0], [0], [1], [0, 0, 1, 1], [], []>} : vector<16x36xbf16>, vector<36x256xbf16>, vector<16x256xf32> -> vector<16x256xf32>
    %c0_42 = arith.constant 0 : index
    %c0_43 = arith.constant 0 : index
    %c768_44 = arith.constant 768 : index
    %55 = vector.load %arg1[%c0_42, %c0_43, %c768_44] : memref<1x36x2560xbf16, #tpu.memory_space<vmem>>, vector<1x36x256xbf16>
    %56 = vector.shape_cast %55 : vector<1x36x256xbf16> to vector<36x256xbf16>
    %cst_45 = arith.constant dense<0.000000e+00> : vector<16x256xf32>
    %57 = tpu.matmul %3, %56, %cst_45 {dimension_numbers = #tpu.dot_dimension_numbers<[1], [0], [0], [1], [0, 0, 1, 1], [], []>} : vector<16x36xbf16>, vector<36x256xbf16>, vector<16x256xf32> -> vector<16x256xf32>
    %58 = arith.addf %54, %57 : vector<16x256xf32>
    %c0_46 = arith.constant 0 : index
    %c0_47 = arith.constant 0 : index
    %c1024 = arith.constant 1024 : index
    %59 = vector.load %arg1[%c0_46, %c0_47, %c1024] : memref<1x36x2560xbf16, #tpu.memory_space<vmem>>, vector<1x36x256xbf16>
    %60 = vector.shape_cast %59 : vector<1x36x256xbf16> to vector<36x256xbf16>
    %cst_48 = arith.constant dense<0.000000e+00> : vector<16x256xf32>
    %61 = tpu.matmul %5, %60, %cst_48 {dimension_numbers = #tpu.dot_dimension_numbers<[1], [0], [0], [1], [0, 0, 1, 1], [], []>} : vector<16x36xbf16>, vector<36x256xbf16>, vector<16x256xf32> -> vector<16x256xf32>
    %62 = arith.addf %58, %61 : vector<16x256xf32>
    %63 = arith.truncf %62 : vector<16x256xf32> to vector<16x256xbf16>
    %c0_49 = arith.constant 0 : index
    %c0_50 = arith.constant 0 : index
    %c512_51 = arith.constant 512 : index
    %64 = vector.load %arg3[%c0_49, %c0_50, %c512_51] : memref<1x16x2048xbf16, #tpu.memory_space<vmem>>, vector<1x16x256xbf16>
    %65 = vector.shape_cast %64 : vector<1x16x256xbf16> to vector<16x256xbf16>
    %66 = vector.shape_cast %63 : vector<16x256xbf16> to vector<1x16x256xbf16>
    tpu.vector_store %arg3[%c0_49, %c0_50, %c512_51], %66 {strides = array<i32>} : memref<1x16x2048xbf16, #tpu.memory_space<vmem>>, vector<1x16x256xbf16>,
    %cst_52 = arith.constant dense<0.000000e+00> : vector<16xf32>
    %67 = vector.multi_reduction <add>, %62, %cst_52 [1] : vector<16x256xf32> to vector<16xf32>
    %68 = vector.shape_cast %67 : vector<16xf32> to vector<16x1xf32>
    %69 = arith.addf %47, %68 : vector<16x1xf32>
    %70 = arith.mulf %62, %62 : vector<16x256xf32>
    %cst_53 = arith.constant dense<0.000000e+00> : vector<16xf32>
    %71 = vector.multi_reduction <add>, %70, %cst_53 [1] : vector<16x256xf32> to vector<16xf32>
    %72 = vector.shape_cast %71 : vector<16xf32> to vector<16x1xf32>
    %73 = arith.addf %51, %72 : vector<16x1xf32>
    %c0_54 = arith.constant 0 : index
    %c0_55 = arith.constant 0 : index
    %c768_56 = arith.constant 768 : index
    %74 = vector.load %arg1[%c0_54, %c0_55, %c768_56] : memref<1x36x2560xbf16, #tpu.memory_space<vmem>>, vector<1x36x256xbf16>
    %75 = vector.shape_cast %74 : vector<1x36x256xbf16> to vector<36x256xbf16>
    %cst_57 = arith.constant dense<0.000000e+00> : vector<16x256xf32>
    %76 = tpu.matmul %1, %75, %cst_57 {dimension_numbers = #tpu.dot_dimension_numbers<[1], [0], [0], [1], [0, 0, 1, 1], [], []>} : vector<16x36xbf16>, vector<36x256xbf16>, vector<16x256xf32> -> vector<16x256xf32>
    %c0_58 = arith.constant 0 : index
    %c0_59 = arith.constant 0 : index
    %c1024_60 = arith.constant 1024 : index
    %77 = vector.load %arg1[%c0_58, %c0_59, %c1024_60] : memref<1x36x2560xbf16, #tpu.memory_space<vmem>>, vector<1x36x256xbf16>
    %78 = vector.shape_cast %77 : vector<1x36x256xbf16> to vector<36x256xbf16>
    %cst_61 = arith.constant dense<0.000000e+00> : vector<16x256xf32>
    %79 = tpu.matmul %3, %78, %cst_61 {dimension_numbers = #tpu.dot_dimension_numbers<[1], [0], [0], [1], [0, 0, 1, 1], [], []>} : vector<16x36xbf16>, vector<36x256xbf16>, vector<16x256xf32> -> vector<16x256xf32>
    %80 = arith.addf %76, %79 : vector<16x256xf32>
    %c0_62 = arith.constant 0 : index
    %c0_63 = arith.constant 0 : index
    %c1280 = arith.constant 1280 : index
    %81 = vector.load %arg1[%c0_62, %c0_63, %c1280] : memref<1x36x2560xbf16, #tpu.memory_space<vmem>>, vector<1x36x256xbf16>
    %82 = vector.shape_cast %81 : vector<1x36x256xbf16> to vector<36x256xbf16>
    %cst_64 = arith.constant dense<0.000000e+00> : vector<16x256xf32>
    %83 = tpu.matmul %5, %82, %cst_64 {dimension_numbers = #tpu.dot_dimension_numbers<[1], [0], [0], [1], [0, 0, 1, 1], [], []>} : vector<16x36xbf16>, vector<36x256xbf16>, vector<16x256xf32> -> vector<16x256xf32>
    %84 = arith.addf %80, %83 : vector<16x256xf32>
    %85 = arith.truncf %84 : vector<16x256xf32> to vector<16x256xbf16>
    %c0_65 = arith.constant 0 : index
    %c0_66 = arith.constant 0 : index
    %c768_67 = arith.constant 768 : index
    %86 = vector.load %arg3[%c0_65, %c0_66, %c768_67] : memref<1x16x2048xbf16, #tpu.memory_space<vmem>>, vector<1x16x256xbf16>
    %87 = vector.shape_cast %86 : vector<1x16x256xbf16> to vector<16x256xbf16>
    %88 = vector.shape_cast %85 : vector<16x256xbf16> to vector<1x16x256xbf16>
    tpu.vector_store %arg3[%c0_65, %c0_66, %c768_67], %88 {strides = array<i32>} : memref<1x16x2048xbf16, #tpu.memory_space<vmem>>, vector<1x16x256xbf16>,
    %cst_68 = arith.constant dense<0.000000e+00> : vector<16xf32>
    %89 = vector.multi_reduction <add>, %84, %cst_68 [1] : vector<16x256xf32> to vector<16xf32>
    %90 = vector.shape_cast %89 : vector<16xf32> to vector<16x1xf32>
    %91 = arith.addf %69, %90 : vector<16x1xf32>
    %92 = arith.mulf %84, %84 : vector<16x256xf32>
    %cst_69 = arith.constant dense<0.000000e+00> : vector<16xf32>
    %93 = vector.multi_reduction <add>, %92, %cst_69 [1] : vector<16x256xf32> to vector<16xf32>
    %94 = vector.shape_cast %93 : vector<16xf32> to vector<16x1xf32>
    %95 = arith.addf %73, %94 : vector<16x1xf32>
    %c0_70 = arith.constant 0 : index
    %c0_71 = arith.constant 0 : index
    %c1024_72 = arith.constant 1024 : index
    %96 = vector.load %arg1[%c0_70, %c0_71, %c1024_72] : memref<1x36x2560xbf16, #tpu.memory_space<vmem>>, vector<1x36x256xbf16>
    %97 = vector.shape_cast %96 : vector<1x36x256xbf16> to vector<36x256xbf16>
    %cst_73 = arith.constant dense<0.000000e+00> : vector<16x256xf32>
    %98 = tpu.matmul %1, %97, %cst_73 {dimension_numbers = #tpu.dot_dimension_numbers<[1], [0], [0], [1], [0, 0, 1, 1], [], []>} : vector<16x36xbf16>, vector<36x256xbf16>, vector<16x256xf32> -> vector<16x256xf32>
    %c0_74 = arith.constant 0 : index
    %c0_75 = arith.constant 0 : index
    %c1280_76 = arith.constant 1280 : index
    %99 = vector.load %arg1[%c0_74, %c0_75, %c1280_76] : memref<1x36x2560xbf16, #tpu.memory_space<vmem>>, vector<1x36x256xbf16>
    %100 = vector.shape_cast %99 : vector<1x36x256xbf16> to vector<36x256xbf16>
    %cst_77 = arith.constant dense<0.000000e+00> : vector<16x256xf32>
    %101 = tpu.matmul %3, %100, %cst_77 {dimension_numbers = #tpu.dot_dimension_numbers<[1], [0], [0], [1], [0, 0, 1, 1], [], []>} : vector<16x36xbf16>, vector<36x256xbf16>, vector<16x256xf32> -> vector<16x256xf32>
    %102 = arith.addf %98, %101 : vector<16x256xf32>
    %c0_78 = arith.constant 0 : index
    %c0_79 = arith.constant 0 : index
    %c1536 = arith.constant 1536 : index
    %103 = vector.load %arg1[%c0_78, %c0_79, %c1536] : memref<1x36x2560xbf16, #tpu.memory_space<vmem>>, vector<1x36x256xbf16>
    %104 = vector.shape_cast %103 : vector<1x36x256xbf16> to vector<36x256xbf16>
    %cst_80 = arith.constant dense<0.000000e+00> : vector<16x256xf32>
    %105 = tpu.matmul %5, %104, %cst_80 {dimension_numbers = #tpu.dot_dimension_numbers<[1], [0], [0], [1], [0, 0, 1, 1], [], []>} : vector<16x36xbf16>, vector<36x256xbf16>, vector<16x256xf32> -> vector<16x256xf32>
    %106 = arith.addf %102, %105 : vector<16x256xf32>
    %107 = arith.truncf %106 : vector<16x256xf32> to vector<16x256xbf16>
    %c0_81 = arith.constant 0 : index
    %c0_82 = arith.constant 0 : index
    %c1024_83 = arith.constant 1024 : index
    %108 = vector.load %arg3[%c0_81, %c0_82, %c1024_83] : memref<1x16x2048xbf16, #tpu.memory_space<vmem>>, vector<1x16x256xbf16>
    %109 = vector.shape_cast %108 : vector<1x16x256xbf16> to vector<16x256xbf16>
    %110 = vector.shape_cast %107 : vector<16x256xbf16> to vector<1x16x256xbf16>
    tpu.vector_store %arg3[%c0_81, %c0_82, %c1024_83], %110 {strides = array<i32>} : memref<1x16x2048xbf16, #tpu.memory_space<vmem>>, vector<1x16x256xbf16>,
    %cst_84 = arith.constant dense<0.000000e+00> : vector<16xf32>
    %111 = vector.multi_reduction <add>, %106, %cst_84 [1] : vector<16x256xf32> to vector<16xf32>
    %112 = vector.shape_cast %111 : vector<16xf32> to vector<16x1xf32>
    %113 = arith.addf %91, %112 : vector<16x1xf32>
    %114 = arith.mulf %106, %106 : vector<16x256xf32>
    %cst_85 = arith.constant dense<0.000000e+00> : vector<16xf32>
    %115 = vector.multi_reduction <add>, %114, %cst_85 [1] : vector<16x256xf32> to vector<16xf32>
    %116 = vector.shape_cast %115 : vector<16xf32> to vector<16x1xf32>
    %117 = arith.addf %95, %116 : vector<16x1xf32>
    %c0_86 = arith.constant 0 : index
    %c0_87 = arith.constant 0 : index
    %c1280_88 = arith.constant 1280 : index
    %118 = vector.load %arg1[%c0_86, %c0_87, %c1280_88] : memref<1x36x2560xbf16, #tpu.memory_space<vmem>>, vector<1x36x256xbf16>
    %119 = vector.shape_cast %118 : vector<1x36x256xbf16> to vector<36x256xbf16>
    %cst_89 = arith.constant dense<0.000000e+00> : vector<16x256xf32>
    %120 = tpu.matmul %1, %119, %cst_89 {dimension_numbers = #tpu.dot_dimension_numbers<[1], [0], [0], [1], [0, 0, 1, 1], [], []>} : vector<16x36xbf16>, vector<36x256xbf16>, vector<16x256xf32> -> vector<16x256xf32>
    %c0_90 = arith.constant 0 : index
    %c0_91 = arith.constant 0 : index
    %c1536_92 = arith.constant 1536 : index
    %121 = vector.load %arg1[%c0_90, %c0_91, %c1536_92] : memref<1x36x2560xbf16, #tpu.memory_space<vmem>>, vector<1x36x256xbf16>
    %122 = vector.shape_cast %121 : vector<1x36x256xbf16> to vector<36x256xbf16>
    %cst_93 = arith.constant dense<0.000000e+00> : vector<16x256xf32>
    %123 = tpu.matmul %3, %122, %cst_93 {dimension_numbers = #tpu.dot_dimension_numbers<[1], [0], [0], [1], [0, 0, 1, 1], [], []>} : vector<16x36xbf16>, vector<36x256xbf16>, vector<16x256xf32> -> vector<16x256xf32>
    %124 = arith.addf %120, %123 : vector<16x256xf32>
    %c0_94 = arith.constant 0 : index
    %c0_95 = arith.constant 0 : index
    %c1792 = arith.constant 1792 : index
    %125 = vector.load %arg1[%c0_94, %c0_95, %c1792] : memref<1x36x2560xbf16, #tpu.memory_space<vmem>>, vector<1x36x256xbf16>
    %126 = vector.shape_cast %125 : vector<1x36x256xbf16> to vector<36x256xbf16>
    %cst_96 = arith.constant dense<0.000000e+00> : vector<16x256xf32>
    %127 = tpu.matmul %5, %126, %cst_96 {dimension_numbers = #tpu.dot_dimension_numbers<[1], [0], [0], [1], [0, 0, 1, 1], [], []>} : vector<16x36xbf16>, vector<36x256xbf16>, vector<16x256xf32> -> vector<16x256xf32>
    %128 = arith.addf %124, %127 : vector<16x256xf32>
    %129 = arith.truncf %128 : vector<16x256xf32> to vector<16x256xbf16>
    %c0_97 = arith.constant 0 : index
    %c0_98 = arith.constant 0 : index
    %c1280_99 = arith.constant 1280 : index
    %130 = vector.load %arg3[%c0_97, %c0_98, %c1280_99] : memref<1x16x2048xbf16, #tpu.memory_space<vmem>>, vector<1x16x256xbf16>
    %131 = vector.shape_cast %130 : vector<1x16x256xbf16> to vector<16x256xbf16>
    %132 = vector.shape_cast %129 : vector<16x256xbf16> to vector<1x16x256xbf16>
    tpu.vector_store %arg3[%c0_97, %c0_98, %c1280_99], %132 {strides = array<i32>} : memref<1x16x2048xbf16, #tpu.memory_space<vmem>>, vector<1x16x256xbf16>,
    %cst_100 = arith.constant dense<0.000000e+00> : vector<16xf32>
    %133 = vector.multi_reduction <add>, %128, %cst_100 [1] : vector<16x256xf32> to vector<16xf32>
    %134 = vector.shape_cast %133 : vector<16xf32> to vector<16x1xf32>
    %135 = arith.addf %113, %134 : vector<16x1xf32>
    %136 = arith.mulf %128, %128 : vector<16x256xf32>
    %cst_101 = arith.constant dense<0.000000e+00> : vector<16xf32>
    %137 = vector.multi_reduction <add>, %136, %cst_101 [1] : vector<16x256xf32> to vector<16xf32>
    %138 = vector.shape_cast %137 : vector<16xf32> to vector<16x1xf32>
    %139 = arith.addf %117, %138 : vector<16x1xf32>
    %c0_102 = arith.constant 0 : index
    %c0_103 = arith.constant 0 : index
    %c1536_104 = arith.constant 1536 : index
    %140 = vector.load %arg1[%c0_102, %c0_103, %c1536_104] : memref<1x36x2560xbf16, #tpu.memory_space<vmem>>, vector<1x36x256xbf16>
    %141 = vector.shape_cast %140 : vector<1x36x256xbf16> to vector<36x256xbf16>
    %cst_105 = arith.constant dense<0.000000e+00> : vector<16x256xf32>
    %142 = tpu.matmul %1, %141, %cst_105 {dimension_numbers = #tpu.dot_dimension_numbers<[1], [0], [0], [1], [0, 0, 1, 1], [], []>} : vector<16x36xbf16>, vector<36x256xbf16>, vector<16x256xf32> -> vector<16x256xf32>
    %c0_106 = arith.constant 0 : index
    %c0_107 = arith.constant 0 : index
    %c1792_108 = arith.constant 1792 : index
    %143 = vector.load %arg1[%c0_106, %c0_107, %c1792_108] : memref<1x36x2560xbf16, #tpu.memory_space<vmem>>, vector<1x36x256xbf16>
    %144 = vector.shape_cast %143 : vector<1x36x256xbf16> to vector<36x256xbf16>
    %cst_109 = arith.constant dense<0.000000e+00> : vector<16x256xf32>
    %145 = tpu.matmul %3, %144, %cst_109 {dimension_numbers = #tpu.dot_dimension_numbers<[1], [0], [0], [1], [0, 0, 1, 1], [], []>} : vector<16x36xbf16>, vector<36x256xbf16>, vector<16x256xf32> -> vector<16x256xf32>
    %146 = arith.addf %142, %145 : vector<16x256xf32>
    %c0_110 = arith.constant 0 : index
    %c0_111 = arith.constant 0 : index
    %c2048 = arith.constant 2048 : index
    %147 = vector.load %arg1[%c0_110, %c0_111, %c2048] : memref<1x36x2560xbf16, #tpu.memory_space<vmem>>, vector<1x36x256xbf16>
    %148 = vector.shape_cast %147 : vector<1x36x256xbf16> to vector<36x256xbf16>
    %cst_112 = arith.constant dense<0.000000e+00> : vector<16x256xf32>
    %149 = tpu.matmul %5, %148, %cst_112 {dimension_numbers = #tpu.dot_dimension_numbers<[1], [0], [0], [1], [0, 0, 1, 1], [], []>} : vector<16x36xbf16>, vector<36x256xbf16>, vector<16x256xf32> -> vector<16x256xf32>
    %150 = arith.addf %146, %149 : vector<16x256xf32>
    %151 = arith.truncf %150 : vector<16x256xf32> to vector<16x256xbf16>
    %c0_113 = arith.constant 0 : index
    %c0_114 = arith.constant 0 : index
    %c1536_115 = arith.constant 1536 : index
    %152 = vector.load %arg3[%c0_113, %c0_114, %c1536_115] : memref<1x16x2048xbf16, #tpu.memory_space<vmem>>, vector<1x16x256xbf16>
    %153 = vector.shape_cast %152 : vector<1x16x256xbf16> to vector<16x256xbf16>
    %154 = vector.shape_cast %151 : vector<16x256xbf16> to vector<1x16x256xbf16>
    tpu.vector_store %arg3[%c0_113, %c0_114, %c1536_115], %154 {strides = array<i32>} : memref<1x16x2048xbf16, #tpu.memory_space<vmem>>, vector<1x16x256xbf16>,
    %cst_116 = arith.constant dense<0.000000e+00> : vector<16xf32>
    %155 = vector.multi_reduction <add>, %150, %cst_116 [1] : vector<16x256xf32> to vector<16xf32>
    %156 = vector.shape_cast %155 : vector<16xf32> to vector<16x1xf32>
    %157 = arith.addf %135, %156 : vector<16x1xf32>
    %158 = arith.mulf %150, %150 : vector<16x256xf32>
    %cst_117 = arith.constant dense<0.000000e+00> : vector<16xf32>
    %159 = vector.multi_reduction <add>, %158, %cst_117 [1] : vector<16x256xf32> to vector<16xf32>
    %160 = vector.shape_cast %159 : vector<16xf32> to vector<16x1xf32>
    %161 = arith.addf %139, %160 : vector<16x1xf32>
    %c0_118 = arith.constant 0 : index
    %c0_119 = arith.constant 0 : index
    %c1792_120 = arith.constant 1792 : index
    %162 = vector.load %arg1[%c0_118, %c0_119, %c1792_120] : memref<1x36x2560xbf16, #tpu.memory_space<vmem>>, vector<1x36x256xbf16>
    %163 = vector.shape_cast %162 : vector<1x36x256xbf16> to vector<36x256xbf16>
    %cst_121 = arith.constant dense<0.000000e+00> : vector<16x256xf32>
    %164 = tpu.matmul %1, %163, %cst_121 {dimension_numbers = #tpu.dot_dimension_numbers<[1], [0], [0], [1], [0, 0, 1, 1], [], []>} : vector<16x36xbf16>, vector<36x256xbf16>, vector<16x256xf32> -> vector<16x256xf32>
    %c0_122 = arith.constant 0 : index
    %c0_123 = arith.constant 0 : index
    %c2048_124 = arith.constant 2048 : index
    %165 = vector.load %arg1[%c0_122, %c0_123, %c2048_124] : memref<1x36x2560xbf16, #tpu.memory_space<vmem>>, vector<1x36x256xbf16>
    %166 = vector.shape_cast %165 : vector<1x36x256xbf16> to vector<36x256xbf16>
    %cst_125 = arith.constant dense<0.000000e+00> : vector<16x256xf32>
    %167 = tpu.matmul %3, %166, %cst_125 {dimension_numbers = #tpu.dot_dimension_numbers<[1], [0], [0], [1], [0, 0, 1, 1], [], []>} : vector<16x36xbf16>, vector<36x256xbf16>, vector<16x256xf32> -> vector<16x256xf32>
    %168 = arith.addf %164, %167 : vector<16x256xf32>
    %c0_126 = arith.constant 0 : index
    %c0_127 = arith.constant 0 : index
    %c2304 = arith.constant 2304 : index
    %169 = vector.load %arg1[%c0_126, %c0_127, %c2304] : memref<1x36x2560xbf16, #tpu.memory_space<vmem>>, vector<1x36x256xbf16>
    %170 = vector.shape_cast %169 : vector<1x36x256xbf16> to vector<36x256xbf16>
    %cst_128 = arith.constant dense<0.000000e+00> : vector<16x256xf32>
    %171 = tpu.matmul %5, %170, %cst_128 {dimension_numbers = #tpu.dot_dimension_numbers<[1], [0], [0], [1], [0, 0, 1, 1], [], []>} : vector<16x36xbf16>, vector<36x256xbf16>, vector<16x256xf32> -> vector<16x256xf32>
    %172 = arith.addf %168, %171 : vector<16x256xf32>
    %173 = arith.truncf %172 : vector<16x256xf32> to vector<16x256xbf16>
    %c0_129 = arith.constant 0 : index
    %c0_130 = arith.constant 0 : index
    %c1792_131 = arith.constant 1792 : index
    %174 = vector.load %arg3[%c0_129, %c0_130, %c1792_131] : memref<1x16x2048xbf16, #tpu.memory_space<vmem>>, vector<1x16x256xbf16>
    %175 = vector.shape_cast %174 : vector<1x16x256xbf16> to vector<16x256xbf16>
    %176 = vector.shape_cast %173 : vector<16x256xbf16> to vector<1x16x256xbf16>
    tpu.vector_store %arg3[%c0_129, %c0_130, %c1792_131], %176 {strides = array<i32>} : memref<1x16x2048xbf16, #tpu.memory_space<vmem>>, vector<1x16x256xbf16>,
    %cst_132 = arith.constant dense<0.000000e+00> : vector<16xf32>
    %177 = vector.multi_reduction <add>, %172, %cst_132 [1] : vector<16x256xf32> to vector<16xf32>
    %178 = vector.shape_cast %177 : vector<16xf32> to vector<16x1xf32>
    %179 = arith.addf %157, %178 : vector<16x1xf32>
    %180 = arith.mulf %172, %172 : vector<16x256xf32>
    %cst_133 = arith.constant dense<0.000000e+00> : vector<16xf32>
    %181 = vector.multi_reduction <add>, %180, %cst_133 [1] : vector<16x256xf32> to vector<16xf32>
    %182 = vector.shape_cast %181 : vector<16xf32> to vector<16x1xf32>
    %183 = arith.addf %161, %182 : vector<16x1xf32>
    %184 = vector.shape_cast %179 : vector<16x1xf32> to vector<16x1xf32>
    %185 = vector.broadcast %184 : vector<16x1xf32> to vector<16x128xf32>
    %c0_134 = arith.constant 0 : index
    %c0_135 = arith.constant 0 : index
    %c0_136 = arith.constant 0 : index
    %186 = vector.load %arg4[%c0_134, %c0_135, %c0_136] : memref<1x32x128xf32, #tpu.memory_space<vmem>>, vector<1x16x128xf32>
    %187 = vector.shape_cast %186 : vector<1x16x128xf32> to vector<16x128xf32>
    %188 = vector.shape_cast %185 : vector<16x128xf32> to vector<1x16x128xf32>
    tpu.vector_store %arg4[%c0_134, %c0_135, %c0_136], %188 {strides = array<i32>} : memref<1x32x128xf32, #tpu.memory_space<vmem>>, vector<1x16x128xf32>,
    %189 = vector.shape_cast %183 : vector<16x1xf32> to vector<16x1xf32>
    %190 = vector.broadcast %189 : vector<16x1xf32> to vector<16x128xf32>
    %c0_137 = arith.constant 0 : index
    %c16 = arith.constant 16 : index
    %c0_138 = arith.constant 0 : index
    %191 = vector.load %arg4[%c0_137, %c16, %c0_138] : memref<1x32x128xf32, #tpu.memory_space<vmem>>, vector<1x16x128xf32>
    %192 = vector.shape_cast %191 : vector<1x16x128xf32> to vector<16x128xf32>
    %193 = vector.shape_cast %190 : vector<16x128xf32> to vector<1x16x128xf32>
    tpu.vector_store %arg4[%c0_137, %c16, %c0_138], %193 {strides = array<i32>} : memref<1x32x128xf32, #tpu.memory_space<vmem>>, vector<1x16x128xf32>,
    return
  }
  func.func @transform_0(%arg0: i32) -> (i32, i32, i32) {
    %c0_i32 = arith.constant 0 : i32
    %c0_i32_0 = arith.constant 0 : i32
    %c0_i32_1 = arith.constant 0 : i32
    return %arg0, %c0_i32, %c0_i32_0 : i32, i32, i32
  }
  func.func @transform_1(%arg0: i32) -> (i32, i32, i32) {
    %c0_i32 = arith.constant 0 : i32
    %c0_i32_0 = arith.constant 0 : i32
    %c0_i32_1 = arith.constant 0 : i32
    %c0_i32_2 = arith.constant 0 : i32
    return %c0_i32, %c0_i32_0, %c0_i32_1 : i32, i32, i32
  }
  func.func @transform_2(%arg0: i32) -> (i32, i32, i32) {
    %c0_i32 = arith.constant 0 : i32
    %c0_i32_0 = arith.constant 0 : i32
    %c0_i32_1 = arith.constant 0 : i32
    return %arg0, %c0_i32, %c0_i32_0 : i32, i32, i32
  }
  func.func @transform_3(%arg0: i32) -> (i32, i32, i32) {
    %c0_i32 = arith.constant 0 : i32
    %c0_i32_0 = arith.constant 0 : i32
    %c0_i32_1 = arith.constant 0 : i32
    return %arg0, %c0_i32, %c0_i32_0 : i32, i32, i32
  }
}

module attributes {stable_mosaic.version = 11 : i64} {
  func.func @_conv_stats_kernel(%arg0: i32, %arg1: memref<1x144x2560xbf16, #tpu.memory_space<vmem>>, %arg2: memref<3x16x144xbf16, #tpu.memory_space<vmem>>, %arg3: memref<1x16x2048xbf16, #tpu.memory_space<vmem>>, %arg4: memref<1x32x128xf32, #tpu.memory_space<vmem>>) attributes {dimension_semantics = [#tpu.dimension_semantics<parallel>], iteration_bounds = array<i64: 2>, scalar_prefetch = 0 : i64, scratch_operands = 0 : i64, tpu.core_type = #tpu.core_type<tc>, window_params = [{transform_indices = @transform_0, window_bounds = array<i64: 1, 144, 2560>}, {pipeline_mode = #tpu.pipeline_mode<synchronous>, transform_indices = @transform_1, window_bounds = array<i64: 3, 16, 144>}, {transform_indices = @transform_2, window_bounds = array<i64: 1, 16, 2048>}, {transform_indices = @transform_3, window_bounds = array<i64: 1, 32, 128>}]} {
    %c0 = arith.constant 0 : index
    %c0_0 = arith.constant 0 : index
    %c0_1 = arith.constant 0 : index
    %0 = vector.load %arg2[%c0, %c0_0, %c0_1] : memref<3x16x144xbf16, #tpu.memory_space<vmem>>, vector<1x16x144xbf16>
    %1 = vector.shape_cast %0 : vector<1x16x144xbf16> to vector<16x144xbf16>
    %c1 = arith.constant 1 : index
    %c0_2 = arith.constant 0 : index
    %c0_3 = arith.constant 0 : index
    %2 = vector.load %arg2[%c1, %c0_2, %c0_3] : memref<3x16x144xbf16, #tpu.memory_space<vmem>>, vector<1x16x144xbf16>
    %3 = vector.shape_cast %2 : vector<1x16x144xbf16> to vector<16x144xbf16>
    %c2 = arith.constant 2 : index
    %c0_4 = arith.constant 0 : index
    %c0_5 = arith.constant 0 : index
    %4 = vector.load %arg2[%c2, %c0_4, %c0_5] : memref<3x16x144xbf16, #tpu.memory_space<vmem>>, vector<1x16x144xbf16>
    %5 = vector.shape_cast %4 : vector<1x16x144xbf16> to vector<16x144xbf16>
    %cst = arith.constant 0.000000e+00 : f32
    %6 = vector.broadcast %cst : f32 to vector<16x1xf32>
    %cst_6 = arith.constant 0.000000e+00 : f32
    %7 = vector.broadcast %cst_6 : f32 to vector<16x1xf32>
    %c0_7 = arith.constant 0 : index
    %c0_8 = arith.constant 0 : index
    %c0_9 = arith.constant 0 : index
    %8 = vector.load %arg1[%c0_7, %c0_8, %c0_9] : memref<1x144x2560xbf16, #tpu.memory_space<vmem>>, vector<1x144x256xbf16>
    %9 = vector.shape_cast %8 : vector<1x144x256xbf16> to vector<144x256xbf16>
    %cst_10 = arith.constant dense<0.000000e+00> : vector<16x256xf32>
    %10 = tpu.matmul %1, %9, %cst_10 {dimension_numbers = #tpu.dot_dimension_numbers<[1], [0], [0], [1], [0, 0, 1, 1], [], []>} : vector<16x144xbf16>, vector<144x256xbf16>, vector<16x256xf32> -> vector<16x256xf32>
    %c0_11 = arith.constant 0 : index
    %c0_12 = arith.constant 0 : index
    %c256 = arith.constant 256 : index
    %11 = vector.load %arg1[%c0_11, %c0_12, %c256] : memref<1x144x2560xbf16, #tpu.memory_space<vmem>>, vector<1x144x256xbf16>
    %12 = vector.shape_cast %11 : vector<1x144x256xbf16> to vector<144x256xbf16>
    %cst_13 = arith.constant dense<0.000000e+00> : vector<16x256xf32>
    %13 = tpu.matmul %3, %12, %cst_13 {dimension_numbers = #tpu.dot_dimension_numbers<[1], [0], [0], [1], [0, 0, 1, 1], [], []>} : vector<16x144xbf16>, vector<144x256xbf16>, vector<16x256xf32> -> vector<16x256xf32>
    %14 = arith.addf %10, %13 : vector<16x256xf32>
    %c0_14 = arith.constant 0 : index
    %c0_15 = arith.constant 0 : index
    %c512 = arith.constant 512 : index
    %15 = vector.load %arg1[%c0_14, %c0_15, %c512] : memref<1x144x2560xbf16, #tpu.memory_space<vmem>>, vector<1x144x256xbf16>
    %16 = vector.shape_cast %15 : vector<1x144x256xbf16> to vector<144x256xbf16>
    %cst_16 = arith.constant dense<0.000000e+00> : vector<16x256xf32>
    %17 = tpu.matmul %5, %16, %cst_16 {dimension_numbers = #tpu.dot_dimension_numbers<[1], [0], [0], [1], [0, 0, 1, 1], [], []>} : vector<16x144xbf16>, vector<144x256xbf16>, vector<16x256xf32> -> vector<16x256xf32>
    %18 = arith.addf %14, %17 : vector<16x256xf32>
    %19 = arith.truncf %18 : vector<16x256xf32> to vector<16x256xbf16>
    %c0_17 = arith.constant 0 : index
    %c0_18 = arith.constant 0 : index
    %c0_19 = arith.constant 0 : index
    %20 = vector.load %arg3[%c0_17, %c0_18, %c0_19] : memref<1x16x2048xbf16, #tpu.memory_space<vmem>>, vector<1x16x256xbf16>
    %21 = vector.shape_cast %20 : vector<1x16x256xbf16> to vector<16x256xbf16>
    %22 = vector.shape_cast %19 : vector<16x256xbf16> to vector<1x16x256xbf16>
    tpu.vector_store %arg3[%c0_17, %c0_18, %c0_19], %22 {strides = array<i32>} : memref<1x16x2048xbf16, #tpu.memory_space<vmem>>, vector<1x16x256xbf16>,
    %cst_20 = arith.constant dense<0.000000e+00> : vector<16xf32>
    %23 = vector.multi_reduction <add>, %18, %cst_20 [1] : vector<16x256xf32> to vector<16xf32>
    %24 = vector.shape_cast %23 : vector<16xf32> to vector<16x1xf32>
    %25 = arith.addf %6, %24 : vector<16x1xf32>
    %26 = arith.mulf %18, %18 : vector<16x256xf32>
    %cst_21 = arith.constant dense<0.000000e+00> : vector<16xf32>
    %27 = vector.multi_reduction <add>, %26, %cst_21 [1] : vector<16x256xf32> to vector<16xf32>
    %28 = vector.shape_cast %27 : vector<16xf32> to vector<16x1xf32>
    %29 = arith.addf %7, %28 : vector<16x1xf32>
    %c0_22 = arith.constant 0 : index
    %c0_23 = arith.constant 0 : index
    %c256_24 = arith.constant 256 : index
    %30 = vector.load %arg1[%c0_22, %c0_23, %c256_24] : memref<1x144x2560xbf16, #tpu.memory_space<vmem>>, vector<1x144x256xbf16>
    %31 = vector.shape_cast %30 : vector<1x144x256xbf16> to vector<144x256xbf16>
    %cst_25 = arith.constant dense<0.000000e+00> : vector<16x256xf32>
    %32 = tpu.matmul %1, %31, %cst_25 {dimension_numbers = #tpu.dot_dimension_numbers<[1], [0], [0], [1], [0, 0, 1, 1], [], []>} : vector<16x144xbf16>, vector<144x256xbf16>, vector<16x256xf32> -> vector<16x256xf32>
    %c0_26 = arith.constant 0 : index
    %c0_27 = arith.constant 0 : index
    %c512_28 = arith.constant 512 : index
    %33 = vector.load %arg1[%c0_26, %c0_27, %c512_28] : memref<1x144x2560xbf16, #tpu.memory_space<vmem>>, vector<1x144x256xbf16>
    %34 = vector.shape_cast %33 : vector<1x144x256xbf16> to vector<144x256xbf16>
    %cst_29 = arith.constant dense<0.000000e+00> : vector<16x256xf32>
    %35 = tpu.matmul %3, %34, %cst_29 {dimension_numbers = #tpu.dot_dimension_numbers<[1], [0], [0], [1], [0, 0, 1, 1], [], []>} : vector<16x144xbf16>, vector<144x256xbf16>, vector<16x256xf32> -> vector<16x256xf32>
    %36 = arith.addf %32, %35 : vector<16x256xf32>
    %c0_30 = arith.constant 0 : index
    %c0_31 = arith.constant 0 : index
    %c768 = arith.constant 768 : index
    %37 = vector.load %arg1[%c0_30, %c0_31, %c768] : memref<1x144x2560xbf16, #tpu.memory_space<vmem>>, vector<1x144x256xbf16>
    %38 = vector.shape_cast %37 : vector<1x144x256xbf16> to vector<144x256xbf16>
    %cst_32 = arith.constant dense<0.000000e+00> : vector<16x256xf32>
    %39 = tpu.matmul %5, %38, %cst_32 {dimension_numbers = #tpu.dot_dimension_numbers<[1], [0], [0], [1], [0, 0, 1, 1], [], []>} : vector<16x144xbf16>, vector<144x256xbf16>, vector<16x256xf32> -> vector<16x256xf32>
    %40 = arith.addf %36, %39 : vector<16x256xf32>
    %41 = arith.truncf %40 : vector<16x256xf32> to vector<16x256xbf16>
    %c0_33 = arith.constant 0 : index
    %c0_34 = arith.constant 0 : index
    %c256_35 = arith.constant 256 : index
    %42 = vector.load %arg3[%c0_33, %c0_34, %c256_35] : memref<1x16x2048xbf16, #tpu.memory_space<vmem>>, vector<1x16x256xbf16>
    %43 = vector.shape_cast %42 : vector<1x16x256xbf16> to vector<16x256xbf16>
    %44 = vector.shape_cast %41 : vector<16x256xbf16> to vector<1x16x256xbf16>
    tpu.vector_store %arg3[%c0_33, %c0_34, %c256_35], %44 {strides = array<i32>} : memref<1x16x2048xbf16, #tpu.memory_space<vmem>>, vector<1x16x256xbf16>,
    %cst_36 = arith.constant dense<0.000000e+00> : vector<16xf32>
    %45 = vector.multi_reduction <add>, %40, %cst_36 [1] : vector<16x256xf32> to vector<16xf32>
    %46 = vector.shape_cast %45 : vector<16xf32> to vector<16x1xf32>
    %47 = arith.addf %25, %46 : vector<16x1xf32>
    %48 = arith.mulf %40, %40 : vector<16x256xf32>
    %cst_37 = arith.constant dense<0.000000e+00> : vector<16xf32>
    %49 = vector.multi_reduction <add>, %48, %cst_37 [1] : vector<16x256xf32> to vector<16xf32>
    %50 = vector.shape_cast %49 : vector<16xf32> to vector<16x1xf32>
    %51 = arith.addf %29, %50 : vector<16x1xf32>
    %c0_38 = arith.constant 0 : index
    %c0_39 = arith.constant 0 : index
    %c512_40 = arith.constant 512 : index
    %52 = vector.load %arg1[%c0_38, %c0_39, %c512_40] : memref<1x144x2560xbf16, #tpu.memory_space<vmem>>, vector<1x144x256xbf16>
    %53 = vector.shape_cast %52 : vector<1x144x256xbf16> to vector<144x256xbf16>
    %cst_41 = arith.constant dense<0.000000e+00> : vector<16x256xf32>
    %54 = tpu.matmul %1, %53, %cst_41 {dimension_numbers = #tpu.dot_dimension_numbers<[1], [0], [0], [1], [0, 0, 1, 1], [], []>} : vector<16x144xbf16>, vector<144x256xbf16>, vector<16x256xf32> -> vector<16x256xf32>
    %c0_42 = arith.constant 0 : index
    %c0_43 = arith.constant 0 : index
    %c768_44 = arith.constant 768 : index
    %55 = vector.load %arg1[%c0_42, %c0_43, %c768_44] : memref<1x144x2560xbf16, #tpu.memory_space<vmem>>, vector<1x144x256xbf16>
    %56 = vector.shape_cast %55 : vector<1x144x256xbf16> to vector<144x256xbf16>
    %cst_45 = arith.constant dense<0.000000e+00> : vector<16x256xf32>
    %57 = tpu.matmul %3, %56, %cst_45 {dimension_numbers = #tpu.dot_dimension_numbers<[1], [0], [0], [1], [0, 0, 1, 1], [], []>} : vector<16x144xbf16>, vector<144x256xbf16>, vector<16x256xf32> -> vector<16x256xf32>
    %58 = arith.addf %54, %57 : vector<16x256xf32>
    %c0_46 = arith.constant 0 : index
    %c0_47 = arith.constant 0 : index
    %c1024 = arith.constant 1024 : index
    %59 = vector.load %arg1[%c0_46, %c0_47, %c1024] : memref<1x144x2560xbf16, #tpu.memory_space<vmem>>, vector<1x144x256xbf16>
    %60 = vector.shape_cast %59 : vector<1x144x256xbf16> to vector<144x256xbf16>
    %cst_48 = arith.constant dense<0.000000e+00> : vector<16x256xf32>
    %61 = tpu.matmul %5, %60, %cst_48 {dimension_numbers = #tpu.dot_dimension_numbers<[1], [0], [0], [1], [0, 0, 1, 1], [], []>} : vector<16x144xbf16>, vector<144x256xbf16>, vector<16x256xf32> -> vector<16x256xf32>
    %62 = arith.addf %58, %61 : vector<16x256xf32>
    %63 = arith.truncf %62 : vector<16x256xf32> to vector<16x256xbf16>
    %c0_49 = arith.constant 0 : index
    %c0_50 = arith.constant 0 : index
    %c512_51 = arith.constant 512 : index
    %64 = vector.load %arg3[%c0_49, %c0_50, %c512_51] : memref<1x16x2048xbf16, #tpu.memory_space<vmem>>, vector<1x16x256xbf16>
    %65 = vector.shape_cast %64 : vector<1x16x256xbf16> to vector<16x256xbf16>
    %66 = vector.shape_cast %63 : vector<16x256xbf16> to vector<1x16x256xbf16>
    tpu.vector_store %arg3[%c0_49, %c0_50, %c512_51], %66 {strides = array<i32>} : memref<1x16x2048xbf16, #tpu.memory_space<vmem>>, vector<1x16x256xbf16>,
    %cst_52 = arith.constant dense<0.000000e+00> : vector<16xf32>
    %67 = vector.multi_reduction <add>, %62, %cst_52 [1] : vector<16x256xf32> to vector<16xf32>
    %68 = vector.shape_cast %67 : vector<16xf32> to vector<16x1xf32>
    %69 = arith.addf %47, %68 : vector<16x1xf32>
    %70 = arith.mulf %62, %62 : vector<16x256xf32>
    %cst_53 = arith.constant dense<0.000000e+00> : vector<16xf32>
    %71 = vector.multi_reduction <add>, %70, %cst_53 [1] : vector<16x256xf32> to vector<16xf32>
    %72 = vector.shape_cast %71 : vector<16xf32> to vector<16x1xf32>
    %73 = arith.addf %51, %72 : vector<16x1xf32>
    %c0_54 = arith.constant 0 : index
    %c0_55 = arith.constant 0 : index
    %c768_56 = arith.constant 768 : index
    %74 = vector.load %arg1[%c0_54, %c0_55, %c768_56] : memref<1x144x2560xbf16, #tpu.memory_space<vmem>>, vector<1x144x256xbf16>
    %75 = vector.shape_cast %74 : vector<1x144x256xbf16> to vector<144x256xbf16>
    %cst_57 = arith.constant dense<0.000000e+00> : vector<16x256xf32>
    %76 = tpu.matmul %1, %75, %cst_57 {dimension_numbers = #tpu.dot_dimension_numbers<[1], [0], [0], [1], [0, 0, 1, 1], [], []>} : vector<16x144xbf16>, vector<144x256xbf16>, vector<16x256xf32> -> vector<16x256xf32>
    %c0_58 = arith.constant 0 : index
    %c0_59 = arith.constant 0 : index
    %c1024_60 = arith.constant 1024 : index
    %77 = vector.load %arg1[%c0_58, %c0_59, %c1024_60] : memref<1x144x2560xbf16, #tpu.memory_space<vmem>>, vector<1x144x256xbf16>
    %78 = vector.shape_cast %77 : vector<1x144x256xbf16> to vector<144x256xbf16>
    %cst_61 = arith.constant dense<0.000000e+00> : vector<16x256xf32>
    %79 = tpu.matmul %3, %78, %cst_61 {dimension_numbers = #tpu.dot_dimension_numbers<[1], [0], [0], [1], [0, 0, 1, 1], [], []>} : vector<16x144xbf16>, vector<144x256xbf16>, vector<16x256xf32> -> vector<16x256xf32>
    %80 = arith.addf %76, %79 : vector<16x256xf32>
    %c0_62 = arith.constant 0 : index
    %c0_63 = arith.constant 0 : index
    %c1280 = arith.constant 1280 : index
    %81 = vector.load %arg1[%c0_62, %c0_63, %c1280] : memref<1x144x2560xbf16, #tpu.memory_space<vmem>>, vector<1x144x256xbf16>
    %82 = vector.shape_cast %81 : vector<1x144x256xbf16> to vector<144x256xbf16>
    %cst_64 = arith.constant dense<0.000000e+00> : vector<16x256xf32>
    %83 = tpu.matmul %5, %82, %cst_64 {dimension_numbers = #tpu.dot_dimension_numbers<[1], [0], [0], [1], [0, 0, 1, 1], [], []>} : vector<16x144xbf16>, vector<144x256xbf16>, vector<16x256xf32> -> vector<16x256xf32>
    %84 = arith.addf %80, %83 : vector<16x256xf32>
    %85 = arith.truncf %84 : vector<16x256xf32> to vector<16x256xbf16>
    %c0_65 = arith.constant 0 : index
    %c0_66 = arith.constant 0 : index
    %c768_67 = arith.constant 768 : index
    %86 = vector.load %arg3[%c0_65, %c0_66, %c768_67] : memref<1x16x2048xbf16, #tpu.memory_space<vmem>>, vector<1x16x256xbf16>
    %87 = vector.shape_cast %86 : vector<1x16x256xbf16> to vector<16x256xbf16>
    %88 = vector.shape_cast %85 : vector<16x256xbf16> to vector<1x16x256xbf16>
    tpu.vector_store %arg3[%c0_65, %c0_66, %c768_67], %88 {strides = array<i32>} : memref<1x16x2048xbf16, #tpu.memory_space<vmem>>, vector<1x16x256xbf16>,
    %cst_68 = arith.constant dense<0.000000e+00> : vector<16xf32>
    %89 = vector.multi_reduction <add>, %84, %cst_68 [1] : vector<16x256xf32> to vector<16xf32>
    %90 = vector.shape_cast %89 : vector<16xf32> to vector<16x1xf32>
    %91 = arith.addf %69, %90 : vector<16x1xf32>
    %92 = arith.mulf %84, %84 : vector<16x256xf32>
    %cst_69 = arith.constant dense<0.000000e+00> : vector<16xf32>
    %93 = vector.multi_reduction <add>, %92, %cst_69 [1] : vector<16x256xf32> to vector<16xf32>
    %94 = vector.shape_cast %93 : vector<16xf32> to vector<16x1xf32>
    %95 = arith.addf %73, %94 : vector<16x1xf32>
    %c0_70 = arith.constant 0 : index
    %c0_71 = arith.constant 0 : index
    %c1024_72 = arith.constant 1024 : index
    %96 = vector.load %arg1[%c0_70, %c0_71, %c1024_72] : memref<1x144x2560xbf16, #tpu.memory_space<vmem>>, vector<1x144x256xbf16>
    %97 = vector.shape_cast %96 : vector<1x144x256xbf16> to vector<144x256xbf16>
    %cst_73 = arith.constant dense<0.000000e+00> : vector<16x256xf32>
    %98 = tpu.matmul %1, %97, %cst_73 {dimension_numbers = #tpu.dot_dimension_numbers<[1], [0], [0], [1], [0, 0, 1, 1], [], []>} : vector<16x144xbf16>, vector<144x256xbf16>, vector<16x256xf32> -> vector<16x256xf32>
    %c0_74 = arith.constant 0 : index
    %c0_75 = arith.constant 0 : index
    %c1280_76 = arith.constant 1280 : index
    %99 = vector.load %arg1[%c0_74, %c0_75, %c1280_76] : memref<1x144x2560xbf16, #tpu.memory_space<vmem>>, vector<1x144x256xbf16>
    %100 = vector.shape_cast %99 : vector<1x144x256xbf16> to vector<144x256xbf16>
    %cst_77 = arith.constant dense<0.000000e+00> : vector<16x256xf32>
    %101 = tpu.matmul %3, %100, %cst_77 {dimension_numbers = #tpu.dot_dimension_numbers<[1], [0], [0], [1], [0, 0, 1, 1], [], []>} : vector<16x144xbf16>, vector<144x256xbf16>, vector<16x256xf32> -> vector<16x256xf32>
    %102 = arith.addf %98, %101 : vector<16x256xf32>
    %c0_78 = arith.constant 0 : index
    %c0_79 = arith.constant 0 : index
    %c1536 = arith.constant 1536 : index
    %103 = vector.load %arg1[%c0_78, %c0_79, %c1536] : memref<1x144x2560xbf16, #tpu.memory_space<vmem>>, vector<1x144x256xbf16>
    %104 = vector.shape_cast %103 : vector<1x144x256xbf16> to vector<144x256xbf16>
    %cst_80 = arith.constant dense<0.000000e+00> : vector<16x256xf32>
    %105 = tpu.matmul %5, %104, %cst_80 {dimension_numbers = #tpu.dot_dimension_numbers<[1], [0], [0], [1], [0, 0, 1, 1], [], []>} : vector<16x144xbf16>, vector<144x256xbf16>, vector<16x256xf32> -> vector<16x256xf32>
    %106 = arith.addf %102, %105 : vector<16x256xf32>
    %107 = arith.truncf %106 : vector<16x256xf32> to vector<16x256xbf16>
    %c0_81 = arith.constant 0 : index
    %c0_82 = arith.constant 0 : index
    %c1024_83 = arith.constant 1024 : index
    %108 = vector.load %arg3[%c0_81, %c0_82, %c1024_83] : memref<1x16x2048xbf16, #tpu.memory_space<vmem>>, vector<1x16x256xbf16>
    %109 = vector.shape_cast %108 : vector<1x16x256xbf16> to vector<16x256xbf16>
    %110 = vector.shape_cast %107 : vector<16x256xbf16> to vector<1x16x256xbf16>
    tpu.vector_store %arg3[%c0_81, %c0_82, %c1024_83], %110 {strides = array<i32>} : memref<1x16x2048xbf16, #tpu.memory_space<vmem>>, vector<1x16x256xbf16>,
    %cst_84 = arith.constant dense<0.000000e+00> : vector<16xf32>
    %111 = vector.multi_reduction <add>, %106, %cst_84 [1] : vector<16x256xf32> to vector<16xf32>
    %112 = vector.shape_cast %111 : vector<16xf32> to vector<16x1xf32>
    %113 = arith.addf %91, %112 : vector<16x1xf32>
    %114 = arith.mulf %106, %106 : vector<16x256xf32>
    %cst_85 = arith.constant dense<0.000000e+00> : vector<16xf32>
    %115 = vector.multi_reduction <add>, %114, %cst_85 [1] : vector<16x256xf32> to vector<16xf32>
    %116 = vector.shape_cast %115 : vector<16xf32> to vector<16x1xf32>
    %117 = arith.addf %95, %116 : vector<16x1xf32>
    %c0_86 = arith.constant 0 : index
    %c0_87 = arith.constant 0 : index
    %c1280_88 = arith.constant 1280 : index
    %118 = vector.load %arg1[%c0_86, %c0_87, %c1280_88] : memref<1x144x2560xbf16, #tpu.memory_space<vmem>>, vector<1x144x256xbf16>
    %119 = vector.shape_cast %118 : vector<1x144x256xbf16> to vector<144x256xbf16>
    %cst_89 = arith.constant dense<0.000000e+00> : vector<16x256xf32>
    %120 = tpu.matmul %1, %119, %cst_89 {dimension_numbers = #tpu.dot_dimension_numbers<[1], [0], [0], [1], [0, 0, 1, 1], [], []>} : vector<16x144xbf16>, vector<144x256xbf16>, vector<16x256xf32> -> vector<16x256xf32>
    %c0_90 = arith.constant 0 : index
    %c0_91 = arith.constant 0 : index
    %c1536_92 = arith.constant 1536 : index
    %121 = vector.load %arg1[%c0_90, %c0_91, %c1536_92] : memref<1x144x2560xbf16, #tpu.memory_space<vmem>>, vector<1x144x256xbf16>
    %122 = vector.shape_cast %121 : vector<1x144x256xbf16> to vector<144x256xbf16>
    %cst_93 = arith.constant dense<0.000000e+00> : vector<16x256xf32>
    %123 = tpu.matmul %3, %122, %cst_93 {dimension_numbers = #tpu.dot_dimension_numbers<[1], [0], [0], [1], [0, 0, 1, 1], [], []>} : vector<16x144xbf16>, vector<144x256xbf16>, vector<16x256xf32> -> vector<16x256xf32>
    %124 = arith.addf %120, %123 : vector<16x256xf32>
    %c0_94 = arith.constant 0 : index
    %c0_95 = arith.constant 0 : index
    %c1792 = arith.constant 1792 : index
    %125 = vector.load %arg1[%c0_94, %c0_95, %c1792] : memref<1x144x2560xbf16, #tpu.memory_space<vmem>>, vector<1x144x256xbf16>
    %126 = vector.shape_cast %125 : vector<1x144x256xbf16> to vector<144x256xbf16>
    %cst_96 = arith.constant dense<0.000000e+00> : vector<16x256xf32>
    %127 = tpu.matmul %5, %126, %cst_96 {dimension_numbers = #tpu.dot_dimension_numbers<[1], [0], [0], [1], [0, 0, 1, 1], [], []>} : vector<16x144xbf16>, vector<144x256xbf16>, vector<16x256xf32> -> vector<16x256xf32>
    %128 = arith.addf %124, %127 : vector<16x256xf32>
    %129 = arith.truncf %128 : vector<16x256xf32> to vector<16x256xbf16>
    %c0_97 = arith.constant 0 : index
    %c0_98 = arith.constant 0 : index
    %c1280_99 = arith.constant 1280 : index
    %130 = vector.load %arg3[%c0_97, %c0_98, %c1280_99] : memref<1x16x2048xbf16, #tpu.memory_space<vmem>>, vector<1x16x256xbf16>
    %131 = vector.shape_cast %130 : vector<1x16x256xbf16> to vector<16x256xbf16>
    %132 = vector.shape_cast %129 : vector<16x256xbf16> to vector<1x16x256xbf16>
    tpu.vector_store %arg3[%c0_97, %c0_98, %c1280_99], %132 {strides = array<i32>} : memref<1x16x2048xbf16, #tpu.memory_space<vmem>>, vector<1x16x256xbf16>,
    %cst_100 = arith.constant dense<0.000000e+00> : vector<16xf32>
    %133 = vector.multi_reduction <add>, %128, %cst_100 [1] : vector<16x256xf32> to vector<16xf32>
    %134 = vector.shape_cast %133 : vector<16xf32> to vector<16x1xf32>
    %135 = arith.addf %113, %134 : vector<16x1xf32>
    %136 = arith.mulf %128, %128 : vector<16x256xf32>
    %cst_101 = arith.constant dense<0.000000e+00> : vector<16xf32>
    %137 = vector.multi_reduction <add>, %136, %cst_101 [1] : vector<16x256xf32> to vector<16xf32>
    %138 = vector.shape_cast %137 : vector<16xf32> to vector<16x1xf32>
    %139 = arith.addf %117, %138 : vector<16x1xf32>
    %c0_102 = arith.constant 0 : index
    %c0_103 = arith.constant 0 : index
    %c1536_104 = arith.constant 1536 : index
    %140 = vector.load %arg1[%c0_102, %c0_103, %c1536_104] : memref<1x144x2560xbf16, #tpu.memory_space<vmem>>, vector<1x144x256xbf16>
    %141 = vector.shape_cast %140 : vector<1x144x256xbf16> to vector<144x256xbf16>
    %cst_105 = arith.constant dense<0.000000e+00> : vector<16x256xf32>
    %142 = tpu.matmul %1, %141, %cst_105 {dimension_numbers = #tpu.dot_dimension_numbers<[1], [0], [0], [1], [0, 0, 1, 1], [], []>} : vector<16x144xbf16>, vector<144x256xbf16>, vector<16x256xf32> -> vector<16x256xf32>
    %c0_106 = arith.constant 0 : index
    %c0_107 = arith.constant 0 : index
    %c1792_108 = arith.constant 1792 : index
    %143 = vector.load %arg1[%c0_106, %c0_107, %c1792_108] : memref<1x144x2560xbf16, #tpu.memory_space<vmem>>, vector<1x144x256xbf16>
    %144 = vector.shape_cast %143 : vector<1x144x256xbf16> to vector<144x256xbf16>
    %cst_109 = arith.constant dense<0.000000e+00> : vector<16x256xf32>
    %145 = tpu.matmul %3, %144, %cst_109 {dimension_numbers = #tpu.dot_dimension_numbers<[1], [0], [0], [1], [0, 0, 1, 1], [], []>} : vector<16x144xbf16>, vector<144x256xbf16>, vector<16x256xf32> -> vector<16x256xf32>
    %146 = arith.addf %142, %145 : vector<16x256xf32>
    %c0_110 = arith.constant 0 : index
    %c0_111 = arith.constant 0 : index
    %c2048 = arith.constant 2048 : index
    %147 = vector.load %arg1[%c0_110, %c0_111, %c2048] : memref<1x144x2560xbf16, #tpu.memory_space<vmem>>, vector<1x144x256xbf16>
    %148 = vector.shape_cast %147 : vector<1x144x256xbf16> to vector<144x256xbf16>
    %cst_112 = arith.constant dense<0.000000e+00> : vector<16x256xf32>
    %149 = tpu.matmul %5, %148, %cst_112 {dimension_numbers = #tpu.dot_dimension_numbers<[1], [0], [0], [1], [0, 0, 1, 1], [], []>} : vector<16x144xbf16>, vector<144x256xbf16>, vector<16x256xf32> -> vector<16x256xf32>
    %150 = arith.addf %146, %149 : vector<16x256xf32>
    %151 = arith.truncf %150 : vector<16x256xf32> to vector<16x256xbf16>
    %c0_113 = arith.constant 0 : index
    %c0_114 = arith.constant 0 : index
    %c1536_115 = arith.constant 1536 : index
    %152 = vector.load %arg3[%c0_113, %c0_114, %c1536_115] : memref<1x16x2048xbf16, #tpu.memory_space<vmem>>, vector<1x16x256xbf16>
    %153 = vector.shape_cast %152 : vector<1x16x256xbf16> to vector<16x256xbf16>
    %154 = vector.shape_cast %151 : vector<16x256xbf16> to vector<1x16x256xbf16>
    tpu.vector_store %arg3[%c0_113, %c0_114, %c1536_115], %154 {strides = array<i32>} : memref<1x16x2048xbf16, #tpu.memory_space<vmem>>, vector<1x16x256xbf16>,
    %cst_116 = arith.constant dense<0.000000e+00> : vector<16xf32>
    %155 = vector.multi_reduction <add>, %150, %cst_116 [1] : vector<16x256xf32> to vector<16xf32>
    %156 = vector.shape_cast %155 : vector<16xf32> to vector<16x1xf32>
    %157 = arith.addf %135, %156 : vector<16x1xf32>
    %158 = arith.mulf %150, %150 : vector<16x256xf32>
    %cst_117 = arith.constant dense<0.000000e+00> : vector<16xf32>
    %159 = vector.multi_reduction <add>, %158, %cst_117 [1] : vector<16x256xf32> to vector<16xf32>
    %160 = vector.shape_cast %159 : vector<16xf32> to vector<16x1xf32>
    %161 = arith.addf %139, %160 : vector<16x1xf32>
    %c0_118 = arith.constant 0 : index
    %c0_119 = arith.constant 0 : index
    %c1792_120 = arith.constant 1792 : index
    %162 = vector.load %arg1[%c0_118, %c0_119, %c1792_120] : memref<1x144x2560xbf16, #tpu.memory_space<vmem>>, vector<1x144x256xbf16>
    %163 = vector.shape_cast %162 : vector<1x144x256xbf16> to vector<144x256xbf16>
    %cst_121 = arith.constant dense<0.000000e+00> : vector<16x256xf32>
    %164 = tpu.matmul %1, %163, %cst_121 {dimension_numbers = #tpu.dot_dimension_numbers<[1], [0], [0], [1], [0, 0, 1, 1], [], []>} : vector<16x144xbf16>, vector<144x256xbf16>, vector<16x256xf32> -> vector<16x256xf32>
    %c0_122 = arith.constant 0 : index
    %c0_123 = arith.constant 0 : index
    %c2048_124 = arith.constant 2048 : index
    %165 = vector.load %arg1[%c0_122, %c0_123, %c2048_124] : memref<1x144x2560xbf16, #tpu.memory_space<vmem>>, vector<1x144x256xbf16>
    %166 = vector.shape_cast %165 : vector<1x144x256xbf16> to vector<144x256xbf16>
    %cst_125 = arith.constant dense<0.000000e+00> : vector<16x256xf32>
    %167 = tpu.matmul %3, %166, %cst_125 {dimension_numbers = #tpu.dot_dimension_numbers<[1], [0], [0], [1], [0, 0, 1, 1], [], []>} : vector<16x144xbf16>, vector<144x256xbf16>, vector<16x256xf32> -> vector<16x256xf32>
    %168 = arith.addf %164, %167 : vector<16x256xf32>
    %c0_126 = arith.constant 0 : index
    %c0_127 = arith.constant 0 : index
    %c2304 = arith.constant 2304 : index
    %169 = vector.load %arg1[%c0_126, %c0_127, %c2304] : memref<1x144x2560xbf16, #tpu.memory_space<vmem>>, vector<1x144x256xbf16>
    %170 = vector.shape_cast %169 : vector<1x144x256xbf16> to vector<144x256xbf16>
    %cst_128 = arith.constant dense<0.000000e+00> : vector<16x256xf32>
    %171 = tpu.matmul %5, %170, %cst_128 {dimension_numbers = #tpu.dot_dimension_numbers<[1], [0], [0], [1], [0, 0, 1, 1], [], []>} : vector<16x144xbf16>, vector<144x256xbf16>, vector<16x256xf32> -> vector<16x256xf32>
    %172 = arith.addf %168, %171 : vector<16x256xf32>
    %173 = arith.truncf %172 : vector<16x256xf32> to vector<16x256xbf16>
    %c0_129 = arith.constant 0 : index
    %c0_130 = arith.constant 0 : index
    %c1792_131 = arith.constant 1792 : index
    %174 = vector.load %arg3[%c0_129, %c0_130, %c1792_131] : memref<1x16x2048xbf16, #tpu.memory_space<vmem>>, vector<1x16x256xbf16>
    %175 = vector.shape_cast %174 : vector<1x16x256xbf16> to vector<16x256xbf16>
    %176 = vector.shape_cast %173 : vector<16x256xbf16> to vector<1x16x256xbf16>
    tpu.vector_store %arg3[%c0_129, %c0_130, %c1792_131], %176 {strides = array<i32>} : memref<1x16x2048xbf16, #tpu.memory_space<vmem>>, vector<1x16x256xbf16>,
    %cst_132 = arith.constant dense<0.000000e+00> : vector<16xf32>
    %177 = vector.multi_reduction <add>, %172, %cst_132 [1] : vector<16x256xf32> to vector<16xf32>
    %178 = vector.shape_cast %177 : vector<16xf32> to vector<16x1xf32>
    %179 = arith.addf %157, %178 : vector<16x1xf32>
    %180 = arith.mulf %172, %172 : vector<16x256xf32>
    %cst_133 = arith.constant dense<0.000000e+00> : vector<16xf32>
    %181 = vector.multi_reduction <add>, %180, %cst_133 [1] : vector<16x256xf32> to vector<16xf32>
    %182 = vector.shape_cast %181 : vector<16xf32> to vector<16x1xf32>
    %183 = arith.addf %161, %182 : vector<16x1xf32>
    %184 = vector.shape_cast %179 : vector<16x1xf32> to vector<16x1xf32>
    %185 = vector.broadcast %184 : vector<16x1xf32> to vector<16x128xf32>
    %c0_134 = arith.constant 0 : index
    %c0_135 = arith.constant 0 : index
    %c0_136 = arith.constant 0 : index
    %186 = vector.load %arg4[%c0_134, %c0_135, %c0_136] : memref<1x32x128xf32, #tpu.memory_space<vmem>>, vector<1x16x128xf32>
    %187 = vector.shape_cast %186 : vector<1x16x128xf32> to vector<16x128xf32>
    %188 = vector.shape_cast %185 : vector<16x128xf32> to vector<1x16x128xf32>
    tpu.vector_store %arg4[%c0_134, %c0_135, %c0_136], %188 {strides = array<i32>} : memref<1x32x128xf32, #tpu.memory_space<vmem>>, vector<1x16x128xf32>,
    %189 = vector.shape_cast %183 : vector<16x1xf32> to vector<16x1xf32>
    %190 = vector.broadcast %189 : vector<16x1xf32> to vector<16x128xf32>
    %c0_137 = arith.constant 0 : index
    %c16 = arith.constant 16 : index
    %c0_138 = arith.constant 0 : index
    %191 = vector.load %arg4[%c0_137, %c16, %c0_138] : memref<1x32x128xf32, #tpu.memory_space<vmem>>, vector<1x16x128xf32>
    %192 = vector.shape_cast %191 : vector<1x16x128xf32> to vector<16x128xf32>
    %193 = vector.shape_cast %190 : vector<16x128xf32> to vector<1x16x128xf32>
    tpu.vector_store %arg4[%c0_137, %c16, %c0_138], %193 {strides = array<i32>} : memref<1x32x128xf32, #tpu.memory_space<vmem>>, vector<1x16x128xf32>,
    return
  }
  func.func @transform_0(%arg0: i32) -> (i32, i32, i32) {
    %c0_i32 = arith.constant 0 : i32
    %c0_i32_0 = arith.constant 0 : i32
    %c0_i32_1 = arith.constant 0 : i32
    return %arg0, %c0_i32, %c0_i32_0 : i32, i32, i32
  }
  func.func @transform_1(%arg0: i32) -> (i32, i32, i32) {
    %c0_i32 = arith.constant 0 : i32
    %c0_i32_0 = arith.constant 0 : i32
    %c0_i32_1 = arith.constant 0 : i32
    %c0_i32_2 = arith.constant 0 : i32
    return %c0_i32, %c0_i32_0, %c0_i32_1 : i32, i32, i32
  }
  func.func @transform_2(%arg0: i32) -> (i32, i32, i32) {
    %c0_i32 = arith.constant 0 : i32
    %c0_i32_0 = arith.constant 0 : i32
    %c0_i32_1 = arith.constant 0 : i32
    return %arg0, %c0_i32, %c0_i32_0 : i32, i32, i32
  }
  func.func @transform_3(%arg0: i32) -> (i32, i32, i32) {
    %c0_i32 = arith.constant 0 : i32
    %c0_i32_0 = arith.constant 0 : i32
    %c0_i32_1 = arith.constant 0 : i32
    return %arg0, %c0_i32, %c0_i32_0 : i32, i32, i32
  }
}

module attributes {stable_mosaic.version = 11 : i64} {
  func.func @_bn_relu_kernel(%arg0: i32, %arg1: memref<1x16x2048xbf16, #tpu.memory_space<vmem>>, %arg2: memref<16x1xf32, #tpu.memory_space<vmem>>, %arg3: memref<16x1xf32, #tpu.memory_space<vmem>>, %arg4: memref<1x16x2048xf32, #tpu.memory_space<vmem>>) attributes {dimension_semantics = [#tpu.dimension_semantics<parallel>], iteration_bounds = array<i64: 2>, scalar_prefetch = 0 : i64, scratch_operands = 0 : i64, tpu.core_type = #tpu.core_type<tc>, window_params = [{transform_indices = @transform_0, window_bounds = array<i64: 1, 16, 2048>}, {pipeline_mode = #tpu.pipeline_mode<synchronous>, transform_indices = @transform_1, window_bounds = array<i64: 16, 1>}, {pipeline_mode = #tpu.pipeline_mode<synchronous>, transform_indices = @transform_2, window_bounds = array<i64: 16, 1>}, {transform_indices = @transform_3, window_bounds = array<i64: 1, 16, 2048>}]} {
    %c0 = arith.constant 0 : index
    %c0_0 = arith.constant 0 : index
    %c0_1 = arith.constant 0 : index
    %0 = vector.load %arg1[%c0, %c0_0, %c0_1] : memref<1x16x2048xbf16, #tpu.memory_space<vmem>>, vector<1x16x2048xbf16>
    %1 = vector.shape_cast %0 : vector<1x16x2048xbf16> to vector<16x2048xbf16>
    %2 = arith.extf %1 : vector<16x2048xbf16> to vector<16x2048xf32>
    %c0_2 = arith.constant 0 : index
    %c0_3 = arith.constant 0 : index
    %3 = vector.load %arg2[%c0_2, %c0_3] : memref<16x1xf32, #tpu.memory_space<vmem>>, vector<16x1xf32>
    %4 = vector.broadcast %3 : vector<16x1xf32> to vector<16x2048xf32>
    %5 = arith.mulf %2, %4 : vector<16x2048xf32>
    %c0_4 = arith.constant 0 : index
    %c0_5 = arith.constant 0 : index
    %6 = vector.load %arg3[%c0_4, %c0_5] : memref<16x1xf32, #tpu.memory_space<vmem>>, vector<16x1xf32>
    %7 = vector.broadcast %6 : vector<16x1xf32> to vector<16x2048xf32>
    %8 = arith.addf %5, %7 : vector<16x2048xf32>
    %cst = arith.constant 0.000000e+00 : f32
    %9 = vector.broadcast %cst : f32 to vector<16x2048xf32>
    %10 = arith.maximumf %8, %9 : vector<16x2048xf32>
    %c0_6 = arith.constant 0 : index
    %c0_7 = arith.constant 0 : index
    %c0_8 = arith.constant 0 : index
    %11 = vector.load %arg4[%c0_6, %c0_7, %c0_8] : memref<1x16x2048xf32, #tpu.memory_space<vmem>>, vector<1x16x2048xf32>
    %12 = vector.shape_cast %11 : vector<1x16x2048xf32> to vector<16x2048xf32>
    %13 = vector.shape_cast %10 : vector<16x2048xf32> to vector<1x16x2048xf32>
    tpu.vector_store %arg4[%c0_6, %c0_7, %c0_8], %13 {strides = array<i32>} : memref<1x16x2048xf32, #tpu.memory_space<vmem>>, vector<1x16x2048xf32>,
    return
  }
  func.func @transform_0(%arg0: i32) -> (i32, i32, i32) {
    %c0_i32 = arith.constant 0 : i32
    %c0_i32_0 = arith.constant 0 : i32
    %c0_i32_1 = arith.constant 0 : i32
    return %arg0, %c0_i32, %c0_i32_0 : i32, i32, i32
  }
  func.func @transform_1(%arg0: i32) -> (i32, i32) {
    %c0_i32 = arith.constant 0 : i32
    %c0_i32_0 = arith.constant 0 : i32
    %c0_i32_1 = arith.constant 0 : i32
    return %c0_i32, %c0_i32_0 : i32, i32
  }
  func.func @transform_2(%arg0: i32) -> (i32, i32) {
    %c0_i32 = arith.constant 0 : i32
    %c0_i32_0 = arith.constant 0 : i32
    %c0_i32_1 = arith.constant 0 : i32
    return %c0_i32, %c0_i32_0 : i32, i32
  }
  func.func @transform_3(%arg0: i32) -> (i32, i32, i32) {
    %c0_i32 = arith.constant 0 : i32
    %c0_i32_0 = arith.constant 0 : i32
    %c0_i32_1 = arith.constant 0 : i32
    return %arg0, %c0_i32, %c0_i32_0 : i32, i32, i32
  }
}

</mosaic_0001>

<llo_original>
// kernel: encoder_block_forward.3
$region0: #{encoder_block_forward.3}
  #allocation0 [shape = 'u32[]', space=smem, size = 0x4, offset = 0x4, fixed_abs, tag = 'smem constant byte address 0x4 - core index']
  #allocation1 [shape = 'u32[144,128]{1,0:T(1,128)}', space=vmem, size = 0x12000, scoped, tag = 'internal scratch']
  %s0 = inlined_call_operand.vmem [shape: bf16[2,36,2560], index: 0, kind: input, shape index: {}]
  %s1 = inlined_call_operand.vmem [shape: bf16[3,16,36], index: 1, kind: input, shape index: {}]
  %s2 = inlined_call_operand.vmem [shape: bf16[2,16,2048], index: 2, kind: output, shape index: {0}]
  %s3 = inlined_call_operand.vmem [shape: f32[2,32,128], index: 3, kind: output, shape index: {1}]
  %4 = xla_tuple %s2, %s3
  %s5 = sld [smem:[#allocation0]]
  $region49: #{encoder_block_forward.3} parent=0
    _
  %s7 = ssub.s32 1, %s5
  %s8 = scalar_select 0, %s7, %s5
  loop: start=0, step=1, limit=4
  $region2: #{encoder_block_forward.3} parent=0 // loop_pre_header
    _
  $region3: #{encoder_block_forward.3} parent=0 // loop_header
    %s10 = sphi 0, %s14
    %p11 = scmp.ge.s32.totalorder %s10, 4
    %s20 = sphi 0, %s22
    %s23 = sphi 0, %s20
    %s24 = sphi 0, %s23
    %s40 = sphi 0, %s24
    %s44 = sphi 0, %s44
    %s46 = sphi 0, %s44
    %s47 = sphi 0, %s46
    %s61 = sphi 0, %s47
    %s67 = sphi 0, %s69
    %s70 = sphi 0, %s67
    %s71 = sphi 0, %s70
    %s87 = sphi 0, %s71
    %s93 = sphi 0, %s95
    %s96 = sphi 0, %s93
    %s97 = sphi 0, %s96
    %s113 = sphi 0, %s97
  $region4: #{encoder_block_forward.3} parent=0 // loop_header_branch
    %13 = sbr.rel (%p11) target = $region8
  $region5: #{encoder_block_forward.3} parent=0 // loop_body
    %s15 = ssub.s32 %s10, 1
    %s16 = ssub.s32 %s10, 2
    %s17 = sadd.s32 %s10, 1
    %s18 = ssub.s32 %s10, %s17
    %p19 = scmp.eq.s32.totalorder %s18, 0
    %s21 = sadd.s32 %s20, 1
    %s22 = scalar_select %p19, %s20, %s21
    %p25 = pneg %p19
    %p26 = scmp.eq.s32.totalorder %s10, 1
    %p27 = por %p25, %p26
    %p28 = scmp.ne.s32.totalorder %s20, %s23
    %p29 = scmp.eq.s32.totalorder %s10, 0
    %p30 = por %p28, %p29
    %p31 = scmp.ne.s32.totalorder %s20, %s23
    %p32 = scmp.eq.s32.totalorder %s15, 1
    %p33 = por %p31, %p32
    %p34 = scmp.ne.s32.totalorder %s23, %s24
    %p35 = scmp.eq.s32.totalorder %s15, 0
    %p36 = por %p34, %p35
    %p37 = scmp.ne.s32.totalorder %s23, %s24
    %p38 = scmp.eq.s32.totalorder %s16, 1
    %p39 = por %p37, %p38
    %p41 = scmp.ne.s32.totalorder %s24, %s40
    %p42 = scmp.eq.s32.totalorder %s16, 0
    %p43 = por %p41, %p42
    %s45 = sadd.s32 %s44, 1
    %p48 = scmp.eq.s32.totalorder %s10, 1
    %p49 = scmp.ne.s32.totalorder %s44, %s46
    %p50 = scmp.eq.s32.totalorder %s10, 0
    %p51 = por %p49, %p50
    %p52 = scmp.ne.s32.totalorder %s44, %s46
    %p53 = scmp.eq.s32.totalorder %s15, 1
    %p54 = por %p52, %p53
    %p55 = scmp.ne.s32.totalorder %s46, %s47
    %p56 = scmp.eq.s32.totalorder %s15, 0
    %p57 = por %p55, %p56
    %p58 = scmp.ne.s32.totalorder %s46, %s47
    %p59 = scmp.eq.s32.totalorder %s16, 1
    %p60 = por %p58, %p59
    %p62 = scmp.ne.s32.totalorder %s47, %s61
    %p63 = scmp.eq.s32.totalorder %s16, 0
    %p64 = por %p62, %p63
    %s65 = ssub.s32 %s10, %s17
    %p66 = scmp.eq.s32.totalorder %s65, 0
    %s68 = sadd.s32 %s67, 1
    %s69 = scalar_select %p66, %s67, %s68
    %p72 = pneg %p66
    %p73 = scmp.eq.s32.totalorder %s10, 1
    %p74 = por %p72, %p73
    %p75 = scmp.ne.s32.totalorder %s67, %s70
    %p76 = scmp.eq.s32.totalorder %s10, 0
    %p77 = por %p75, %p76
    %p78 = scmp.ne.s32.totalorder %s67, %s70
    %p79 = scmp.eq.s32.totalorder %s15, 1
    %p80 = por %p78, %p79
    %p81 = scmp.ne.s32.totalorder %s70, %s71
    %p82 = scmp.eq.s32.totalorder %s15, 0
    %p83 = por %p81, %p82
    %p84 = scmp.ne.s32.totalorder %s70, %s71
    %p85 = scmp.eq.s32.totalorder %s16, 1
    %p86 = por %p84, %p85
    %p88 = scmp.ne.s32.totalorder %s71, %s87
    %p89 = scmp.eq.s32.totalorder %s16, 0
    %p90 = por %p88, %p89
    %s91 = ssub.s32 %s10, %s17
    %p92 = scmp.eq.s32.totalorder %s91, 0
    %s94 = sadd.s32 %s93, 1
    %s95 = scalar_select %p92, %s93, %s94
    %p98 = pneg %p92
    %p99 = scmp.eq.s32.totalorder %s10, 1
    %p100 = por %p98, %p99
    %p101 = scmp.ne.s32.totalorder %s93, %s96
    %p102 = scmp.eq.s32.totalorder %s10, 0
    %p103 = por %p101, %p102
    %p104 = scmp.ne.s32.totalorder %s93, %s96
    %p105 = scmp.eq.s32.totalorder %s15, 1
    %p106 = por %p104, %p105
    %p107 = scmp.ne.s32.totalorder %s96, %s97
    %p108 = scmp.eq.s32.totalorder %s15, 0
    %p109 = por %p107, %p108
    %p110 = scmp.ne.s32.totalorder %s96, %s97
    %p111 = scmp.eq.s32.totalorder %s16, 1
    %p112 = por %p110, %p111
    %p114 = scmp.ne.s32.totalorder %s97, %s113
    %p115 = scmp.eq.s32.totalorder %s16, 0
    %p116 = por %p114, %p115
    %p117 = scmp.le.s32.totalorder 1, %s10
    %p118 = scmp.lt.s32.totalorder %s10, 3
    %p119 = pnand %p117, %p118
    %p120 = pneg %p119
    // Predicated region
    $region9: #{encoder_block_forward.3} parent=5 // pred_check
      _
    $region10: #{encoder_block_forward.3} parent=5 // pred_check_branch
      %122 = sbr.rel (%p119) target = $region12
    $region11: #{encoder_block_forward.3} parent=5 // pred_region
      %s123 = ssub.s32 %s10, 1
      // Predicated region
      $region13: #{encoder_block_forward.3} parent=11 // pred_check
        %p124 = pneg %p57
      $region14: #{encoder_block_forward.3} parent=11 // pred_check_branch
        %126 = sbr.rel (%p124) target = $region16
      $region15: #{encoder_block_forward.3} parent=11 // pred_region
        _
      $region16: #{encoder_block_forward.3} parent=11 // pred_fallthru
        _
    $region12: #{encoder_block_forward.3} parent=5 // pred_fallthru
      _
    %p127 = scmp.lt.s32.totalorder %s10, 2
    // Predicated region
    $region17: #{encoder_block_forward.3} parent=5 // pred_check
      %p128 = pneg %p127
    $region18: #{encoder_block_forward.3} parent=5 // pred_check_branch
      %130 = sbr.rel (%p128) target = $region20
    $region19: #{encoder_block_forward.3} parent=5 // pred_region
      // Predicated region
      $region21: #{encoder_block_forward.3} parent=19 // pred_check
        %p131 = pneg %p30
      $region22: #{encoder_block_forward.3} parent=19 // pred_check_branch
        %133 = sbr.rel (%p131) target = $region24
      $region23: #{encoder_block_forward.3} parent=19 // pred_region
        %p134 = scmp.lt.s32.totalorder %s10, 1
        %s135 = scalar_select %p134, %s10, 1
        %s136 = smul.addr %s135, 100
        %s137 = smul.addr %s136, 4
        %s138 = scalar_lea.vmem %s0, %s137
      $region24: #{encoder_block_forward.3} parent=19 // pred_fallthru
        _
    $region20: #{encoder_block_forward.3} parent=5 // pred_fallthru
      _
    %p139 = scmp.le.s32.totalorder 1, %s10
    %p140 = scmp.lt.s32.totalorder %s10, 3
    %p141 = pnand %p139, %p140
    %p142 = pneg %p141
    // Predicated region
    $region25: #{encoder_block_forward.3} parent=5 // pred_check
      _
    $region26: #{encoder_block_forward.3} parent=5 // pred_check_branch
      %144 = sbr.rel (%p141) target = $region28
    $region27: #{encoder_block_forward.3} parent=5 // pred_region
      %s145 = ssub.s32 %s10, 1
      %p146 = scmp.lt.s32.totalorder %s15, 1
      %s147 = scalar_select %p146, %s15, 1
      %s148 = smul.addr %s147, 100
      %s149 = smul.addr %s148, 4
      %s150 = scalar_lea.vmem %s0, %s149
      %p151 = pneg %p36
      %p152 = pneg %p33
      %p153 = pneg %p57
      %p154 = pneg %p54
      %p155 = pneg %p83
      %p156 = pneg %p80
      %p157 = scmp.lt.s32.totalorder %s15, 1
      %s158 = scalar_select %p157, %s15, 1
      %s159 = smul.addr %s158, 32
      %s160 = smul.addr %s159, 4
      %s161 = scalar_lea.vmem %s2, %s160
      %p162 = pneg %p109
      %p163 = pneg %p106
      %p164 = scmp.lt.s32.totalorder %s15, 1
      %s165 = scalar_select %p164, %s15, 1
      %s166 = smul.addr %s165, 4
      %s167 = smul.addr %s166, 8
      %s168 = scalar_lea.vmem %s3, %s167
      %p169 = scmp.lt.s32.totalorder %s15, 1
      %s170 = scalar_select %p169, %s15, 1
      %s171 = smul.addr %s170, 100
      %s172 = smul.addr %s171, 4
      %s173 = scalar_lea.vmem %s0, %s172
      %p174 = scmp.lt.s32.totalorder %s15, 1
      %s175 = scalar_select %p174, %s15, 1
      %s176 = smul.addr %s175, 32
      %s177 = smul.addr %s176, 4
      %s178 = scalar_lea.vmem %s2, %s177
      %p179 = scmp.lt.s32.totalorder %s15, 1
      %s180 = scalar_select %p179, %s15, 1
      %s181 = smul.addr %s180, 4
      %s182 = smul.addr %s181, 8
      %s183 = scalar_lea.vmem %s3, %s182
      %v185 = vld [vmem:[%s1] sm:$0xf]
      %v186 = vld [vmem:[%s1 + $0x4] sm:$0xf]
      %s187 = scalar_lea.vmem %s1, 8
      %v188 = vld [vmem:[%s187] sm:$0xf]
      %v189 = vld [vmem:[%s187 + $0x4] sm:$0xf]
      %s190 = scalar_lea.vmem %s1, 16
      %v191 = vld [vmem:[%s190] sm:$0xf]
      %v192 = vld [vmem:[%s190 + $0x4] sm:$0xf]
      %v193 = vld [vmem:[%s173] sm:$0xff]
      %v194 = vld [vmem:[%s173 + $0x50] sm:$0xff]
      %v195 = vld [vmem:[%s173 + $0xa0] sm:$0xff]
      %v196 = vld [vmem:[%s173 + $0xf0] sm:$0xff]
      %v197 = vld [vmem:[%s173 + $0x140] sm:$0x33]
      %v198 = vld [vmem:[%s173 + $0x8] sm:$0xff]
      %v199 = vld [vmem:[%s173 + $0x58] sm:$0xff]
      %v200 = vld [vmem:[%s173 + $0xa8] sm:$0xff]
      %v201 = vld [vmem:[%s173 + $0xf8] sm:$0xff]
      %v202 = vld [vmem:[%s173 + $0x148] sm:$0x33]
      %v205 = vunpack.c.l.b16 %v188
      %v206 = vunpack.c.l.b16 %v189
      %v207 = vpack.c.b16 %v206, %v205
      %v213 = vunpack.c.l.b16 %v198
      %v214 = vunpack.c.h.b16 %v198
      %v215 = vunpack.c.l.b16 %v199
      %v216 = vunpack.c.h.b16 %v199
      %v217 = vunpack.c.l.b16 %v200
      %v218 = vunpack.c.h.b16 %v200
      %v219 = vunpack.c.l.b16 %v201
      %v220 = vunpack.c.h.b16 %v201
      %v221 = vunpack.c.l.b16 %v202
      %v222 = vunpack.c.h.b16 %v202
      %v223 = vpack.c.b16 %v215, %v213
      %v224 = vpack.c.b16 %v216, %v214
      %v225 = vpack.c.b16 %v219, %v217
      %v226 = vpack.c.b16 %v220, %v218
      %v227 = vpack.c.b16 %v221, %v221
      %v228 = vpack.c.b16 %v222, %v222
      %vm233 = vcmask 293888
      %v235 = vsel %vm233, %v207, 0
      %vm237 = vcmask 1041408
      %v239 = vsel %vm237, %v227, 0
      %v242 = vsel %vm237, %v228, 0
      %244 = vmatprep.subr.bf16.mxu0 0
      %245 = vmatpush1.bf16.msra.mxu0 0
      %246 = vmatprep.subr.bf16.mxu0 0
      %247 = vmatpush1.bf16.msra.mxu0 0
      %248 = vmatprep.subr.bf16.mxu0 0
      %249 = vmatpush1.bf16.msra.mxu0 0
      %250 = vmatprep.subr.bf16.mxu0 0
      %251 = vmatpush1.bf16.msra.mxu0 0
      %252 = vmatprep.subr.bf16.mxu0 0
      %253 = vmatpush1.bf16.msra.mxu0 0
      %254 = vmatprep.subr.bf16.mxu0 %v242
      %255 = vmatpush1.bf16.msra.mxu0 %v239
      %256 = vmatprep.subr.bf16.mxu0 %v226
      %257 = vmatpush1.bf16.msra.mxu0 %v225
      %258 = vmatprep.subr.bf16.mxu0 %v224
      %259 = vmatpush1.bf16.msra.mxu0 %v223
      %260 = vmatprep.subr.bf16.mxu0 0
      %261 = vmatpush2.bf16.msra.mxu0 0
      %262 = vmatprep.subr.bf16.mxu0 0
      %263 = vmatpush2.bf16.msra.mxu0 0
      %264 = vmatprep.subr.bf16.mxu0 0
      %265 = vmatpush2.bf16.msra.mxu0 0
      %266 = vmatprep.subr.bf16.mxu0 0
      %267 = vmatpush2.bf16.msra.mxu0 0
      %268 = vmatprep.subr.bf16.mxu0 0
      %269 = vmatpush2.bf16.msra.mxu0 0
      %270 = vmatprep.subr.bf16.mxu0 0
      %271 = vmatpush2.bf16.msra.mxu0 0
      %272 = vmatprep.subr.bf16.mxu0 0
      %273 = vmatpush2.bf16.msra.mxu0 0
      %274 = vmatprep.subr.bf16.mxu0 0
      %275 = vmatpush2.bf16.msra.mxu0 0
      %276 = vmatprep.mubr.bf16.mxu0 0
      %277 = vmatmul.mubr.bf16.gmra.mxu0 %v235
      %v278 = vpop.f32.mrf.mxu0
      %v279 = vadd.f32 0.0, %v278
      %v280 = vpop.f32.mrf.mxu0
      %v281 = vadd.f32 0.0, %v280
      %v282 = vpop.f32.mrf.mxu0
      %v283 = vadd.f32 0.0, %v282
      %v284 = vpop.f32.mrf.mxu0
      %v285 = vadd.f32 0.0, %v284
      %286 = vdwg.mxu0
      %v289 = vunpack.c.l.b16 %v185
      %v290 = vunpack.c.l.b16 %v186
      %v291 = vpack.c.b16 %v290, %v289
      %v297 = vunpack.c.l.b16 %v193
      %v298 = vunpack.c.h.b16 %v193
      %v299 = vunpack.c.l.b16 %v194
      %v300 = vunpack.c.h.b16 %v194
      %v301 = vunpack.c.l.b16 %v195
      %v302 = vunpack.c.h.b16 %v195
      %v303 = vunpack.c.l.b16 %v196
      %v304 = vunpack.c.h.b16 %v196
      %v305 = vunpack.c.l.b16 %v197
      %v306 = vunpack.c.h.b16 %v197
      %v307 = vpack.c.b16 %v299, %v297
      %v308 = vpack.c.b16 %v300, %v298
      %v309 = vpack.c.b16 %v303, %v301
      %v310 = vpack.c.b16 %v304, %v302
      %v311 = vpack.c.b16 %v305, %v305
      %v312 = vpack.c.b16 %v306, %v306
      %v318 = vsel %vm233, %v291, 0
      %v321 = vsel %vm237, %v311, 0
      %v324 = vsel %vm237, %v312, 0
      %326 = vmatprep.subr.bf16.mxu0 0
      %327 = vmatpush1.bf16.msra.mxu0 0
      %328 = vmatprep.subr.bf16.mxu0 0
      %329 = vmatpush1.bf16.msra.mxu0 0
      %330 = vmatprep.subr.bf16.mxu0 0
      %331 = vmatpush1.bf16.msra.mxu0 0
      %332 = vmatprep.subr.bf16.mxu0 0
      %333 = vmatpush1.bf16.msra.mxu0 0
      %334 = vmatprep.subr.bf16.mxu0 0
      %335 = vmatpush1.bf16.msra.mxu0 0
      %336 = vmatprep.subr.bf16.mxu0 %v324
      %337 = vmatpush1.bf16.msra.mxu0 %v321
      %338 = vmatprep.subr.bf16.mxu0 %v310
      %339 = vmatpush1.bf16.msra.mxu0 %v309
      %340 = vmatprep.subr.bf16.mxu0 %v308
      %341 = vmatpush1.bf16.msra.mxu0 %v307
      %342 = vmatprep.subr.bf16.mxu0 0
      %343 = vmatpush2.bf16.msra.mxu0 0
      %344 = vmatprep.subr.bf16.mxu0 0
      %345 = vmatpush2.bf16.msra.mxu0 0
      %346 = vmatprep.subr.bf16.mxu0 0
      %347 = vmatpush2.bf16.msra.mxu0 0
      %348 = vmatprep.subr.bf16.mxu0 0
      %349 = vmatpush2.bf16.msra.mxu0 0
      %350 = vmatprep.subr.bf16.mxu0 0
      %351 = vmatpush2.bf16.msra.mxu0 0
      %352 = vmatprep.subr.bf16.mxu0 0
      %353 = vmatpush2.bf16.msra.mxu0 0
      %354 = vmatprep.subr.bf16.mxu0 0
      %355 = vmatpush2.bf16.msra.mxu0 0
      %356 = vmatprep.subr.bf16.mxu0 0
      %357 = vmatpush2.bf16.msra.mxu0 0
      %358 = vmatprep.mubr.bf16.mxu0 0
      %359 = vmatmul.mubr.bf16.gmra.mxu0 %v318
      %v360 = vpop.f32.mrf.mxu0
      %v361 = vadd.f32 %v279, %v360
      %v362 = vpop.f32.mrf.mxu0
      %v363 = vadd.f32 %v281, %v362
      %v364 = vpop.f32.mrf.mxu0
      %v365 = vadd.f32 %v283, %v364
      %v366 = vpop.f32.mrf.mxu0
      %v367 = vadd.f32 %v285, %v366
      %368 = vdwg.mxu0
      %v369 = vld [vmem:[%s173 + $0x10] sm:$0xff]
      %v370 = vld [vmem:[%s173 + $0x60] sm:$0xff]
      %v371 = vld [vmem:[%s173 + $0xb0] sm:$0xff]
      %v372 = vld [vmem:[%s173 + $0x100] sm:$0xff]
      %v373 = vld [vmem:[%s173 + $0x150] sm:$0x33]
      %v376 = vunpack.c.l.b16 %v191
      %v377 = vunpack.c.l.b16 %v192
      %v378 = vpack.c.b16 %v377, %v376
      %v384 = vunpack.c.l.b16 %v369
      %v385 = vunpack.c.h.b16 %v369
      %v386 = vunpack.c.l.b16 %v370
      %v387 = vunpack.c.h.b16 %v370
      %v388 = vunpack.c.l.b16 %v371
      %v389 = vunpack.c.h.b16 %v371
      %v390 = vunpack.c.l.b16 %v372
      %v391 = vunpack.c.h.b16 %v372
      %v392 = vunpack.c.l.b16 %v373
      %v393 = vunpack.c.h.b16 %v373
      %v394 = vpack.c.b16 %v386, %v384
      %v395 = vpack.c.b16 %v387, %v385
      %v396 = vpack.c.b16 %v390, %v388
      %v397 = vpack.c.b16 %v391, %v389
      %v398 = vpack.c.b16 %v392, %v392
      %v399 = vpack.c.b16 %v393, %v393
      %v405 = vsel %vm233, %v378, 0
      %v408 = vsel %vm237, %v398, 0
      %v411 = vsel %vm237, %v399, 0
      %413 = vmatprep.subr.bf16.mxu0 0
      %414 = vmatpush1.bf16.msra.mxu0 0
      %415 = vmatprep.subr.bf16.mxu0 0
      %416 = vmatpush1.bf16.msra.mxu0 0
      %417 = vmatprep.subr.bf16.mxu0 0
      %418 = vmatpush1.bf16.msra.mxu0 0
      %419 = vmatprep.subr.bf16.mxu0 0
      %420 = vmatpush1.bf16.msra.mxu0 0
      %421 = vmatprep.subr.bf16.mxu0 0
      %422 = vmatpush1.bf16.msra.mxu0 0
      %423 = vmatprep.subr.bf16.mxu0 %v411
      %424 = vmatpush1.bf16.msra.mxu0 %v408
      %425 = vmatprep.subr.bf16.mxu0 %v397
      %426 = vmatpush1.bf16.msra.mxu0 %v396
      %427 = vmatprep.subr.bf16.mxu0 %v395
      %428 = vmatpush1.bf16.msra.mxu0 %v394
      %429 = vmatprep.subr.bf16.mxu0 0
      %430 = vmatpush2.bf16.msra.mxu0 0
      %431 = vmatprep.subr.bf16.mxu0 0
      %432 = vmatpush2.bf16.msra.mxu0 0
      %433 = vmatprep.subr.bf16.mxu0 0
      %434 = vmatpush2.bf16.msra.mxu0 0
      %435 = vmatprep.subr.bf16.mxu0 0
      %436 = vmatpush2.bf16.msra.mxu0 0
      %437 = vmatprep.subr.bf16.mxu0 0
      %438 = vmatpush2.bf16.msra.mxu0 0
      %439 = vmatprep.subr.bf16.mxu0 0
      %440 = vmatpush2.bf16.msra.mxu0 0
      %441 = vmatprep.subr.bf16.mxu0 0
      %442 = vmatpush2.bf16.msra.mxu0 0
      %443 = vmatprep.subr.bf16.mxu0 0
      %444 = vmatpush2.bf16.msra.mxu0 0
      %445 = vmatprep.mubr.bf16.mxu0 0
      %446 = vmatmul.mubr.bf16.gmra.mxu0 %v405
      %v447 = vpop.f32.mrf.mxu0
      %v448 = vadd.f32 0.0, %v447
      %v449 = vpop.f32.mrf.mxu0
      %v450 = vadd.f32 0.0, %v449
      %v451 = vpop.f32.mrf.mxu0
      %v452 = vadd.f32 0.0, %v451
      %v453 = vpop.f32.mrf.mxu0
      %v454 = vadd.f32 0.0, %v453
      %455 = vdwg.mxu0
      %v456 = vadd.f32 %v361, %v448
      %v457 = vadd.f32 %v363, %v450
      %v458 = vadd.f32 %v365, %v452
      %v459 = vadd.f32 %v367, %v454
      %v460 = vpack.c.bf16 %v458, %v456
      %v461 = vpack.c.bf16 %v459, %v457
      %v464 = vunpack.c.l.b16 %v460
      %v465 = vunpack.c.l.b16 %v461
      %v466 = vunpack.c.h.b16 %v460
      %v467 = vunpack.c.h.b16 %v461
      %v468 = vpack.c.b16 %v465, %v464
      %v469 = vpack.c.b16 %v467, %v466
      %472 = vst [vmem:[%s178] sm:$0xff] %v468
      %473 = vst [vmem:[%s178 + $0x40] sm:$0xff] %v469
      %v474 = vadd.f32 %v456, %v457
      %475 = vadd.xlane.f32.xlu0 %v474
      %v476 = vpop.xlane.xlu0 %475
      %v477 = vadd.f32 %v458, %v459
      %478 = vadd.xlane.f32.xlu0 %v477
      %v479 = vpop.xlane.xlu0 %478
      %v480 = vadd.f32 %v476, 0.0
      %v481 = vadd.f32 %v479, 0.0
      %v482 = vmul.f32 %v456, %v456
      %v483 = vmul.f32 %v457, %v457
      %v484 = vmul.f32 %v458, %v458
      %v485 = vmul.f32 %v459, %v459
      %v486 = vadd.f32 %v482, %v483
      %487 = vadd.xlane.f32.xlu0 %v486
      %v488 = vpop.xlane.xlu0 %487
      %v489 = vadd.f32 %v484, %v485
      %490 = vadd.xlane.f32.xlu0 %v489
      %v491 = vpop.xlane.xlu0 %490
      %v492 = vadd.f32 %v488, 0.0
      %v493 = vadd.f32 %v491, 0.0
      %v494 = vld [vmem:[%s173 + $0x8] sm:$0xff]
      %v495 = vld [vmem:[%s173 + $0x58] sm:$0xff]
      %v496 = vld [vmem:[%s173 + $0xa8] sm:$0xff]
      %v497 = vld [vmem:[%s173 + $0xf8] sm:$0xff]
      %v498 = vld [vmem:[%s173 + $0x148] sm:$0x33]
      %v499 = vld [vmem:[%s173 + $0x10] sm:$0xff]
      %v500 = vld [vmem:[%s173 + $0x60] sm:$0xff]
      %v501 = vld [vmem:[%s173 + $0xb0] sm:$0xff]
      %v502 = vld [vmem:[%s173 + $0x100] sm:$0xff]
      %v503 = vld [vmem:[%s173 + $0x150] sm:$0x33]
      %v509 = vunpack.c.l.b16 %v499
      %v510 = vunpack.c.h.b16 %v499
      %v511 = vunpack.c.l.b16 %v500
      %v512 = vunpack.c.h.b16 %v500
      %v513 = vunpack.c.l.b16 %v501
      %v514 = vunpack.c.h.b16 %v501
      %v515 = vunpack.c.l.b16 %v502
      %v516 = vunpack.c.h.b16 %v502
      %v517 = vunpack.c.l.b16 %v503
      %v518 = vunpack.c.h.b16 %v503
      %v519 = vpack.c.b16 %v511, %v509
      %v520 = vpack.c.b16 %v512, %v510
      %v521 = vpack.c.b16 %v515, %v513
      %v522 = vpack.c.b16 %v516, %v514
      %v523 = vpack.c.b16 %v517, %v517
      %v524 = vpack.c.b16 %v518, %v518
      %v530 = vsel %vm237, %v523, 0
      %v533 = vsel %vm237, %v524, 0
      %535 = vmatprep.subr.bf16.mxu0 0
      %536 = vmatpush1.bf16.msra.mxu0 0
      %537 = vmatprep.subr.bf16.mxu0 0
      %538 = vmatpush1.bf16.msra.mxu0 0
      %539 = vmatprep.subr.bf16.mxu0 0
      %540 = vmatpush1.bf16.msra.mxu0 0
      %541 = vmatprep.subr.bf16.mxu0 0
      %542 = vmatpush1.bf16.msra.mxu0 0
      %543 = vmatprep.subr.bf16.mxu0 0
      %544 = vmatpush1.bf16.msra.mxu0 0
      %545 = vmatprep.subr.bf16.mxu0 %v533
      %546 = vmatpush1.bf16.msra.mxu0 %v530
      %547 = vmatprep.subr.bf16.mxu0 %v522
      %548 = vmatpush1.bf16.msra.mxu0 %v521
      %549 = vmatprep.subr.bf16.mxu0 %v520
      %550 = vmatpush1.bf16.msra.mxu0 %v519
      %551 = vmatprep.subr.bf16.mxu0 0
      %552 = vmatpush2.bf16.msra.mxu0 0
      %553 = vmatprep.subr.bf16.mxu0 0
      %554 = vmatpush2.bf16.msra.mxu0 0
      %555 = vmatprep.subr.bf16.mxu0 0
      %556 = vmatpush2.bf16.msra.mxu0 0
      %557 = vmatprep.subr.bf16.mxu0 0
      %558 = vmatpush2.bf16.msra.mxu0 0
      %559 = vmatprep.subr.bf16.mxu0 0
      %560 = vmatpush2.bf16.msra.mxu0 0
      %561 = vmatprep.subr.bf16.mxu0 0
      %562 = vmatpush2.bf16.msra.mxu0 0
      %563 = vmatprep.subr.bf16.mxu0 0
      %564 = vmatpush2.bf16.msra.mxu0 0
      %565 = vmatprep.subr.bf16.mxu0 0
      %566 = vmatpush2.bf16.msra.mxu0 0
      %567 = vmatprep.mubr.bf16.mxu0 0
      %568 = vmatmul.mubr.bf16.gmra.mxu0 %v235
      %v569 = vpop.f32.mrf.mxu0
      %v570 = vadd.f32 0.0, %v569
      %v571 = vpop.f32.mrf.mxu0
      %v572 = vadd.f32 0.0, %v571
      %v573 = vpop.f32.mrf.mxu0
      %v574 = vadd.f32 0.0, %v573
      %v575 = vpop.f32.mrf.mxu0
      %v576 = vadd.f32 0.0, %v575
      %577 = vdwg.mxu0
      %v583 = vunpack.c.l.b16 %v494
      %v584 = vunpack.c.h.b16 %v494
      %v585 = vunpack.c.l.b16 %v495
      %v586 = vunpack.c.h.b16 %v495
      %v587 = vunpack.c.l.b16 %v496
      %v588 = vunpack.c.h.b16 %v496
      %v589 = vunpack.c.l.b16 %v497
      %v590 = vunpack.c.h.b16 %v497
      %v591 = vunpack.c.l.b16 %v498
      %v592 = vunpack.c.h.b16 %v498
      %v593 = vpack.c.b16 %v585, %v583
      %v594 = vpack.c.b16 %v586, %v584
      %v595 = vpack.c.b16 %v589, %v587
      %v596 = vpack.c.b16 %v590, %v588
      %v597 = vpack.c.b16 %v591, %v591
      %v598 = vpack.c.b16 %v592, %v592
      %v604 = vsel %vm237, %v597, 0
      %v607 = vsel %vm237, %v598, 0
      %609 = vmatprep.subr.bf16.mxu0 0
      %610 = vmatpush1.bf16.msra.mxu0 0
      %611 = vmatprep.subr.bf16.mxu0 0
      %612 = vmatpush1.bf16.msra.mxu0 0
      %613 = vmatprep.subr.bf16.mxu0 0
      %614 = vmatpush1.bf16.msra.mxu0 0
      %615 = vmatprep.subr.bf16.mxu0 0
      %616 = vmatpush1.bf16.msra.mxu0 0
      %617 = vmatprep.subr.bf16.mxu0 0
      %618 = vmatpush1.bf16.msra.mxu0 0
      %619 = vmatprep.subr.bf16.mxu0 %v607
      %620 = vmatpush1.bf16.msra.mxu0 %v604
      %621 = vmatprep.subr.bf16.mxu0 %v596
      %622 = vmatpush1.bf16.msra.mxu0 %v595
      %623 = vmatprep.subr.bf16.mxu0 %v594
      %624 = vmatpush1.bf16.msra.mxu0 %v593
      %625 = vmatprep.subr.bf16.mxu0 0
      %626 = vmatpush2.bf16.msra.mxu0 0
      %627 = vmatprep.subr.bf16.mxu0 0
      %628 = vmatpush2.bf16.msra.mxu0 0
      %629 = vmatprep.subr.bf16.mxu0 0
      %630 = vmatpush2.bf16.msra.mxu0 0
      %631 = vmatprep.subr.bf16.mxu0 0
      %632 = vmatpush2.bf16.msra.mxu0 0
      %633 = vmatprep.subr.bf16.mxu0 0
      %634 = vmatpush2.bf16.msra.mxu0 0
      %635 = vmatprep.subr.bf16.mxu0 0
      %636 = vmatpush2.bf16.msra.mxu0 0
      %637 = vmatprep.subr.bf16.mxu0 0
      %638 = vmatpush2.bf16.msra.mxu0 0
      %639 = vmatprep.subr.bf16.mxu0 0
      %640 = vmatpush2.bf16.msra.mxu0 0
      %641 = vmatprep.mubr.bf16.mxu0 0
      %642 = vmatmul.mubr.bf16.gmra.mxu0 %v318
      %v643 = vpop.f32.mrf.mxu0
      %v644 = vadd.f32 %v570, %v643
      %v645 = vpop.f32.mrf.mxu0
      %v646 = vadd.f32 %v572, %v645
      %v647 = vpop.f32.mrf.mxu0
      %v648 = vadd.f32 %v574, %v647
      %v649 = vpop.f32.mrf.mxu0
      %v650 = vadd.f32 %v576, %v649
      %651 = vdwg.mxu0
      %v652 = vld [vmem:[%s173 + $0x18] sm:$0xff]
      %v653 = vld [vmem:[%s173 + $0x68] sm:$0xff]
      %v654 = vld [vmem:[%s173 + $0xb8] sm:$0xff]
      %v655 = vld [vmem:[%s173 + $0x108] sm:$0xff]
      %v656 = vld [vmem:[%s173 + $0x158] sm:$0x33]
      %v662 = vunpack.c.l.b16 %v652
      %v663 = vunpack.c.h.b16 %v652
      %v664 = vunpack.c.l.b16 %v653
      %v665 = vunpack.c.h.b16 %v653
      %v666 = vunpack.c.l.b16 %v654
      %v667 = vunpack.c.h.b16 %v654
      %v668 = vunpack.c.l.b16 %v655
      %v669 = vunpack.c.h.b16 %v655
      %v670 = vunpack.c.l.b16 %v656
      %v671 = vunpack.c.h.b16 %v656
      %v672 = vpack.c.b16 %v664, %v662
      %v673 = vpack.c.b16 %v665, %v663
      %v674 = vpack.c.b16 %v668, %v666
      %v675 = vpack.c.b16 %v669, %v667
      %v676 = vpack.c.b16 %v670, %v670
      %v677 = vpack.c.b16 %v671, %v671
      %v683 = vsel %vm237, %v676, 0
      %v686 = vsel %vm237, %v677, 0
      %688 = vmatprep.subr.bf16.mxu0 0
      %689 = vmatpush1.bf16.msra.mxu0 0
      %690 = vmatprep.subr.bf16.mxu0 0
      %691 = vmatpush1.bf16.msra.mxu0 0
      %692 = vmatprep.subr.bf16.mxu0 0
      %693 = vmatpush1.bf16.msra.mxu0 0
      %694 = vmatprep.subr.bf16.mxu0 0
      %695 = vmatpush1.bf16.msra.mxu0 0
      %696 = vmatprep.subr.bf16.mxu0 0
      %697 = vmatpush1.bf16.msra.mxu0 0
      %698 = vmatprep.subr.bf16.mxu0 %v686
      %699 = vmatpush1.bf16.msra.mxu0 %v683
      %700 = vmatprep.subr.bf16.mxu0 %v675
      %701 = vmatpush1.bf16.msra.mxu0 %v674
      %702 = vmatprep.subr.bf16.mxu0 %v673
      %703 = vmatpush1.bf16.msra.mxu0 %v672
      %704 = vmatprep.subr.bf16.mxu0 0
      %705 = vmatpush2.bf16.msra.mxu0 0
      %706 = vmatprep.subr.bf16.mxu0 0
      %707 = vmatpush2.bf16.msra.mxu0 0
      %708 = vmatprep.subr.bf16.mxu0 0
      %709 = vmatpush2.bf16.msra.mxu0 0
      %710 = vmatprep.subr.bf16.mxu0 0
      %711 = vmatpush2.bf16.msra.mxu0 0
      %712 = vmatprep.subr.bf16.mxu0 0
      %713 = vmatpush2.bf16.msra.mxu0 0
      %714 = vmatprep.subr.bf16.mxu0 0
      %715 = vmatpush2.bf16.msra.mxu0 0
      %716 = vmatprep.subr.bf16.mxu0 0
      %717 = vmatpush2.bf16.msra.mxu0 0
      %718 = vmatprep.subr.bf16.mxu0 0
      %719 = vmatpush2.bf16.msra.mxu0 0
      %720 = vmatprep.mubr.bf16.mxu0 0
      %721 = vmatmul.mubr.bf16.gmra.mxu0 %v405
      %v722 = vpop.f32.mrf.mxu0
      %v723 = vadd.f32 0.0, %v722
      %v724 = vpop.f32.mrf.mxu0
      %v725 = vadd.f32 0.0, %v724
      %v726 = vpop.f32.mrf.mxu0
      %v727 = vadd.f32 0.0, %v726
      %v728 = vpop.f32.mrf.mxu0
      %v729 = vadd.f32 0.0, %v728
      %730 = vdwg.mxu0
      %v731 = vadd.f32 %v644, %v723
      %v732 = vadd.f32 %v646, %v725
      %v733 = vadd.f32 %v648, %v727
      %v734 = vadd.f32 %v650, %v729
      %v735 = vpack.c.bf16 %v733, %v731
      %v736 = vpack.c.bf16 %v734, %v732
      %v739 = vunpack.c.l.b16 %v735
      %v740 = vunpack.c.l.b16 %v736
      %v741 = vunpack.c.h.b16 %v735
      %v742 = vunpack.c.h.b16 %v736
      %v743 = vpack.c.b16 %v740, %v739
      %v744 = vpack.c.b16 %v742, %v741
      %747 = vst [vmem:[%s178 + $0x8] sm:$0xff] %v743
      %748 = vst [vmem:[%s178 + $0x48] sm:$0xff] %v744
      %v749 = vadd.f32 %v731, %v732
      %750 = vadd.xlane.f32.xlu0 %v749
      %v751 = vpop.xlane.xlu0 %750
      %v752 = vadd.f32 %v733, %v734
      %753 = vadd.xlane.f32.xlu0 %v752
      %v754 = vpop.xlane.xlu0 %753
      %v755 = vadd.f32 %v480, %v751
      %v756 = vadd.f32 %v481, %v754
      %v757 = vmul.f32 %v731, %v731
      %v758 = vmul.f32 %v732, %v732
      %v759 = vmul.f32 %v733, %v733
      %v760 = vmul.f32 %v734, %v734
      %v761 = vadd.f32 %v757, %v758
      %762 = vadd.xlane.f32.xlu0 %v761
      %v763 = vpop.xlane.xlu0 %762
      %v764 = vadd.f32 %v759, %v760
      %765 = vadd.xlane.f32.xlu0 %v764
      %v766 = vpop.xlane.xlu0 %765
      %v767 = vadd.f32 %v492, %v763
      %v768 = vadd.f32 %v493, %v766
      %v769 = vld [vmem:[%s173 + $0x10] sm:$0xff]
      %v770 = vld [vmem:[%s173 + $0x60] sm:$0xff]
      %v771 = vld [vmem:[%s173 + $0xb0] sm:$0xff]
      %v772 = vld [vmem:[%s173 + $0x100] sm:$0xff]
      %v773 = vld [vmem:[%s173 + $0x150] sm:$0x33]
      %v774 = vld [vmem:[%s173 + $0x18] sm:$0xff]
      %v775 = vld [vmem:[%s173 + $0x68] sm:$0xff]
      %v776 = vld [vmem:[%s173 + $0xb8] sm:$0xff]
      %v777 = vld [vmem:[%s173 + $0x108] sm:$0xff]
      %v778 = vld [vmem:[%s173 + $0x158] sm:$0x33]
      %v784 = vunpack.c.l.b16 %v774
      %v785 = vunpack.c.h.b16 %v774
      %v786 = vunpack.c.l.b16 %v775
      %v787 = vunpack.c.h.b16 %v775
      %v788 = vunpack.c.l.b16 %v776
      %v789 = vunpack.c.h.b16 %v776
      %v790 = vunpack.c.l.b16 %v777
      %v791 = vunpack.c.h.b16 %v777
      %v792 = vunpack.c.l.b16 %v778
      %v793 = vunpack.c.h.b16 %v778
      %v794 = vpack.c.b16 %v786, %v784
      %v795 = vpack.c.b16 %v787, %v785
      %v796 = vpack.c.b16 %v790, %v788
      %v797 = vpack.c.b16 %v791, %v789
      %v798 = vpack.c.b16 %v792, %v792
      %v799 = vpack.c.b16 %v793, %v793
      %v805 = vsel %vm237, %v798, 0
      %v808 = vsel %vm237, %v799, 0
      %810 = vmatprep.subr.bf16.mxu0 0
      %811 = vmatpush1.bf16.msra.mxu0 0
      %812 = vmatprep.subr.bf16.mxu0 0
      %813 = vmatpush1.bf16.msra.mxu0 0
      %814 = vmatprep.subr.bf16.mxu0 0
      %815 = vmatpush1.bf16.msra.mxu0 0
      %816 = vmatprep.subr.bf16.mxu0 0
      %817 = vmatpush1.bf16.msra.mxu0 0
      %818 = vmatprep.subr.bf16.mxu0 0
      %819 = vmatpush1.bf16.msra.mxu0 0
      %820 = vmatprep.subr.bf16.mxu0 %v808
      %821 = vmatpush1.bf16.msra.mxu0 %v805
      %822 = vmatprep.subr.bf16.mxu0 %v797
      %823 = vmatpush1.bf16.msra.mxu0 %v796
      %824 = vmatprep.subr.bf16.mxu0 %v795
      %825 = vmatpush1.bf16.msra.mxu0 %v794
      %826 = vmatprep.subr.bf16.mxu0 0
      %827 = vmatpush2.bf16.msra.mxu0 0
      %828 = vmatprep.subr.bf16.mxu0 0
      %829 = vmatpush2.bf16.msra.mxu0 0
      %830 = vmatprep.subr.bf16.mxu0 0
      %831 = vmatpush2.bf16.msra.mxu0 0
      %832 = vmatprep.subr.bf16.mxu0 0
      %833 = vmatpush2.bf16.msra.mxu0 0
      %834 = vmatprep.subr.bf16.mxu0 0
      %835 = vmatpush2.bf16.msra.mxu0 0
      %836 = vmatprep.subr.bf16.mxu0 0
      %837 = vmatpush2.bf16.msra.mxu0 0
      %838 = vmatprep.subr.bf16.mxu0 0
      %839 = vmatpush2.bf16.msra.mxu0 0
      %840 = vmatprep.subr.bf16.mxu0 0
      %841 = vmatpush2.bf16.msra.mxu0 0
      %842 = vmatprep.mubr.bf16.mxu0 0
      %843 = vmatmul.mubr.bf16.gmra.mxu0 %v235
      %v844 = vpop.f32.mrf.mxu0
      %v845 = vadd.f32 0.0, %v844
      %v846 = vpop.f32.mrf.mxu0
      %v847 = vadd.f32 0.0, %v846
      %v848 = vpop.f32.mrf.mxu0
      %v849 = vadd.f32 0.0, %v848
      %v850 = vpop.f32.mrf.mxu0
      %v851 = vadd.f32 0.0, %v850
      %852 = vdwg.mxu0
      %v858 = vunpack.c.l.b16 %v769
      %v859 = vunpack.c.h.b16 %v769
      %v860 = vunpack.c.l.b16 %v770
      %v861 = vunpack.c.h.b16 %v770
      %v862 = vunpack.c.l.b16 %v771
      %v863 = vunpack.c.h.b16 %v771
      %v864 = vunpack.c.l.b16 %v772
      %v865 = vunpack.c.h.b16 %v772
      %v866 = vunpack.c.l.b16 %v773
      %v867 = vunpack.c.h.b16 %v773
      %v868 = vpack.c.b16 %v860, %v858
      %v869 = vpack.c.b16 %v861, %v859
      %v870 = vpack.c.b16 %v864, %v862
      %v871 = vpack.c.b16 %v865, %v863
      %v872 = vpack.c.b16 %v866, %v866
      %v873 = vpack.c.b16 %v867, %v867
      %v879 = vsel %vm237, %v872, 0
      %v882 = vsel %vm237, %v873, 0
      %884 = vmatprep.subr.bf16.mxu0 0
      %885 = vmatpush1.bf16.msra.mxu0 0
      %886 = vmatprep.subr.bf16.mxu0 0
      %887 = vmatpush1.bf16.msra.mxu0 0
      %888 = vmatprep.subr.bf16.mxu0 0
      %889 = vmatpush1.bf16.msra.mxu0 0
      %890 = vmatprep.subr.bf16.mxu0 0
      %891 = vmatpush1.bf16.msra.mxu0 0
      %892 = vmatprep.subr.bf16.mxu0 0
      %893 = vmatpush1.bf16.msra.mxu0 0
      %894 = vmatprep.subr.bf16.mxu0 %v882
      %895 = vmatpush1.bf16.msra.mxu0 %v879
      %896 = vmatprep.subr.bf16.mxu0 %v871
      %897 = vmatpush1.bf16.msra.mxu0 %v870
      %898 = vmatprep.subr.bf16.mxu0 %v869
      %899 = vmatpush1.bf16.msra.mxu0 %v868
      %900 = vmatprep.subr.bf16.mxu0 0
      %901 = vmatpush2.bf16.msra.mxu0 0
      %902 = vmatprep.subr.bf16.mxu0 0
      %903 = vmatpush2.bf16.msra.mxu0 0
      %904 = vmatprep.subr.bf16.mxu0 0
      %905 = vmatpush2.bf16.msra.mxu0 0
      %906 = vmatprep.subr.bf16.mxu0 0
      %907 = vmatpush2.bf16.msra.mxu0 0
      %908 = vmatprep.subr.bf16.mxu0 0
      %909 = vmatpush2.bf16.msra.mxu0 0
      %910 = vmatprep.subr.bf16.mxu0 0
      %911 = vmatpush2.bf16.msra.mxu0 0
      %912 = vmatprep.subr.bf16.mxu0 0
      %913 = vmatpush2.bf16.msra.mxu0 0
      %914 = vmatprep.subr.bf16.mxu0 0
      %915 = vmatpush2.bf16.msra.mxu0 0
      %916 = vmatprep.mubr.bf16.mxu0 0
      %917 = vmatmul.mubr.bf16.gmra.mxu0 %v318
      %v918 = vpop.f32.mrf.mxu0
      %v919 = vadd.f32 %v845, %v918
      %v920 = vpop.f32.mrf.mxu0
      %v921 = vadd.f32 %v847, %v920
      %v922 = vpop.f32.mrf.mxu0
      %v923 = vadd.f32 %v849, %v922
      %v924 = vpop.f32.mrf.mxu0
      %v925 = vadd.f32 %v851, %v924
      %926 = vdwg.mxu0
      %v927 = vld [vmem:[%s173 + $0x20] sm:$0xff]
      %v928 = vld [vmem:[%s173 + $0x70] sm:$0xff]
      %v929 = vld [vmem:[%s173 + $0xc0] sm:$0xff]
      %v930 = vld [vmem:[%s173 + $0x110] sm:$0xff]
      %v931 = vld [vmem:[%s173 + $0x160] sm:$0x33]
      %v937 = vunpack.c.l.b16 %v927
      %v938 = vunpack.c.h.b16 %v927
      %v939 = vunpack.c.l.b16 %v928
      %v940 = vunpack.c.h.b16 %v928
      %v941 = vunpack.c.l.b16 %v929
      %v942 = vunpack.c.h.b16 %v929
      %v943 = vunpack.c.l.b16 %v930
      %v944 = vunpack.c.h.b16 %v930
      %v945 = vunpack.c.l.b16 %v931
      %v946 = vunpack.c.h.b16 %v931
      %v947 = vpack.c.b16 %v939, %v937
      %v948 = vpack.c.b16 %v940, %v938
      %v949 = vpack.c.b16 %v943, %v941
      %v950 = vpack.c.b16 %v944, %v942
      %v951 = vpack.c.b16 %v945, %v945
      %v952 = vpack.c.b16 %v946, %v946
      %v958 = vsel %vm237, %v951, 0
      %v961 = vsel %vm237, %v952, 0
      %963 = vmatprep.subr.bf16.mxu0 0
      %964 = vmatpush1.bf16.msra.mxu0 0
      %965 = vmatprep.subr.bf16.mxu0 0
      %966 = vmatpush1.bf16.msra.mxu0 0
      %967 = vmatprep.subr.bf16.mxu0 0
      %968 = vmatpush1.bf16.msra.mxu0 0
      %969 = vmatprep.subr.bf16.mxu0 0
      %970 = vmatpush1.bf16.msra.mxu0 0
      %971 = vmatprep.subr.bf16.mxu0 0
      %972 = vmatpush1.bf16.msra.mxu0 0
      %973 = vmatprep.subr.bf16.mxu0 %v961
      %974 = vmatpush1.bf16.msra.mxu0 %v958
      %975 = vmatprep.subr.bf16.mxu0 %v950
      %976 = vmatpush1.bf16.msra.mxu0 %v949
      %977 = vmatprep.subr.bf16.mxu0 %v948
      %978 = vmatpush1.bf16.msra.mxu0 %v947
      %979 = vmatprep.subr.bf16.mxu0 0
      %980 = vmatpush2.bf16.msra.mxu0 0
      %981 = vmatprep.subr.bf16.mxu0 0
      %982 = vmatpush2.bf16.msra.mxu0 0
      %983 = vmatprep.subr.bf16.mxu0 0
      %984 = vmatpush2.bf16.msra.mxu0 0
      %985 = vmatprep.subr.bf16.mxu0 0
      %986 = vmatpush2.bf16.msra.mxu0 0
      %987 = vmatprep.subr.bf16.mxu0 0
      %988 = vmatpush2.bf16.msra.mxu0 0
      %989 = vmatprep.subr.bf16.mxu0 0
      %990 = vmatpush2.bf16.msra.mxu0 0
      %991 = vmatprep.subr.bf16.mxu0 0
      %992 = vmatpush2.bf16.msra.mxu0 0
      %993 = vmatprep.subr.bf16.mxu0 0
      %994 = vmatpush2.bf16.msra.mxu0 0
      %995 = vmatprep.mubr.bf16.mxu0 0
      %996 = vmatmul.mubr.bf16.gmra.mxu0 %v405
      %v997 = vpop.f32.mrf.mxu0
      %v998 = vadd.f32 0.0, %v997
      %v999 = vpop.f32.mrf.mxu0
      %v1000 = vadd.f32 0.0, %v999
      %v1001 = vpop.f32.mrf.mxu0
      %v1002 = vadd.f32 0.0, %v1001
      %v1003 = vpop.f32.mrf.mxu0
      %v1004 = vadd.f32 0.0, %v1003
      %1005 = vdwg.mxu0
      %v1006 = vadd.f32 %v919, %v998
      %v1007 = vadd.f32 %v921, %v1000
      %v1008 = vadd.f32 %v923, %v1002
      %v1009 = vadd.f32 %v925, %v1004
      %v1010 = vpack.c.bf16 %v1008, %v1006
      %v1011 = vpack.c.bf16 %v1009, %v1007
      %v1014 = vunpack.c.l.b16 %v1010
      %v1015 = vunpack.c.l.b16 %v1011
      %v1016 = vunpack.c.h.b16 %v1010
      %v1017 = vunpack.c.h.b16 %v1011
      %v1018 = vpack.c.b16 %v1015, %v1014
      %v1019 = vpack.c.b16 %v1017, %v1016
      %1022 = vst [vmem:[%s178 + $0x10] sm:$0xff] %v1018
      %1023 = vst [vmem:[%s178 + $0x50] sm:$0xff] %v1019
      %v1024 = vadd.f32 %v1006, %v1007
      %1025 = vadd.xlane.f32.xlu0 %v1024
      %v1026 = vpop.xlane.xlu0 %1025
      %v1027 = vadd.f32 %v1008, %v1009
      %1028 = vadd.xlane.f32.xlu0 %v1027
      %v1029 = vpop.xlane.xlu0 %1028
      %v1030 = vadd.f32 %v755, %v1026
      %v1031 = vadd.f32 %v756, %v1029
      %v1032 = vmul.f32 %v1006, %v1006
      %v1033 = vmul.f32 %v1007, %v1007
      %v1034 = vmul.f32 %v1008, %v1008
      %v1035 = vmul.f32 %v1009, %v1009
      %v1036 = vadd.f32 %v1032, %v1033
      %1037 = vadd.xlane.f32.xlu0 %v1036
      %v1038 = vpop.xlane.xlu0 %1037
      %v1039 = vadd.f32 %v1034, %v1035
      %1040 = vadd.xlane.f32.xlu0 %v1039
      %v1041 = vpop.xlane.xlu0 %1040
      %v1042 = vadd.f32 %v767, %v1038
      %v1043 = vadd.f32 %v768, %v1041
      %v1044 = vld [vmem:[%s173 + $0x18] sm:$0xff]
      %v1045 = vld [vmem:[%s173 + $0x68] sm:$0xff]
      %v1046 = vld [vmem:[%s173 + $0xb8] sm:$0xff]
      %v1047 = vld [vmem:[%s173 + $0x108] sm:$0xff]
      %v1048 = vld [vmem:[%s173 + $0x158] sm:$0x33]
      %v1049 = vld [vmem:[%s173 + $0x20] sm:$0xff]
      %v1050 = vld [vmem:[%s173 + $0x70] sm:$0xff]
      %v1051 = vld [vmem:[%s173 + $0xc0] sm:$0xff]
      %v1052 = vld [vmem:[%s173 + $0x110] sm:$0xff]
      %v1053 = vld [vmem:[%s173 + $0x160] sm:$0x33]
      %v1059 = vunpack.c.l.b16 %v1049
      %v1060 = vunpack.c.h.b16 %v1049
      %v1061 = vunpack.c.l.b16 %v1050
      %v1062 = vunpack.c.h.b16 %v1050
      %v1063 = vunpack.c.l.b16 %v1051
      %v1064 = vunpack.c.h.b16 %v1051
      %v1065 = vunpack.c.l.b16 %v1052
      %v1066 = vunpack.c.h.b16 %v1052
      %v1067 = vunpack.c.l.b16 %v1053
      %v1068 = vunpack.c.h.b16 %v1053
      %v1069 = vpack.c.b16 %v1061, %v1059
      %v1070 = vpack.c.b16 %v1062, %v1060
      %v1071 = vpack.c.b16 %v1065, %v1063
      %v1072 = vpack.c.b16 %v1066, %v1064
      %v1073 = vpack.c.b16 %v1067, %v1067
      %v1074 = vpack.c.b16 %v1068, %v1068
      %v1080 = vsel %vm237, %v1073, 0
      %v1083 = vsel %vm237, %v1074, 0
      %1085 = vmatprep.subr.bf16.mxu0 0
      %1086 = vmatpush1.bf16.msra.mxu0 0
      %1087 = vmatprep.subr.bf16.mxu0 0
      %1088 = vmatpush1.bf16.msra.mxu0 0
      %1089 = vmatprep.subr.bf16.mxu0 0
      %1090 = vmatpush1.bf16.msra.mxu0 0
      %1091 = vmatprep.subr.bf16.mxu0 0
      %1092 = vmatpush1.bf16.msra.mxu0 0
      %1093 = vmatprep.subr.bf16.mxu0 0
      %1094 = vmatpush1.bf16.msra.mxu0 0
      %1095 = vmatprep.subr.bf16.mxu0 %v1083
      %1096 = vmatpush1.bf16.msra.mxu0 %v1080
      %1097 = vmatprep.subr.bf16.mxu0 %v1072
      %1098 = vmatpush1.bf16.msra.mxu0 %v1071
      %1099 = vmatprep.subr.bf16.mxu0 %v1070
      %1100 = vmatpush1.bf16.msra.mxu0 %v1069
      %1101 = vmatprep.subr.bf16.mxu0 0
      %1102 = vmatpush2.bf16.msra.mxu0 0
      %1103 = vmatprep.subr.bf16.mxu0 0
      %1104 = vmatpush2.bf16.msra.mxu0 0
      %1105 = vmatprep.subr.bf16.mxu0 0
      %1106 = vmatpush2.bf16.msra.mxu0 0
      %1107 = vmatprep.subr.bf16.mxu0 0
      %1108 = vmatpush2.bf16.msra.mxu0 0
      %1109 = vmatprep.subr.bf16.mxu0 0
      %1110 = vmatpush2.bf16.msra.mxu0 0
      %1111 = vmatprep.subr.bf16.mxu0 0
      %1112 = vmatpush2.bf16.msra.mxu0 0
      %1113 = vmatprep.subr.bf16.mxu0 0
      %1114 = vmatpush2.bf16.msra.mxu0 0
      %1115 = vmatprep.subr.bf16.mxu0 0
      %1116 = vmatpush2.bf16.msra.mxu0 0
      %1117 = vmatprep.mubr.bf16.mxu0 0
      %1118 = vmatmul.mubr.bf16.gmra.mxu0 %v235
      %v1119 = vpop.f32.mrf.mxu0
      %v1120 = vadd.f32 0.0, %v1119
      %v1121 = vpop.f32.mrf.mxu0
      %v1122 = vadd.f32 0.0, %v1121
      %v1123 = vpop.f32.mrf.mxu0
      %v1124 = vadd.f32 0.0, %v1123
      %v1125 = vpop.f32.mrf.mxu0
      %v1126 = vadd.f32 0.0, %v1125
      %1127 = vdwg.mxu0
      %v1133 = vunpack.c.l.b16 %v1044
      %v1134 = vunpack.c.h.b16 %v1044
      %v1135 = vunpack.c.l.b16 %v1045
      %v1136 = vunpack.c.h.b16 %v1045
      %v1137 = vunpack.c.l.b16 %v1046
      %v1138 = vunpack.c.h.b16 %v1046
      %v1139 = vunpack.c.l.b16 %v1047
      %v1140 = vunpack.c.h.b16 %v1047
      %v1141 = vunpack.c.l.b16 %v1048
      %v1142 = vunpack.c.h.b16 %v1048
      %v1143 = vpack.c.b16 %v1135, %v1133
      %v1144 = vpack.c.b16 %v1136, %v1134
      %v1145 = vpack.c.b16 %v1139, %v1137
      %v1146 = vpack.c.b16 %v1140, %v1138
      %v1147 = vpack.c.b16 %v1141, %v1141
      %v1148 = vpack.c.b16 %v1142, %v1142
      %v1154 = vsel %vm237, %v1147, 0
      %v1157 = vsel %vm237, %v1148, 0
      %1159 = vmatprep.subr.bf16.mxu0 0
      %1160 = vmatpush1.bf16.msra.mxu0 0
      %1161 = vmatprep.subr.bf16.mxu0 0
      %1162 = vmatpush1.bf16.msra.mxu0 0
      %1163 = vmatprep.subr.bf16.mxu0 0
      %1164 = vmatpush1.bf16.msra.mxu0 0
      %1165 = vmatprep.subr.bf16.mxu0 0
      %1166 = vmatpush1.bf16.msra.mxu0 0
      %1167 = vmatprep.subr.bf16.mxu0 0
      %1168 = vmatpush1.bf16.msra.mxu0 0
      %1169 = vmatprep.subr.bf16.mxu0 %v1157
      %1170 = vmatpush1.bf16.msra.mxu0 %v1154
      %1171 = vmatprep.subr.bf16.mxu0 %v1146
      %1172 = vmatpush1.bf16.msra.mxu0 %v1145
      %1173 = vmatprep.subr.bf16.mxu0 %v1144
      %1174 = vmatpush1.bf16.msra.mxu0 %v1143
      %1175 = vmatprep.subr.bf16.mxu0 0
      %1176 = vmatpush2.bf16.msra.mxu0 0
      %1177 = vmatprep.subr.bf16.mxu0 0
      %1178 = vmatpush2.bf16.msra.mxu0 0
      %1179 = vmatprep.subr.bf16.mxu0 0
      %1180 = vmatpush2.bf16.msra.mxu0 0
      %1181 = vmatprep.subr.bf16.mxu0 0
      %1182 = vmatpush2.bf16.msra.mxu0 0
      %1183 = vmatprep.subr.bf16.mxu0 0
      %1184 = vmatpush2.bf16.msra.mxu0 0
      %1185 = vmatprep.subr.bf16.mxu0 0
      %1186 = vmatpush2.bf16.msra.mxu0 0
      %1187 = vmatprep.subr.bf16.mxu0 0
      %1188 = vmatpush2.bf16.msra.mxu0 0
      %1189 = vmatprep.subr.bf16.mxu0 0
      %1190 = vmatpush2.bf16.msra.mxu0 0
      %1191 = vmatprep.mubr.bf16.mxu0 0
      %1192 = vmatmul.mubr.bf16.gmra.mxu0 %v318
      %v1193 = vpop.f32.mrf.mxu0
      %v1194 = vadd.f32 %v1120, %v1193
      %v1195 = vpop.f32.mrf.mxu0
      %v1196 = vadd.f32 %v1122, %v1195
      %v1197 = vpop.f32.mrf.mxu0
      %v1198 = vadd.f32 %v1124, %v1197
      %v1199 = vpop.f32.mrf.mxu0
      %v1200 = vadd.f32 %v1126, %v1199
      %1201 = vdwg.mxu0
      %v1202 = vld [vmem:[%s173 + $0x28] sm:$0xff]
      %v1203 = vld [vmem:[%s173 + $0x78] sm:$0xff]
      %v1204 = vld [vmem:[%s173 + $0xc8] sm:$0xff]
      %v1205 = vld [vmem:[%s173 + $0x118] sm:$0xff]
      %v1206 = vld [vmem:[%s173 + $0x168] sm:$0x33]
      %v1212 = vunpack.c.l.b16 %v1202
      %v1213 = vunpack.c.h.b16 %v1202
      %v1214 = vunpack.c.l.b16 %v1203
      %v1215 = vunpack.c.h.b16 %v1203
      %v1216 = vunpack.c.l.b16 %v1204
      %v1217 = vunpack.c.h.b16 %v1204
      %v1218 = vunpack.c.l.b16 %v1205
      %v1219 = vunpack.c.h.b16 %v1205
      %v1220 = vunpack.c.l.b16 %v1206
      %v1221 = vunpack.c.h.b16 %v1206
      %v1222 = vpack.c.b16 %v1214, %v1212
      %v1223 = vpack.c.b16 %v1215, %v1213
      %v1224 = vpack.c.b16 %v1218, %v1216
      %v1225 = vpack.c.b16 %v1219, %v1217
      %v1226 = vpack.c.b16 %v1220, %v1220
      %v1227 = vpack.c.b16 %v1221, %v1221
      %v1233 = vsel %vm237, %v1226, 0
      %v1236 = vsel %vm237, %v1227, 0
      %1238 = vmatprep.subr.bf16.mxu0 0
      %1239 = vmatpush1.bf16.msra.mxu0 0
      %1240 = vmatprep.subr.bf16.mxu0 0
      %1241 = vmatpush1.bf16.msra.mxu0 0
      %1242 = vmatprep.subr.bf16.mxu0 0
      %1243 = vmatpush1.bf16.msra.mxu0 0
      %1244 = vmatprep.subr.bf16.mxu0 0
      %1245 = vmatpush1.bf16.msra.mxu0 0
      %1246 = vmatprep.subr.bf16.mxu0 0
      %1247 = vmatpush1.bf16.msra.mxu0 0
      %1248 = vmatprep.subr.bf16.mxu0 %v1236
      %1249 = vmatpush1.bf16.msra.mxu0 %v1233
      %1250 = vmatprep.subr.bf16.mxu0 %v1225
      %1251 = vmatpush1.bf16.msra.mxu0 %v1224
      %1252 = vmatprep.subr.bf16.mxu0 %v1223
      %1253 = vmatpush1.bf16.msra.mxu0 %v1222
      %1254 = vmatprep.subr.bf16.mxu0 0
      %1255 = vmatpush2.bf16.msra.mxu0 0
      %1256 = vmatprep.subr.bf16.mxu0 0
      %1257 = vmatpush2.bf16.msra.mxu0 0
      %1258 = vmatprep.subr.bf16.mxu0 0
      %1259 = vmatpush2.bf16.msra.mxu0 0
      %1260 = vmatprep.subr.bf16.mxu0 0
      %1261 = vmatpush2.bf16.msra.mxu0 0
      %1262 = vmatprep.subr.bf16.mxu0 0
      %1263 = vmatpush2.bf16.msra.mxu0 0
      %1264 = vmatprep.subr.bf16.mxu0 0
      %1265 = vmatpush2.bf16.msra.mxu0 0
      %1266 = vmatprep.subr.bf16.mxu0 0
      %1267 = vmatpush2.bf16.msra.mxu0 0
      %1268 = vmatprep.subr.bf16.mxu0 0
      %1269 = vmatpush2.bf16.msra.mxu0 0
      %1270 = vmatprep.mubr.bf16.mxu0 0
      %1271 = vmatmul.mubr.bf16.gmra.mxu0 %v405
      %v1272 = vpop.f32.mrf.mxu0
      %v1273 = vadd.f32 0.0, %v1272
      %v1274 = vpop.f32.mrf.mxu0
      %v1275 = vadd.f32 0.0, %v1274
      %v1276 = vpop.f32.mrf.mxu0
      %v1277 = vadd.f32 0.0, %v1276
      %v1278 = vpop.f32.mrf.mxu0
      %v1279 = vadd.f32 0.0, %v1278
      %1280 = vdwg.mxu0
      %v1281 = vadd.f32 %v1194, %v1273
      %v1282 = vadd.f32 %v1196, %v1275
      %v1283 = vadd.f32 %v1198, %v1277
      %v1284 = vadd.f32 %v1200, %v1279
      %v1285 = vpack.c.bf16 %v1283, %v1281
      %v1286 = vpack.c.bf16 %v1284, %v1282
      %v1289 = vunpack.c.l.b16 %v1285
      %v1290 = vunpack.c.l.b16 %v1286
      %v1291 = vunpack.c.h.b16 %v1285
      %v1292 = vunpack.c.h.b16 %v1286
      %v1293 = vpack.c.b16 %v1290, %v1289
      %v1294 = vpack.c.b16 %v1292, %v1291
      %1297 = vst [vmem:[%s178 + $0x18] sm:$0xff] %v1293
      %1298 = vst [vmem:[%s178 + $0x58] sm:$0xff] %v1294
      %v1299 = vadd.f32 %v1281, %v1282
      %1300 = vadd.xlane.f32.xlu0 %v1299
      %v1301 = vpop.xlane.xlu0 %1300
      %v1302 = vadd.f32 %v1283, %v1284
      %1303 = vadd.xlane.f32.xlu0 %v1302
      %v1304 = vpop.xlane.xlu0 %1303
      %v1305 = vadd.f32 %v1030, %v1301
      %v1306 = vadd.f32 %v1031, %v1304
      %v1307 = vmul.f32 %v1281, %v1281
      %v1308 = vmul.f32 %v1282, %v1282
      %v1309 = vmul.f32 %v1283, %v1283
      %v1310 = vmul.f32 %v1284, %v1284
      %v1311 = vadd.f32 %v1307, %v1308
      %1312 = vadd.xlane.f32.xlu0 %v1311
      %v1313 = vpop.xlane.xlu0 %1312
      %v1314 = vadd.f32 %v1309, %v1310
      %1315 = vadd.xlane.f32.xlu0 %v1314
      %v1316 = vpop.xlane.xlu0 %1315
      %v1317 = vadd.f32 %v1042, %v1313
      %v1318 = vadd.f32 %v1043, %v1316
      %v1319 = vld [vmem:[%s173 + $0x20] sm:$0xff]
      %v1320 = vld [vmem:[%s173 + $0x70] sm:$0xff]
      %v1321 = vld [vmem:[%s173 + $0xc0] sm:$0xff]
      %v1322 = vld [vmem:[%s173 + $0x110] sm:$0xff]
      %v1323 = vld [vmem:[%s173 + $0x160] sm:$0x33]
      %v1324 = vld [vmem:[%s173 + $0x28] sm:$0xff]
      %v1325 = vld [vmem:[%s173 + $0x78] sm:$0xff]
      %v1326 = vld [vmem:[%s173 + $0xc8] sm:$0xff]
      %v1327 = vld [vmem:[%s173 + $0x118] sm:$0xff]
      %v1328 = vld [vmem:[%s173 + $0x168] sm:$0x33]
      %v1334 = vunpack.c.l.b16 %v1324
      %v1335 = vunpack.c.h.b16 %v1324
      %v1336 = vunpack.c.l.b16 %v1325
      %v1337 = vunpack.c.h.b16 %v1325
      %v1338 = vunpack.c.l.b16 %v1326
      %v1339 = vunpack.c.h.b16 %v1326
      %v1340 = vunpack.c.l.b16 %v1327
      %v1341 = vunpack.c.h.b16 %v1327
      %v1342 = vunpack.c.l.b16 %v1328
      %v1343 = vunpack.c.h.b16 %v1328
      %v1344 = vpack.c.b16 %v1336, %v1334
      %v1345 = vpack.c.b16 %v1337, %v1335
      %v1346 = vpack.c.b16 %v1340, %v1338
      %v1347 = vpack.c.b16 %v1341, %v1339
      %v1348 = vpack.c.b16 %v1342, %v1342
      %v1349 = vpack.c.b16 %v1343, %v1343
      %v1355 = vsel %vm237, %v1348, 0
      %v1358 = vsel %vm237, %v1349, 0
      %1360 = vmatprep.subr.bf16.mxu0 0
      %1361 = vmatpush1.bf16.msra.mxu0 0
      %1362 = vmatprep.subr.bf16.mxu0 0
      %1363 = vmatpush1.bf16.msra.mxu0 0
      %1364 = vmatprep.subr.bf16.mxu0 0
      %1365 = vmatpush1.bf16.msra.mxu0 0
      %1366 = vmatprep.subr.bf16.mxu0 0
      %1367 = vmatpush1.bf16.msra.mxu0 0
      %1368 = vmatprep.subr.bf16.mxu0 0
      %1369 = vmatpush1.bf16.msra.mxu0 0
      %1370 = vmatprep.subr.bf16.mxu0 %v1358
      %1371 = vmatpush1.bf16.msra.mxu0 %v1355
      %1372 = vmatprep.subr.bf16.mxu0 %v1347
      %1373 = vmatpush1.bf16.msra.mxu0 %v1346
      %1374 = vmatprep.subr.bf16.mxu0 %v1345
      %1375 = vmatpush1.bf16.msra.mxu0 %v1344
      %1376 = vmatprep.subr.bf16.mxu0 0
      %1377 = vmatpush2.bf16.msra.mxu0 0
      %1378 = vmatprep.subr.bf16.mxu0 0
      %1379 = vmatpush2.bf16.msra.mxu0 0
      %1380 = vmatprep.subr.bf16.mxu0 0
      %1381 = vmatpush2.bf16.msra.mxu0 0
      %1382 = vmatprep.subr.bf16.mxu0 0
      %1383 = vmatpush2.bf16.msra.mxu0 0
      %1384 = vmatprep.subr.bf16.mxu0 0
      %1385 = vmatpush2.bf16.msra.mxu0 0
      %1386 = vmatprep.subr.bf16.mxu0 0
      %1387 = vmatpush2.bf16.msra.mxu0 0
      %1388 = vmatprep.subr.bf16.mxu0 0
      %1389 = vmatpush2.bf16.msra.mxu0 0
      %1390 = vmatprep.subr.bf16.mxu0 0
      %1391 = vmatpush2.bf16.msra.mxu0 0
      %1392 = vmatprep.mubr.bf16.mxu0 0
      %1393 = vmatmul.mubr.bf16.gmra.mxu0 %v235
      %v1394 = vpop.f32.mrf.mxu0
      %v1395 = vadd.f32 0.0, %v1394
      %v1396 = vpop.f32.mrf.mxu0
      %v1397 = vadd.f32 0.0, %v1396
      %v1398 = vpop.f32.mrf.mxu0
      %v1399 = vadd.f32 0.0, %v1398
      %v1400 = vpop.f32.mrf.mxu0
      %v1401 = vadd.f32 0.0, %v1400
      %1402 = vdwg.mxu0
      %v1408 = vunpack.c.l.b16 %v1319
      %v1409 = vunpack.c.h.b16 %v1319
      %v1410 = vunpack.c.l.b16 %v1320
      %v1411 = vunpack.c.h.b16 %v1320
      %v1412 = vunpack.c.l.b16 %v1321
      %v1413 = vunpack.c.h.b16 %v1321
      %v1414 = vunpack.c.l.b16 %v1322
      %v1415 = vunpack.c.h.b16 %v1322
      %v1416 = vunpack.c.l.b16 %v1323
      %v1417 = vunpack.c.h.b16 %v1323
      %v1418 = vpack.c.b16 %v1410, %v1408
      %v1419 = vpack.c.b16 %v1411, %v1409
      %v1420 = vpack.c.b16 %v1414, %v1412
      %v1421 = vpack.c.b16 %v1415, %v1413
      %v1422 = vpack.c.b16 %v1416, %v1416
      %v1423 = vpack.c.b16 %v1417, %v1417
      %v1429 = vsel %vm237, %v1422, 0
      %v1432 = vsel %vm237, %v1423, 0
      %1434 = vmatprep.subr.bf16.mxu0 0
      %1435 = vmatpush1.bf16.msra.mxu0 0
      %1436 = vmatprep.subr.bf16.mxu0 0
      %1437 = vmatpush1.bf16.msra.mxu0 0
      %1438 = vmatprep.subr.bf16.mxu0 0
      %1439 = vmatpush1.bf16.msra.mxu0 0
      %1440 = vmatprep.subr.bf16.mxu0 0
      %1441 = vmatpush1.bf16.msra.mxu0 0
      %1442 = vmatprep.subr.bf16.mxu0 0
      %1443 = vmatpush1.bf16.msra.mxu0 0
      %1444 = vmatprep.subr.bf16.mxu0 %v1432
      %1445 = vmatpush1.bf16.msra.mxu0 %v1429
      %1446 = vmatprep.subr.bf16.mxu0 %v1421
      %1447 = vmatpush1.bf16.msra.mxu0 %v1420
      %1448 = vmatprep.subr.bf16.mxu0 %v1419
      %1449 = vmatpush1.bf16.msra.mxu0 %v1418
      %1450 = vmatprep.subr.bf16.mxu0 0
      %1451 = vmatpush2.bf16.msra.mxu0 0
      %1452 = vmatprep.subr.bf16.mxu0 0
      %1453 = vmatpush2.bf16.msra.mxu0 0
      %1454 = vmatprep.subr.bf16.mxu0 0
      %1455 = vmatpush2.bf16.msra.mxu0 0
      %1456 = vmatprep.subr.bf16.mxu0 0
      %1457 = vmatpush2.bf16.msra.mxu0 0
      %1458 = vmatprep.subr.bf16.mxu0 0
      %1459 = vmatpush2.bf16.msra.mxu0 0
      %1460 = vmatprep.subr.bf16.mxu0 0
      %1461 = vmatpush2.bf16.msra.mxu0 0
      %1462 = vmatprep.subr.bf16.mxu0 0
      %1463 = vmatpush2.bf16.msra.mxu0 0
      %1464 = vmatprep.subr.bf16.mxu0 0
      %1465 = vmatpush2.bf16.msra.mxu0 0
      %1466 = vmatprep.mubr.bf16.mxu0 0
      %1467 = vmatmul.mubr.bf16.gmra.mxu0 %v318
      %v1468 = vpop.f32.mrf.mxu0
      %v1469 = vadd.f32 %v1395, %v1468
      %v1470 = vpop.f32.mrf.mxu0
      %v1471 = vadd.f32 %v1397, %v1470
      %v1472 = vpop.f32.mrf.mxu0
      %v1473 = vadd.f32 %v1399, %v1472
      %v1474 = vpop.f32.mrf.mxu0
      %v1475 = vadd.f32 %v1401, %v1474
      %1476 = vdwg.mxu0
      %v1477 = vld [vmem:[%s173 + $0x30] sm:$0xff]
      %v1478 = vld [vmem:[%s173 + $0x80] sm:$0xff]
      %v1479 = vld [vmem:[%s173 + $0xd0] sm:$0xff]
      %v1480 = vld [vmem:[%s173 + $0x120] sm:$0xff]
      %v1481 = vld [vmem:[%s173 + $0x170] sm:$0x33]
      %v1487 = vunpack.c.l.b16 %v1477
      %v1488 = vunpack.c.h.b16 %v1477
      %v1489 = vunpack.c.l.b16 %v1478
      %v1490 = vunpack.c.h.b16 %v1478
      %v1491 = vunpack.c.l.b16 %v1479
      %v1492 = vunpack.c.h.b16 %v1479
      %v1493 = vunpack.c.l.b16 %v1480
      %v1494 = vunpack.c.h.b16 %v1480
      %v1495 = vunpack.c.l.b16 %v1481
      %v1496 = vunpack.c.h.b16 %v1481
      %v1497 = vpack.c.b16 %v1489, %v1487
      %v1498 = vpack.c.b16 %v1490, %v1488
      %v1499 = vpack.c.b16 %v1493, %v1491
      %v1500 = vpack.c.b16 %v1494, %v1492
      %v1501 = vpack.c.b16 %v1495, %v1495
      %v1502 = vpack.c.b16 %v1496, %v1496
      %v1508 = vsel %vm237, %v1501, 0
      %v1511 = vsel %vm237, %v1502, 0
      %1513 = vmatprep.subr.bf16.mxu0 0
      %1514 = vmatpush1.bf16.msra.mxu0 0
      %1515 = vmatprep.subr.bf16.mxu0 0
      %1516 = vmatpush1.bf16.msra.mxu0 0
      %1517 = vmatprep.subr.bf16.mxu0 0
      %1518 = vmatpush1.bf16.msra.mxu0 0
      %1519 = vmatprep.subr.bf16.mxu0 0
      %1520 = vmatpush1.bf16.msra.mxu0 0
      %1521 = vmatprep.subr.bf16.mxu0 0
      %1522 = vmatpush1.bf16.msra.mxu0 0
      %1523 = vmatprep.subr.bf16.mxu0 %v1511
      %1524 = vmatpush1.bf16.msra.mxu0 %v1508
      %1525 = vmatprep.subr.bf16.mxu0 %v1500
      %1526 = vmatpush1.bf16.msra.mxu0 %v1499
      %1527 = vmatprep.subr.bf16.mxu0 %v1498
      %1528 = vmatpush1.bf16.msra.mxu0 %v1497
      %1529 = vmatprep.subr.bf16.mxu0 0
      %1530 = vmatpush2.bf16.msra.mxu0 0
      %1531 = vmatprep.subr.bf16.mxu0 0
      %1532 = vmatpush2.bf16.msra.mxu0 0
      %1533 = vmatprep.subr.bf16.mxu0 0
      %1534 = vmatpush2.bf16.msra.mxu0 0
      %1535 = vmatprep.subr.bf16.mxu0 0
      %1536 = vmatpush2.bf16.msra.mxu0 0
      %1537 = vmatprep.subr.bf16.mxu0 0
      %1538 = vmatpush2.bf16.msra.mxu0 0
      %1539 = vmatprep.subr.bf16.mxu0 0
      %1540 = vmatpush2.bf16.msra.mxu0 0
      %1541 = vmatprep.subr.bf16.mxu0 0
      %1542 = vmatpush2.bf16.msra.mxu0 0
      %1543 = vmatprep.subr.bf16.mxu0 0
      %1544 = vmatpush2.bf16.msra.mxu0 0
      %1545 = vmatprep.mubr.bf16.mxu0 0
      %1546 = vmatmul.mubr.bf16.gmra.mxu0 %v405
      %v1547 = vpop.f32.mrf.mxu0
      %v1548 = vadd.f32 0.0, %v1547
      %v1549 = vpop.f32.mrf.mxu0
      %v1550 = vadd.f32 0.0, %v1549
      %v1551 = vpop.f32.mrf.mxu0
      %v1552 = vadd.f32 0.0, %v1551
      %v1553 = vpop.f32.mrf.mxu0
      %v1554 = vadd.f32 0.0, %v1553
      %1555 = vdwg.mxu0
      %v1556 = vadd.f32 %v1469, %v1548
      %v1557 = vadd.f32 %v1471, %v1550
      %v1558 = vadd.f32 %v1473, %v1552
      %v1559 = vadd.f32 %v1475, %v1554
      %v1560 = vpack.c.bf16 %v1558, %v1556
      %v1561 = vpack.c.bf16 %v1559, %v1557
      %v1564 = vunpack.c.l.b16 %v1560
      %v1565 = vunpack.c.l.b16 %v1561
      %v1566 = vunpack.c.h.b16 %v1560
      %v1567 = vunpack.c.h.b16 %v1561
      %v1568 = vpack.c.b16 %v1565, %v1564
      %v1569 = vpack.c.b16 %v1567, %v1566
      %1572 = vst [vmem:[%s178 + $0x20] sm:$0xff] %v1568
      %1573 = vst [vmem:[%s178 + $0x60] sm:$0xff] %v1569
      %v1574 = vadd.f32 %v1556, %v1557
      %1575 = vadd.xlane.f32.xlu0 %v1574
      %v1576 = vpop.xlane.xlu0 %1575
      %v1577 = vadd.f32 %v1558, %v1559
      %1578 = vadd.xlane.f32.xlu0 %v1577
      %v1579 = vpop.xlane.xlu0 %1578
      %v1580 = vadd.f32 %v1305, %v1576
      %v1581 = vadd.f32 %v1306, %v1579
      %v1582 = vmul.f32 %v1556, %v1556
      %v1583 = vmul.f32 %v1557, %v1557
      %v1584 = vmul.f32 %v1558, %v1558
      %v1585 = vmul.f32 %v1559, %v1559
      %v1586 = vadd.f32 %v1582, %v1583
      %1587 = vadd.xlane.f32.xlu0 %v1586
      %v1588 = vpop.xlane.xlu0 %1587
      %v1589 = vadd.f32 %v1584, %v1585
      %1590 = vadd.xlane.f32.xlu0 %v1589
      %v1591 = vpop.xlane.xlu0 %1590
      %v1592 = vadd.f32 %v1317, %v1588
      %v1593 = vadd.f32 %v1318, %v1591
      %v1594 = vld [vmem:[%s173 + $0x28] sm:$0xff]
      %v1595 = vld [vmem:[%s173 + $0x78] sm:$0xff]
      %v1596 = vld [vmem:[%s173 + $0xc8] sm:$0xff]
      %v1597 = vld [vmem:[%s173 + $0x118] sm:$0xff]
      %v1598 = vld [vmem:[%s173 + $0x168] sm:$0x33]
      %v1599 = vld [vmem:[%s173 + $0x30] sm:$0xff]
      %v1600 = vld [vmem:[%s173 + $0x80] sm:$0xff]
      %v1601 = vld [vmem:[%s173 + $0xd0] sm:$0xff]
      %v1602 = vld [vmem:[%s173 + $0x120] sm:$0xff]
      %v1603 = vld [vmem:[%s173 + $0x170] sm:$0x33]
      %v1609 = vunpack.c.l.b16 %v1599
      %v1610 = vunpack.c.h.b16 %v1599
      %v1611 = vunpack.c.l.b16 %v1600
      %v1612 = vunpack.c.h.b16 %v1600
      %v1613 = vunpack.c.l.b16 %v1601
      %v1614 = vunpack.c.h.b16 %v1601
      %v1615 = vunpack.c.l.b16 %v1602
      %v1616 = vunpack.c.h.b16 %v1602
      %v1617 = vunpack.c.l.b16 %v1603
      %v1618 = vunpack.c.h.b16 %v1603
      %v1619 = vpack.c.b16 %v1611, %v1609
      %v1620 = vpack.c.b16 %v1612, %v1610
      %v1621 = vpack.c.b16 %v1615, %v1613
      %v1622 = vpack.c.b16 %v1616, %v1614
      %v1623 = vpack.c.b16 %v1617, %v1617
      %v1624 = vpack.c.b16 %v1618, %v1618
      %v1630 = vsel %vm237, %v1623, 0
      %v1633 = vsel %vm237, %v1624, 0
      %1635 = vmatprep.subr.bf16.mxu0 0
      %1636 = vmatpush1.bf16.msra.mxu0 0
      %1637 = vmatprep.subr.bf16.mxu0 0
      %1638 = vmatpush1.bf16.msra.mxu0 0
      %1639 = vmatprep.subr.bf16.mxu0 0
      %1640 = vmatpush1.bf16.msra.mxu0 0
      %1641 = vmatprep.subr.bf16.mxu0 0
      %1642 = vmatpush1.bf16.msra.mxu0 0
      %1643 = vmatprep.subr.bf16.mxu0 0
      %1644 = vmatpush1.bf16.msra.mxu0 0
      %1645 = vmatprep.subr.bf16.mxu0 %v1633
      %1646 = vmatpush1.bf16.msra.mxu0 %v1630
      %1647 = vmatprep.subr.bf16.mxu0 %v1622
      %1648 = vmatpush1.bf16.msra.mxu0 %v1621
      %1649 = vmatprep.subr.bf16.mxu0 %v1620
      %1650 = vmatpush1.bf16.msra.mxu0 %v1619
      %1651 = vmatprep.subr.bf16.mxu0 0
      %1652 = vmatpush2.bf16.msra.mxu0 0
      %1653 = vmatprep.subr.bf16.mxu0 0
      %1654 = vmatpush2.bf16.msra.mxu0 0
      %1655 = vmatprep.subr.bf16.mxu0 0
      %1656 = vmatpush2.bf16.msra.mxu0 0
      %1657 = vmatprep.subr.bf16.mxu0 0
      %1658 = vmatpush2.bf16.msra.mxu0 0
      %1659 = vmatprep.subr.bf16.mxu0 0
      %1660 = vmatpush2.bf16.msra.mxu0 0
      %1661 = vmatprep.subr.bf16.mxu0 0
      %1662 = vmatpush2.bf16.msra.mxu0 0
      %1663 = vmatprep.subr.bf16.mxu0 0
      %1664 = vmatpush2.bf16.msra.mxu0 0
      %1665 = vmatprep.subr.bf16.mxu0 0
      %1666 = vmatpush2.bf16.msra.mxu0 0
      %1667 = vmatprep.mubr.bf16.mxu0 0
      %1668 = vmatmul.mubr.bf16.gmra.mxu0 %v235
      %v1669 = vpop.f32.mrf.mxu0
      %v1670 = vadd.f32 0.0, %v1669
      %v1671 = vpop.f32.mrf.mxu0
      %v1672 = vadd.f32 0.0, %v1671
      %v1673 = vpop.f32.mrf.mxu0
      %v1674 = vadd.f32 0.0, %v1673
      %v1675 = vpop.f32.mrf.mxu0
      %v1676 = vadd.f32 0.0, %v1675
      %1677 = vdwg.mxu0
      %v1683 = vunpack.c.l.b16 %v1594
      %v1684 = vunpack.c.h.b16 %v1594
      %v1685 = vunpack.c.l.b16 %v1595
      %v1686 = vunpack.c.h.b16 %v1595
      %v1687 = vunpack.c.l.b16 %v1596
      %v1688 = vunpack.c.h.b16 %v1596
      %v1689 = vunpack.c.l.b16 %v1597
      %v1690 = vunpack.c.h.b16 %v1597
      %v1691 = vunpack.c.l.b16 %v1598
      %v1692 = vunpack.c.h.b16 %v1598
      %v1693 = vpack.c.b16 %v1685, %v1683
      %v1694 = vpack.c.b16 %v1686, %v1684
      %v1695 = vpack.c.b16 %v1689, %v1687
      %v1696 = vpack.c.b16 %v1690, %v1688
      %v1697 = vpack.c.b16 %v1691, %v1691
      %v1698 = vpack.c.b16 %v1692, %v1692
      %v1704 = vsel %vm237, %v1697, 0
      %v1707 = vsel %vm237, %v1698, 0
      %1709 = vmatprep.subr.bf16.mxu0 0
      %1710 = vmatpush1.bf16.msra.mxu0 0
      %1711 = vmatprep.subr.bf16.mxu0 0
      %1712 = vmatpush1.bf16.msra.mxu0 0
      %1713 = vmatprep.subr.bf16.mxu0 0
      %1714 = vmatpush1.bf16.msra.mxu0 0
      %1715 = vmatprep.subr.bf16.mxu0 0
      %1716 = vmatpush1.bf16.msra.mxu0 0
      %1717 = vmatprep.subr.bf16.mxu0 0
      %1718 = vmatpush1.bf16.msra.mxu0 0
      %1719 = vmatprep.subr.bf16.mxu0 %v1707
      %1720 = vmatpush1.bf16.msra.mxu0 %v1704
      %1721 = vmatprep.subr.bf16.mxu0 %v1696
      %1722 = vmatpush1.bf16.msra.mxu0 %v1695
      %1723 = vmatprep.subr.bf16.mxu0 %v1694
      %1724 = vmatpush1.bf16.msra.mxu0 %v1693
      %1725 = vmatprep.subr.bf16.mxu0 0
      %1726 = vmatpush2.bf16.msra.mxu0 0
      %1727 = vmatprep.subr.bf16.mxu0 0
      %1728 = vmatpush2.bf16.msra.mxu0 0
      %1729 = vmatprep.subr.bf16.mxu0 0
      %1730 = vmatpush2.bf16.msra.mxu0 0
      %1731 = vmatprep.subr.bf16.mxu0 0
      %1732 = vmatpush2.bf16.msra.mxu0 0
      %1733 = vmatprep.subr.bf16.mxu0 0
      %1734 = vmatpush2.bf16.msra.mxu0 0
      %1735 = vmatprep.subr.bf16.mxu0 0
      %1736 = vmatpush2.bf16.msra.mxu0 0
      %1737 = vmatprep.subr.bf16.mxu0 0
      %1738 = vmatpush2.bf16.msra.mxu0 0
      %1739 = vmatprep.subr.bf16.mxu0 0
      %1740 = vmatpush2.bf16.msra.mxu0 0
      %1741 = vmatprep.mubr.bf16.mxu0 0
      %1742 = vmatmul.mubr.bf16.gmra.mxu0 %v318
      %v1743 = vpop.f32.mrf.mxu0
      %v1744 = vadd.f32 %v1670, %v1743
      %v1745 = vpop.f32.mrf.mxu0
      %v1746 = vadd.f32 %v1672, %v1745
      %v1747 = vpop.f32.mrf.mxu0
      %v1748 = vadd.f32 %v1674, %v1747
      %v1749 = vpop.f32.mrf.mxu0
      %v1750 = vadd.f32 %v1676, %v1749
      %1751 = vdwg.mxu0
      %v1752 = vld [vmem:[%s173 + $0x38] sm:$0xff]
      %v1753 = vld [vmem:[%s173 + $0x88] sm:$0xff]
      %v1754 = vld [vmem:[%s173 + $0xd8] sm:$0xff]
      %v1755 = vld [vmem:[%s173 + $0x128] sm:$0xff]
      %v1756 = vld [vmem:[%s173 + $0x178] sm:$0x33]
      %v1762 = vunpack.c.l.b16 %v1752
      %v1763 = vunpack.c.h.b16 %v1752
      %v1764 = vunpack.c.l.b16 %v1753
      %v1765 = vunpack.c.h.b16 %v1753
      %v1766 = vunpack.c.l.b16 %v1754
      %v1767 = vunpack.c.h.b16 %v1754
      %v1768 = vunpack.c.l.b16 %v1755
      %v1769 = vunpack.c.h.b16 %v1755
      %v1770 = vunpack.c.l.b16 %v1756
      %v1771 = vunpack.c.h.b16 %v1756
      %v1772 = vpack.c.b16 %v1764, %v1762
      %v1773 = vpack.c.b16 %v1765, %v1763
      %v1774 = vpack.c.b16 %v1768, %v1766
      %v1775 = vpack.c.b16 %v1769, %v1767
      %v1776 = vpack.c.b16 %v1770, %v1770
      %v1777 = vpack.c.b16 %v1771, %v1771
      %v1783 = vsel %vm237, %v1776, 0
      %v1786 = vsel %vm237, %v1777, 0
      %1788 = vmatprep.subr.bf16.mxu0 0
      %1789 = vmatpush1.bf16.msra.mxu0 0
      %1790 = vmatprep.subr.bf16.mxu0 0
      %1791 = vmatpush1.bf16.msra.mxu0 0
      %1792 = vmatprep.subr.bf16.mxu0 0
      %1793 = vmatpush1.bf16.msra.mxu0 0
      %1794 = vmatprep.subr.bf16.mxu0 0
      %1795 = vmatpush1.bf16.msra.mxu0 0
      %1796 = vmatprep.subr.bf16.mxu0 0
      %1797 = vmatpush1.bf16.msra.mxu0 0
      %1798 = vmatprep.subr.bf16.mxu0 %v1786
      %1799 = vmatpush1.bf16.msra.mxu0 %v1783
      %1800 = vmatprep.subr.bf16.mxu0 %v1775
      %1801 = vmatpush1.bf16.msra.mxu0 %v1774
      %1802 = vmatprep.subr.bf16.mxu0 %v1773
      %1803 = vmatpush1.bf16.msra.mxu0 %v1772
      %1804 = vmatprep.subr.bf16.mxu0 0
      %1805 = vmatpush2.bf16.msra.mxu0 0
      %1806 = vmatprep.subr.bf16.mxu0 0
      %1807 = vmatpush2.bf16.msra.mxu0 0
      %1808 = vmatprep.subr.bf16.mxu0 0
      %1809 = vmatpush2.bf16.msra.mxu0 0
      %1810 = vmatprep.subr.bf16.mxu0 0
      %1811 = vmatpush2.bf16.msra.mxu0 0
      %1812 = vmatprep.subr.bf16.mxu0 0
      %1813 = vmatpush2.bf16.msra.mxu0 0
      %1814 = vmatprep.subr.bf16.mxu0 0
      %1815 = vmatpush2.bf16.msra.mxu0 0
      %1816 = vmatprep.subr.bf16.mxu0 0
      %1817 = vmatpush2.bf16.msra.mxu0 0
      %1818 = vmatprep.subr.bf16.mxu0 0
      %1819 = vmatpush2.bf16.msra.mxu0 0
      %1820 = vmatprep.mubr.bf16.mxu0 0
      %1821 = vmatmul.mubr.bf16.gmra.mxu0 %v405
      %v1822 = vpop.f32.mrf.mxu0
      %v1823 = vadd.f32 0.0, %v1822
      %v1824 = vpop.f32.mrf.mxu0
      %v1825 = vadd.f32 0.0, %v1824
      %v1826 = vpop.f32.mrf.mxu0
      %v1827 = vadd.f32 0.0, %v1826
      %v1828 = vpop.f32.mrf.mxu0
      %v1829 = vadd.f32 0.0, %v1828
      %1830 = vdwg.mxu0
      %v1831 = vadd.f32 %v1744, %v1823
      %v1832 = vadd.f32 %v1746, %v1825
      %v1833 = vadd.f32 %v1748, %v1827
      %v1834 = vadd.f32 %v1750, %v1829
      %v1835 = vpack.c.bf16 %v1833, %v1831
      %v1836 = vpack.c.bf16 %v1834, %v1832
      %v1839 = vunpack.c.l.b16 %v1835
      %v1840 = vunpack.c.l.b16 %v1836
      %v1841 = vunpack.c.h.b16 %v1835
      %v1842 = vunpack.c.h.b16 %v1836
      %v1843 = vpack.c.b16 %v1840, %v1839
      %v1844 = vpack.c.b16 %v1842, %v1841
      %1847 = vst [vmem:[%s178 + $0x28] sm:$0xff] %v1843
      %1848 = vst [vmem:[%s178 + $0x68] sm:$0xff] %v1844
      %v1849 = vadd.f32 %v1831, %v1832
      %1850 = vadd.xlane.f32.xlu0 %v1849
      %v1851 = vpop.xlane.xlu0 %1850
      %v1852 = vadd.f32 %v1833, %v1834
      %1853 = vadd.xlane.f32.xlu0 %v1852
      %v1854 = vpop.xlane.xlu0 %1853
      %v1855 = vadd.f32 %v1580, %v1851
      %v1856 = vadd.f32 %v1581, %v1854
      %v1857 = vmul.f32 %v1831, %v1831
      %v1858 = vmul.f32 %v1832, %v1832
      %v1859 = vmul.f32 %v1833, %v1833
      %v1860 = vmul.f32 %v1834, %v1834
      %v1861 = vadd.f32 %v1857, %v1858
      %1862 = vadd.xlane.f32.xlu0 %v1861
      %v1863 = vpop.xlane.xlu0 %1862
      %v1864 = vadd.f32 %v1859, %v1860
      %1865 = vadd.xlane.f32.xlu0 %v1864
      %v1866 = vpop.xlane.xlu0 %1865
      %v1867 = vadd.f32 %v1592, %v1863
      %v1868 = vadd.f32 %v1593, %v1866
      %v1869 = vld [vmem:[%s173 + $0x30] sm:$0xff]
      %v1870 = vld [vmem:[%s173 + $0x80] sm:$0xff]
      %v1871 = vld [vmem:[%s173 + $0xd0] sm:$0xff]
      %v1872 = vld [vmem:[%s173 + $0x120] sm:$0xff]
      %v1873 = vld [vmem:[%s173 + $0x170] sm:$0x33]
      %v1874 = vld [vmem:[%s173 + $0x38] sm:$0xff]
      %v1875 = vld [vmem:[%s173 + $0x88] sm:$0xff]
      %v1876 = vld [vmem:[%s173 + $0xd8] sm:$0xff]
      %v1877 = vld [vmem:[%s173 + $0x128] sm:$0xff]
      %v1878 = vld [vmem:[%s173 + $0x178] sm:$0x33]
      %v1884 = vunpack.c.l.b16 %v1874
      %v1885 = vunpack.c.h.b16 %v1874
      %v1886 = vunpack.c.l.b16 %v1875
      %v1887 = vunpack.c.h.b16 %v1875
      %v1888 = vunpack.c.l.b16 %v1876
      %v1889 = vunpack.c.h.b16 %v1876
      %v1890 = vunpack.c.l.b16 %v1877
      %v1891 = vunpack.c.h.b16 %v1877
      %v1892 = vunpack.c.l.b16 %v1878
      %v1893 = vunpack.c.h.b16 %v1878
      %v1894 = vpack.c.b16 %v1886, %v1884
      %v1895 = vpack.c.b16 %v1887, %v1885
      %v1896 = vpack.c.b16 %v1890, %v1888
      %v1897 = vpack.c.b16 %v1891, %v1889
      %v1898 = vpack.c.b16 %v1892, %v1892
      %v1899 = vpack.c.b16 %v1893, %v1893
      %v1905 = vsel %vm237, %v1898, 0
      %v1908 = vsel %vm237, %v1899, 0
      %1910 = vmatprep.subr.bf16.mxu0 0
      %1911 = vmatpush1.bf16.msra.mxu0 0
      %1912 = vmatprep.subr.bf16.mxu0 0
      %1913 = vmatpush1.bf16.msra.mxu0 0
      %1914 = vmatprep.subr.bf16.mxu0 0
      %1915 = vmatpush1.bf16.msra.mxu0 0
      %1916 = vmatprep.subr.bf16.mxu0 0
      %1917 = vmatpush1.bf16.msra.mxu0 0
      %1918 = vmatprep.subr.bf16.mxu0 0
      %1919 = vmatpush1.bf16.msra.mxu0 0
      %1920 = vmatprep.subr.bf16.mxu0 %v1908
      %1921 = vmatpush1.bf16.msra.mxu0 %v1905
      %1922 = vmatprep.subr.bf16.mxu0 %v1897
      %1923 = vmatpush1.bf16.msra.mxu0 %v1896
      %1924 = vmatprep.subr.bf16.mxu0 %v1895
      %1925 = vmatpush1.bf16.msra.mxu0 %v1894
      %1926 = vmatprep.subr.bf16.mxu0 0
      %1927 = vmatpush2.bf16.msra.mxu0 0
      %1928 = vmatprep.subr.bf16.mxu0 0
      %1929 = vmatpush2.bf16.msra.mxu0 0
      %1930 = vmatprep.subr.bf16.mxu0 0
      %1931 = vmatpush2.bf16.msra.mxu0 0
      %1932 = vmatprep.subr.bf16.mxu0 0
      %1933 = vmatpush2.bf16.msra.mxu0 0
      %1934 = vmatprep.subr.bf16.mxu0 0
      %1935 = vmatpush2.bf16.msra.mxu0 0
      %1936 = vmatprep.subr.bf16.mxu0 0
      %1937 = vmatpush2.bf16.msra.mxu0 0
      %1938 = vmatprep.subr.bf16.mxu0 0
      %1939 = vmatpush2.bf16.msra.mxu0 0
      %1940 = vmatprep.subr.bf16.mxu0 0
      %1941 = vmatpush2.bf16.msra.mxu0 0
      %1942 = vmatprep.mubr.bf16.mxu0 0
      %1943 = vmatmul.mubr.bf16.gmra.mxu0 %v235
      %v1944 = vpop.f32.mrf.mxu0
      %v1945 = vadd.f32 0.0, %v1944
      %v1946 = vpop.f32.mrf.mxu0
      %v1947 = vadd.f32 0.0, %v1946
      %v1948 = vpop.f32.mrf.mxu0
      %v1949 = vadd.f32 0.0, %v1948
      %v1950 = vpop.f32.mrf.mxu0
      %v1951 = vadd.f32 0.0, %v1950
      %1952 = vdwg.mxu0
      %v1958 = vunpack.c.l.b16 %v1869
      %v1959 = vunpack.c.h.b16 %v1869
      %v1960 = vunpack.c.l.b16 %v1870
      %v1961 = vunpack.c.h.b16 %v1870
      %v1962 = vunpack.c.l.b16 %v1871
      %v1963 = vunpack.c.h.b16 %v1871
      %v1964 = vunpack.c.l.b16 %v1872
      %v1965 = vunpack.c.h.b16 %v1872
      %v1966 = vunpack.c.l.b16 %v1873
      %v1967 = vunpack.c.h.b16 %v1873
      %v1968 = vpack.c.b16 %v1960, %v1958
      %v1969 = vpack.c.b16 %v1961, %v1959
      %v1970 = vpack.c.b16 %v1964, %v1962
      %v1971 = vpack.c.b16 %v1965, %v1963
      %v1972 = vpack.c.b16 %v1966, %v1966
      %v1973 = vpack.c.b16 %v1967, %v1967
      %v1979 = vsel %vm237, %v1972, 0
      %v1982 = vsel %vm237, %v1973, 0
      %1984 = vmatprep.subr.bf16.mxu0 0
      %1985 = vmatpush1.bf16.msra.mxu0 0
      %1986 = vmatprep.subr.bf16.mxu0 0
      %1987 = vmatpush1.bf16.msra.mxu0 0
      %1988 = vmatprep.subr.bf16.mxu0 0
      %1989 = vmatpush1.bf16.msra.mxu0 0
      %1990 = vmatprep.subr.bf16.mxu0 0
      %1991 = vmatpush1.bf16.msra.mxu0 0
      %1992 = vmatprep.subr.bf16.mxu0 0
      %1993 = vmatpush1.bf16.msra.mxu0 0
      %1994 = vmatprep.subr.bf16.mxu0 %v1982
      %1995 = vmatpush1.bf16.msra.mxu0 %v1979
      %1996 = vmatprep.subr.bf16.mxu0 %v1971
      %1997 = vmatpush1.bf16.msra.mxu0 %v1970
      %1998 = vmatprep.subr.bf16.mxu0 %v1969
      %1999 = vmatpush1.bf16.msra.mxu0 %v1968
      %2000 = vmatprep.subr.bf16.mxu0 0
      %2001 = vmatpush2.bf16.msra.mxu0 0
      %2002 = vmatprep.subr.bf16.mxu0 0
      %2003 = vmatpush2.bf16.msra.mxu0 0
      %2004 = vmatprep.subr.bf16.mxu0 0
      %2005 = vmatpush2.bf16.msra.mxu0 0
      %2006 = vmatprep.subr.bf16.mxu0 0
      %2007 = vmatpush2.bf16.msra.mxu0 0
      %2008 = vmatprep.subr.bf16.mxu0 0
      %2009 = vmatpush2.bf16.msra.mxu0 0
      %2010 = vmatprep.subr.bf16.mxu0 0
      %2011 = vmatpush2.bf16.msra.mxu0 0
      %2012 = vmatprep.subr.bf16.mxu0 0
      %2013 = vmatpush2.bf16.msra.mxu0 0
      %2014 = vmatprep.subr.bf16.mxu0 0
      %2015 = vmatpush2.bf16.msra.mxu0 0
      %2016 = vmatprep.mubr.bf16.mxu0 0
      %2017 = vmatmul.mubr.bf16.gmra.mxu0 %v318
      %v2018 = vpop.f32.mrf.mxu0
      %v2019 = vadd.f32 %v1945, %v2018
      %v2020 = vpop.f32.mrf.mxu0
      %v2021 = vadd.f32 %v1947, %v2020
      %v2022 = vpop.f32.mrf.mxu0
      %v2023 = vadd.f32 %v1949, %v2022
      %v2024 = vpop.f32.mrf.mxu0
      %v2025 = vadd.f32 %v1951, %v2024
      %2026 = vdwg.mxu0
      %v2027 = vld [vmem:[%s173 + $0x40] sm:$0xff]
      %v2028 = vld [vmem:[%s173 + $0x90] sm:$0xff]
      %v2029 = vld [vmem:[%s173 + $0xe0] sm:$0xff]
      %v2030 = vld [vmem:[%s173 + $0x130] sm:$0xff]
      %v2031 = vld [vmem:[%s173 + $0x180] sm:$0x33]
      %v2037 = vunpack.c.l.b16 %v2027
      %v2038 = vunpack.c.h.b16 %v2027
      %v2039 = vunpack.c.l.b16 %v2028
      %v2040 = vunpack.c.h.b16 %v2028
      %v2041 = vunpack.c.l.b16 %v2029
      %v2042 = vunpack.c.h.b16 %v2029
      %v2043 = vunpack.c.l.b16 %v2030
      %v2044 = vunpack.c.h.b16 %v2030
      %v2045 = vunpack.c.l.b16 %v2031
      %v2046 = vunpack.c.h.b16 %v2031
      %v2047 = vpack.c.b16 %v2039, %v2037
      %v2048 = vpack.c.b16 %v2040, %v2038
      %v2049 = vpack.c.b16 %v2043, %v2041
      %v2050 = vpack.c.b16 %v2044, %v2042
      %v2051 = vpack.c.b16 %v2045, %v2045
      %v2052 = vpack.c.b16 %v2046, %v2046
      %v2058 = vsel %vm237, %v2051, 0
      %v2061 = vsel %vm237, %v2052, 0
      %2063 = vmatprep.subr.bf16.mxu0 0
      %2064 = vmatpush1.bf16.msra.mxu0 0
      %2065 = vmatprep.subr.bf16.mxu0 0
      %2066 = vmatpush1.bf16.msra.mxu0 0
      %2067 = vmatprep.subr.bf16.mxu0 0
      %2068 = vmatpush1.bf16.msra.mxu0 0
      %2069 = vmatprep.subr.bf16.mxu0 0
      %2070 = vmatpush1.bf16.msra.mxu0 0
      %2071 = vmatprep.subr.bf16.mxu0 0
      %2072 = vmatpush1.bf16.msra.mxu0 0
      %2073 = vmatprep.subr.bf16.mxu0 %v2061
      %2074 = vmatpush1.bf16.msra.mxu0 %v2058
      %2075 = vmatprep.subr.bf16.mxu0 %v2050
      %2076 = vmatpush1.bf16.msra.mxu0 %v2049
      %2077 = vmatprep.subr.bf16.mxu0 %v2048
      %2078 = vmatpush1.bf16.msra.mxu0 %v2047
      %2079 = vmatprep.subr.bf16.mxu0 0
      %2080 = vmatpush2.bf16.msra.mxu0 0
      %2081 = vmatprep.subr.bf16.mxu0 0
      %2082 = vmatpush2.bf16.msra.mxu0 0
      %2083 = vmatprep.subr.bf16.mxu0 0
      %2084 = vmatpush2.bf16.msra.mxu0 0
      %2085 = vmatprep.subr.bf16.mxu0 0
      %2086 = vmatpush2.bf16.msra.mxu0 0
      %2087 = vmatprep.subr.bf16.mxu0 0
      %2088 = vmatpush2.bf16.msra.mxu0 0
      %2089 = vmatprep.subr.bf16.mxu0 0
      %2090 = vmatpush2.bf16.msra.mxu0 0
      %2091 = vmatprep.subr.bf16.mxu0 0
      %2092 = vmatpush2.bf16.msra.mxu0 0
      %2093 = vmatprep.subr.bf16.mxu0 0
      %2094 = vmatpush2.bf16.msra.mxu0 0
      %2095 = vmatprep.mubr.bf16.mxu0 0
      %2096 = vmatmul.mubr.bf16.gmra.mxu0 %v405
      %v2097 = vpop.f32.mrf.mxu0
      %v2098 = vadd.f32 0.0, %v2097
      %v2099 = vpop.f32.mrf.mxu0
      %v2100 = vadd.f32 0.0, %v2099
      %v2101 = vpop.f32.mrf.mxu0
      %v2102 = vadd.f32 0.0, %v2101
      %v2103 = vpop.f32.mrf.mxu0
      %v2104 = vadd.f32 0.0, %v2103
      %2105 = vdwg.mxu0
      %v2106 = vadd.f32 %v2019, %v2098
      %v2107 = vadd.f32 %v2021, %v2100
      %v2108 = vadd.f32 %v2023, %v2102
      %v2109 = vadd.f32 %v2025, %v2104
      %v2110 = vpack.c.bf16 %v2108, %v2106
      %v2111 = vpack.c.bf16 %v2109, %v2107
      %v2114 = vunpack.c.l.b16 %v2110
      %v2115 = vunpack.c.l.b16 %v2111
      %v2116 = vunpack.c.h.b16 %v2110
      %v2117 = vunpack.c.h.b16 %v2111
      %v2118 = vpack.c.b16 %v2115, %v2114
      %v2119 = vpack.c.b16 %v2117, %v2116
      %2122 = vst [vmem:[%s178 + $0x30] sm:$0xff] %v2118
      %2123 = vst [vmem:[%s178 + $0x70] sm:$0xff] %v2119
      %v2124 = vadd.f32 %v2106, %v2107
      %2125 = vadd.xlane.f32.xlu0 %v2124
      %v2126 = vpop.xlane.xlu0 %2125
      %v2127 = vadd.f32 %v2108, %v2109
      %2128 = vadd.xlane.f32.xlu0 %v2127
      %v2129 = vpop.xlane.xlu0 %2128
      %v2130 = vadd.f32 %v1855, %v2126
      %v2131 = vadd.f32 %v1856, %v2129
      %v2132 = vmul.f32 %v2106, %v2106
      %v2133 = vmul.f32 %v2107, %v2107
      %v2134 = vmul.f32 %v2108, %v2108
      %v2135 = vmul.f32 %v2109, %v2109
      %v2136 = vadd.f32 %v2132, %v2133
      %2137 = vadd.xlane.f32.xlu0 %v2136
      %v2138 = vpop.xlane.xlu0 %2137
      %v2139 = vadd.f32 %v2134, %v2135
      %2140 = vadd.xlane.f32.xlu0 %v2139
      %v2141 = vpop.xlane.xlu0 %2140
      %v2142 = vadd.f32 %v1867, %v2138
      %v2143 = vadd.f32 %v1868, %v2141
      %v2144 = vld [vmem:[%s173 + $0x38] sm:$0xff]
      %v2145 = vld [vmem:[%s173 + $0x88] sm:$0xff]
      %v2146 = vld [vmem:[%s173 + $0xd8] sm:$0xff]
      %v2147 = vld [vmem:[%s173 + $0x128] sm:$0xff]
      %v2148 = vld [vmem:[%s173 + $0x178] sm:$0x33]
      %v2149 = vld [vmem:[%s173 + $0x40] sm:$0xff]
      %v2150 = vld [vmem:[%s173 + $0x90] sm:$0xff]
      %v2151 = vld [vmem:[%s173 + $0xe0] sm:$0xff]
      %v2152 = vld [vmem:[%s173 + $0x130] sm:$0xff]
      %v2153 = vld [vmem:[%s173 + $0x180] sm:$0x33]
      %v2159 = vunpack.c.l.b16 %v2149
      %v2160 = vunpack.c.h.b16 %v2149
      %v2161 = vunpack.c.l.b16 %v2150
      %v2162 = vunpack.c.h.b16 %v2150
      %v2163 = vunpack.c.l.b16 %v2151
      %v2164 = vunpack.c.h.b16 %v2151
      %v2165 = vunpack.c.l.b16 %v2152
      %v2166 = vunpack.c.h.b16 %v2152
      %v2167 = vunpack.c.l.b16 %v2153
      %v2168 = vunpack.c.h.b16 %v2153
      %v2169 = vpack.c.b16 %v2161, %v2159
      %v2170 = vpack.c.b16 %v2162, %v2160
      %v2171 = vpack.c.b16 %v2165, %v2163
      %v2172 = vpack.c.b16 %v2166, %v2164
      %v2173 = vpack.c.b16 %v2167, %v2167
      %v2174 = vpack.c.b16 %v2168, %v2168
      %v2180 = vsel %vm237, %v2173, 0
      %v2183 = vsel %vm237, %v2174, 0
      %2185 = vmatprep.subr.bf16.mxu0 0
      %2186 = vmatpush1.bf16.msra.mxu0 0
      %2187 = vmatprep.subr.bf16.mxu0 0
      %2188 = vmatpush1.bf16.msra.mxu0 0
      %2189 = vmatprep.subr.bf16.mxu0 0
      %2190 = vmatpush1.bf16.msra.mxu0 0
      %2191 = vmatprep.subr.bf16.mxu0 0
      %2192 = vmatpush1.bf16.msra.mxu0 0
      %2193 = vmatprep.subr.bf16.mxu0 0
      %2194 = vmatpush1.bf16.msra.mxu0 0
      %2195 = vmatprep.subr.bf16.mxu0 %v2183
      %2196 = vmatpush1.bf16.msra.mxu0 %v2180
      %2197 = vmatprep.subr.bf16.mxu0 %v2172
      %2198 = vmatpush1.bf16.msra.mxu0 %v2171
      %2199 = vmatprep.subr.bf16.mxu0 %v2170
      %2200 = vmatpush1.bf16.msra.mxu0 %v2169
      %2201 = vmatprep.subr.bf16.mxu0 0
      %2202 = vmatpush2.bf16.msra.mxu0 0
      %2203 = vmatprep.subr.bf16.mxu0 0
      %2204 = vmatpush2.bf16.msra.mxu0 0
      %2205 = vmatprep.subr.bf16.mxu0 0
      %2206 = vmatpush2.bf16.msra.mxu0 0
      %2207 = vmatprep.subr.bf16.mxu0 0
      %2208 = vmatpush2.bf16.msra.mxu0 0
      %2209 = vmatprep.subr.bf16.mxu0 0
      %2210 = vmatpush2.bf16.msra.mxu0 0
      %2211 = vmatprep.subr.bf16.mxu0 0
      %2212 = vmatpush2.bf16.msra.mxu0 0
      %2213 = vmatprep.subr.bf16.mxu0 0
      %2214 = vmatpush2.bf16.msra.mxu0 0
      %2215 = vmatprep.subr.bf16.mxu0 0
      %2216 = vmatpush2.bf16.msra.mxu0 0
      %2217 = vmatprep.mubr.bf16.mxu0 0
      %2218 = vmatmul.mubr.bf16.gmra.mxu0 %v235
      %v2219 = vpop.f32.mrf.mxu0
      %v2220 = vadd.f32 0.0, %v2219
      %v2221 = vpop.f32.mrf.mxu0
      %v2222 = vadd.f32 0.0, %v2221
      %v2223 = vpop.f32.mrf.mxu0
      %v2224 = vadd.f32 0.0, %v2223
      %v2225 = vpop.f32.mrf.mxu0
      %v2226 = vadd.f32 0.0, %v2225
      %2227 = vdwg.mxu0
      %v2233 = vunpack.c.l.b16 %v2144
      %v2234 = vunpack.c.h.b16 %v2144
      %v2235 = vunpack.c.l.b16 %v2145
      %v2236 = vunpack.c.h.b16 %v2145
      %v2237 = vunpack.c.l.b16 %v2146
      %v2238 = vunpack.c.h.b16 %v2146
      %v2239 = vunpack.c.l.b16 %v2147
      %v2240 = vunpack.c.h.b16 %v2147
      %v2241 = vunpack.c.l.b16 %v2148
      %v2242 = vunpack.c.h.b16 %v2148
      %v2243 = vpack.c.b16 %v2235, %v2233
      %v2244 = vpack.c.b16 %v2236, %v2234
      %v2245 = vpack.c.b16 %v2239, %v2237
      %v2246 = vpack.c.b16 %v2240, %v2238
      %v2247 = vpack.c.b16 %v2241, %v2241
      %v2248 = vpack.c.b16 %v2242, %v2242
      %v2254 = vsel %vm237, %v2247, 0
      %v2257 = vsel %vm237, %v2248, 0
      %2259 = vmatprep.subr.bf16.mxu0 0
      %2260 = vmatpush1.bf16.msra.mxu0 0
      %2261 = vmatprep.subr.bf16.mxu0 0
      %2262 = vmatpush1.bf16.msra.mxu0 0
      %2263 = vmatprep.subr.bf16.mxu0 0
      %2264 = vmatpush1.bf16.msra.mxu0 0
      %2265 = vmatprep.subr.bf16.mxu0 0
      %2266 = vmatpush1.bf16.msra.mxu0 0
      %2267 = vmatprep.subr.bf16.mxu0 0
      %2268 = vmatpush1.bf16.msra.mxu0 0
      %2269 = vmatprep.subr.bf16.mxu0 %v2257
      %2270 = vmatpush1.bf16.msra.mxu0 %v2254
      %2271 = vmatprep.subr.bf16.mxu0 %v2246
      %2272 = vmatpush1.bf16.msra.mxu0 %v2245
      %2273 = vmatprep.subr.bf16.mxu0 %v2244
      %2274 = vmatpush1.bf16.msra.mxu0 %v2243
      %2275 = vmatprep.subr.bf16.mxu0 0
      %2276 = vmatpush2.bf16.msra.mxu0 0
      %2277 = vmatprep.subr.bf16.mxu0 0
      %2278 = vmatpush2.bf16.msra.mxu0 0
      %2279 = vmatprep.subr.bf16.mxu0 0
      %2280 = vmatpush2.bf16.msra.mxu0 0
      %2281 = vmatprep.subr.bf16.mxu0 0
      %2282 = vmatpush2.bf16.msra.mxu0 0
      %2283 = vmatprep.subr.bf16.mxu0 0
      %2284 = vmatpush2.bf16.msra.mxu0 0
      %2285 = vmatprep.subr.bf16.mxu0 0
      %2286 = vmatpush2.bf16.msra.mxu0 0
      %2287 = vmatprep.subr.bf16.mxu0 0
      %2288 = vmatpush2.bf16.msra.mxu0 0
      %2289 = vmatprep.subr.bf16.mxu0 0
      %2290 = vmatpush2.bf16.msra.mxu0 0
      %2291 = vmatprep.mubr.bf16.mxu0 0
      %2292 = vmatmul.mubr.bf16.gmra.mxu0 %v318
      %v2293 = vpop.f32.mrf.mxu0
      %v2294 = vadd.f32 %v2220, %v2293
      %v2295 = vpop.f32.mrf.mxu0
      %v2296 = vadd.f32 %v2222, %v2295
      %v2297 = vpop.f32.mrf.mxu0
      %v2298 = vadd.f32 %v2224, %v2297
      %v2299 = vpop.f32.mrf.mxu0
      %v2300 = vadd.f32 %v2226, %v2299
      %2301 = vdwg.mxu0
      %v2302 = vld [vmem:[%s173 + $0x48] sm:$0xff]
      %v2303 = vld [vmem:[%s173 + $0x98] sm:$0xff]
      %v2304 = vld [vmem:[%s173 + $0xe8] sm:$0xff]
      %v2305 = vld [vmem:[%s173 + $0x138] sm:$0xff]
      %v2306 = vld [vmem:[%s173 + $0x188] sm:$0x33]
      %v2312 = vunpack.c.l.b16 %v2302
      %v2313 = vunpack.c.h.b16 %v2302
      %v2314 = vunpack.c.l.b16 %v2303
      %v2315 = vunpack.c.h.b16 %v2303
      %v2316 = vunpack.c.l.b16 %v2304
      %v2317 = vunpack.c.h.b16 %v2304
      %v2318 = vunpack.c.l.b16 %v2305
      %v2319 = vunpack.c.h.b16 %v2305
      %v2320 = vunpack.c.l.b16 %v2306
      %v2321 = vunpack.c.h.b16 %v2306
      %v2322 = vpack.c.b16 %v2314, %v2312
      %v2323 = vpack.c.b16 %v2315, %v2313
      %v2324 = vpack.c.b16 %v2318, %v2316
      %v2325 = vpack.c.b16 %v2319, %v2317
      %v2326 = vpack.c.b16 %v2320, %v2320
      %v2327 = vpack.c.b16 %v2321, %v2321
      %v2333 = vsel %vm237, %v2326, 0
      %v2336 = vsel %vm237, %v2327, 0
      %2338 = vmatprep.subr.bf16.mxu0 0
      %2339 = vmatpush1.bf16.msra.mxu0 0
      %2340 = vmatprep.subr.bf16.mxu0 0
      %2341 = vmatpush1.bf16.msra.mxu0 0
      %2342 = vmatprep.subr.bf16.mxu0 0
      %2343 = vmatpush1.bf16.msra.mxu0 0
      %2344 = vmatprep.subr.bf16.mxu0 0
      %2345 = vmatpush1.bf16.msra.mxu0 0
      %2346 = vmatprep.subr.bf16.mxu0 0
      %2347 = vmatpush1.bf16.msra.mxu0 0
      %2348 = vmatprep.subr.bf16.mxu0 %v2336
      %2349 = vmatpush1.bf16.msra.mxu0 %v2333
      %2350 = vmatprep.subr.bf16.mxu0 %v2325
      %2351 = vmatpush1.bf16.msra.mxu0 %v2324
      %2352 = vmatprep.subr.bf16.mxu0 %v2323
      %2353 = vmatpush1.bf16.msra.mxu0 %v2322
      %2354 = vmatprep.subr.bf16.mxu0 0
      %2355 = vmatpush2.bf16.msra.mxu0 0
      %2356 = vmatprep.subr.bf16.mxu0 0
      %2357 = vmatpush2.bf16.msra.mxu0 0
      %2358 = vmatprep.subr.bf16.mxu0 0
      %2359 = vmatpush2.bf16.msra.mxu0 0
      %2360 = vmatprep.subr.bf16.mxu0 0
      %2361 = vmatpush2.bf16.msra.mxu0 0
      %2362 = vmatprep.subr.bf16.mxu0 0
      %2363 = vmatpush2.bf16.msra.mxu0 0
      %2364 = vmatprep.subr.bf16.mxu0 0
      %2365 = vmatpush2.bf16.msra.mxu0 0
      %2366 = vmatprep.subr.bf16.mxu0 0
      %2367 = vmatpush2.bf16.msra.mxu0 0
      %2368 = vmatprep.subr.bf16.mxu0 0
      %2369 = vmatpush2.bf16.msra.mxu0 0
      %2370 = vmatprep.mubr.bf16.mxu0 0
      %2371 = vmatmul.mubr.bf16.gmra.mxu0 %v405
      %v2372 = vpop.f32.mrf.mxu0
      %v2373 = vadd.f32 0.0, %v2372
      %v2374 = vpop.f32.mrf.mxu0
      %v2375 = vadd.f32 0.0, %v2374
      %v2376 = vpop.f32.mrf.mxu0
      %v2377 = vadd.f32 0.0, %v2376
      %v2378 = vpop.f32.mrf.mxu0
      %v2379 = vadd.f32 0.0, %v2378
      %2380 = vdwg.mxu0
      %v2381 = vadd.f32 %v2294, %v2373
      %v2382 = vadd.f32 %v2296, %v2375
      %v2383 = vadd.f32 %v2298, %v2377
      %v2384 = vadd.f32 %v2300, %v2379
      %v2385 = vpack.c.bf16 %v2383, %v2381
      %v2386 = vpack.c.bf16 %v2384, %v2382
      %v2389 = vunpack.c.l.b16 %v2385
      %v2390 = vunpack.c.l.b16 %v2386
      %v2391 = vunpack.c.h.b16 %v2385
      %v2392 = vunpack.c.h.b16 %v2386
      %v2393 = vpack.c.b16 %v2390, %v2389
      %v2394 = vpack.c.b16 %v2392, %v2391
      %2397 = vst [vmem:[%s178 + $0x38] sm:$0xff] %v2393
      %2398 = vst [vmem:[%s178 + $0x78] sm:$0xff] %v2394
      %v2399 = vadd.f32 %v2381, %v2382
      %2400 = vadd.xlane.f32.xlu0 %v2399
      %v2401 = vpop.xlane.xlu0 %2400
      %v2402 = vadd.f32 %v2383, %v2384
      %2403 = vadd.xlane.f32.xlu0 %v2402
      %v2404 = vpop.xlane.xlu0 %2403
      %v2405 = vadd.f32 %v2130, %v2401
      %v2406 = vadd.f32 %v2131, %v2404
      %v2407 = vmul.f32 %v2381, %v2381
      %v2408 = vmul.f32 %v2382, %v2382
      %v2409 = vmul.f32 %v2383, %v2383
      %v2410 = vmul.f32 %v2384, %v2384
      %v2411 = vadd.f32 %v2407, %v2408
      %2412 = vadd.xlane.f32.xlu0 %v2411
      %v2413 = vpop.xlane.xlu0 %2412
      %v2414 = vadd.f32 %v2409, %v2410
      %2415 = vadd.xlane.f32.xlu0 %v2414
      %v2416 = vpop.xlane.xlu0 %2415
      %v2417 = vadd.f32 %v2142, %v2413
      %v2418 = vadd.f32 %v2143, %v2416
      %2419 = vst [vmem:[%s183] sm:$0xff] %v2405
      %2420 = vst [vmem:[%s183 + $0x8] sm:$0xff] %v2406
      %2421 = vst [vmem:[%s183 + $0x10] sm:$0xff] %v2417
      %2422 = vst [vmem:[%s183 + $0x18] sm:$0xff] %v2418
      %p2423 = scmp.lt.s32.totalorder %s15, 1
      %s2424 = scalar_select %p2423, %s15, 1
      %s2425 = smul.addr %s2424, 32
      %s2426 = smul.addr %s2425, 4
      %s2427 = scalar_lea.vmem %s2, %s2426
      %p2428 = scmp.lt.s32.totalorder %s15, 1
      %s2429 = scalar_select %p2428, %s15, 1
      %s2430 = smul.addr %s2429, 4
      %s2431 = smul.addr %s2430, 8
      %s2432 = scalar_lea.vmem %s3, %s2431
      // Predicated region
      $region29: #{encoder_block_forward.3} parent=27 // pred_check
        %p2433 = pneg %p80
      $region30: #{encoder_block_forward.3} parent=27 // pred_check_branch
        %2435 = sbr.rel (%p2433) target = $region32
      $region31: #{encoder_block_forward.3} parent=27 // pred_region
        _
      $region32: #{encoder_block_forward.3} parent=27 // pred_fallthru
        _
      // Predicated region
      $region33: #{encoder_block_forward.3} parent=27 // pred_check
        %p2436 = pneg %p106
      $region34: #{encoder_block_forward.3} parent=27 // pred_check_branch
        %2438 = sbr.rel (%p2436) target = $region36
      $region35: #{encoder_block_forward.3} parent=27 // pred_region
        _
      $region36: #{encoder_block_forward.3} parent=27 // pred_fallthru
        _
    $region28: #{encoder_block_forward.3} parent=5 // pred_fallthru
      _
    %p2439 = scmp.le.s32.totalorder 2, %s10
    // Predicated region
    $region37: #{encoder_block_forward.3} parent=5 // pred_check
      %p2440 = pneg %p2439
    $region38: #{encoder_block_forward.3} parent=5 // pred_check_branch
      %2442 = sbr.rel (%p2440) target = $region40
    $region39: #{encoder_block_forward.3} parent=5 // pred_region
      %s2443 = ssub.s32 %s10, 2
      // Predicated region
      $region41: #{encoder_block_forward.3} parent=39 // pred_check
        %p2444 = pneg %p86
      $region42: #{encoder_block_forward.3} parent=39 // pred_check_branch
        %2446 = sbr.rel (%p2444) target = $region44
      $region43: #{encoder_block_forward.3} parent=39 // pred_region
        %p2447 = scmp.lt.s32.totalorder %s16, 1
        %s2448 = scalar_select %p2447, %s16, 1
        %s2449 = smul.addr %s2448, 32
        %s2450 = smul.addr %s2449, 4
        %s2451 = scalar_lea.vmem %s2, %s2450
      $region44: #{encoder_block_forward.3} parent=39 // pred_fallthru
        _
      // Predicated region
      $region45: #{encoder_block_forward.3} parent=39 // pred_check
        %p2452 = pneg %p112
      $region46: #{encoder_block_forward.3} parent=39 // pred_check_branch
        %2454 = sbr.rel (%p2452) target = $region48
      $region47: #{encoder_block_forward.3} parent=39 // pred_region
        %p2455 = scmp.lt.s32.totalorder %s16, 1
        %s2456 = scalar_select %p2455, %s16, 1
        %s2457 = smul.addr %s2456, 4
        %s2458 = smul.addr %s2457, 8
        %s2459 = scalar_lea.vmem %s3, %s2458
      $region48: #{encoder_block_forward.3} parent=39 // pred_fallthru
        _
    $region40: #{encoder_block_forward.3} parent=5 // pred_fallthru
      _
  $region6: #{encoder_block_forward.3} parent=0 // loop_footer
    %s14 = sadd.s32 1, %s10
  $region7: #{encoder_block_forward.3} parent=0 // loop_footer_branch
    %9 = sbr.rel target = $region3
  $region8: #{encoder_block_forward.3} parent=0 // loop_exit
    _

// kernel: encoder_block_forward.5
$region0: #{encoder_block_forward.5}
  #allocation0 [shape = 'u32[]', space=smem, size = 0x4, offset = 0x4, fixed_abs, tag = 'smem constant byte address 0x4 - core index']
  #allocation1 [shape = 'u32[144,128]{1,0:T(1,128)}', space=vmem, size = 0x12000, scoped, tag = 'internal scratch']
  %s0 = inlined_call_operand.vmem [shape: bf16[2,16,2048], index: 0, kind: input, shape index: {}]
  %s1 = inlined_call_operand.vmem [shape: f32[16,1], index: 1, kind: input, shape index: {}]
  %s2 = inlined_call_operand.vmem [shape: f32[16,1], index: 2, kind: input, shape index: {}]
  %s3 = inlined_call_operand.vmem [shape: f32[2,16,2048], index: 3, kind: output, shape index: {}]
  %s4 = sld [smem:[#allocation0]]
  $region45: #{encoder_block_forward.5} parent=0
    _
  %s6 = ssub.s32 1, %s4
  %s7 = scalar_select 0, %s6, %s4
  loop: start=0, step=1, limit=4
  $region2: #{encoder_block_forward.5} parent=0 // loop_pre_header
    _
  $region3: #{encoder_block_forward.5} parent=0 // loop_header
    %s9 = sphi 0, %s13
    %p10 = scmp.ge.s32.totalorder %s9, 4
    %s19 = sphi 0, %s21
    %s22 = sphi 0, %s19
    %s23 = sphi 0, %s22
    %s39 = sphi 0, %s23
    %s43 = sphi 0, %s43
    %s45 = sphi 0, %s43
    %s46 = sphi 0, %s45
    %s60 = sphi 0, %s46
    %s64 = sphi 0, %s64
    %s66 = sphi 0, %s64
    %s67 = sphi 0, %s66
    %s81 = sphi 0, %s67
    %s87 = sphi 0, %s89
    %s90 = sphi 0, %s87
    %s91 = sphi 0, %s90
    %s107 = sphi 0, %s91
  $region4: #{encoder_block_forward.5} parent=0 // loop_header_branch
    %12 = sbr.rel (%p10) target = $region8
  $region5: #{encoder_block_forward.5} parent=0 // loop_body
    %s14 = ssub.s32 %s9, 1
    %s15 = ssub.s32 %s9, 2
    %s16 = sadd.s32 %s9, 1
    %s17 = ssub.s32 %s9, %s16
    %p18 = scmp.eq.s32.totalorder %s17, 0
    %s20 = sadd.s32 %s19, 1
    %s21 = scalar_select %p18, %s19, %s20
    %p24 = pneg %p18
    %p25 = scmp.eq.s32.totalorder %s9, 1
    %p26 = por %p24, %p25
    %p27 = scmp.ne.s32.totalorder %s19, %s22
    %p28 = scmp.eq.s32.totalorder %s9, 0
    %p29 = por %p27, %p28
    %p30 = scmp.ne.s32.totalorder %s19, %s22
    %p31 = scmp.eq.s32.totalorder %s14, 1
    %p32 = por %p30, %p31
    %p33 = scmp.ne.s32.totalorder %s22, %s23
    %p34 = scmp.eq.s32.totalorder %s14, 0
    %p35 = por %p33, %p34
    %p36 = scmp.ne.s32.totalorder %s22, %s23
    %p37 = scmp.eq.s32.totalorder %s15, 1
    %p38 = por %p36, %p37
    %p40 = scmp.ne.s32.totalorder %s23, %s39
    %p41 = scmp.eq.s32.totalorder %s15, 0
    %p42 = por %p40, %p41
    %s44 = sadd.s32 %s43, 1
    %p47 = scmp.eq.s32.totalorder %s9, 1
    %p48 = scmp.ne.s32.totalorder %s43, %s45
    %p49 = scmp.eq.s32.totalorder %s9, 0
    %p50 = por %p48, %p49
    %p51 = scmp.ne.s32.totalorder %s43, %s45
    %p52 = scmp.eq.s32.totalorder %s14, 1
    %p53 = por %p51, %p52
    %p54 = scmp.ne.s32.totalorder %s45, %s46
    %p55 = scmp.eq.s32.totalorder %s14, 0
    %p56 = por %p54, %p55
    %p57 = scmp.ne.s32.totalorder %s45, %s46
    %p58 = scmp.eq.s32.totalorder %s15, 1
    %p59 = por %p57, %p58
    %p61 = scmp.ne.s32.totalorder %s46, %s60
    %p62 = scmp.eq.s32.totalorder %s15, 0
    %p63 = por %p61, %p62
    %s65 = sadd.s32 %s64, 1
    %p68 = scmp.eq.s32.totalorder %s9, 1
    %p69 = scmp.ne.s32.totalorder %s64, %s66
    %p70 = scmp.eq.s32.totalorder %s9, 0
    %p71 = por %p69, %p70
    %p72 = scmp.ne.s32.totalorder %s64, %s66
    %p73 = scmp.eq.s32.totalorder %s14, 1
    %p74 = por %p72, %p73
    %p75 = scmp.ne.s32.totalorder %s66, %s67
    %p76 = scmp.eq.s32.totalorder %s14, 0
    %p77 = por %p75, %p76
    %p78 = scmp.ne.s32.totalorder %s66, %s67
    %p79 = scmp.eq.s32.totalorder %s15, 1
    %p80 = por %p78, %p79
    %p82 = scmp.ne.s32.totalorder %s67, %s81
    %p83 = scmp.eq.s32.totalorder %s15, 0
    %p84 = por %p82, %p83
    %s85 = ssub.s32 %s9, %s16
    %p86 = scmp.eq.s32.totalorder %s85, 0
    %s88 = sadd.s32 %s87, 1
    %s89 = scalar_select %p86, %s87, %s88
    %p92 = pneg %p86
    %p93 = scmp.eq.s32.totalorder %s9, 1
    %p94 = por %p92, %p93
    %p95 = scmp.ne.s32.totalorder %s87, %s90
    %p96 = scmp.eq.s32.totalorder %s9, 0
    %p97 = por %p95, %p96
    %p98 = scmp.ne.s32.totalorder %s87, %s90
    %p99 = scmp.eq.s32.totalorder %s14, 1
    %p100 = por %p98, %p99
    %p101 = scmp.ne.s32.totalorder %s90, %s91
    %p102 = scmp.eq.s32.totalorder %s14, 0
    %p103 = por %p101, %p102
    %p104 = scmp.ne.s32.totalorder %s90, %s91
    %p105 = scmp.eq.s32.totalorder %s15, 1
    %p106 = por %p104, %p105
    %p108 = scmp.ne.s32.totalorder %s91, %s107
    %p109 = scmp.eq.s32.totalorder %s15, 0
    %p110 = por %p108, %p109
    %p111 = scmp.le.s32.totalorder 1, %s9
    %p112 = scmp.lt.s32.totalorder %s9, 3
    %p113 = pnand %p111, %p112
    %p114 = pneg %p113
    // Predicated region
    $region9: #{encoder_block_forward.5} parent=5 // pred_check
      _
    $region10: #{encoder_block_forward.5} parent=5 // pred_check_branch
      %116 = sbr.rel (%p113) target = $region12
    $region11: #{encoder_block_forward.5} parent=5 // pred_region
      %s117 = ssub.s32 %s9, 1
      // Predicated region
      $region13: #{encoder_block_forward.5} parent=11 // pred_check
        %p118 = pneg %p56
      $region14: #{encoder_block_forward.5} parent=11 // pred_check_branch
        %120 = sbr.rel (%p118) target = $region16
      $region15: #{encoder_block_forward.5} parent=11 // pred_region
        _
      $region16: #{encoder_block_forward.5} parent=11 // pred_fallthru
        _
      // Predicated region
      $region17: #{encoder_block_forward.5} parent=11 // pred_check
        %p121 = pneg %p77
      $region18: #{encoder_block_forward.5} parent=11 // pred_check_branch
        %123 = sbr.rel (%p121) target = $region20
      $region19: #{encoder_block_forward.5} parent=11 // pred_region
        _
      $region20: #{encoder_block_forward.5} parent=11 // pred_fallthru
        _
    $region12: #{encoder_block_forward.5} parent=5 // pred_fallthru
      _
    %p124 = scmp.lt.s32.totalorder %s9, 2
    // Predicated region
    $region21: #{encoder_block_forward.5} parent=5 // pred_check
      %p125 = pneg %p124
    $region22: #{encoder_block_forward.5} parent=5 // pred_check_branch
      %127 = sbr.rel (%p125) target = $region24
    $region23: #{encoder_block_forward.5} parent=5 // pred_region
      // Predicated region
      $region25: #{encoder_block_forward.5} parent=23 // pred_check
        %p128 = pneg %p29
      $region26: #{encoder_block_forward.5} parent=23 // pred_check_branch
        %130 = sbr.rel (%p128) target = $region28
      $region27: #{encoder_block_forward.5} parent=23 // pred_region
        %p131 = scmp.lt.s32.totalorder %s9, 1
        %s132 = scalar_select %p131, %s9, 1
        %s133 = smul.addr %s132, 32
        %s134 = smul.addr %s133, 4
        %s135 = scalar_lea.vmem %s0, %s134
      $region28: #{encoder_block_forward.5} parent=23 // pred_fallthru
        _
    $region24: #{encoder_block_forward.5} parent=5 // pred_fallthru
      _
    %p136 = scmp.le.s32.totalorder 1, %s9
    %p137 = scmp.lt.s32.totalorder %s9, 3
    %p138 = pnand %p136, %p137
    %p139 = pneg %p138
    // Predicated region
    $region29: #{encoder_block_forward.5} parent=5 // pred_check
      _
    $region30: #{encoder_block_forward.5} parent=5 // pred_check_branch
      %141 = sbr.rel (%p138) target = $region32
    $region31: #{encoder_block_forward.5} parent=5 // pred_region
      %s142 = ssub.s32 %s9, 1
      %p143 = scmp.lt.s32.totalorder %s14, 1
      %s144 = scalar_select %p143, %s14, 1
      %s145 = smul.addr %s144, 32
      %s146 = smul.addr %s145, 4
      %s147 = scalar_lea.vmem %s0, %s146
      %p148 = pneg %p35
      %p149 = pneg %p32
      %p150 = pneg %p56
      %p151 = pneg %p53
      %p152 = pneg %p77
      %p153 = pneg %p74
      %p154 = pneg %p103
      %p155 = pneg %p100
      %p156 = scmp.lt.s32.totalorder %s14, 1
      %s157 = scalar_select %p156, %s14, 1
      %s158 = smul.addr %s157, 32
      %s159 = smul.addr %s158, 8
      %s160 = scalar_lea.vmem %s3, %s159
      %p161 = scmp.lt.s32.totalorder %s14, 1
      %s162 = scalar_select %p161, %s14, 1
      %s163 = smul.addr %s162, 32
      %s164 = smul.addr %s163, 4
      %s165 = scalar_lea.vmem %s0, %s164
      %p166 = scmp.lt.s32.totalorder %s14, 1
      %s167 = scalar_select %p166, %s14, 1
      %s168 = smul.addr %s167, 32
      %s169 = smul.addr %s168, 8
      %s170 = scalar_lea.vmem %s3, %s169
      %v171 = vld [vmem:[%s165] sm:$0xff]
      %v172 = vld [vmem:[%s165 + $0x8] sm:$0xff]
      %v173 = vld [vmem:[%s165 + $0x10] sm:$0xff]
      %v174 = vld [vmem:[%s165 + $0x18] sm:$0xff]
      %v175 = vld [vmem:[%s165 + $0x20] sm:$0xff]
      %v176 = vld [vmem:[%s165 + $0x28] sm:$0xff]
      %v177 = vld [vmem:[%s165 + $0x30] sm:$0xff]
      %v178 = vld [vmem:[%s165 + $0x38] sm:$0xff]
      %v179 = vld [vmem:[%s165 + $0x40] sm:$0xff]
      %v180 = vld [vmem:[%s165 + $0x48] sm:$0xff]
      %v181 = vld [vmem:[%s165 + $0x50] sm:$0xff]
      %v182 = vld [vmem:[%s165 + $0x58] sm:$0xff]
      %v183 = vld [vmem:[%s165 + $0x60] sm:$0xff]
      %v184 = vld [vmem:[%s165 + $0x68] sm:$0xff]
      %v185 = vld [vmem:[%s165 + $0x70] sm:$0xff]
      %v186 = vld [vmem:[%s165 + $0x78] sm:$0xff]
      %v187 = vunpack.c.l.bf16 %v171
      %v188 = vunpack.c.h.bf16 %v171
      %v189 = vunpack.c.l.bf16 %v172
      %v190 = vunpack.c.h.bf16 %v172
      %v191 = vunpack.c.l.bf16 %v173
      %v192 = vunpack.c.h.bf16 %v173
      %v193 = vunpack.c.l.bf16 %v174
      %v194 = vunpack.c.h.bf16 %v174
      %v195 = vunpack.c.l.bf16 %v175
      %v196 = vunpack.c.h.bf16 %v175
      %v197 = vunpack.c.l.bf16 %v176
      %v198 = vunpack.c.h.bf16 %v176
      %v199 = vunpack.c.l.bf16 %v177
      %v200 = vunpack.c.h.bf16 %v177
      %v201 = vunpack.c.l.bf16 %v178
      %v202 = vunpack.c.h.bf16 %v178
      %v203 = vunpack.c.l.bf16 %v179
      %v204 = vunpack.c.h.bf16 %v179
      %v205 = vunpack.c.l.bf16 %v180
      %v206 = vunpack.c.h.bf16 %v180
      %v207 = vunpack.c.l.bf16 %v181
      %v208 = vunpack.c.h.bf16 %v181
      %v209 = vunpack.c.l.bf16 %v182
      %v210 = vunpack.c.h.bf16 %v182
      %v211 = vunpack.c.l.bf16 %v183
      %v212 = vunpack.c.h.bf16 %v183
      %v213 = vunpack.c.l.bf16 %v184
      %v214 = vunpack.c.h.bf16 %v184
      %v215 = vunpack.c.l.bf16 %v185
      %v216 = vunpack.c.h.bf16 %v185
      %v217 = vunpack.c.l.bf16 %v186
      %v218 = vunpack.c.h.bf16 %v186
      %v219 = vld [vmem:[%s1] sm:$0xff]
      %v220 = vld [vmem:[%s1 + $0x8] sm:$0xff]
      %222 = vset.pattern.permute.xlu0 0
      %223 = vperm.xlu0 %222, %v219
      %v224 = vpop.permute.xlu0 %223
      %227 = vset.pattern.permute.xlu0 0
      %228 = vperm.xlu0 %227, %v220
      %v229 = vpop.permute.xlu0 %228
      %v231 = vmul.f32 %v187, %v224
      %v232 = vmul.f32 %v188, %v224
      %v233 = vmul.f32 %v189, %v224
      %v234 = vmul.f32 %v190, %v224
      %v235 = vmul.f32 %v191, %v224
      %v236 = vmul.f32 %v192, %v224
      %v237 = vmul.f32 %v193, %v224
      %v238 = vmul.f32 %v194, %v224
      %v239 = vmul.f32 %v195, %v224
      %v240 = vmul.f32 %v196, %v224
      %v241 = vmul.f32 %v197, %v224
      %v242 = vmul.f32 %v198, %v224
      %v243 = vmul.f32 %v199, %v224
      %v244 = vmul.f32 %v200, %v224
      %v245 = vmul.f32 %v201, %v224
      %v246 = vmul.f32 %v202, %v224
      %v247 = vmul.f32 %v203, %v229
      %v248 = vmul.f32 %v204, %v229
      %v249 = vmul.f32 %v205, %v229
      %v250 = vmul.f32 %v206, %v229
      %v251 = vmul.f32 %v207, %v229
      %v252 = vmul.f32 %v208, %v229
      %v253 = vmul.f32 %v209, %v229
      %v254 = vmul.f32 %v210, %v229
      %v255 = vmul.f32 %v211, %v229
      %v256 = vmul.f32 %v212, %v229
      %v257 = vmul.f32 %v213, %v229
      %v258 = vmul.f32 %v214, %v229
      %v259 = vmul.f32 %v215, %v229
      %v260 = vmul.f32 %v216, %v229
      %v261 = vmul.f32 %v217, %v229
      %v262 = vmul.f32 %v218, %v229
      %v263 = vld [vmem:[%s2] sm:$0xff]
      %v264 = vld [vmem:[%s2 + $0x8] sm:$0xff]
      %266 = vset.pattern.permute.xlu0 0
      %267 = vperm.xlu0 %266, %v263
      %v268 = vpop.permute.xlu0 %267
      %271 = vset.pattern.permute.xlu0 0
      %272 = vperm.xlu0 %271, %v264
      %v273 = vpop.permute.xlu0 %272
      %v275 = vadd.f32 %v231, %v268
      %v276 = vadd.f32 %v232, %v268
      %v277 = vadd.f32 %v233, %v268
      %v278 = vadd.f32 %v234, %v268
      %v279 = vadd.f32 %v235, %v268
      %v280 = vadd.f32 %v236, %v268
      %v281 = vadd.f32 %v237, %v268
      %v282 = vadd.f32 %v238, %v268
      %v283 = vadd.f32 %v239, %v268
      %v284 = vadd.f32 %v240, %v268
      %v285 = vadd.f32 %v241, %v268
      %v286 = vadd.f32 %v242, %v268
      %v287 = vadd.f32 %v243, %v268
      %v288 = vadd.f32 %v244, %v268
      %v289 = vadd.f32 %v245, %v268
      %v290 = vadd.f32 %v246, %v268
      %v291 = vadd.f32 %v247, %v273
      %v292 = vadd.f32 %v248, %v273
      %v293 = vadd.f32 %v249, %v273
      %v294 = vadd.f32 %v250, %v273
      %v295 = vadd.f32 %v251, %v273
      %v296 = vadd.f32 %v252, %v273
      %v297 = vadd.f32 %v253, %v273
      %v298 = vadd.f32 %v254, %v273
      %v299 = vadd.f32 %v255, %v273
      %v300 = vadd.f32 %v256, %v273
      %v301 = vadd.f32 %v257, %v273
      %v302 = vadd.f32 %v258, %v273
      %v303 = vadd.f32 %v259, %v273
      %v304 = vadd.f32 %v260, %v273
      %v305 = vadd.f32 %v261, %v273
      %v306 = vadd.f32 %v262, %v273
      %v307 = vmax.f32 %v275, 0.0
      %v308 = vmax.f32 %v276, 0.0
      %v309 = vmax.f32 %v277, 0.0
      %v310 = vmax.f32 %v278, 0.0
      %v311 = vmax.f32 %v279, 0.0
      %v312 = vmax.f32 %v280, 0.0
      %v313 = vmax.f32 %v281, 0.0
      %v314 = vmax.f32 %v282, 0.0
      %v315 = vmax.f32 %v283, 0.0
      %v316 = vmax.f32 %v284, 0.0
      %v317 = vmax.f32 %v285, 0.0
      %v318 = vmax.f32 %v286, 0.0
      %v319 = vmax.f32 %v287, 0.0
      %v320 = vmax.f32 %v288, 0.0
      %v321 = vmax.f32 %v289, 0.0
      %v322 = vmax.f32 %v290, 0.0
      %v323 = vmax.f32 %v291, 0.0
      %v324 = vmax.f32 %v292, 0.0
      %v325 = vmax.f32 %v293, 0.0
      %v326 = vmax.f32 %v294, 0.0
      %v327 = vmax.f32 %v295, 0.0
      %v328 = vmax.f32 %v296, 0.0
      %v329 = vmax.f32 %v297, 0.0
      %v330 = vmax.f32 %v298, 0.0
      %v331 = vmax.f32 %v299, 0.0
      %v332 = vmax.f32 %v300, 0.0
      %v333 = vmax.f32 %v301, 0.0
      %v334 = vmax.f32 %v302, 0.0
      %v335 = vmax.f32 %v303, 0.0
      %v336 = vmax.f32 %v304, 0.0
      %v337 = vmax.f32 %v305, 0.0
      %v338 = vmax.f32 %v306, 0.0
      %339 = vst [vmem:[%s170] sm:$0xff] %v307
      %340 = vst [vmem:[%s170 + $0x8] sm:$0xff] %v308
      %341 = vst [vmem:[%s170 + $0x10] sm:$0xff] %v309
      %342 = vst [vmem:[%s170 + $0x18] sm:$0xff] %v310
      %343 = vst [vmem:[%s170 + $0x20] sm:$0xff] %v311
      %344 = vst [vmem:[%s170 + $0x28] sm:$0xff] %v312
      %345 = vst [vmem:[%s170 + $0x30] sm:$0xff] %v313
      %346 = vst [vmem:[%s170 + $0x38] sm:$0xff] %v314
      %347 = vst [vmem:[%s170 + $0x40] sm:$0xff] %v315
      %348 = vst [vmem:[%s170 + $0x48] sm:$0xff] %v316
      %349 = vst [vmem:[%s170 + $0x50] sm:$0xff] %v317
      %350 = vst [vmem:[%s170 + $0x58] sm:$0xff] %v318
      %351 = vst [vmem:[%s170 + $0x60] sm:$0xff] %v319
      %352 = vst [vmem:[%s170 + $0x68] sm:$0xff] %v320
      %353 = vst [vmem:[%s170 + $0x70] sm:$0xff] %v321
      %354 = vst [vmem:[%s170 + $0x78] sm:$0xff] %v322
      %355 = vst [vmem:[%s170 + $0x80] sm:$0xff] %v323
      %356 = vst [vmem:[%s170 + $0x88] sm:$0xff] %v324
      %357 = vst [vmem:[%s170 + $0x90] sm:$0xff] %v325
      %358 = vst [vmem:[%s170 + $0x98] sm:$0xff] %v326
      %359 = vst [vmem:[%s170 + $0xa0] sm:$0xff] %v327
      %360 = vst [vmem:[%s170 + $0xa8] sm:$0xff] %v328
      %361 = vst [vmem:[%s170 + $0xb0] sm:$0xff] %v329
      %362 = vst [vmem:[%s170 + $0xb8] sm:$0xff] %v330
      %363 = vst [vmem:[%s170 + $0xc0] sm:$0xff] %v331
      %364 = vst [vmem:[%s170 + $0xc8] sm:$0xff] %v332
      %365 = vst [vmem:[%s170 + $0xd0] sm:$0xff] %v333
      %366 = vst [vmem:[%s170 + $0xd8] sm:$0xff] %v334
      %367 = vst [vmem:[%s170 + $0xe0] sm:$0xff] %v335
      %368 = vst [vmem:[%s170 + $0xe8] sm:$0xff] %v336
      %369 = vst [vmem:[%s170 + $0xf0] sm:$0xff] %v337
      %370 = vst [vmem:[%s170 + $0xf8] sm:$0xff] %v338
      %p371 = scmp.lt.s32.totalorder %s14, 1
      %s372 = scalar_select %p371, %s14, 1
      %s373 = smul.addr %s372, 32
      %s374 = smul.addr %s373, 8
      %s375 = scalar_lea.vmem %s3, %s374
      // Predicated region
      $region33: #{encoder_block_forward.5} parent=31 // pred_check
        %p376 = pneg %p100
      $region34: #{encoder_block_forward.5} parent=31 // pred_check_branch
        %378 = sbr.rel (%p376) target = $region36
      $region35: #{encoder_block_forward.5} parent=31 // pred_region
        _
      $region36: #{encoder_block_forward.5} parent=31 // pred_fallthru
        _
    $region32: #{encoder_block_forward.5} parent=5 // pred_fallthru
      _
    %p379 = scmp.le.s32.totalorder 2, %s9
    // Predicated region
    $region37: #{encoder_block_forward.5} parent=5 // pred_check
      %p380 = pneg %p379
    $region38: #{encoder_block_forward.5} parent=5 // pred_check_branch
      %382 = sbr.rel (%p380) target = $region40
    $region39: #{encoder_block_forward.5} parent=5 // pred_region
      %s383 = ssub.s32 %s9, 2
      // Predicated region
      $region41: #{encoder_block_forward.5} parent=39 // pred_check
        %p384 = pneg %p106
      $region42: #{encoder_block_forward.5} parent=39 // pred_check_branch
        %386 = sbr.rel (%p384) target = $region44
      $region43: #{encoder_block_forward.5} parent=39 // pred_region
        %p387 = scmp.lt.s32.totalorder %s15, 1
        %s388 = scalar_select %p387, %s15, 1
        %s389 = smul.addr %s388, 32
        %s390 = smul.addr %s389, 8
        %s391 = scalar_lea.vmem %s3, %s390
      $region44: #{encoder_block_forward.5} parent=39 // pred_fallthru
        _
    $region40: #{encoder_block_forward.5} parent=5 // pred_fallthru
      _
  $region6: #{encoder_block_forward.5} parent=0 // loop_footer
    %s13 = sadd.s32 1, %s9
  $region7: #{encoder_block_forward.5} parent=0 // loop_footer_branch
    %8 = sbr.rel target = $region3
  $region8: #{encoder_block_forward.5} parent=0 // loop_exit
    _

// kernel: encoder_block_forward.4
$region0: #{encoder_block_forward.4}
  #allocation0 [shape = 'u32[]', space=smem, size = 0x4, offset = 0x4, fixed_abs, tag = 'smem constant byte address 0x4 - core index']
  #allocation1 [shape = 'u32[144,128]{1,0:T(1,128)}', space=vmem, size = 0x12000, scoped, tag = 'internal scratch']
  %s0 = inlined_call_operand.vmem [shape: bf16[2,144,2560], index: 0, kind: input, shape index: {}]
  %s1 = inlined_call_operand.vmem [shape: bf16[3,16,144], index: 1, kind: input, shape index: {}]
  %s2 = inlined_call_operand.vmem [shape: bf16[2,16,2048], index: 2, kind: output, shape index: {0}]
  %s3 = inlined_call_operand.vmem [shape: f32[2,32,128], index: 3, kind: output, shape index: {1}]
  %4 = xla_tuple %s2, %s3
  %s5 = sld [smem:[#allocation0]]
  $region49: #{encoder_block_forward.4} parent=0
    _
  %s7 = ssub.s32 1, %s5
  %s8 = scalar_select 0, %s7, %s5
  loop: start=0, step=1, limit=4
  $region2: #{encoder_block_forward.4} parent=0 // loop_pre_header
    _
  $region3: #{encoder_block_forward.4} parent=0 // loop_header
    %s10 = sphi 0, %s14
    %p11 = scmp.ge.s32.totalorder %s10, 4
    %s20 = sphi 0, %s22
    %s23 = sphi 0, %s20
    %s24 = sphi 0, %s23
    %s40 = sphi 0, %s24
    %s44 = sphi 0, %s44
    %s46 = sphi 0, %s44
    %s47 = sphi 0, %s46
    %s61 = sphi 0, %s47
    %s67 = sphi 0, %s69
    %s70 = sphi 0, %s67
    %s71 = sphi 0, %s70
    %s87 = sphi 0, %s71
    %s93 = sphi 0, %s95
    %s96 = sphi 0, %s93
    %s97 = sphi 0, %s96
    %s113 = sphi 0, %s97
  $region4: #{encoder_block_forward.4} parent=0 // loop_header_branch
    %13 = sbr.rel (%p11) target = $region8
  $region5: #{encoder_block_forward.4} parent=0 // loop_body
    %s15 = ssub.s32 %s10, 1
    %s16 = ssub.s32 %s10, 2
    %s17 = sadd.s32 %s10, 1
    %s18 = ssub.s32 %s10, %s17
    %p19 = scmp.eq.s32.totalorder %s18, 0
    %s21 = sadd.s32 %s20, 1
    %s22 = scalar_select %p19, %s20, %s21
    %p25 = pneg %p19
    %p26 = scmp.eq.s32.totalorder %s10, 1
    %p27 = por %p25, %p26
    %p28 = scmp.ne.s32.totalorder %s20, %s23
    %p29 = scmp.eq.s32.totalorder %s10, 0
    %p30 = por %p28, %p29
    %p31 = scmp.ne.s32.totalorder %s20, %s23
    %p32 = scmp.eq.s32.totalorder %s15, 1
    %p33 = por %p31, %p32
    %p34 = scmp.ne.s32.totalorder %s23, %s24
    %p35 = scmp.eq.s32.totalorder %s15, 0
    %p36 = por %p34, %p35
    %p37 = scmp.ne.s32.totalorder %s23, %s24
    %p38 = scmp.eq.s32.totalorder %s16, 1
    %p39 = por %p37, %p38
    %p41 = scmp.ne.s32.totalorder %s24, %s40
    %p42 = scmp.eq.s32.totalorder %s16, 0
    %p43 = por %p41, %p42
    %s45 = sadd.s32 %s44, 1
    %p48 = scmp.eq.s32.totalorder %s10, 1
    %p49 = scmp.ne.s32.totalorder %s44, %s46
    %p50 = scmp.eq.s32.totalorder %s10, 0
    %p51 = por %p49, %p50
    %p52 = scmp.ne.s32.totalorder %s44, %s46
    %p53 = scmp.eq.s32.totalorder %s15, 1
    %p54 = por %p52, %p53
    %p55 = scmp.ne.s32.totalorder %s46, %s47
    %p56 = scmp.eq.s32.totalorder %s15, 0
    %p57 = por %p55, %p56
    %p58 = scmp.ne.s32.totalorder %s46, %s47
    %p59 = scmp.eq.s32.totalorder %s16, 1
    %p60 = por %p58, %p59
    %p62 = scmp.ne.s32.totalorder %s47, %s61
    %p63 = scmp.eq.s32.totalorder %s16, 0
    %p64 = por %p62, %p63
    %s65 = ssub.s32 %s10, %s17
    %p66 = scmp.eq.s32.totalorder %s65, 0
    %s68 = sadd.s32 %s67, 1
    %s69 = scalar_select %p66, %s67, %s68
    %p72 = pneg %p66
    %p73 = scmp.eq.s32.totalorder %s10, 1
    %p74 = por %p72, %p73
    %p75 = scmp.ne.s32.totalorder %s67, %s70
    %p76 = scmp.eq.s32.totalorder %s10, 0
    %p77 = por %p75, %p76
    %p78 = scmp.ne.s32.totalorder %s67, %s70
    %p79 = scmp.eq.s32.totalorder %s15, 1
    %p80 = por %p78, %p79
    %p81 = scmp.ne.s32.totalorder %s70, %s71
    %p82 = scmp.eq.s32.totalorder %s15, 0
    %p83 = por %p81, %p82
    %p84 = scmp.ne.s32.totalorder %s70, %s71
    %p85 = scmp.eq.s32.totalorder %s16, 1
    %p86 = por %p84, %p85
    %p88 = scmp.ne.s32.totalorder %s71, %s87
    %p89 = scmp.eq.s32.totalorder %s16, 0
    %p90 = por %p88, %p89
    %s91 = ssub.s32 %s10, %s17
    %p92 = scmp.eq.s32.totalorder %s91, 0
    %s94 = sadd.s32 %s93, 1
    %s95 = scalar_select %p92, %s93, %s94
    %p98 = pneg %p92
    %p99 = scmp.eq.s32.totalorder %s10, 1
    %p100 = por %p98, %p99
    %p101 = scmp.ne.s32.totalorder %s93, %s96
    %p102 = scmp.eq.s32.totalorder %s10, 0
    %p103 = por %p101, %p102
    %p104 = scmp.ne.s32.totalorder %s93, %s96
    %p105 = scmp.eq.s32.totalorder %s15, 1
    %p106 = por %p104, %p105
    %p107 = scmp.ne.s32.totalorder %s96, %s97
    %p108 = scmp.eq.s32.totalorder %s15, 0
    %p109 = por %p107, %p108
    %p110 = scmp.ne.s32.totalorder %s96, %s97
    %p111 = scmp.eq.s32.totalorder %s16, 1
    %p112 = por %p110, %p111
    %p114 = scmp.ne.s32.totalorder %s97, %s113
    %p115 = scmp.eq.s32.totalorder %s16, 0
    %p116 = por %p114, %p115
    %p117 = scmp.le.s32.totalorder 1, %s10
    %p118 = scmp.lt.s32.totalorder %s10, 3
    %p119 = pnand %p117, %p118
    %p120 = pneg %p119
    // Predicated region
    $region9: #{encoder_block_forward.4} parent=5 // pred_check
      _
    $region10: #{encoder_block_forward.4} parent=5 // pred_check_branch
      %122 = sbr.rel (%p119) target = $region12
    $region11: #{encoder_block_forward.4} parent=5 // pred_region
      %s123 = ssub.s32 %s10, 1
      // Predicated region
      $region13: #{encoder_block_forward.4} parent=11 // pred_check
        %p124 = pneg %p57
      $region14: #{encoder_block_forward.4} parent=11 // pred_check_branch
        %126 = sbr.rel (%p124) target = $region16
      $region15: #{encoder_block_forward.4} parent=11 // pred_region
        _
      $region16: #{encoder_block_forward.4} parent=11 // pred_fallthru
        _
    $region12: #{encoder_block_forward.4} parent=5 // pred_fallthru
      _
    %p127 = scmp.lt.s32.totalorder %s10, 2
    // Predicated region
    $region17: #{encoder_block_forward.4} parent=5 // pred_check
      %p128 = pneg %p127
    $region18: #{encoder_block_forward.4} parent=5 // pred_check_branch
      %130 = sbr.rel (%p128) target = $region20
    $region19: #{encoder_block_forward.4} parent=5 // pred_region
      // Predicated region
      $region21: #{encoder_block_forward.4} parent=19 // pred_check
        %p131 = pneg %p30
      $region22: #{encoder_block_forward.4} parent=19 // pred_check_branch
        %133 = sbr.rel (%p131) target = $region24
      $region23: #{encoder_block_forward.4} parent=19 // pred_region
        %p134 = scmp.lt.s32.totalorder %s10, 1
        %s135 = scalar_select %p134, %s10, 1
        %s136 = smul.addr %s135, 360
        %s137 = smul.addr %s136, 4
        %s138 = scalar_lea.vmem %s0, %s137
      $region24: #{encoder_block_forward.4} parent=19 // pred_fallthru
        _
    $region20: #{encoder_block_forward.4} parent=5 // pred_fallthru
      _
    %p139 = scmp.le.s32.totalorder 1, %s10
    %p140 = scmp.lt.s32.totalorder %s10, 3
    %p141 = pnand %p139, %p140
    %p142 = pneg %p141
    // Predicated region
    $region25: #{encoder_block_forward.4} parent=5 // pred_check
      _
    $region26: #{encoder_block_forward.4} parent=5 // pred_check_branch
      %144 = sbr.rel (%p141) target = $region28
    $region27: #{encoder_block_forward.4} parent=5 // pred_region
      %s145 = ssub.s32 %s10, 1
      %p146 = scmp.lt.s32.totalorder %s15, 1
      %s147 = scalar_select %p146, %s15, 1
      %s148 = smul.addr %s147, 360
      %s149 = smul.addr %s148, 4
      %s150 = scalar_lea.vmem %s0, %s149
      %p151 = pneg %p36
      %p152 = pneg %p33
      %p153 = pneg %p57
      %p154 = pneg %p54
      %p155 = pneg %p83
      %p156 = pneg %p80
      %p157 = scmp.lt.s32.totalorder %s15, 1
      %s158 = scalar_select %p157, %s15, 1
      %s159 = smul.addr %s158, 32
      %s160 = smul.addr %s159, 4
      %s161 = scalar_lea.vmem %s2, %s160
      %p162 = pneg %p109
      %p163 = pneg %p106
      %p164 = scmp.lt.s32.totalorder %s15, 1
      %s165 = scalar_select %p164, %s15, 1
      %s166 = smul.addr %s165, 4
      %s167 = smul.addr %s166, 8
      %s168 = scalar_lea.vmem %s3, %s167
      %p169 = scmp.lt.s32.totalorder %s15, 1
      %s170 = scalar_select %p169, %s15, 1
      %s171 = smul.addr %s170, 360
      %s172 = smul.addr %s171, 4
      %s173 = scalar_lea.vmem %s0, %s172
      %p174 = scmp.lt.s32.totalorder %s15, 1
      %s175 = scalar_select %p174, %s15, 1
      %s176 = smul.addr %s175, 32
      %s177 = smul.addr %s176, 4
      %s178 = scalar_lea.vmem %s2, %s177
      %p179 = scmp.lt.s32.totalorder %s15, 1
      %s180 = scalar_select %p179, %s15, 1
      %s181 = smul.addr %s180, 4
      %s182 = smul.addr %s181, 8
      %s183 = scalar_lea.vmem %s3, %s182
      %v185 = vld [vmem:[%s1] sm:$0xff]
      %v186 = vld [vmem:[%s1 + $0x8] sm:$0xff]
      %s187 = scalar_lea.vmem %s1, 16
      %v188 = vld [vmem:[%s187] sm:$0xff]
      %v189 = vld [vmem:[%s187 + $0x8] sm:$0xff]
      %s190 = scalar_lea.vmem %s1, 32
      %v191 = vld [vmem:[%s190] sm:$0xff]
      %v192 = vld [vmem:[%s190 + $0x8] sm:$0xff]
      %v193 = vld [vmem:[%s173] sm:$0xff]
      %v194 = vld [vmem:[%s173 + $0x50] sm:$0xff]
      %v195 = vld [vmem:[%s173 + $0xa0] sm:$0xff]
      %v196 = vld [vmem:[%s173 + $0xf0] sm:$0xff]
      %v197 = vld [vmem:[%s173 + $0x140] sm:$0xff]
      %v198 = vld [vmem:[%s173 + $0x190] sm:$0xff]
      %v199 = vld [vmem:[%s173 + $0x1e0] sm:$0xff]
      %v200 = vld [vmem:[%s173 + $0x230] sm:$0xff]
      %v201 = vld [vmem:[%s173 + $0x280] sm:$0xff]
      %v202 = vld [vmem:[%s173 + $0x2d0] sm:$0xff]
      %v203 = vld [vmem:[%s173 + $0x320] sm:$0xff]
      %v204 = vld [vmem:[%s173 + $0x370] sm:$0xff]
      %v205 = vld [vmem:[%s173 + $0x3c0] sm:$0xff]
      %v206 = vld [vmem:[%s173 + $0x410] sm:$0xff]
      %v207 = vld [vmem:[%s173 + $0x460] sm:$0xff]
      %v208 = vld [vmem:[%s173 + $0x4b0] sm:$0xff]
      %v209 = vld [vmem:[%s173 + $0x500] sm:$0xff]
      %v210 = vld [vmem:[%s173 + $0x550] sm:$0xff]
      %v211 = vld [vmem:[%s173 + $0x8] sm:$0xff]
      %v212 = vld [vmem:[%s173 + $0x58] sm:$0xff]
      %v213 = vld [vmem:[%s173 + $0xa8] sm:$0xff]
      %v214 = vld [vmem:[%s173 + $0xf8] sm:$0xff]
      %v215 = vld [vmem:[%s173 + $0x148] sm:$0xff]
      %v216 = vld [vmem:[%s173 + $0x198] sm:$0xff]
      %v217 = vld [vmem:[%s173 + $0x1e8] sm:$0xff]
      %v218 = vld [vmem:[%s173 + $0x238] sm:$0xff]
      %v219 = vld [vmem:[%s173 + $0x288] sm:$0xff]
      %v220 = vld [vmem:[%s173 + $0x2d8] sm:$0xff]
      %v221 = vld [vmem:[%s173 + $0x328] sm:$0xff]
      %v222 = vld [vmem:[%s173 + $0x378] sm:$0xff]
      %v223 = vld [vmem:[%s173 + $0x3c8] sm:$0xff]
      %v224 = vld [vmem:[%s173 + $0x418] sm:$0xff]
      %v225 = vld [vmem:[%s173 + $0x468] sm:$0xff]
      %v226 = vld [vmem:[%s173 + $0x4b8] sm:$0xff]
      %v227 = vld [vmem:[%s173 + $0x508] sm:$0xff]
      %v228 = vld [vmem:[%s173 + $0x558] sm:$0xff]
      %v231 = vunpack.c.l.b16 %v188
      %v232 = vunpack.c.h.b16 %v188
      %v233 = vunpack.c.l.b16 %v189
      %v234 = vunpack.c.h.b16 %v189
      %v235 = vpack.c.b16 %v233, %v231
      %v236 = vpack.c.b16 %v234, %v232
      %v256 = vunpack.c.l.b16 %v211
      %v257 = vunpack.c.h.b16 %v211
      %v258 = vunpack.c.l.b16 %v212
      %v259 = vunpack.c.h.b16 %v212
      %v260 = vunpack.c.l.b16 %v213
      %v261 = vunpack.c.h.b16 %v213
      %v262 = vunpack.c.l.b16 %v214
      %v263 = vunpack.c.h.b16 %v214
      %v264 = vunpack.c.l.b16 %v215
      %v265 = vunpack.c.h.b16 %v215
      %v266 = vunpack.c.l.b16 %v216
      %v267 = vunpack.c.h.b16 %v216
      %v268 = vunpack.c.l.b16 %v217
      %v269 = vunpack.c.h.b16 %v217
      %v270 = vunpack.c.l.b16 %v218
      %v271 = vunpack.c.h.b16 %v218
      %v272 = vunpack.c.l.b16 %v219
      %v273 = vunpack.c.h.b16 %v219
      %v274 = vunpack.c.l.b16 %v220
      %v275 = vunpack.c.h.b16 %v220
      %v276 = vunpack.c.l.b16 %v221
      %v277 = vunpack.c.h.b16 %v221
      %v278 = vunpack.c.l.b16 %v222
      %v279 = vunpack.c.h.b16 %v222
      %v280 = vunpack.c.l.b16 %v223
      %v281 = vunpack.c.h.b16 %v223
      %v282 = vunpack.c.l.b16 %v224
      %v283 = vunpack.c.h.b16 %v224
      %v284 = vunpack.c.l.b16 %v225
      %v285 = vunpack.c.h.b16 %v225
      %v286 = vunpack.c.l.b16 %v226
      %v287 = vunpack.c.h.b16 %v226
      %v288 = vunpack.c.l.b16 %v227
      %v289 = vunpack.c.h.b16 %v227
      %v290 = vunpack.c.l.b16 %v228
      %v291 = vunpack.c.h.b16 %v228
      %v292 = vpack.c.b16 %v258, %v256
      %v293 = vpack.c.b16 %v259, %v257
      %v294 = vpack.c.b16 %v262, %v260
      %v295 = vpack.c.b16 %v263, %v261
      %v296 = vpack.c.b16 %v266, %v264
      %v297 = vpack.c.b16 %v267, %v265
      %v298 = vpack.c.b16 %v270, %v268
      %v299 = vpack.c.b16 %v271, %v269
      %v300 = vpack.c.b16 %v274, %v272
      %v301 = vpack.c.b16 %v275, %v273
      %v302 = vpack.c.b16 %v278, %v276
      %v303 = vpack.c.b16 %v279, %v277
      %v304 = vpack.c.b16 %v282, %v280
      %v305 = vpack.c.b16 %v283, %v281
      %v306 = vpack.c.b16 %v286, %v284
      %v307 = vpack.c.b16 %v287, %v285
      %v308 = vpack.c.b16 %v290, %v288
      %v309 = vpack.c.b16 %v291, %v289
      %vm328 = vcmask 130048
      %v330 = vsel %vm328, %v236, 0
      %332 = vmatprep.subr.bf16.mxu0 %v307
      %333 = vmatpush1.bf16.msra.mxu0 %v306
      %334 = vmatprep.subr.bf16.mxu0 %v305
      %335 = vmatpush1.bf16.msra.mxu0 %v304
      %336 = vmatprep.subr.bf16.mxu0 %v303
      %337 = vmatpush1.bf16.msra.mxu0 %v302
      %338 = vmatprep.subr.bf16.mxu0 %v301
      %339 = vmatpush1.bf16.msra.mxu0 %v300
      %340 = vmatprep.subr.bf16.mxu0 %v299
      %341 = vmatpush1.bf16.msra.mxu0 %v298
      %342 = vmatprep.subr.bf16.mxu0 %v297
      %343 = vmatpush1.bf16.msra.mxu0 %v296
      %344 = vmatprep.subr.bf16.mxu0 %v295
      %345 = vmatpush1.bf16.msra.mxu0 %v294
      %346 = vmatprep.subr.bf16.mxu0 %v293
      %347 = vmatpush1.bf16.msra.mxu0 %v292
      %348 = vmatprep.subr.bf16.mxu0 0
      %349 = vmatpush2.bf16.msra.mxu0 0
      %350 = vmatprep.subr.bf16.mxu0 0
      %351 = vmatpush2.bf16.msra.mxu0 0
      %352 = vmatprep.subr.bf16.mxu0 0
      %353 = vmatpush2.bf16.msra.mxu0 0
      %354 = vmatprep.subr.bf16.mxu0 0
      %355 = vmatpush2.bf16.msra.mxu0 0
      %356 = vmatprep.subr.bf16.mxu0 0
      %357 = vmatpush2.bf16.msra.mxu0 0
      %358 = vmatprep.subr.bf16.mxu0 0
      %359 = vmatpush2.bf16.msra.mxu0 0
      %360 = vmatprep.subr.bf16.mxu0 0
      %361 = vmatpush2.bf16.msra.mxu0 0
      %362 = vmatprep.subr.bf16.mxu0 %v309
      %363 = vmatpush2.bf16.msra.mxu0 %v308
      %364 = vmatprep.mubr.bf16.mxu0 %v330
      %365 = vmatmul.mubr.bf16.gmra.mxu0 %v235
      %v366 = vpop.f32.mrf.mxu0
      %v367 = vadd.f32 0.0, %v366
      %v368 = vpop.f32.mrf.mxu0
      %v369 = vadd.f32 0.0, %v368
      %v370 = vpop.f32.mrf.mxu0
      %v371 = vadd.f32 0.0, %v370
      %v372 = vpop.f32.mrf.mxu0
      %v373 = vadd.f32 0.0, %v372
      %374 = vdwg.mxu0
      %v377 = vunpack.c.l.b16 %v185
      %v378 = vunpack.c.h.b16 %v185
      %v379 = vunpack.c.l.b16 %v186
      %v380 = vunpack.c.h.b16 %v186
      %v381 = vpack.c.b16 %v379, %v377
      %v382 = vpack.c.b16 %v380, %v378
      %v402 = vunpack.c.l.b16 %v193
      %v403 = vunpack.c.h.b16 %v193
      %v404 = vunpack.c.l.b16 %v194
      %v405 = vunpack.c.h.b16 %v194
      %v406 = vunpack.c.l.b16 %v195
      %v407 = vunpack.c.h.b16 %v195
      %v408 = vunpack.c.l.b16 %v196
      %v409 = vunpack.c.h.b16 %v196
      %v410 = vunpack.c.l.b16 %v197
      %v411 = vunpack.c.h.b16 %v197
      %v412 = vunpack.c.l.b16 %v198
      %v413 = vunpack.c.h.b16 %v198
      %v414 = vunpack.c.l.b16 %v199
      %v415 = vunpack.c.h.b16 %v199
      %v416 = vunpack.c.l.b16 %v200
      %v417 = vunpack.c.h.b16 %v200
      %v418 = vunpack.c.l.b16 %v201
      %v419 = vunpack.c.h.b16 %v201
      %v420 = vunpack.c.l.b16 %v202
      %v421 = vunpack.c.h.b16 %v202
      %v422 = vunpack.c.l.b16 %v203
      %v423 = vunpack.c.h.b16 %v203
      %v424 = vunpack.c.l.b16 %v204
      %v425 = vunpack.c.h.b16 %v204
      %v426 = vunpack.c.l.b16 %v205
      %v427 = vunpack.c.h.b16 %v205
      %v428 = vunpack.c.l.b16 %v206
      %v429 = vunpack.c.h.b16 %v206
      %v430 = vunpack.c.l.b16 %v207
      %v431 = vunpack.c.h.b16 %v207
      %v432 = vunpack.c.l.b16 %v208
      %v433 = vunpack.c.h.b16 %v208
      %v434 = vunpack.c.l.b16 %v209
      %v435 = vunpack.c.h.b16 %v209
      %v436 = vunpack.c.l.b16 %v210
      %v437 = vunpack.c.h.b16 %v210
      %v438 = vpack.c.b16 %v404, %v402
      %v439 = vpack.c.b16 %v405, %v403
      %v440 = vpack.c.b16 %v408, %v406
      %v441 = vpack.c.b16 %v409, %v407
      %v442 = vpack.c.b16 %v412, %v410
      %v443 = vpack.c.b16 %v413, %v411
      %v444 = vpack.c.b16 %v416, %v414
      %v445 = vpack.c.b16 %v417, %v415
      %v446 = vpack.c.b16 %v420, %v418
      %v447 = vpack.c.b16 %v421, %v419
      %v448 = vpack.c.b16 %v424, %v422
      %v449 = vpack.c.b16 %v425, %v423
      %v450 = vpack.c.b16 %v428, %v426
      %v451 = vpack.c.b16 %v429, %v427
      %v452 = vpack.c.b16 %v432, %v430
      %v453 = vpack.c.b16 %v433, %v431
      %v454 = vpack.c.b16 %v436, %v434
      %v455 = vpack.c.b16 %v437, %v435
      %v475 = vsel %vm328, %v382, 0
      %477 = vmatprep.subr.bf16.mxu0 %v453
      %478 = vmatpush1.bf16.msra.mxu0 %v452
      %479 = vmatprep.subr.bf16.mxu0 %v451
      %480 = vmatpush1.bf16.msra.mxu0 %v450
      %481 = vmatprep.subr.bf16.mxu0 %v449
      %482 = vmatpush1.bf16.msra.mxu0 %v448
      %483 = vmatprep.subr.bf16.mxu0 %v447
      %484 = vmatpush1.bf16.msra.mxu0 %v446
      %485 = vmatprep.subr.bf16.mxu0 %v445
      %486 = vmatpush1.bf16.msra.mxu0 %v444
      %487 = vmatprep.subr.bf16.mxu0 %v443
      %488 = vmatpush1.bf16.msra.mxu0 %v442
      %489 = vmatprep.subr.bf16.mxu0 %v441
      %490 = vmatpush1.bf16.msra.mxu0 %v440
      %491 = vmatprep.subr.bf16.mxu0 %v439
      %492 = vmatpush1.bf16.msra.mxu0 %v438
      %493 = vmatprep.subr.bf16.mxu0 0
      %494 = vmatpush2.bf16.msra.mxu0 0
      %495 = vmatprep.subr.bf16.mxu0 0
      %496 = vmatpush2.bf16.msra.mxu0 0
      %497 = vmatprep.subr.bf16.mxu0 0
      %498 = vmatpush2.bf16.msra.mxu0 0
      %499 = vmatprep.subr.bf16.mxu0 0
      %500 = vmatpush2.bf16.msra.mxu0 0
      %501 = vmatprep.subr.bf16.mxu0 0
      %502 = vmatpush2.bf16.msra.mxu0 0
      %503 = vmatprep.subr.bf16.mxu0 0
      %504 = vmatpush2.bf16.msra.mxu0 0
      %505 = vmatprep.subr.bf16.mxu0 0
      %506 = vmatpush2.bf16.msra.mxu0 0
      %507 = vmatprep.subr.bf16.mxu0 %v455
      %508 = vmatpush2.bf16.msra.mxu0 %v454
      %509 = vmatprep.mubr.bf16.mxu0 %v475
      %510 = vmatmul.mubr.bf16.gmra.mxu0 %v381
      %v511 = vpop.f32.mrf.mxu0
      %v512 = vadd.f32 %v367, %v511
      %v513 = vpop.f32.mrf.mxu0
      %v514 = vadd.f32 %v369, %v513
      %v515 = vpop.f32.mrf.mxu0
      %v516 = vadd.f32 %v371, %v515
      %v517 = vpop.f32.mrf.mxu0
      %v518 = vadd.f32 %v373, %v517
      %519 = vdwg.mxu0
      %v520 = vld [vmem:[%s173 + $0x10] sm:$0xff]
      %v521 = vld [vmem:[%s173 + $0x60] sm:$0xff]
      %v522 = vld [vmem:[%s173 + $0xb0] sm:$0xff]
      %v523 = vld [vmem:[%s173 + $0x100] sm:$0xff]
      %v524 = vld [vmem:[%s173 + $0x150] sm:$0xff]
      %v525 = vld [vmem:[%s173 + $0x1a0] sm:$0xff]
      %v526 = vld [vmem:[%s173 + $0x1f0] sm:$0xff]
      %v527 = vld [vmem:[%s173 + $0x240] sm:$0xff]
      %v528 = vld [vmem:[%s173 + $0x290] sm:$0xff]
      %v529 = vld [vmem:[%s173 + $0x2e0] sm:$0xff]
      %v530 = vld [vmem:[%s173 + $0x330] sm:$0xff]
      %v531 = vld [vmem:[%s173 + $0x380] sm:$0xff]
      %v532 = vld [vmem:[%s173 + $0x3d0] sm:$0xff]
      %v533 = vld [vmem:[%s173 + $0x420] sm:$0xff]
      %v534 = vld [vmem:[%s173 + $0x470] sm:$0xff]
      %v535 = vld [vmem:[%s173 + $0x4c0] sm:$0xff]
      %v536 = vld [vmem:[%s173 + $0x510] sm:$0xff]
      %v537 = vld [vmem:[%s173 + $0x560] sm:$0xff]
      %v540 = vunpack.c.l.b16 %v191
      %v541 = vunpack.c.h.b16 %v191
      %v542 = vunpack.c.l.b16 %v192
      %v543 = vunpack.c.h.b16 %v192
      %v544 = vpack.c.b16 %v542, %v540
      %v545 = vpack.c.b16 %v543, %v541
      %v565 = vunpack.c.l.b16 %v520
      %v566 = vunpack.c.h.b16 %v520
      %v567 = vunpack.c.l.b16 %v521
      %v568 = vunpack.c.h.b16 %v521
      %v569 = vunpack.c.l.b16 %v522
      %v570 = vunpack.c.h.b16 %v522
      %v571 = vunpack.c.l.b16 %v523
      %v572 = vunpack.c.h.b16 %v523
      %v573 = vunpack.c.l.b16 %v524
      %v574 = vunpack.c.h.b16 %v524
      %v575 = vunpack.c.l.b16 %v525
      %v576 = vunpack.c.h.b16 %v525
      %v577 = vunpack.c.l.b16 %v526
      %v578 = vunpack.c.h.b16 %v526
      %v579 = vunpack.c.l.b16 %v527
      %v580 = vunpack.c.h.b16 %v527
      %v581 = vunpack.c.l.b16 %v528
      %v582 = vunpack.c.h.b16 %v528
      %v583 = vunpack.c.l.b16 %v529
      %v584 = vunpack.c.h.b16 %v529
      %v585 = vunpack.c.l.b16 %v530
      %v586 = vunpack.c.h.b16 %v530
      %v587 = vunpack.c.l.b16 %v531
      %v588 = vunpack.c.h.b16 %v531
      %v589 = vunpack.c.l.b16 %v532
      %v590 = vunpack.c.h.b16 %v532
      %v591 = vunpack.c.l.b16 %v533
      %v592 = vunpack.c.h.b16 %v533
      %v593 = vunpack.c.l.b16 %v534
      %v594 = vunpack.c.h.b16 %v534
      %v595 = vunpack.c.l.b16 %v535
      %v596 = vunpack.c.h.b16 %v535
      %v597 = vunpack.c.l.b16 %v536
      %v598 = vunpack.c.h.b16 %v536
      %v599 = vunpack.c.l.b16 %v537
      %v600 = vunpack.c.h.b16 %v537
      %v601 = vpack.c.b16 %v567, %v565
      %v602 = vpack.c.b16 %v568, %v566
      %v603 = vpack.c.b16 %v571, %v569
      %v604 = vpack.c.b16 %v572, %v570
      %v605 = vpack.c.b16 %v575, %v573
      %v606 = vpack.c.b16 %v576, %v574
      %v607 = vpack.c.b16 %v579, %v577
      %v608 = vpack.c.b16 %v580, %v578
      %v609 = vpack.c.b16 %v583, %v581
      %v610 = vpack.c.b16 %v584, %v582
      %v611 = vpack.c.b16 %v587, %v585
      %v612 = vpack.c.b16 %v588, %v586
      %v613 = vpack.c.b16 %v591, %v589
      %v614 = vpack.c.b16 %v592, %v590
      %v615 = vpack.c.b16 %v595, %v593
      %v616 = vpack.c.b16 %v596, %v594
      %v617 = vpack.c.b16 %v599, %v597
      %v618 = vpack.c.b16 %v600, %v598
      %v638 = vsel %vm328, %v545, 0
      %640 = vmatprep.subr.bf16.mxu0 %v616
      %641 = vmatpush1.bf16.msra.mxu0 %v615
      %642 = vmatprep.subr.bf16.mxu0 %v614
      %643 = vmatpush1.bf16.msra.mxu0 %v613
      %644 = vmatprep.subr.bf16.mxu0 %v612
      %645 = vmatpush1.bf16.msra.mxu0 %v611
      %646 = vmatprep.subr.bf16.mxu0 %v610
      %647 = vmatpush1.bf16.msra.mxu0 %v609
      %648 = vmatprep.subr.bf16.mxu0 %v608
      %649 = vmatpush1.bf16.msra.mxu0 %v607
      %650 = vmatprep.subr.bf16.mxu0 %v606
      %651 = vmatpush1.bf16.msra.mxu0 %v605
      %652 = vmatprep.subr.bf16.mxu0 %v604
      %653 = vmatpush1.bf16.msra.mxu0 %v603
      %654 = vmatprep.subr.bf16.mxu0 %v602
      %655 = vmatpush1.bf16.msra.mxu0 %v601
      %656 = vmatprep.subr.bf16.mxu0 0
      %657 = vmatpush2.bf16.msra.mxu0 0
      %658 = vmatprep.subr.bf16.mxu0 0
      %659 = vmatpush2.bf16.msra.mxu0 0
      %660 = vmatprep.subr.bf16.mxu0 0
      %661 = vmatpush2.bf16.msra.mxu0 0
      %662 = vmatprep.subr.bf16.mxu0 0
      %663 = vmatpush2.bf16.msra.mxu0 0
      %664 = vmatprep.subr.bf16.mxu0 0
      %665 = vmatpush2.bf16.msra.mxu0 0
      %666 = vmatprep.subr.bf16.mxu0 0
      %667 = vmatpush2.bf16.msra.mxu0 0
      %668 = vmatprep.subr.bf16.mxu0 0
      %669 = vmatpush2.bf16.msra.mxu0 0
      %670 = vmatprep.subr.bf16.mxu0 %v618
      %671 = vmatpush2.bf16.msra.mxu0 %v617
      %672 = vmatprep.mubr.bf16.mxu0 %v638
      %673 = vmatmul.mubr.bf16.gmra.mxu0 %v544
      %v674 = vpop.f32.mrf.mxu0
      %v675 = vadd.f32 0.0, %v674
      %v676 = vpop.f32.mrf.mxu0
      %v677 = vadd.f32 0.0, %v676
      %v678 = vpop.f32.mrf.mxu0
      %v679 = vadd.f32 0.0, %v678
      %v680 = vpop.f32.mrf.mxu0
      %v681 = vadd.f32 0.0, %v680
      %682 = vdwg.mxu0
      %v683 = vadd.f32 %v512, %v675
      %v684 = vadd.f32 %v514, %v677
      %v685 = vadd.f32 %v516, %v679
      %v686 = vadd.f32 %v518, %v681
      %v687 = vpack.c.bf16 %v685, %v683
      %v688 = vpack.c.bf16 %v686, %v684
      %v691 = vunpack.c.l.b16 %v687
      %v692 = vunpack.c.l.b16 %v688
      %v693 = vunpack.c.h.b16 %v687
      %v694 = vunpack.c.h.b16 %v688
      %v695 = vpack.c.b16 %v692, %v691
      %v696 = vpack.c.b16 %v694, %v693
      %699 = vst [vmem:[%s178] sm:$0xff] %v695
      %700 = vst [vmem:[%s178 + $0x40] sm:$0xff] %v696
      %v701 = vadd.f32 %v683, %v684
      %702 = vadd.xlane.f32.xlu0 %v701
      %v703 = vpop.xlane.xlu0 %702
      %v704 = vadd.f32 %v685, %v686
      %705 = vadd.xlane.f32.xlu0 %v704
      %v706 = vpop.xlane.xlu0 %705
      %v707 = vadd.f32 %v703, 0.0
      %v708 = vadd.f32 %v706, 0.0
      %v709 = vmul.f32 %v683, %v683
      %v710 = vmul.f32 %v684, %v684
      %v711 = vmul.f32 %v685, %v685
      %v712 = vmul.f32 %v686, %v686
      %v713 = vadd.f32 %v709, %v710
      %714 = vadd.xlane.f32.xlu0 %v713
      %v715 = vpop.xlane.xlu0 %714
      %v716 = vadd.f32 %v711, %v712
      %717 = vadd.xlane.f32.xlu0 %v716
      %v718 = vpop.xlane.xlu0 %717
      %v719 = vadd.f32 %v715, 0.0
      %v720 = vadd.f32 %v718, 0.0
      %v721 = vld [vmem:[%s173 + $0x8] sm:$0xff]
      %v722 = vld [vmem:[%s173 + $0x58] sm:$0xff]
      %v723 = vld [vmem:[%s173 + $0xa8] sm:$0xff]
      %v724 = vld [vmem:[%s173 + $0xf8] sm:$0xff]
      %v725 = vld [vmem:[%s173 + $0x148] sm:$0xff]
      %v726 = vld [vmem:[%s173 + $0x198] sm:$0xff]
      %v727 = vld [vmem:[%s173 + $0x1e8] sm:$0xff]
      %v728 = vld [vmem:[%s173 + $0x238] sm:$0xff]
      %v729 = vld [vmem:[%s173 + $0x288] sm:$0xff]
      %v730 = vld [vmem:[%s173 + $0x2d8] sm:$0xff]
      %v731 = vld [vmem:[%s173 + $0x328] sm:$0xff]
      %v732 = vld [vmem:[%s173 + $0x378] sm:$0xff]
      %v733 = vld [vmem:[%s173 + $0x3c8] sm:$0xff]
      %v734 = vld [vmem:[%s173 + $0x418] sm:$0xff]
      %v735 = vld [vmem:[%s173 + $0x468] sm:$0xff]
      %v736 = vld [vmem:[%s173 + $0x4b8] sm:$0xff]
      %v737 = vld [vmem:[%s173 + $0x508] sm:$0xff]
      %v738 = vld [vmem:[%s173 + $0x558] sm:$0xff]
      %v739 = vld [vmem:[%s173 + $0x10] sm:$0xff]
      %v740 = vld [vmem:[%s173 + $0x60] sm:$0xff]
      %v741 = vld [vmem:[%s173 + $0xb0] sm:$0xff]
      %v742 = vld [vmem:[%s173 + $0x100] sm:$0xff]
      %v743 = vld [vmem:[%s173 + $0x150] sm:$0xff]
      %v744 = vld [vmem:[%s173 + $0x1a0] sm:$0xff]
      %v745 = vld [vmem:[%s173 + $0x1f0] sm:$0xff]
      %v746 = vld [vmem:[%s173 + $0x240] sm:$0xff]
      %v747 = vld [vmem:[%s173 + $0x290] sm:$0xff]
      %v748 = vld [vmem:[%s173 + $0x2e0] sm:$0xff]
      %v749 = vld [vmem:[%s173 + $0x330] sm:$0xff]
      %v750 = vld [vmem:[%s173 + $0x380] sm:$0xff]
      %v751 = vld [vmem:[%s173 + $0x3d0] sm:$0xff]
      %v752 = vld [vmem:[%s173 + $0x420] sm:$0xff]
      %v753 = vld [vmem:[%s173 + $0x470] sm:$0xff]
      %v754 = vld [vmem:[%s173 + $0x4c0] sm:$0xff]
      %v755 = vld [vmem:[%s173 + $0x510] sm:$0xff]
      %v756 = vld [vmem:[%s173 + $0x560] sm:$0xff]
      %v775 = vunpack.c.l.b16 %v739
      %v776 = vunpack.c.h.b16 %v739
      %v777 = vunpack.c.l.b16 %v740
      %v778 = vunpack.c.h.b16 %v740
      %v779 = vunpack.c.l.b16 %v741
      %v780 = vunpack.c.h.b16 %v741
      %v781 = vunpack.c.l.b16 %v742
      %v782 = vunpack.c.h.b16 %v742
      %v783 = vunpack.c.l.b16 %v743
      %v784 = vunpack.c.h.b16 %v743
      %v785 = vunpack.c.l.b16 %v744
      %v786 = vunpack.c.h.b16 %v744
      %v787 = vunpack.c.l.b16 %v745
      %v788 = vunpack.c.h.b16 %v745
      %v789 = vunpack.c.l.b16 %v746
      %v790 = vunpack.c.h.b16 %v746
      %v791 = vunpack.c.l.b16 %v747
      %v792 = vunpack.c.h.b16 %v747
      %v793 = vunpack.c.l.b16 %v748
      %v794 = vunpack.c.h.b16 %v748
      %v795 = vunpack.c.l.b16 %v749
      %v796 = vunpack.c.h.b16 %v749
      %v797 = vunpack.c.l.b16 %v750
      %v798 = vunpack.c.h.b16 %v750
      %v799 = vunpack.c.l.b16 %v751
      %v800 = vunpack.c.h.b16 %v751
      %v801 = vunpack.c.l.b16 %v752
      %v802 = vunpack.c.h.b16 %v752
      %v803 = vunpack.c.l.b16 %v753
      %v804 = vunpack.c.h.b16 %v753
      %v805 = vunpack.c.l.b16 %v754
      %v806 = vunpack.c.h.b16 %v754
      %v807 = vunpack.c.l.b16 %v755
      %v808 = vunpack.c.h.b16 %v755
      %v809 = vunpack.c.l.b16 %v756
      %v810 = vunpack.c.h.b16 %v756
      %v811 = vpack.c.b16 %v777, %v775
      %v812 = vpack.c.b16 %v778, %v776
      %v813 = vpack.c.b16 %v781, %v779
      %v814 = vpack.c.b16 %v782, %v780
      %v815 = vpack.c.b16 %v785, %v783
      %v816 = vpack.c.b16 %v786, %v784
      %v817 = vpack.c.b16 %v789, %v787
      %v818 = vpack.c.b16 %v790, %v788
      %v819 = vpack.c.b16 %v793, %v791
      %v820 = vpack.c.b16 %v794, %v792
      %v821 = vpack.c.b16 %v797, %v795
      %v822 = vpack.c.b16 %v798, %v796
      %v823 = vpack.c.b16 %v801, %v799
      %v824 = vpack.c.b16 %v802, %v800
      %v825 = vpack.c.b16 %v805, %v803
      %v826 = vpack.c.b16 %v806, %v804
      %v827 = vpack.c.b16 %v809, %v807
      %v828 = vpack.c.b16 %v810, %v808
      %847 = vmatprep.subr.bf16.mxu0 %v826
      %848 = vmatpush1.bf16.msra.mxu0 %v825
      %849 = vmatprep.subr.bf16.mxu0 %v824
      %850 = vmatpush1.bf16.msra.mxu0 %v823
      %851 = vmatprep.subr.bf16.mxu0 %v822
      %852 = vmatpush1.bf16.msra.mxu0 %v821
      %853 = vmatprep.subr.bf16.mxu0 %v820
      %854 = vmatpush1.bf16.msra.mxu0 %v819
      %855 = vmatprep.subr.bf16.mxu0 %v818
      %856 = vmatpush1.bf16.msra.mxu0 %v817
      %857 = vmatprep.subr.bf16.mxu0 %v816
      %858 = vmatpush1.bf16.msra.mxu0 %v815
      %859 = vmatprep.subr.bf16.mxu0 %v814
      %860 = vmatpush1.bf16.msra.mxu0 %v813
      %861 = vmatprep.subr.bf16.mxu0 %v812
      %862 = vmatpush1.bf16.msra.mxu0 %v811
      %863 = vmatprep.subr.bf16.mxu0 0
      %864 = vmatpush2.bf16.msra.mxu0 0
      %865 = vmatprep.subr.bf16.mxu0 0
      %866 = vmatpush2.bf16.msra.mxu0 0
      %867 = vmatprep.subr.bf16.mxu0 0
      %868 = vmatpush2.bf16.msra.mxu0 0
      %869 = vmatprep.subr.bf16.mxu0 0
      %870 = vmatpush2.bf16.msra.mxu0 0
      %871 = vmatprep.subr.bf16.mxu0 0
      %872 = vmatpush2.bf16.msra.mxu0 0
      %873 = vmatprep.subr.bf16.mxu0 0
      %874 = vmatpush2.bf16.msra.mxu0 0
      %875 = vmatprep.subr.bf16.mxu0 0
      %876 = vmatpush2.bf16.msra.mxu0 0
      %877 = vmatprep.subr.bf16.mxu0 %v828
      %878 = vmatpush2.bf16.msra.mxu0 %v827
      %879 = vmatprep.mubr.bf16.mxu0 %v330
      %880 = vmatmul.mubr.bf16.gmra.mxu0 %v235
      %v881 = vpop.f32.mrf.mxu0
      %v882 = vadd.f32 0.0, %v881
      %v883 = vpop.f32.mrf.mxu0
      %v884 = vadd.f32 0.0, %v883
      %v885 = vpop.f32.mrf.mxu0
      %v886 = vadd.f32 0.0, %v885
      %v887 = vpop.f32.mrf.mxu0
      %v888 = vadd.f32 0.0, %v887
      %889 = vdwg.mxu0
      %v908 = vunpack.c.l.b16 %v721
      %v909 = vunpack.c.h.b16 %v721
      %v910 = vunpack.c.l.b16 %v722
      %v911 = vunpack.c.h.b16 %v722
      %v912 = vunpack.c.l.b16 %v723
      %v913 = vunpack.c.h.b16 %v723
      %v914 = vunpack.c.l.b16 %v724
      %v915 = vunpack.c.h.b16 %v724
      %v916 = vunpack.c.l.b16 %v725
      %v917 = vunpack.c.h.b16 %v725
      %v918 = vunpack.c.l.b16 %v726
      %v919 = vunpack.c.h.b16 %v726
      %v920 = vunpack.c.l.b16 %v727
      %v921 = vunpack.c.h.b16 %v727
      %v922 = vunpack.c.l.b16 %v728
      %v923 = vunpack.c.h.b16 %v728
      %v924 = vunpack.c.l.b16 %v729
      %v925 = vunpack.c.h.b16 %v729
      %v926 = vunpack.c.l.b16 %v730
      %v927 = vunpack.c.h.b16 %v730
      %v928 = vunpack.c.l.b16 %v731
      %v929 = vunpack.c.h.b16 %v731
      %v930 = vunpack.c.l.b16 %v732
      %v931 = vunpack.c.h.b16 %v732
      %v932 = vunpack.c.l.b16 %v733
      %v933 = vunpack.c.h.b16 %v733
      %v934 = vunpack.c.l.b16 %v734
      %v935 = vunpack.c.h.b16 %v734
      %v936 = vunpack.c.l.b16 %v735
      %v937 = vunpack.c.h.b16 %v735
      %v938 = vunpack.c.l.b16 %v736
      %v939 = vunpack.c.h.b16 %v736
      %v940 = vunpack.c.l.b16 %v737
      %v941 = vunpack.c.h.b16 %v737
      %v942 = vunpack.c.l.b16 %v738
      %v943 = vunpack.c.h.b16 %v738
      %v944 = vpack.c.b16 %v910, %v908
      %v945 = vpack.c.b16 %v911, %v909
      %v946 = vpack.c.b16 %v914, %v912
      %v947 = vpack.c.b16 %v915, %v913
      %v948 = vpack.c.b16 %v918, %v916
      %v949 = vpack.c.b16 %v919, %v917
      %v950 = vpack.c.b16 %v922, %v920
      %v951 = vpack.c.b16 %v923, %v921
      %v952 = vpack.c.b16 %v926, %v924
      %v953 = vpack.c.b16 %v927, %v925
      %v954 = vpack.c.b16 %v930, %v928
      %v955 = vpack.c.b16 %v931, %v929
      %v956 = vpack.c.b16 %v934, %v932
      %v957 = vpack.c.b16 %v935, %v933
      %v958 = vpack.c.b16 %v938, %v936
      %v959 = vpack.c.b16 %v939, %v937
      %v960 = vpack.c.b16 %v942, %v940
      %v961 = vpack.c.b16 %v943, %v941
      %980 = vmatprep.subr.bf16.mxu0 %v959
      %981 = vmatpush1.bf16.msra.mxu0 %v958
      %982 = vmatprep.subr.bf16.mxu0 %v957
      %983 = vmatpush1.bf16.msra.mxu0 %v956
      %984 = vmatprep.subr.bf16.mxu0 %v955
      %985 = vmatpush1.bf16.msra.mxu0 %v954
      %986 = vmatprep.subr.bf16.mxu0 %v953
      %987 = vmatpush1.bf16.msra.mxu0 %v952
      %988 = vmatprep.subr.bf16.mxu0 %v951
      %989 = vmatpush1.bf16.msra.mxu0 %v950
      %990 = vmatprep.subr.bf16.mxu0 %v949
      %991 = vmatpush1.bf16.msra.mxu0 %v948
      %992 = vmatprep.subr.bf16.mxu0 %v947
      %993 = vmatpush1.bf16.msra.mxu0 %v946
      %994 = vmatprep.subr.bf16.mxu0 %v945
      %995 = vmatpush1.bf16.msra.mxu0 %v944
      %996 = vmatprep.subr.bf16.mxu0 0
      %997 = vmatpush2.bf16.msra.mxu0 0
      %998 = vmatprep.subr.bf16.mxu0 0
      %999 = vmatpush2.bf16.msra.mxu0 0
      %1000 = vmatprep.subr.bf16.mxu0 0
      %1001 = vmatpush2.bf16.msra.mxu0 0
      %1002 = vmatprep.subr.bf16.mxu0 0
      %1003 = vmatpush2.bf16.msra.mxu0 0
      %1004 = vmatprep.subr.bf16.mxu0 0
      %1005 = vmatpush2.bf16.msra.mxu0 0
      %1006 = vmatprep.subr.bf16.mxu0 0
      %1007 = vmatpush2.bf16.msra.mxu0 0
      %1008 = vmatprep.subr.bf16.mxu0 0
      %1009 = vmatpush2.bf16.msra.mxu0 0
      %1010 = vmatprep.subr.bf16.mxu0 %v961
      %1011 = vmatpush2.bf16.msra.mxu0 %v960
      %1012 = vmatprep.mubr.bf16.mxu0 %v475
      %1013 = vmatmul.mubr.bf16.gmra.mxu0 %v381
      %v1014 = vpop.f32.mrf.mxu0
      %v1015 = vadd.f32 %v882, %v1014
      %v1016 = vpop.f32.mrf.mxu0
      %v1017 = vadd.f32 %v884, %v1016
      %v1018 = vpop.f32.mrf.mxu0
      %v1019 = vadd.f32 %v886, %v1018
      %v1020 = vpop.f32.mrf.mxu0
      %v1021 = vadd.f32 %v888, %v1020
      %1022 = vdwg.mxu0
      %v1023 = vld [vmem:[%s173 + $0x18] sm:$0xff]
      %v1024 = vld [vmem:[%s173 + $0x68] sm:$0xff]
      %v1025 = vld [vmem:[%s173 + $0xb8] sm:$0xff]
      %v1026 = vld [vmem:[%s173 + $0x108] sm:$0xff]
      %v1027 = vld [vmem:[%s173 + $0x158] sm:$0xff]
      %v1028 = vld [vmem:[%s173 + $0x1a8] sm:$0xff]
      %v1029 = vld [vmem:[%s173 + $0x1f8] sm:$0xff]
      %v1030 = vld [vmem:[%s173 + $0x248] sm:$0xff]
      %v1031 = vld [vmem:[%s173 + $0x298] sm:$0xff]
      %v1032 = vld [vmem:[%s173 + $0x2e8] sm:$0xff]
      %v1033 = vld [vmem:[%s173 + $0x338] sm:$0xff]
      %v1034 = vld [vmem:[%s173 + $0x388] sm:$0xff]
      %v1035 = vld [vmem:[%s173 + $0x3d8] sm:$0xff]
      %v1036 = vld [vmem:[%s173 + $0x428] sm:$0xff]
      %v1037 = vld [vmem:[%s173 + $0x478] sm:$0xff]
      %v1038 = vld [vmem:[%s173 + $0x4c8] sm:$0xff]
      %v1039 = vld [vmem:[%s173 + $0x518] sm:$0xff]
      %v1040 = vld [vmem:[%s173 + $0x568] sm:$0xff]
      %v1059 = vunpack.c.l.b16 %v1023
      %v1060 = vunpack.c.h.b16 %v1023
      %v1061 = vunpack.c.l.b16 %v1024
      %v1062 = vunpack.c.h.b16 %v1024
      %v1063 = vunpack.c.l.b16 %v1025
      %v1064 = vunpack.c.h.b16 %v1025
      %v1065 = vunpack.c.l.b16 %v1026
      %v1066 = vunpack.c.h.b16 %v1026
      %v1067 = vunpack.c.l.b16 %v1027
      %v1068 = vunpack.c.h.b16 %v1027
      %v1069 = vunpack.c.l.b16 %v1028
      %v1070 = vunpack.c.h.b16 %v1028
      %v1071 = vunpack.c.l.b16 %v1029
      %v1072 = vunpack.c.h.b16 %v1029
      %v1073 = vunpack.c.l.b16 %v1030
      %v1074 = vunpack.c.h.b16 %v1030
      %v1075 = vunpack.c.l.b16 %v1031
      %v1076 = vunpack.c.h.b16 %v1031
      %v1077 = vunpack.c.l.b16 %v1032
      %v1078 = vunpack.c.h.b16 %v1032
      %v1079 = vunpack.c.l.b16 %v1033
      %v1080 = vunpack.c.h.b16 %v1033
      %v1081 = vunpack.c.l.b16 %v1034
      %v1082 = vunpack.c.h.b16 %v1034
      %v1083 = vunpack.c.l.b16 %v1035
      %v1084 = vunpack.c.h.b16 %v1035
      %v1085 = vunpack.c.l.b16 %v1036
      %v1086 = vunpack.c.h.b16 %v1036
      %v1087 = vunpack.c.l.b16 %v1037
      %v1088 = vunpack.c.h.b16 %v1037
      %v1089 = vunpack.c.l.b16 %v1038
      %v1090 = vunpack.c.h.b16 %v1038
      %v1091 = vunpack.c.l.b16 %v1039
      %v1092 = vunpack.c.h.b16 %v1039
      %v1093 = vunpack.c.l.b16 %v1040
      %v1094 = vunpack.c.h.b16 %v1040
      %v1095 = vpack.c.b16 %v1061, %v1059
      %v1096 = vpack.c.b16 %v1062, %v1060
      %v1097 = vpack.c.b16 %v1065, %v1063
      %v1098 = vpack.c.b16 %v1066, %v1064
      %v1099 = vpack.c.b16 %v1069, %v1067
      %v1100 = vpack.c.b16 %v1070, %v1068
      %v1101 = vpack.c.b16 %v1073, %v1071
      %v1102 = vpack.c.b16 %v1074, %v1072
      %v1103 = vpack.c.b16 %v1077, %v1075
      %v1104 = vpack.c.b16 %v1078, %v1076
      %v1105 = vpack.c.b16 %v1081, %v1079
      %v1106 = vpack.c.b16 %v1082, %v1080
      %v1107 = vpack.c.b16 %v1085, %v1083
      %v1108 = vpack.c.b16 %v1086, %v1084
      %v1109 = vpack.c.b16 %v1089, %v1087
      %v1110 = vpack.c.b16 %v1090, %v1088
      %v1111 = vpack.c.b16 %v1093, %v1091
      %v1112 = vpack.c.b16 %v1094, %v1092
      %1131 = vmatprep.subr.bf16.mxu0 %v1110
      %1132 = vmatpush1.bf16.msra.mxu0 %v1109
      %1133 = vmatprep.subr.bf16.mxu0 %v1108
      %1134 = vmatpush1.bf16.msra.mxu0 %v1107
      %1135 = vmatprep.subr.bf16.mxu0 %v1106
      %1136 = vmatpush1.bf16.msra.mxu0 %v1105
      %1137 = vmatprep.subr.bf16.mxu0 %v1104
      %1138 = vmatpush1.bf16.msra.mxu0 %v1103
      %1139 = vmatprep.subr.bf16.mxu0 %v1102
      %1140 = vmatpush1.bf16.msra.mxu0 %v1101
      %1141 = vmatprep.subr.bf16.mxu0 %v1100
      %1142 = vmatpush1.bf16.msra.mxu0 %v1099
      %1143 = vmatprep.subr.bf16.mxu0 %v1098
      %1144 = vmatpush1.bf16.msra.mxu0 %v1097
      %1145 = vmatprep.subr.bf16.mxu0 %v1096
      %1146 = vmatpush1.bf16.msra.mxu0 %v1095
      %1147 = vmatprep.subr.bf16.mxu0 0
      %1148 = vmatpush2.bf16.msra.mxu0 0
      %1149 = vmatprep.subr.bf16.mxu0 0
      %1150 = vmatpush2.bf16.msra.mxu0 0
      %1151 = vmatprep.subr.bf16.mxu0 0
      %1152 = vmatpush2.bf16.msra.mxu0 0
      %1153 = vmatprep.subr.bf16.mxu0 0
      %1154 = vmatpush2.bf16.msra.mxu0 0
      %1155 = vmatprep.subr.bf16.mxu0 0
      %1156 = vmatpush2.bf16.msra.mxu0 0
      %1157 = vmatprep.subr.bf16.mxu0 0
      %1158 = vmatpush2.bf16.msra.mxu0 0
      %1159 = vmatprep.subr.bf16.mxu0 0
      %1160 = vmatpush2.bf16.msra.mxu0 0
      %1161 = vmatprep.subr.bf16.mxu0 %v1112
      %1162 = vmatpush2.bf16.msra.mxu0 %v1111
      %1163 = vmatprep.mubr.bf16.mxu0 %v638
      %1164 = vmatmul.mubr.bf16.gmra.mxu0 %v544
      %v1165 = vpop.f32.mrf.mxu0
      %v1166 = vadd.f32 0.0, %v1165
      %v1167 = vpop.f32.mrf.mxu0
      %v1168 = vadd.f32 0.0, %v1167
      %v1169 = vpop.f32.mrf.mxu0
      %v1170 = vadd.f32 0.0, %v1169
      %v1171 = vpop.f32.mrf.mxu0
      %v1172 = vadd.f32 0.0, %v1171
      %1173 = vdwg.mxu0
      %v1174 = vadd.f32 %v1015, %v1166
      %v1175 = vadd.f32 %v1017, %v1168
      %v1176 = vadd.f32 %v1019, %v1170
      %v1177 = vadd.f32 %v1021, %v1172
      %v1178 = vpack.c.bf16 %v1176, %v1174
      %v1179 = vpack.c.bf16 %v1177, %v1175
      %v1182 = vunpack.c.l.b16 %v1178
      %v1183 = vunpack.c.l.b16 %v1179
      %v1184 = vunpack.c.h.b16 %v1178
      %v1185 = vunpack.c.h.b16 %v1179
      %v1186 = vpack.c.b16 %v1183, %v1182
      %v1187 = vpack.c.b16 %v1185, %v1184
      %1190 = vst [vmem:[%s178 + $0x8] sm:$0xff] %v1186
      %1191 = vst [vmem:[%s178 + $0x48] sm:$0xff] %v1187
      %v1192 = vadd.f32 %v1174, %v1175
      %1193 = vadd.xlane.f32.xlu0 %v1192
      %v1194 = vpop.xlane.xlu0 %1193
      %v1195 = vadd.f32 %v1176, %v1177
      %1196 = vadd.xlane.f32.xlu0 %v1195
      %v1197 = vpop.xlane.xlu0 %1196
      %v1198 = vadd.f32 %v707, %v1194
      %v1199 = vadd.f32 %v708, %v1197
      %v1200 = vmul.f32 %v1174, %v1174
      %v1201 = vmul.f32 %v1175, %v1175
      %v1202 = vmul.f32 %v1176, %v1176
      %v1203 = vmul.f32 %v1177, %v1177
      %v1204 = vadd.f32 %v1200, %v1201
      %1205 = vadd.xlane.f32.xlu0 %v1204
      %v1206 = vpop.xlane.xlu0 %1205
      %v1207 = vadd.f32 %v1202, %v1203
      %1208 = vadd.xlane.f32.xlu0 %v1207
      %v1209 = vpop.xlane.xlu0 %1208
      %v1210 = vadd.f32 %v719, %v1206
      %v1211 = vadd.f32 %v720, %v1209
      %v1212 = vld [vmem:[%s173 + $0x10] sm:$0xff]
      %v1213 = vld [vmem:[%s173 + $0x60] sm:$0xff]
      %v1214 = vld [vmem:[%s173 + $0xb0] sm:$0xff]
      %v1215 = vld [vmem:[%s173 + $0x100] sm:$0xff]
      %v1216 = vld [vmem:[%s173 + $0x150] sm:$0xff]
      %v1217 = vld [vmem:[%s173 + $0x1a0] sm:$0xff]
      %v1218 = vld [vmem:[%s173 + $0x1f0] sm:$0xff]
      %v1219 = vld [vmem:[%s173 + $0x240] sm:$0xff]
      %v1220 = vld [vmem:[%s173 + $0x290] sm:$0xff]
      %v1221 = vld [vmem:[%s173 + $0x2e0] sm:$0xff]
      %v1222 = vld [vmem:[%s173 + $0x330] sm:$0xff]
      %v1223 = vld [vmem:[%s173 + $0x380] sm:$0xff]
      %v1224 = vld [vmem:[%s173 + $0x3d0] sm:$0xff]
      %v1225 = vld [vmem:[%s173 + $0x420] sm:$0xff]
      %v1226 = vld [vmem:[%s173 + $0x470] sm:$0xff]
      %v1227 = vld [vmem:[%s173 + $0x4c0] sm:$0xff]
      %v1228 = vld [vmem:[%s173 + $0x510] sm:$0xff]
      %v1229 = vld [vmem:[%s173 + $0x560] sm:$0xff]
      %v1230 = vld [vmem:[%s173 + $0x18] sm:$0xff]
      %v1231 = vld [vmem:[%s173 + $0x68] sm:$0xff]
      %v1232 = vld [vmem:[%s173 + $0xb8] sm:$0xff]
      %v1233 = vld [vmem:[%s173 + $0x108] sm:$0xff]
      %v1234 = vld [vmem:[%s173 + $0x158] sm:$0xff]
      %v1235 = vld [vmem:[%s173 + $0x1a8] sm:$0xff]
      %v1236 = vld [vmem:[%s173 + $0x1f8] sm:$0xff]
      %v1237 = vld [vmem:[%s173 + $0x248] sm:$0xff]
      %v1238 = vld [vmem:[%s173 + $0x298] sm:$0xff]
      %v1239 = vld [vmem:[%s173 + $0x2e8] sm:$0xff]
      %v1240 = vld [vmem:[%s173 + $0x338] sm:$0xff]
      %v1241 = vld [vmem:[%s173 + $0x388] sm:$0xff]
      %v1242 = vld [vmem:[%s173 + $0x3d8] sm:$0xff]
      %v1243 = vld [vmem:[%s173 + $0x428] sm:$0xff]
      %v1244 = vld [vmem:[%s173 + $0x478] sm:$0xff]
      %v1245 = vld [vmem:[%s173 + $0x4c8] sm:$0xff]
      %v1246 = vld [vmem:[%s173 + $0x518] sm:$0xff]
      %v1247 = vld [vmem:[%s173 + $0x568] sm:$0xff]
      %v1266 = vunpack.c.l.b16 %v1230
      %v1267 = vunpack.c.h.b16 %v1230
      %v1268 = vunpack.c.l.b16 %v1231
      %v1269 = vunpack.c.h.b16 %v1231
      %v1270 = vunpack.c.l.b16 %v1232
      %v1271 = vunpack.c.h.b16 %v1232
      %v1272 = vunpack.c.l.b16 %v1233
      %v1273 = vunpack.c.h.b16 %v1233
      %v1274 = vunpack.c.l.b16 %v1234
      %v1275 = vunpack.c.h.b16 %v1234
      %v1276 = vunpack.c.l.b16 %v1235
      %v1277 = vunpack.c.h.b16 %v1235
      %v1278 = vunpack.c.l.b16 %v1236
      %v1279 = vunpack.c.h.b16 %v1236
      %v1280 = vunpack.c.l.b16 %v1237
      %v1281 = vunpack.c.h.b16 %v1237
      %v1282 = vunpack.c.l.b16 %v1238
      %v1283 = vunpack.c.h.b16 %v1238
      %v1284 = vunpack.c.l.b16 %v1239
      %v1285 = vunpack.c.h.b16 %v1239
      %v1286 = vunpack.c.l.b16 %v1240
      %v1287 = vunpack.c.h.b16 %v1240
      %v1288 = vunpack.c.l.b16 %v1241
      %v1289 = vunpack.c.h.b16 %v1241
      %v1290 = vunpack.c.l.b16 %v1242
      %v1291 = vunpack.c.h.b16 %v1242
      %v1292 = vunpack.c.l.b16 %v1243
      %v1293 = vunpack.c.h.b16 %v1243
      %v1294 = vunpack.c.l.b16 %v1244
      %v1295 = vunpack.c.h.b16 %v1244
      %v1296 = vunpack.c.l.b16 %v1245
      %v1297 = vunpack.c.h.b16 %v1245
      %v1298 = vunpack.c.l.b16 %v1246
      %v1299 = vunpack.c.h.b16 %v1246
      %v1300 = vunpack.c.l.b16 %v1247
      %v1301 = vunpack.c.h.b16 %v1247
      %v1302 = vpack.c.b16 %v1268, %v1266
      %v1303 = vpack.c.b16 %v1269, %v1267
      %v1304 = vpack.c.b16 %v1272, %v1270
      %v1305 = vpack.c.b16 %v1273, %v1271
      %v1306 = vpack.c.b16 %v1276, %v1274
      %v1307 = vpack.c.b16 %v1277, %v1275
      %v1308 = vpack.c.b16 %v1280, %v1278
      %v1309 = vpack.c.b16 %v1281, %v1279
      %v1310 = vpack.c.b16 %v1284, %v1282
      %v1311 = vpack.c.b16 %v1285, %v1283
      %v1312 = vpack.c.b16 %v1288, %v1286
      %v1313 = vpack.c.b16 %v1289, %v1287
      %v1314 = vpack.c.b16 %v1292, %v1290
      %v1315 = vpack.c.b16 %v1293, %v1291
      %v1316 = vpack.c.b16 %v1296, %v1294
      %v1317 = vpack.c.b16 %v1297, %v1295
      %v1318 = vpack.c.b16 %v1300, %v1298
      %v1319 = vpack.c.b16 %v1301, %v1299
      %1338 = vmatprep.subr.bf16.mxu0 %v1317
      %1339 = vmatpush1.bf16.msra.mxu0 %v1316
      %1340 = vmatprep.subr.bf16.mxu0 %v1315
      %1341 = vmatpush1.bf16.msra.mxu0 %v1314
      %1342 = vmatprep.subr.bf16.mxu0 %v1313
      %1343 = vmatpush1.bf16.msra.mxu0 %v1312
      %1344 = vmatprep.subr.bf16.mxu0 %v1311
      %1345 = vmatpush1.bf16.msra.mxu0 %v1310
      %1346 = vmatprep.subr.bf16.mxu0 %v1309
      %1347 = vmatpush1.bf16.msra.mxu0 %v1308
      %1348 = vmatprep.subr.bf16.mxu0 %v1307
      %1349 = vmatpush1.bf16.msra.mxu0 %v1306
      %1350 = vmatprep.subr.bf16.mxu0 %v1305
      %1351 = vmatpush1.bf16.msra.mxu0 %v1304
      %1352 = vmatprep.subr.bf16.mxu0 %v1303
      %1353 = vmatpush1.bf16.msra.mxu0 %v1302
      %1354 = vmatprep.subr.bf16.mxu0 0
      %1355 = vmatpush2.bf16.msra.mxu0 0
      %1356 = vmatprep.subr.bf16.mxu0 0
      %1357 = vmatpush2.bf16.msra.mxu0 0
      %1358 = vmatprep.subr.bf16.mxu0 0
      %1359 = vmatpush2.bf16.msra.mxu0 0
      %1360 = vmatprep.subr.bf16.mxu0 0
      %1361 = vmatpush2.bf16.msra.mxu0 0
      %1362 = vmatprep.subr.bf16.mxu0 0
      %1363 = vmatpush2.bf16.msra.mxu0 0
      %1364 = vmatprep.subr.bf16.mxu0 0
      %1365 = vmatpush2.bf16.msra.mxu0 0
      %1366 = vmatprep.subr.bf16.mxu0 0
      %1367 = vmatpush2.bf16.msra.mxu0 0
      %1368 = vmatprep.subr.bf16.mxu0 %v1319
      %1369 = vmatpush2.bf16.msra.mxu0 %v1318
      %1370 = vmatprep.mubr.bf16.mxu0 %v330
      %1371 = vmatmul.mubr.bf16.gmra.mxu0 %v235
      %v1372 = vpop.f32.mrf.mxu0
      %v1373 = vadd.f32 0.0, %v1372
      %v1374 = vpop.f32.mrf.mxu0
      %v1375 = vadd.f32 0.0, %v1374
      %v1376 = vpop.f32.mrf.mxu0
      %v1377 = vadd.f32 0.0, %v1376
      %v1378 = vpop.f32.mrf.mxu0
      %v1379 = vadd.f32 0.0, %v1378
      %1380 = vdwg.mxu0
      %v1399 = vunpack.c.l.b16 %v1212
      %v1400 = vunpack.c.h.b16 %v1212
      %v1401 = vunpack.c.l.b16 %v1213
      %v1402 = vunpack.c.h.b16 %v1213
      %v1403 = vunpack.c.l.b16 %v1214
      %v1404 = vunpack.c.h.b16 %v1214
      %v1405 = vunpack.c.l.b16 %v1215
      %v1406 = vunpack.c.h.b16 %v1215
      %v1407 = vunpack.c.l.b16 %v1216
      %v1408 = vunpack.c.h.b16 %v1216
      %v1409 = vunpack.c.l.b16 %v1217
      %v1410 = vunpack.c.h.b16 %v1217
      %v1411 = vunpack.c.l.b16 %v1218
      %v1412 = vunpack.c.h.b16 %v1218
      %v1413 = vunpack.c.l.b16 %v1219
      %v1414 = vunpack.c.h.b16 %v1219
      %v1415 = vunpack.c.l.b16 %v1220
      %v1416 = vunpack.c.h.b16 %v1220
      %v1417 = vunpack.c.l.b16 %v1221
      %v1418 = vunpack.c.h.b16 %v1221
      %v1419 = vunpack.c.l.b16 %v1222
      %v1420 = vunpack.c.h.b16 %v1222
      %v1421 = vunpack.c.l.b16 %v1223
      %v1422 = vunpack.c.h.b16 %v1223
      %v1423 = vunpack.c.l.b16 %v1224
      %v1424 = vunpack.c.h.b16 %v1224
      %v1425 = vunpack.c.l.b16 %v1225
      %v1426 = vunpack.c.h.b16 %v1225
      %v1427 = vunpack.c.l.b16 %v1226
      %v1428 = vunpack.c.h.b16 %v1226
      %v1429 = vunpack.c.l.b16 %v1227
      %v1430 = vunpack.c.h.b16 %v1227
      %v1431 = vunpack.c.l.b16 %v1228
      %v1432 = vunpack.c.h.b16 %v1228
      %v1433 = vunpack.c.l.b16 %v1229
      %v1434 = vunpack.c.h.b16 %v1229
      %v1435 = vpack.c.b16 %v1401, %v1399
      %v1436 = vpack.c.b16 %v1402, %v1400
      %v1437 = vpack.c.b16 %v1405, %v1403
      %v1438 = vpack.c.b16 %v1406, %v1404
      %v1439 = vpack.c.b16 %v1409, %v1407
      %v1440 = vpack.c.b16 %v1410, %v1408
      %v1441 = vpack.c.b16 %v1413, %v1411
      %v1442 = vpack.c.b16 %v1414, %v1412
      %v1443 = vpack.c.b16 %v1417, %v1415
      %v1444 = vpack.c.b16 %v1418, %v1416
      %v1445 = vpack.c.b16 %v1421, %v1419
      %v1446 = vpack.c.b16 %v1422, %v1420
      %v1447 = vpack.c.b16 %v1425, %v1423
      %v1448 = vpack.c.b16 %v1426, %v1424
      %v1449 = vpack.c.b16 %v1429, %v1427
      %v1450 = vpack.c.b16 %v1430, %v1428
      %v1451 = vpack.c.b16 %v1433, %v1431
      %v1452 = vpack.c.b16 %v1434, %v1432
      %1471 = vmatprep.subr.bf16.mxu0 %v1450
      %1472 = vmatpush1.bf16.msra.mxu0 %v1449
      %1473 = vmatprep.subr.bf16.mxu0 %v1448
      %1474 = vmatpush1.bf16.msra.mxu0 %v1447
      %1475 = vmatprep.subr.bf16.mxu0 %v1446
      %1476 = vmatpush1.bf16.msra.mxu0 %v1445
      %1477 = vmatprep.subr.bf16.mxu0 %v1444
      %1478 = vmatpush1.bf16.msra.mxu0 %v1443
      %1479 = vmatprep.subr.bf16.mxu0 %v1442
      %1480 = vmatpush1.bf16.msra.mxu0 %v1441
      %1481 = vmatprep.subr.bf16.mxu0 %v1440
      %1482 = vmatpush1.bf16.msra.mxu0 %v1439
      %1483 = vmatprep.subr.bf16.mxu0 %v1438
      %1484 = vmatpush1.bf16.msra.mxu0 %v1437
      %1485 = vmatprep.subr.bf16.mxu0 %v1436
      %1486 = vmatpush1.bf16.msra.mxu0 %v1435
      %1487 = vmatprep.subr.bf16.mxu0 0
      %1488 = vmatpush2.bf16.msra.mxu0 0
      %1489 = vmatprep.subr.bf16.mxu0 0
      %1490 = vmatpush2.bf16.msra.mxu0 0
      %1491 = vmatprep.subr.bf16.mxu0 0
      %1492 = vmatpush2.bf16.msra.mxu0 0
      %1493 = vmatprep.subr.bf16.mxu0 0
      %1494 = vmatpush2.bf16.msra.mxu0 0
      %1495 = vmatprep.subr.bf16.mxu0 0
      %1496 = vmatpush2.bf16.msra.mxu0 0
      %1497 = vmatprep.subr.bf16.mxu0 0
      %1498 = vmatpush2.bf16.msra.mxu0 0
      %1499 = vmatprep.subr.bf16.mxu0 0
      %1500 = vmatpush2.bf16.msra.mxu0 0
      %1501 = vmatprep.subr.bf16.mxu0 %v1452
      %1502 = vmatpush2.bf16.msra.mxu0 %v1451
      %1503 = vmatprep.mubr.bf16.mxu0 %v475
      %1504 = vmatmul.mubr.bf16.gmra.mxu0 %v381
      %v1505 = vpop.f32.mrf.mxu0
      %v1506 = vadd.f32 %v1373, %v1505
      %v1507 = vpop.f32.mrf.mxu0
      %v1508 = vadd.f32 %v1375, %v1507
      %v1509 = vpop.f32.mrf.mxu0
      %v1510 = vadd.f32 %v1377, %v1509
      %v1511 = vpop.f32.mrf.mxu0
      %v1512 = vadd.f32 %v1379, %v1511
      %1513 = vdwg.mxu0
      %v1514 = vld [vmem:[%s173 + $0x20] sm:$0xff]
      %v1515 = vld [vmem:[%s173 + $0x70] sm:$0xff]
      %v1516 = vld [vmem:[%s173 + $0xc0] sm:$0xff]
      %v1517 = vld [vmem:[%s173 + $0x110] sm:$0xff]
      %v1518 = vld [vmem:[%s173 + $0x160] sm:$0xff]
      %v1519 = vld [vmem:[%s173 + $0x1b0] sm:$0xff]
      %v1520 = vld [vmem:[%s173 + $0x200] sm:$0xff]
      %v1521 = vld [vmem:[%s173 + $0x250] sm:$0xff]
      %v1522 = vld [vmem:[%s173 + $0x2a0] sm:$0xff]
      %v1523 = vld [vmem:[%s173 + $0x2f0] sm:$0xff]
      %v1524 = vld [vmem:[%s173 + $0x340] sm:$0xff]
      %v1525 = vld [vmem:[%s173 + $0x390] sm:$0xff]
      %v1526 = vld [vmem:[%s173 + $0x3e0] sm:$0xff]
      %v1527 = vld [vmem:[%s173 + $0x430] sm:$0xff]
      %v1528 = vld [vmem:[%s173 + $0x480] sm:$0xff]
      %v1529 = vld [vmem:[%s173 + $0x4d0] sm:$0xff]
      %v1530 = vld [vmem:[%s173 + $0x520] sm:$0xff]
      %v1531 = vld [vmem:[%s173 + $0x570] sm:$0xff]
      %v1550 = vunpack.c.l.b16 %v1514
      %v1551 = vunpack.c.h.b16 %v1514
      %v1552 = vunpack.c.l.b16 %v1515
      %v1553 = vunpack.c.h.b16 %v1515
      %v1554 = vunpack.c.l.b16 %v1516
      %v1555 = vunpack.c.h.b16 %v1516
      %v1556 = vunpack.c.l.b16 %v1517
      %v1557 = vunpack.c.h.b16 %v1517
      %v1558 = vunpack.c.l.b16 %v1518
      %v1559 = vunpack.c.h.b16 %v1518
      %v1560 = vunpack.c.l.b16 %v1519
      %v1561 = vunpack.c.h.b16 %v1519
      %v1562 = vunpack.c.l.b16 %v1520
      %v1563 = vunpack.c.h.b16 %v1520
      %v1564 = vunpack.c.l.b16 %v1521
      %v1565 = vunpack.c.h.b16 %v1521
      %v1566 = vunpack.c.l.b16 %v1522
      %v1567 = vunpack.c.h.b16 %v1522
      %v1568 = vunpack.c.l.b16 %v1523
      %v1569 = vunpack.c.h.b16 %v1523
      %v1570 = vunpack.c.l.b16 %v1524
      %v1571 = vunpack.c.h.b16 %v1524
      %v1572 = vunpack.c.l.b16 %v1525
      %v1573 = vunpack.c.h.b16 %v1525
      %v1574 = vunpack.c.l.b16 %v1526
      %v1575 = vunpack.c.h.b16 %v1526
      %v1576 = vunpack.c.l.b16 %v1527
      %v1577 = vunpack.c.h.b16 %v1527
      %v1578 = vunpack.c.l.b16 %v1528
      %v1579 = vunpack.c.h.b16 %v1528
      %v1580 = vunpack.c.l.b16 %v1529
      %v1581 = vunpack.c.h.b16 %v1529
      %v1582 = vunpack.c.l.b16 %v1530
      %v1583 = vunpack.c.h.b16 %v1530
      %v1584 = vunpack.c.l.b16 %v1531
      %v1585 = vunpack.c.h.b16 %v1531
      %v1586 = vpack.c.b16 %v1552, %v1550
      %v1587 = vpack.c.b16 %v1553, %v1551
      %v1588 = vpack.c.b16 %v1556, %v1554
      %v1589 = vpack.c.b16 %v1557, %v1555
      %v1590 = vpack.c.b16 %v1560, %v1558
      %v1591 = vpack.c.b16 %v1561, %v1559
      %v1592 = vpack.c.b16 %v1564, %v1562
      %v1593 = vpack.c.b16 %v1565, %v1563
      %v1594 = vpack.c.b16 %v1568, %v1566
      %v1595 = vpack.c.b16 %v1569, %v1567
      %v1596 = vpack.c.b16 %v1572, %v1570
      %v1597 = vpack.c.b16 %v1573, %v1571
      %v1598 = vpack.c.b16 %v1576, %v1574
      %v1599 = vpack.c.b16 %v1577, %v1575
      %v1600 = vpack.c.b16 %v1580, %v1578
      %v1601 = vpack.c.b16 %v1581, %v1579
      %v1602 = vpack.c.b16 %v1584, %v1582
      %v1603 = vpack.c.b16 %v1585, %v1583
      %1622 = vmatprep.subr.bf16.mxu0 %v1601
      %1623 = vmatpush1.bf16.msra.mxu0 %v1600
      %1624 = vmatprep.subr.bf16.mxu0 %v1599
      %1625 = vmatpush1.bf16.msra.mxu0 %v1598
      %1626 = vmatprep.subr.bf16.mxu0 %v1597
      %1627 = vmatpush1.bf16.msra.mxu0 %v1596
      %1628 = vmatprep.subr.bf16.mxu0 %v1595
      %1629 = vmatpush1.bf16.msra.mxu0 %v1594
      %1630 = vmatprep.subr.bf16.mxu0 %v1593
      %1631 = vmatpush1.bf16.msra.mxu0 %v1592
      %1632 = vmatprep.subr.bf16.mxu0 %v1591
      %1633 = vmatpush1.bf16.msra.mxu0 %v1590
      %1634 = vmatprep.subr.bf16.mxu0 %v1589
      %1635 = vmatpush1.bf16.msra.mxu0 %v1588
      %1636 = vmatprep.subr.bf16.mxu0 %v1587
      %1637 = vmatpush1.bf16.msra.mxu0 %v1586
      %1638 = vmatprep.subr.bf16.mxu0 0
      %1639 = vmatpush2.bf16.msra.mxu0 0
      %1640 = vmatprep.subr.bf16.mxu0 0
      %1641 = vmatpush2.bf16.msra.mxu0 0
      %1642 = vmatprep.subr.bf16.mxu0 0
      %1643 = vmatpush2.bf16.msra.mxu0 0
      %1644 = vmatprep.subr.bf16.mxu0 0
      %1645 = vmatpush2.bf16.msra.mxu0 0
      %1646 = vmatprep.subr.bf16.mxu0 0
      %1647 = vmatpush2.bf16.msra.mxu0 0
      %1648 = vmatprep.subr.bf16.mxu0 0
      %1649 = vmatpush2.bf16.msra.mxu0 0
      %1650 = vmatprep.subr.bf16.mxu0 0
      %1651 = vmatpush2.bf16.msra.mxu0 0
      %1652 = vmatprep.subr.bf16.mxu0 %v1603
      %1653 = vmatpush2.bf16.msra.mxu0 %v1602
      %1654 = vmatprep.mubr.bf16.mxu0 %v638
      %1655 = vmatmul.mubr.bf16.gmra.mxu0 %v544
      %v1656 = vpop.f32.mrf.mxu0
      %v1657 = vadd.f32 0.0, %v1656
      %v1658 = vpop.f32.mrf.mxu0
      %v1659 = vadd.f32 0.0, %v1658
      %v1660 = vpop.f32.mrf.mxu0
      %v1661 = vadd.f32 0.0, %v1660
      %v1662 = vpop.f32.mrf.mxu0
      %v1663 = vadd.f32 0.0, %v1662
      %1664 = vdwg.mxu0
      %v1665 = vadd.f32 %v1506, %v1657
      %v1666 = vadd.f32 %v1508, %v1659
      %v1667 = vadd.f32 %v1510, %v1661
      %v1668 = vadd.f32 %v1512, %v1663
      %v1669 = vpack.c.bf16 %v1667, %v1665
      %v1670 = vpack.c.bf16 %v1668, %v1666
      %v1673 = vunpack.c.l.b16 %v1669
      %v1674 = vunpack.c.l.b16 %v1670
      %v1675 = vunpack.c.h.b16 %v1669
      %v1676 = vunpack.c.h.b16 %v1670
      %v1677 = vpack.c.b16 %v1674, %v1673
      %v1678 = vpack.c.b16 %v1676, %v1675
      %1681 = vst [vmem:[%s178 + $0x10] sm:$0xff] %v1677
      %1682 = vst [vmem:[%s178 + $0x50] sm:$0xff] %v1678
      %v1683 = vadd.f32 %v1665, %v1666
      %1684 = vadd.xlane.f32.xlu0 %v1683
      %v1685 = vpop.xlane.xlu0 %1684
      %v1686 = vadd.f32 %v1667, %v1668
      %1687 = vadd.xlane.f32.xlu0 %v1686
      %v1688 = vpop.xlane.xlu0 %1687
      %v1689 = vadd.f32 %v1198, %v1685
      %v1690 = vadd.f32 %v1199, %v1688
      %v1691 = vmul.f32 %v1665, %v1665
      %v1692 = vmul.f32 %v1666, %v1666
      %v1693 = vmul.f32 %v1667, %v1667
      %v1694 = vmul.f32 %v1668, %v1668
      %v1695 = vadd.f32 %v1691, %v1692
      %1696 = vadd.xlane.f32.xlu0 %v1695
      %v1697 = vpop.xlane.xlu0 %1696
      %v1698 = vadd.f32 %v1693, %v1694
      %1699 = vadd.xlane.f32.xlu0 %v1698
      %v1700 = vpop.xlane.xlu0 %1699
      %v1701 = vadd.f32 %v1210, %v1697
      %v1702 = vadd.f32 %v1211, %v1700
      %v1703 = vld [vmem:[%s173 + $0x18] sm:$0xff]
      %v1704 = vld [vmem:[%s173 + $0x68] sm:$0xff]
      %v1705 = vld [vmem:[%s173 + $0xb8] sm:$0xff]
      %v1706 = vld [vmem:[%s173 + $0x108] sm:$0xff]
      %v1707 = vld [vmem:[%s173 + $0x158] sm:$0xff]
      %v1708 = vld [vmem:[%s173 + $0x1a8] sm:$0xff]
      %v1709 = vld [vmem:[%s173 + $0x1f8] sm:$0xff]
      %v1710 = vld [vmem:[%s173 + $0x248] sm:$0xff]
      %v1711 = vld [vmem:[%s173 + $0x298] sm:$0xff]
      %v1712 = vld [vmem:[%s173 + $0x2e8] sm:$0xff]
      %v1713 = vld [vmem:[%s173 + $0x338] sm:$0xff]
      %v1714 = vld [vmem:[%s173 + $0x388] sm:$0xff]
      %v1715 = vld [vmem:[%s173 + $0x3d8] sm:$0xff]
      %v1716 = vld [vmem:[%s173 + $0x428] sm:$0xff]
      %v1717 = vld [vmem:[%s173 + $0x478] sm:$0xff]
      %v1718 = vld [vmem:[%s173 + $0x4c8] sm:$0xff]
      %v1719 = vld [vmem:[%s173 + $0x518] sm:$0xff]
      %v1720 = vld [vmem:[%s173 + $0x568] sm:$0xff]
      %v1721 = vld [vmem:[%s173 + $0x20] sm:$0xff]
      %v1722 = vld [vmem:[%s173 + $0x70] sm:$0xff]
      %v1723 = vld [vmem:[%s173 + $0xc0] sm:$0xff]
      %v1724 = vld [vmem:[%s173 + $0x110] sm:$0xff]
      %v1725 = vld [vmem:[%s173 + $0x160] sm:$0xff]
      %v1726 = vld [vmem:[%s173 + $0x1b0] sm:$0xff]
      %v1727 = vld [vmem:[%s173 + $0x200] sm:$0xff]
      %v1728 = vld [vmem:[%s173 + $0x250] sm:$0xff]
      %v1729 = vld [vmem:[%s173 + $0x2a0] sm:$0xff]
      %v1730 = vld [vmem:[%s173 + $0x2f0] sm:$0xff]
      %v1731 = vld [vmem:[%s173 + $0x340] sm:$0xff]
      %v1732 = vld [vmem:[%s173 + $0x390] sm:$0xff]
      %v1733 = vld [vmem:[%s173 + $0x3e0] sm:$0xff]
      %v1734 = vld [vmem:[%s173 + $0x430] sm:$0xff]
      %v1735 = vld [vmem:[%s173 + $0x480] sm:$0xff]
      %v1736 = vld [vmem:[%s173 + $0x4d0] sm:$0xff]
      %v1737 = vld [vmem:[%s173 + $0x520] sm:$0xff]
      %v1738 = vld [vmem:[%s173 + $0x570] sm:$0xff]
      %v1757 = vunpack.c.l.b16 %v1721
      %v1758 = vunpack.c.h.b16 %v1721
      %v1759 = vunpack.c.l.b16 %v1722
      %v1760 = vunpack.c.h.b16 %v1722
      %v1761 = vunpack.c.l.b16 %v1723
      %v1762 = vunpack.c.h.b16 %v1723
      %v1763 = vunpack.c.l.b16 %v1724
      %v1764 = vunpack.c.h.b16 %v1724
      %v1765 = vunpack.c.l.b16 %v1725
      %v1766 = vunpack.c.h.b16 %v1725
      %v1767 = vunpack.c.l.b16 %v1726
      %v1768 = vunpack.c.h.b16 %v1726
      %v1769 = vunpack.c.l.b16 %v1727
      %v1770 = vunpack.c.h.b16 %v1727
      %v1771 = vunpack.c.l.b16 %v1728
      %v1772 = vunpack.c.h.b16 %v1728
      %v1773 = vunpack.c.l.b16 %v1729
      %v1774 = vunpack.c.h.b16 %v1729
      %v1775 = vunpack.c.l.b16 %v1730
      %v1776 = vunpack.c.h.b16 %v1730
      %v1777 = vunpack.c.l.b16 %v1731
      %v1778 = vunpack.c.h.b16 %v1731
      %v1779 = vunpack.c.l.b16 %v1732
      %v1780 = vunpack.c.h.b16 %v1732
      %v1781 = vunpack.c.l.b16 %v1733
      %v1782 = vunpack.c.h.b16 %v1733
      %v1783 = vunpack.c.l.b16 %v1734
      %v1784 = vunpack.c.h.b16 %v1734
      %v1785 = vunpack.c.l.b16 %v1735
      %v1786 = vunpack.c.h.b16 %v1735
      %v1787 = vunpack.c.l.b16 %v1736
      %v1788 = vunpack.c.h.b16 %v1736
      %v1789 = vunpack.c.l.b16 %v1737
      %v1790 = vunpack.c.h.b16 %v1737
      %v1791 = vunpack.c.l.b16 %v1738
      %v1792 = vunpack.c.h.b16 %v1738
      %v1793 = vpack.c.b16 %v1759, %v1757
      %v1794 = vpack.c.b16 %v1760, %v1758
      %v1795 = vpack.c.b16 %v1763, %v1761
      %v1796 = vpack.c.b16 %v1764, %v1762
      %v1797 = vpack.c.b16 %v1767, %v1765
      %v1798 = vpack.c.b16 %v1768, %v1766
      %v1799 = vpack.c.b16 %v1771, %v1769
      %v1800 = vpack.c.b16 %v1772, %v1770
      %v1801 = vpack.c.b16 %v1775, %v1773
      %v1802 = vpack.c.b16 %v1776, %v1774
      %v1803 = vpack.c.b16 %v1779, %v1777
      %v1804 = vpack.c.b16 %v1780, %v1778
      %v1805 = vpack.c.b16 %v1783, %v1781
      %v1806 = vpack.c.b16 %v1784, %v1782
      %v1807 = vpack.c.b16 %v1787, %v1785
      %v1808 = vpack.c.b16 %v1788, %v1786
      %v1809 = vpack.c.b16 %v1791, %v1789
      %v1810 = vpack.c.b16 %v1792, %v1790
      %1829 = vmatprep.subr.bf16.mxu0 %v1808
      %1830 = vmatpush1.bf16.msra.mxu0 %v1807
      %1831 = vmatprep.subr.bf16.mxu0 %v1806
      %1832 = vmatpush1.bf16.msra.mxu0 %v1805
      %1833 = vmatprep.subr.bf16.mxu0 %v1804
      %1834 = vmatpush1.bf16.msra.mxu0 %v1803
      %1835 = vmatprep.subr.bf16.mxu0 %v1802
      %1836 = vmatpush1.bf16.msra.mxu0 %v1801
      %1837 = vmatprep.subr.bf16.mxu0 %v1800
      %1838 = vmatpush1.bf16.msra.mxu0 %v1799
      %1839 = vmatprep.subr.bf16.mxu0 %v1798
      %1840 = vmatpush1.bf16.msra.mxu0 %v1797
      %1841 = vmatprep.subr.bf16.mxu0 %v1796
      %1842 = vmatpush1.bf16.msra.mxu0 %v1795
      %1843 = vmatprep.subr.bf16.mxu0 %v1794
      %1844 = vmatpush1.bf16.msra.mxu0 %v1793
      %1845 = vmatprep.subr.bf16.mxu0 0
      %1846 = vmatpush2.bf16.msra.mxu0 0
      %1847 = vmatprep.subr.bf16.mxu0 0
      %1848 = vmatpush2.bf16.msra.mxu0 0
      %1849 = vmatprep.subr.bf16.mxu0 0
      %1850 = vmatpush2.bf16.msra.mxu0 0
      %1851 = vmatprep.subr.bf16.mxu0 0
      %1852 = vmatpush2.bf16.msra.mxu0 0
      %1853 = vmatprep.subr.bf16.mxu0 0
      %1854 = vmatpush2.bf16.msra.mxu0 0
      %1855 = vmatprep.subr.bf16.mxu0 0
      %1856 = vmatpush2.bf16.msra.mxu0 0
      %1857 = vmatprep.subr.bf16.mxu0 0
      %1858 = vmatpush2.bf16.msra.mxu0 0
      %1859 = vmatprep.subr.bf16.mxu0 %v1810
      %1860 = vmatpush2.bf16.msra.mxu0 %v1809
      %1861 = vmatprep.mubr.bf16.mxu0 %v330
      %1862 = vmatmul.mubr.bf16.gmra.mxu0 %v235
      %v1863 = vpop.f32.mrf.mxu0
      %v1864 = vadd.f32 0.0, %v1863
      %v1865 = vpop.f32.mrf.mxu0
      %v1866 = vadd.f32 0.0, %v1865
      %v1867 = vpop.f32.mrf.mxu0
      %v1868 = vadd.f32 0.0, %v1867
      %v1869 = vpop.f32.mrf.mxu0
      %v1870 = vadd.f32 0.0, %v1869
      %1871 = vdwg.mxu0
      %v1890 = vunpack.c.l.b16 %v1703
      %v1891 = vunpack.c.h.b16 %v1703
      %v1892 = vunpack.c.l.b16 %v1704
      %v1893 = vunpack.c.h.b16 %v1704
      %v1894 = vunpack.c.l.b16 %v1705
      %v1895 = vunpack.c.h.b16 %v1705
      %v1896 = vunpack.c.l.b16 %v1706
      %v1897 = vunpack.c.h.b16 %v1706
      %v1898 = vunpack.c.l.b16 %v1707
      %v1899 = vunpack.c.h.b16 %v1707
      %v1900 = vunpack.c.l.b16 %v1708
      %v1901 = vunpack.c.h.b16 %v1708
      %v1902 = vunpack.c.l.b16 %v1709
      %v1903 = vunpack.c.h.b16 %v1709
      %v1904 = vunpack.c.l.b16 %v1710
      %v1905 = vunpack.c.h.b16 %v1710
      %v1906 = vunpack.c.l.b16 %v1711
      %v1907 = vunpack.c.h.b16 %v1711
      %v1908 = vunpack.c.l.b16 %v1712
      %v1909 = vunpack.c.h.b16 %v1712
      %v1910 = vunpack.c.l.b16 %v1713
      %v1911 = vunpack.c.h.b16 %v1713
      %v1912 = vunpack.c.l.b16 %v1714
      %v1913 = vunpack.c.h.b16 %v1714
      %v1914 = vunpack.c.l.b16 %v1715
      %v1915 = vunpack.c.h.b16 %v1715
      %v1916 = vunpack.c.l.b16 %v1716
      %v1917 = vunpack.c.h.b16 %v1716
      %v1918 = vunpack.c.l.b16 %v1717
      %v1919 = vunpack.c.h.b16 %v1717
      %v1920 = vunpack.c.l.b16 %v1718
      %v1921 = vunpack.c.h.b16 %v1718
      %v1922 = vunpack.c.l.b16 %v1719
      %v1923 = vunpack.c.h.b16 %v1719
      %v1924 = vunpack.c.l.b16 %v1720
      %v1925 = vunpack.c.h.b16 %v1720
      %v1926 = vpack.c.b16 %v1892, %v1890
      %v1927 = vpack.c.b16 %v1893, %v1891
      %v1928 = vpack.c.b16 %v1896, %v1894
      %v1929 = vpack.c.b16 %v1897, %v1895
      %v1930 = vpack.c.b16 %v1900, %v1898
      %v1931 = vpack.c.b16 %v1901, %v1899
      %v1932 = vpack.c.b16 %v1904, %v1902
      %v1933 = vpack.c.b16 %v1905, %v1903
      %v1934 = vpack.c.b16 %v1908, %v1906
      %v1935 = vpack.c.b16 %v1909, %v1907
      %v1936 = vpack.c.b16 %v1912, %v1910
      %v1937 = vpack.c.b16 %v1913, %v1911
      %v1938 = vpack.c.b16 %v1916, %v1914
      %v1939 = vpack.c.b16 %v1917, %v1915
      %v1940 = vpack.c.b16 %v1920, %v1918
      %v1941 = vpack.c.b16 %v1921, %v1919
      %v1942 = vpack.c.b16 %v1924, %v1922
      %v1943 = vpack.c.b16 %v1925, %v1923
      %1962 = vmatprep.subr.bf16.mxu0 %v1941
      %1963 = vmatpush1.bf16.msra.mxu0 %v1940
      %1964 = vmatprep.subr.bf16.mxu0 %v1939
      %1965 = vmatpush1.bf16.msra.mxu0 %v1938
      %1966 = vmatprep.subr.bf16.mxu0 %v1937
      %1967 = vmatpush1.bf16.msra.mxu0 %v1936
      %1968 = vmatprep.subr.bf16.mxu0 %v1935
      %1969 = vmatpush1.bf16.msra.mxu0 %v1934
      %1970 = vmatprep.subr.bf16.mxu0 %v1933
      %1971 = vmatpush1.bf16.msra.mxu0 %v1932
      %1972 = vmatprep.subr.bf16.mxu0 %v1931
      %1973 = vmatpush1.bf16.msra.mxu0 %v1930
      %1974 = vmatprep.subr.bf16.mxu0 %v1929
      %1975 = vmatpush1.bf16.msra.mxu0 %v1928
      %1976 = vmatprep.subr.bf16.mxu0 %v1927
      %1977 = vmatpush1.bf16.msra.mxu0 %v1926
      %1978 = vmatprep.subr.bf16.mxu0 0
      %1979 = vmatpush2.bf16.msra.mxu0 0
      %1980 = vmatprep.subr.bf16.mxu0 0
      %1981 = vmatpush2.bf16.msra.mxu0 0
      %1982 = vmatprep.subr.bf16.mxu0 0
      %1983 = vmatpush2.bf16.msra.mxu0 0
      %1984 = vmatprep.subr.bf16.mxu0 0
      %1985 = vmatpush2.bf16.msra.mxu0 0
      %1986 = vmatprep.subr.bf16.mxu0 0
      %1987 = vmatpush2.bf16.msra.mxu0 0
      %1988 = vmatprep.subr.bf16.mxu0 0
      %1989 = vmatpush2.bf16.msra.mxu0 0
      %1990 = vmatprep.subr.bf16.mxu0 0
      %1991 = vmatpush2.bf16.msra.mxu0 0
      %1992 = vmatprep.subr.bf16.mxu0 %v1943
      %1993 = vmatpush2.bf16.msra.mxu0 %v1942
      %1994 = vmatprep.mubr.bf16.mxu0 %v475
      %1995 = vmatmul.mubr.bf16.gmra.mxu0 %v381
      %v1996 = vpop.f32.mrf.mxu0
      %v1997 = vadd.f32 %v1864, %v1996
      %v1998 = vpop.f32.mrf.mxu0
      %v1999 = vadd.f32 %v1866, %v1998
      %v2000 = vpop.f32.mrf.mxu0
      %v2001 = vadd.f32 %v1868, %v2000
      %v2002 = vpop.f32.mrf.mxu0
      %v2003 = vadd.f32 %v1870, %v2002
      %2004 = vdwg.mxu0
      %v2005 = vld [vmem:[%s173 + $0x28] sm:$0xff]
      %v2006 = vld [vmem:[%s173 + $0x78] sm:$0xff]
      %v2007 = vld [vmem:[%s173 + $0xc8] sm:$0xff]
      %v2008 = vld [vmem:[%s173 + $0x118] sm:$0xff]
      %v2009 = vld [vmem:[%s173 + $0x168] sm:$0xff]
      %v2010 = vld [vmem:[%s173 + $0x1b8] sm:$0xff]
      %v2011 = vld [vmem:[%s173 + $0x208] sm:$0xff]
      %v2012 = vld [vmem:[%s173 + $0x258] sm:$0xff]
      %v2013 = vld [vmem:[%s173 + $0x2a8] sm:$0xff]
      %v2014 = vld [vmem:[%s173 + $0x2f8] sm:$0xff]
      %v2015 = vld [vmem:[%s173 + $0x348] sm:$0xff]
      %v2016 = vld [vmem:[%s173 + $0x398] sm:$0xff]
      %v2017 = vld [vmem:[%s173 + $0x3e8] sm:$0xff]
      %v2018 = vld [vmem:[%s173 + $0x438] sm:$0xff]
      %v2019 = vld [vmem:[%s173 + $0x488] sm:$0xff]
      %v2020 = vld [vmem:[%s173 + $0x4d8] sm:$0xff]
      %v2021 = vld [vmem:[%s173 + $0x528] sm:$0xff]
      %v2022 = vld [vmem:[%s173 + $0x578] sm:$0xff]
      %v2041 = vunpack.c.l.b16 %v2005
      %v2042 = vunpack.c.h.b16 %v2005
      %v2043 = vunpack.c.l.b16 %v2006
      %v2044 = vunpack.c.h.b16 %v2006
      %v2045 = vunpack.c.l.b16 %v2007
      %v2046 = vunpack.c.h.b16 %v2007
      %v2047 = vunpack.c.l.b16 %v2008
      %v2048 = vunpack.c.h.b16 %v2008
      %v2049 = vunpack.c.l.b16 %v2009
      %v2050 = vunpack.c.h.b16 %v2009
      %v2051 = vunpack.c.l.b16 %v2010
      %v2052 = vunpack.c.h.b16 %v2010
      %v2053 = vunpack.c.l.b16 %v2011
      %v2054 = vunpack.c.h.b16 %v2011
      %v2055 = vunpack.c.l.b16 %v2012
      %v2056 = vunpack.c.h.b16 %v2012
      %v2057 = vunpack.c.l.b16 %v2013
      %v2058 = vunpack.c.h.b16 %v2013
      %v2059 = vunpack.c.l.b16 %v2014
      %v2060 = vunpack.c.h.b16 %v2014
      %v2061 = vunpack.c.l.b16 %v2015
      %v2062 = vunpack.c.h.b16 %v2015
      %v2063 = vunpack.c.l.b16 %v2016
      %v2064 = vunpack.c.h.b16 %v2016
      %v2065 = vunpack.c.l.b16 %v2017
      %v2066 = vunpack.c.h.b16 %v2017
      %v2067 = vunpack.c.l.b16 %v2018
      %v2068 = vunpack.c.h.b16 %v2018
      %v2069 = vunpack.c.l.b16 %v2019
      %v2070 = vunpack.c.h.b16 %v2019
      %v2071 = vunpack.c.l.b16 %v2020
      %v2072 = vunpack.c.h.b16 %v2020
      %v2073 = vunpack.c.l.b16 %v2021
      %v2074 = vunpack.c.h.b16 %v2021
      %v2075 = vunpack.c.l.b16 %v2022
      %v2076 = vunpack.c.h.b16 %v2022
      %v2077 = vpack.c.b16 %v2043, %v2041
      %v2078 = vpack.c.b16 %v2044, %v2042
      %v2079 = vpack.c.b16 %v2047, %v2045
      %v2080 = vpack.c.b16 %v2048, %v2046
      %v2081 = vpack.c.b16 %v2051, %v2049
      %v2082 = vpack.c.b16 %v2052, %v2050
      %v2083 = vpack.c.b16 %v2055, %v2053
      %v2084 = vpack.c.b16 %v2056, %v2054
      %v2085 = vpack.c.b16 %v2059, %v2057
      %v2086 = vpack.c.b16 %v2060, %v2058
      %v2087 = vpack.c.b16 %v2063, %v2061
      %v2088 = vpack.c.b16 %v2064, %v2062
      %v2089 = vpack.c.b16 %v2067, %v2065
      %v2090 = vpack.c.b16 %v2068, %v2066
      %v2091 = vpack.c.b16 %v2071, %v2069
      %v2092 = vpack.c.b16 %v2072, %v2070
      %v2093 = vpack.c.b16 %v2075, %v2073
      %v2094 = vpack.c.b16 %v2076, %v2074
      %2113 = vmatprep.subr.bf16.mxu0 %v2092
      %2114 = vmatpush1.bf16.msra.mxu0 %v2091
      %2115 = vmatprep.subr.bf16.mxu0 %v2090
      %2116 = vmatpush1.bf16.msra.mxu0 %v2089
      %2117 = vmatprep.subr.bf16.mxu0 %v2088
      %2118 = vmatpush1.bf16.msra.mxu0 %v2087
      %2119 = vmatprep.subr.bf16.mxu0 %v2086
      %2120 = vmatpush1.bf16.msra.mxu0 %v2085
      %2121 = vmatprep.subr.bf16.mxu0 %v2084
      %2122 = vmatpush1.bf16.msra.mxu0 %v2083
      %2123 = vmatprep.subr.bf16.mxu0 %v2082
      %2124 = vmatpush1.bf16.msra.mxu0 %v2081
      %2125 = vmatprep.subr.bf16.mxu0 %v2080
      %2126 = vmatpush1.bf16.msra.mxu0 %v2079
      %2127 = vmatprep.subr.bf16.mxu0 %v2078
      %2128 = vmatpush1.bf16.msra.mxu0 %v2077
      %2129 = vmatprep.subr.bf16.mxu0 0
      %2130 = vmatpush2.bf16.msra.mxu0 0
      %2131 = vmatprep.subr.bf16.mxu0 0
      %2132 = vmatpush2.bf16.msra.mxu0 0
      %2133 = vmatprep.subr.bf16.mxu0 0
      %2134 = vmatpush2.bf16.msra.mxu0 0
      %2135 = vmatprep.subr.bf16.mxu0 0
      %2136 = vmatpush2.bf16.msra.mxu0 0
      %2137 = vmatprep.subr.bf16.mxu0 0
      %2138 = vmatpush2.bf16.msra.mxu0 0
      %2139 = vmatprep.subr.bf16.mxu0 0
      %2140 = vmatpush2.bf16.msra.mxu0 0
      %2141 = vmatprep.subr.bf16.mxu0 0
      %2142 = vmatpush2.bf16.msra.mxu0 0
      %2143 = vmatprep.subr.bf16.mxu0 %v2094
      %2144 = vmatpush2.bf16.msra.mxu0 %v2093
      %2145 = vmatprep.mubr.bf16.mxu0 %v638
      %2146 = vmatmul.mubr.bf16.gmra.mxu0 %v544
      %v2147 = vpop.f32.mrf.mxu0
      %v2148 = vadd.f32 0.0, %v2147
      %v2149 = vpop.f32.mrf.mxu0
      %v2150 = vadd.f32 0.0, %v2149
      %v2151 = vpop.f32.mrf.mxu0
      %v2152 = vadd.f32 0.0, %v2151
      %v2153 = vpop.f32.mrf.mxu0
      %v2154 = vadd.f32 0.0, %v2153
      %2155 = vdwg.mxu0
      %v2156 = vadd.f32 %v1997, %v2148
      %v2157 = vadd.f32 %v1999, %v2150
      %v2158 = vadd.f32 %v2001, %v2152
      %v2159 = vadd.f32 %v2003, %v2154
      %v2160 = vpack.c.bf16 %v2158, %v2156
      %v2161 = vpack.c.bf16 %v2159, %v2157
      %v2164 = vunpack.c.l.b16 %v2160
      %v2165 = vunpack.c.l.b16 %v2161
      %v2166 = vunpack.c.h.b16 %v2160
      %v2167 = vunpack.c.h.b16 %v2161
      %v2168 = vpack.c.b16 %v2165, %v2164
      %v2169 = vpack.c.b16 %v2167, %v2166
      %2172 = vst [vmem:[%s178 + $0x18] sm:$0xff] %v2168
      %2173 = vst [vmem:[%s178 + $0x58] sm:$0xff] %v2169
      %v2174 = vadd.f32 %v2156, %v2157
      %2175 = vadd.xlane.f32.xlu0 %v2174
      %v2176 = vpop.xlane.xlu0 %2175
      %v2177 = vadd.f32 %v2158, %v2159
      %2178 = vadd.xlane.f32.xlu0 %v2177
      %v2179 = vpop.xlane.xlu0 %2178
      %v2180 = vadd.f32 %v1689, %v2176
      %v2181 = vadd.f32 %v1690, %v2179
      %v2182 = vmul.f32 %v2156, %v2156
      %v2183 = vmul.f32 %v2157, %v2157
      %v2184 = vmul.f32 %v2158, %v2158
      %v2185 = vmul.f32 %v2159, %v2159
      %v2186 = vadd.f32 %v2182, %v2183
      %2187 = vadd.xlane.f32.xlu0 %v2186
      %v2188 = vpop.xlane.xlu0 %2187
      %v2189 = vadd.f32 %v2184, %v2185
      %2190 = vadd.xlane.f32.xlu0 %v2189
      %v2191 = vpop.xlane.xlu0 %2190
      %v2192 = vadd.f32 %v1701, %v2188
      %v2193 = vadd.f32 %v1702, %v2191
      %v2194 = vld [vmem:[%s173 + $0x20] sm:$0xff]
      %v2195 = vld [vmem:[%s173 + $0x70] sm:$0xff]
      %v2196 = vld [vmem:[%s173 + $0xc0] sm:$0xff]
      %v2197 = vld [vmem:[%s173 + $0x110] sm:$0xff]
      %v2198 = vld [vmem:[%s173 + $0x160] sm:$0xff]
      %v2199 = vld [vmem:[%s173 + $0x1b0] sm:$0xff]
      %v2200 = vld [vmem:[%s173 + $0x200] sm:$0xff]
      %v2201 = vld [vmem:[%s173 + $0x250] sm:$0xff]
      %v2202 = vld [vmem:[%s173 + $0x2a0] sm:$0xff]
      %v2203 = vld [vmem:[%s173 + $0x2f0] sm:$0xff]
      %v2204 = vld [vmem:[%s173 + $0x340] sm:$0xff]
      %v2205 = vld [vmem:[%s173 + $0x390] sm:$0xff]
      %v2206 = vld [vmem:[%s173 + $0x3e0] sm:$0xff]
      %v2207 = vld [vmem:[%s173 + $0x430] sm:$0xff]
      %v2208 = vld [vmem:[%s173 + $0x480] sm:$0xff]
      %v2209 = vld [vmem:[%s173 + $0x4d0] sm:$0xff]
      %v2210 = vld [vmem:[%s173 + $0x520] sm:$0xff]
      %v2211 = vld [vmem:[%s173 + $0x570] sm:$0xff]
      %v2212 = vld [vmem:[%s173 + $0x28] sm:$0xff]
      %v2213 = vld [vmem:[%s173 + $0x78] sm:$0xff]
      %v2214 = vld [vmem:[%s173 + $0xc8] sm:$0xff]
      %v2215 = vld [vmem:[%s173 + $0x118] sm:$0xff]
      %v2216 = vld [vmem:[%s173 + $0x168] sm:$0xff]
      %v2217 = vld [vmem:[%s173 + $0x1b8] sm:$0xff]
      %v2218 = vld [vmem:[%s173 + $0x208] sm:$0xff]
      %v2219 = vld [vmem:[%s173 + $0x258] sm:$0xff]
      %v2220 = vld [vmem:[%s173 + $0x2a8] sm:$0xff]
      %v2221 = vld [vmem:[%s173 + $0x2f8] sm:$0xff]
      %v2222 = vld [vmem:[%s173 + $0x348] sm:$0xff]
      %v2223 = vld [vmem:[%s173 + $0x398] sm:$0xff]
      %v2224 = vld [vmem:[%s173 + $0x3e8] sm:$0xff]
      %v2225 = vld [vmem:[%s173 + $0x438] sm:$0xff]
      %v2226 = vld [vmem:[%s173 + $0x488] sm:$0xff]
      %v2227 = vld [vmem:[%s173 + $0x4d8] sm:$0xff]
      %v2228 = vld [vmem:[%s173 + $0x528] sm:$0xff]
      %v2229 = vld [vmem:[%s173 + $0x578] sm:$0xff]
      %v2248 = vunpack.c.l.b16 %v2212
      %v2249 = vunpack.c.h.b16 %v2212
      %v2250 = vunpack.c.l.b16 %v2213
      %v2251 = vunpack.c.h.b16 %v2213
      %v2252 = vunpack.c.l.b16 %v2214
      %v2253 = vunpack.c.h.b16 %v2214
      %v2254 = vunpack.c.l.b16 %v2215
      %v2255 = vunpack.c.h.b16 %v2215
      %v2256 = vunpack.c.l.b16 %v2216
      %v2257 = vunpack.c.h.b16 %v2216
      %v2258 = vunpack.c.l.b16 %v2217
      %v2259 = vunpack.c.h.b16 %v2217
      %v2260 = vunpack.c.l.b16 %v2218
      %v2261 = vunpack.c.h.b16 %v2218
      %v2262 = vunpack.c.l.b16 %v2219
      %v2263 = vunpack.c.h.b16 %v2219
      %v2264 = vunpack.c.l.b16 %v2220
      %v2265 = vunpack.c.h.b16 %v2220
      %v2266 = vunpack.c.l.b16 %v2221
      %v2267 = vunpack.c.h.b16 %v2221
      %v2268 = vunpack.c.l.b16 %v2222
      %v2269 = vunpack.c.h.b16 %v2222
      %v2270 = vunpack.c.l.b16 %v2223
      %v2271 = vunpack.c.h.b16 %v2223
      %v2272 = vunpack.c.l.b16 %v2224
      %v2273 = vunpack.c.h.b16 %v2224
      %v2274 = vunpack.c.l.b16 %v2225
      %v2275 = vunpack.c.h.b16 %v2225
      %v2276 = vunpack.c.l.b16 %v2226
      %v2277 = vunpack.c.h.b16 %v2226
      %v2278 = vunpack.c.l.b16 %v2227
      %v2279 = vunpack.c.h.b16 %v2227
      %v2280 = vunpack.c.l.b16 %v2228
      %v2281 = vunpack.c.h.b16 %v2228
      %v2282 = vunpack.c.l.b16 %v2229
      %v2283 = vunpack.c.h.b16 %v2229
      %v2284 = vpack.c.b16 %v2250, %v2248
      %v2285 = vpack.c.b16 %v2251, %v2249
      %v2286 = vpack.c.b16 %v2254, %v2252
      %v2287 = vpack.c.b16 %v2255, %v2253
      %v2288 = vpack.c.b16 %v2258, %v2256
      %v2289 = vpack.c.b16 %v2259, %v2257
      %v2290 = vpack.c.b16 %v2262, %v2260
      %v2291 = vpack.c.b16 %v2263, %v2261
      %v2292 = vpack.c.b16 %v2266, %v2264
      %v2293 = vpack.c.b16 %v2267, %v2265
      %v2294 = vpack.c.b16 %v2270, %v2268
      %v2295 = vpack.c.b16 %v2271, %v2269
      %v2296 = vpack.c.b16 %v2274, %v2272
      %v2297 = vpack.c.b16 %v2275, %v2273
      %v2298 = vpack.c.b16 %v2278, %v2276
      %v2299 = vpack.c.b16 %v2279, %v2277
      %v2300 = vpack.c.b16 %v2282, %v2280
      %v2301 = vpack.c.b16 %v2283, %v2281
      %2320 = vmatprep.subr.bf16.mxu0 %v2299
      %2321 = vmatpush1.bf16.msra.mxu0 %v2298
      %2322 = vmatprep.subr.bf16.mxu0 %v2297
      %2323 = vmatpush1.bf16.msra.mxu0 %v2296
      %2324 = vmatprep.subr.bf16.mxu0 %v2295
      %2325 = vmatpush1.bf16.msra.mxu0 %v2294
      %2326 = vmatprep.subr.bf16.mxu0 %v2293
      %2327 = vmatpush1.bf16.msra.mxu0 %v2292
      %2328 = vmatprep.subr.bf16.mxu0 %v2291
      %2329 = vmatpush1.bf16.msra.mxu0 %v2290
      %2330 = vmatprep.subr.bf16.mxu0 %v2289
      %2331 = vmatpush1.bf16.msra.mxu0 %v2288
      %2332 = vmatprep.subr.bf16.mxu0 %v2287
      %2333 = vmatpush1.bf16.msra.mxu0 %v2286
      %2334 = vmatprep.subr.bf16.mxu0 %v2285
      %2335 = vmatpush1.bf16.msra.mxu0 %v2284
      %2336 = vmatprep.subr.bf16.mxu0 0
      %2337 = vmatpush2.bf16.msra.mxu0 0
      %2338 = vmatprep.subr.bf16.mxu0 0
      %2339 = vmatpush2.bf16.msra.mxu0 0
      %2340 = vmatprep.subr.bf16.mxu0 0
      %2341 = vmatpush2.bf16.msra.mxu0 0
      %2342 = vmatprep.subr.bf16.mxu0 0
      %2343 = vmatpush2.bf16.msra.mxu0 0
      %2344 = vmatprep.subr.bf16.mxu0 0
      %2345 = vmatpush2.bf16.msra.mxu0 0
      %2346 = vmatprep.subr.bf16.mxu0 0
      %2347 = vmatpush2.bf16.msra.mxu0 0
      %2348 = vmatprep.subr.bf16.mxu0 0
      %2349 = vmatpush2.bf16.msra.mxu0 0
      %2350 = vmatprep.subr.bf16.mxu0 %v2301
      %2351 = vmatpush2.bf16.msra.mxu0 %v2300
      %2352 = vmatprep.mubr.bf16.mxu0 %v330
      %2353 = vmatmul.mubr.bf16.gmra.mxu0 %v235
      %v2354 = vpop.f32.mrf.mxu0
      %v2355 = vadd.f32 0.0, %v2354
      %v2356 = vpop.f32.mrf.mxu0
      %v2357 = vadd.f32 0.0, %v2356
      %v2358 = vpop.f32.mrf.mxu0
      %v2359 = vadd.f32 0.0, %v2358
      %v2360 = vpop.f32.mrf.mxu0
      %v2361 = vadd.f32 0.0, %v2360
      %2362 = vdwg.mxu0
      %v2381 = vunpack.c.l.b16 %v2194
      %v2382 = vunpack.c.h.b16 %v2194
      %v2383 = vunpack.c.l.b16 %v2195
      %v2384 = vunpack.c.h.b16 %v2195
      %v2385 = vunpack.c.l.b16 %v2196
      %v2386 = vunpack.c.h.b16 %v2196
      %v2387 = vunpack.c.l.b16 %v2197
      %v2388 = vunpack.c.h.b16 %v2197
      %v2389 = vunpack.c.l.b16 %v2198
      %v2390 = vunpack.c.h.b16 %v2198
      %v2391 = vunpack.c.l.b16 %v2199
      %v2392 = vunpack.c.h.b16 %v2199
      %v2393 = vunpack.c.l.b16 %v2200
      %v2394 = vunpack.c.h.b16 %v2200
      %v2395 = vunpack.c.l.b16 %v2201
      %v2396 = vunpack.c.h.b16 %v2201
      %v2397 = vunpack.c.l.b16 %v2202
      %v2398 = vunpack.c.h.b16 %v2202
      %v2399 = vunpack.c.l.b16 %v2203
      %v2400 = vunpack.c.h.b16 %v2203
      %v2401 = vunpack.c.l.b16 %v2204
      %v2402 = vunpack.c.h.b16 %v2204
      %v2403 = vunpack.c.l.b16 %v2205
      %v2404 = vunpack.c.h.b16 %v2205
      %v2405 = vunpack.c.l.b16 %v2206
      %v2406 = vunpack.c.h.b16 %v2206
      %v2407 = vunpack.c.l.b16 %v2207
      %v2408 = vunpack.c.h.b16 %v2207
      %v2409 = vunpack.c.l.b16 %v2208
      %v2410 = vunpack.c.h.b16 %v2208
      %v2411 = vunpack.c.l.b16 %v2209
      %v2412 = vunpack.c.h.b16 %v2209
      %v2413 = vunpack.c.l.b16 %v2210
      %v2414 = vunpack.c.h.b16 %v2210
      %v2415 = vunpack.c.l.b16 %v2211
      %v2416 = vunpack.c.h.b16 %v2211
      %v2417 = vpack.c.b16 %v2383, %v2381
      %v2418 = vpack.c.b16 %v2384, %v2382
      %v2419 = vpack.c.b16 %v2387, %v2385
      %v2420 = vpack.c.b16 %v2388, %v2386
      %v2421 = vpack.c.b16 %v2391, %v2389
      %v2422 = vpack.c.b16 %v2392, %v2390
      %v2423 = vpack.c.b16 %v2395, %v2393
      %v2424 = vpack.c.b16 %v2396, %v2394
      %v2425 = vpack.c.b16 %v2399, %v2397
      %v2426 = vpack.c.b16 %v2400, %v2398
      %v2427 = vpack.c.b16 %v2403, %v2401
      %v2428 = vpack.c.b16 %v2404, %v2402
      %v2429 = vpack.c.b16 %v2407, %v2405
      %v2430 = vpack.c.b16 %v2408, %v2406
      %v2431 = vpack.c.b16 %v2411, %v2409
      %v2432 = vpack.c.b16 %v2412, %v2410
      %v2433 = vpack.c.b16 %v2415, %v2413
      %v2434 = vpack.c.b16 %v2416, %v2414
      %2453 = vmatprep.subr.bf16.mxu0 %v2432
      %2454 = vmatpush1.bf16.msra.mxu0 %v2431
      %2455 = vmatprep.subr.bf16.mxu0 %v2430
      %2456 = vmatpush1.bf16.msra.mxu0 %v2429
      %2457 = vmatprep.subr.bf16.mxu0 %v2428
      %2458 = vmatpush1.bf16.msra.mxu0 %v2427
      %2459 = vmatprep.subr.bf16.mxu0 %v2426
      %2460 = vmatpush1.bf16.msra.mxu0 %v2425
      %2461 = vmatprep.subr.bf16.mxu0 %v2424
      %2462 = vmatpush1.bf16.msra.mxu0 %v2423
      %2463 = vmatprep.subr.bf16.mxu0 %v2422
      %2464 = vmatpush1.bf16.msra.mxu0 %v2421
      %2465 = vmatprep.subr.bf16.mxu0 %v2420
      %2466 = vmatpush1.bf16.msra.mxu0 %v2419
      %2467 = vmatprep.subr.bf16.mxu0 %v2418
      %2468 = vmatpush1.bf16.msra.mxu0 %v2417
      %2469 = vmatprep.subr.bf16.mxu0 0
      %2470 = vmatpush2.bf16.msra.mxu0 0
      %2471 = vmatprep.subr.bf16.mxu0 0
      %2472 = vmatpush2.bf16.msra.mxu0 0
      %2473 = vmatprep.subr.bf16.mxu0 0
      %2474 = vmatpush2.bf16.msra.mxu0 0
      %2475 = vmatprep.subr.bf16.mxu0 0
      %2476 = vmatpush2.bf16.msra.mxu0 0
      %2477 = vmatprep.subr.bf16.mxu0 0
      %2478 = vmatpush2.bf16.msra.mxu0 0
      %2479 = vmatprep.subr.bf16.mxu0 0
      %2480 = vmatpush2.bf16.msra.mxu0 0
      %2481 = vmatprep.subr.bf16.mxu0 0
      %2482 = vmatpush2.bf16.msra.mxu0 0
      %2483 = vmatprep.subr.bf16.mxu0 %v2434
      %2484 = vmatpush2.bf16.msra.mxu0 %v2433
      %2485 = vmatprep.mubr.bf16.mxu0 %v475
      %2486 = vmatmul.mubr.bf16.gmra.mxu0 %v381
      %v2487 = vpop.f32.mrf.mxu0
      %v2488 = vadd.f32 %v2355, %v2487
      %v2489 = vpop.f32.mrf.mxu0
      %v2490 = vadd.f32 %v2357, %v2489
      %v2491 = vpop.f32.mrf.mxu0
      %v2492 = vadd.f32 %v2359, %v2491
      %v2493 = vpop.f32.mrf.mxu0
      %v2494 = vadd.f32 %v2361, %v2493
      %2495 = vdwg.mxu0
      %v2496 = vld [vmem:[%s173 + $0x30] sm:$0xff]
      %v2497 = vld [vmem:[%s173 + $0x80] sm:$0xff]
      %v2498 = vld [vmem:[%s173 + $0xd0] sm:$0xff]
      %v2499 = vld [vmem:[%s173 + $0x120] sm:$0xff]
      %v2500 = vld [vmem:[%s173 + $0x170] sm:$0xff]
      %v2501 = vld [vmem:[%s173 + $0x1c0] sm:$0xff]
      %v2502 = vld [vmem:[%s173 + $0x210] sm:$0xff]
      %v2503 = vld [vmem:[%s173 + $0x260] sm:$0xff]
      %v2504 = vld [vmem:[%s173 + $0x2b0] sm:$0xff]
      %v2505 = vld [vmem:[%s173 + $0x300] sm:$0xff]
      %v2506 = vld [vmem:[%s173 + $0x350] sm:$0xff]
      %v2507 = vld [vmem:[%s173 + $0x3a0] sm:$0xff]
      %v2508 = vld [vmem:[%s173 + $0x3f0] sm:$0xff]
      %v2509 = vld [vmem:[%s173 + $0x440] sm:$0xff]
      %v2510 = vld [vmem:[%s173 + $0x490] sm:$0xff]
      %v2511 = vld [vmem:[%s173 + $0x4e0] sm:$0xff]
      %v2512 = vld [vmem:[%s173 + $0x530] sm:$0xff]
      %v2513 = vld [vmem:[%s173 + $0x580] sm:$0xff]
      %v2532 = vunpack.c.l.b16 %v2496
      %v2533 = vunpack.c.h.b16 %v2496
      %v2534 = vunpack.c.l.b16 %v2497
      %v2535 = vunpack.c.h.b16 %v2497
      %v2536 = vunpack.c.l.b16 %v2498
      %v2537 = vunpack.c.h.b16 %v2498
      %v2538 = vunpack.c.l.b16 %v2499
      %v2539 = vunpack.c.h.b16 %v2499
      %v2540 = vunpack.c.l.b16 %v2500
      %v2541 = vunpack.c.h.b16 %v2500
      %v2542 = vunpack.c.l.b16 %v2501
      %v2543 = vunpack.c.h.b16 %v2501
      %v2544 = vunpack.c.l.b16 %v2502
      %v2545 = vunpack.c.h.b16 %v2502
      %v2546 = vunpack.c.l.b16 %v2503
      %v2547 = vunpack.c.h.b16 %v2503
      %v2548 = vunpack.c.l.b16 %v2504
      %v2549 = vunpack.c.h.b16 %v2504
      %v2550 = vunpack.c.l.b16 %v2505
      %v2551 = vunpack.c.h.b16 %v2505
      %v2552 = vunpack.c.l.b16 %v2506
      %v2553 = vunpack.c.h.b16 %v2506
      %v2554 = vunpack.c.l.b16 %v2507
      %v2555 = vunpack.c.h.b16 %v2507
      %v2556 = vunpack.c.l.b16 %v2508
      %v2557 = vunpack.c.h.b16 %v2508
      %v2558 = vunpack.c.l.b16 %v2509
      %v2559 = vunpack.c.h.b16 %v2509
      %v2560 = vunpack.c.l.b16 %v2510
      %v2561 = vunpack.c.h.b16 %v2510
      %v2562 = vunpack.c.l.b16 %v2511
      %v2563 = vunpack.c.h.b16 %v2511
      %v2564 = vunpack.c.l.b16 %v2512
      %v2565 = vunpack.c.h.b16 %v2512
      %v2566 = vunpack.c.l.b16 %v2513
      %v2567 = vunpack.c.h.b16 %v2513
      %v2568 = vpack.c.b16 %v2534, %v2532
      %v2569 = vpack.c.b16 %v2535, %v2533
      %v2570 = vpack.c.b16 %v2538, %v2536
      %v2571 = vpack.c.b16 %v2539, %v2537
      %v2572 = vpack.c.b16 %v2542, %v2540
      %v2573 = vpack.c.b16 %v2543, %v2541
      %v2574 = vpack.c.b16 %v2546, %v2544
      %v2575 = vpack.c.b16 %v2547, %v2545
      %v2576 = vpack.c.b16 %v2550, %v2548
      %v2577 = vpack.c.b16 %v2551, %v2549
      %v2578 = vpack.c.b16 %v2554, %v2552
      %v2579 = vpack.c.b16 %v2555, %v2553
      %v2580 = vpack.c.b16 %v2558, %v2556
      %v2581 = vpack.c.b16 %v2559, %v2557
      %v2582 = vpack.c.b16 %v2562, %v2560
      %v2583 = vpack.c.b16 %v2563, %v2561
      %v2584 = vpack.c.b16 %v2566, %v2564
      %v2585 = vpack.c.b16 %v2567, %v2565
      %2604 = vmatprep.subr.bf16.mxu0 %v2583
      %2605 = vmatpush1.bf16.msra.mxu0 %v2582
      %2606 = vmatprep.subr.bf16.mxu0 %v2581
      %2607 = vmatpush1.bf16.msra.mxu0 %v2580
      %2608 = vmatprep.subr.bf16.mxu0 %v2579
      %2609 = vmatpush1.bf16.msra.mxu0 %v2578
      %2610 = vmatprep.subr.bf16.mxu0 %v2577
      %2611 = vmatpush1.bf16.msra.mxu0 %v2576
      %2612 = vmatprep.subr.bf16.mxu0 %v2575
      %2613 = vmatpush1.bf16.msra.mxu0 %v2574
      %2614 = vmatprep.subr.bf16.mxu0 %v2573
      %2615 = vmatpush1.bf16.msra.mxu0 %v2572
      %2616 = vmatprep.subr.bf16.mxu0 %v2571
      %2617 = vmatpush1.bf16.msra.mxu0 %v2570
      %2618 = vmatprep.subr.bf16.mxu0 %v2569
      %2619 = vmatpush1.bf16.msra.mxu0 %v2568
      %2620 = vmatprep.subr.bf16.mxu0 0
      %2621 = vmatpush2.bf16.msra.mxu0 0
      %2622 = vmatprep.subr.bf16.mxu0 0
      %2623 = vmatpush2.bf16.msra.mxu0 0
      %2624 = vmatprep.subr.bf16.mxu0 0
      %2625 = vmatpush2.bf16.msra.mxu0 0
      %2626 = vmatprep.subr.bf16.mxu0 0
      %2627 = vmatpush2.bf16.msra.mxu0 0
      %2628 = vmatprep.subr.bf16.mxu0 0
      %2629 = vmatpush2.bf16.msra.mxu0 0
      %2630 = vmatprep.subr.bf16.mxu0 0
      %2631 = vmatpush2.bf16.msra.mxu0 0
      %2632 = vmatprep.subr.bf16.mxu0 0
      %2633 = vmatpush2.bf16.msra.mxu0 0
      %2634 = vmatprep.subr.bf16.mxu0 %v2585
      %2635 = vmatpush2.bf16.msra.mxu0 %v2584
      %2636 = vmatprep.mubr.bf16.mxu0 %v638
      %2637 = vmatmul.mubr.bf16.gmra.mxu0 %v544
      %v2638 = vpop.f32.mrf.mxu0
      %v2639 = vadd.f32 0.0, %v2638
      %v2640 = vpop.f32.mrf.mxu0
      %v2641 = vadd.f32 0.0, %v2640
      %v2642 = vpop.f32.mrf.mxu0
      %v2643 = vadd.f32 0.0, %v2642
      %v2644 = vpop.f32.mrf.mxu0
      %v2645 = vadd.f32 0.0, %v2644
      %2646 = vdwg.mxu0
      %v2647 = vadd.f32 %v2488, %v2639
      %v2648 = vadd.f32 %v2490, %v2641
      %v2649 = vadd.f32 %v2492, %v2643
      %v2650 = vadd.f32 %v2494, %v2645
      %v2651 = vpack.c.bf16 %v2649, %v2647
      %v2652 = vpack.c.bf16 %v2650, %v2648
      %v2655 = vunpack.c.l.b16 %v2651
      %v2656 = vunpack.c.l.b16 %v2652
      %v2657 = vunpack.c.h.b16 %v2651
      %v2658 = vunpack.c.h.b16 %v2652
      %v2659 = vpack.c.b16 %v2656, %v2655
      %v2660 = vpack.c.b16 %v2658, %v2657
      %2663 = vst [vmem:[%s178 + $0x20] sm:$0xff] %v2659
      %2664 = vst [vmem:[%s178 + $0x60] sm:$0xff] %v2660
      %v2665 = vadd.f32 %v2647, %v2648
      %2666 = vadd.xlane.f32.xlu0 %v2665
      %v2667 = vpop.xlane.xlu0 %2666
      %v2668 = vadd.f32 %v2649, %v2650
      %2669 = vadd.xlane.f32.xlu0 %v2668
      %v2670 = vpop.xlane.xlu0 %2669
      %v2671 = vadd.f32 %v2180, %v2667
      %v2672 = vadd.f32 %v2181, %v2670
      %v2673 = vmul.f32 %v2647, %v2647
      %v2674 = vmul.f32 %v2648, %v2648
      %v2675 = vmul.f32 %v2649, %v2649
      %v2676 = vmul.f32 %v2650, %v2650
      %v2677 = vadd.f32 %v2673, %v2674
      %2678 = vadd.xlane.f32.xlu0 %v2677
      %v2679 = vpop.xlane.xlu0 %2678
      %v2680 = vadd.f32 %v2675, %v2676
      %2681 = vadd.xlane.f32.xlu0 %v2680
      %v2682 = vpop.xlane.xlu0 %2681
      %v2683 = vadd.f32 %v2192, %v2679
      %v2684 = vadd.f32 %v2193, %v2682
      %v2685 = vld [vmem:[%s173 + $0x28] sm:$0xff]
      %v2686 = vld [vmem:[%s173 + $0x78] sm:$0xff]
      %v2687 = vld [vmem:[%s173 + $0xc8] sm:$0xff]
      %v2688 = vld [vmem:[%s173 + $0x118] sm:$0xff]
      %v2689 = vld [vmem:[%s173 + $0x168] sm:$0xff]
      %v2690 = vld [vmem:[%s173 + $0x1b8] sm:$0xff]
      %v2691 = vld [vmem:[%s173 + $0x208] sm:$0xff]
      %v2692 = vld [vmem:[%s173 + $0x258] sm:$0xff]
      %v2693 = vld [vmem:[%s173 + $0x2a8] sm:$0xff]
      %v2694 = vld [vmem:[%s173 + $0x2f8] sm:$0xff]
      %v2695 = vld [vmem:[%s173 + $0x348] sm:$0xff]
      %v2696 = vld [vmem:[%s173 + $0x398] sm:$0xff]
      %v2697 = vld [vmem:[%s173 + $0x3e8] sm:$0xff]
      %v2698 = vld [vmem:[%s173 + $0x438] sm:$0xff]
      %v2699 = vld [vmem:[%s173 + $0x488] sm:$0xff]
      %v2700 = vld [vmem:[%s173 + $0x4d8] sm:$0xff]
      %v2701 = vld [vmem:[%s173 + $0x528] sm:$0xff]
      %v2702 = vld [vmem:[%s173 + $0x578] sm:$0xff]
      %v2703 = vld [vmem:[%s173 + $0x30] sm:$0xff]
      %v2704 = vld [vmem:[%s173 + $0x80] sm:$0xff]
      %v2705 = vld [vmem:[%s173 + $0xd0] sm:$0xff]
      %v2706 = vld [vmem:[%s173 + $0x120] sm:$0xff]
      %v2707 = vld [vmem:[%s173 + $0x170] sm:$0xff]
      %v2708 = vld [vmem:[%s173 + $0x1c0] sm:$0xff]
      %v2709 = vld [vmem:[%s173 + $0x210] sm:$0xff]
      %v2710 = vld [vmem:[%s173 + $0x260] sm:$0xff]
      %v2711 = vld [vmem:[%s173 + $0x2b0] sm:$0xff]
      %v2712 = vld [vmem:[%s173 + $0x300] sm:$0xff]
      %v2713 = vld [vmem:[%s173 + $0x350] sm:$0xff]
      %v2714 = vld [vmem:[%s173 + $0x3a0] sm:$0xff]
      %v2715 = vld [vmem:[%s173 + $0x3f0] sm:$0xff]
      %v2716 = vld [vmem:[%s173 + $0x440] sm:$0xff]
      %v2717 = vld [vmem:[%s173 + $0x490] sm:$0xff]
      %v2718 = vld [vmem:[%s173 + $0x4e0] sm:$0xff]
      %v2719 = vld [vmem:[%s173 + $0x530] sm:$0xff]
      %v2720 = vld [vmem:[%s173 + $0x580] sm:$0xff]
      %v2739 = vunpack.c.l.b16 %v2703
      %v2740 = vunpack.c.h.b16 %v2703
      %v2741 = vunpack.c.l.b16 %v2704
      %v2742 = vunpack.c.h.b16 %v2704
      %v2743 = vunpack.c.l.b16 %v2705
      %v2744 = vunpack.c.h.b16 %v2705
      %v2745 = vunpack.c.l.b16 %v2706
      %v2746 = vunpack.c.h.b16 %v2706
      %v2747 = vunpack.c.l.b16 %v2707
      %v2748 = vunpack.c.h.b16 %v2707
      %v2749 = vunpack.c.l.b16 %v2708
      %v2750 = vunpack.c.h.b16 %v2708
      %v2751 = vunpack.c.l.b16 %v2709
      %v2752 = vunpack.c.h.b16 %v2709
      %v2753 = vunpack.c.l.b16 %v2710
      %v2754 = vunpack.c.h.b16 %v2710
      %v2755 = vunpack.c.l.b16 %v2711
      %v2756 = vunpack.c.h.b16 %v2711
      %v2757 = vunpack.c.l.b16 %v2712
      %v2758 = vunpack.c.h.b16 %v2712
      %v2759 = vunpack.c.l.b16 %v2713
      %v2760 = vunpack.c.h.b16 %v2713
      %v2761 = vunpack.c.l.b16 %v2714
      %v2762 = vunpack.c.h.b16 %v2714
      %v2763 = vunpack.c.l.b16 %v2715
      %v2764 = vunpack.c.h.b16 %v2715
      %v2765 = vunpack.c.l.b16 %v2716
      %v2766 = vunpack.c.h.b16 %v2716
      %v2767 = vunpack.c.l.b16 %v2717
      %v2768 = vunpack.c.h.b16 %v2717
      %v2769 = vunpack.c.l.b16 %v2718
      %v2770 = vunpack.c.h.b16 %v2718
      %v2771 = vunpack.c.l.b16 %v2719
      %v2772 = vunpack.c.h.b16 %v2719
      %v2773 = vunpack.c.l.b16 %v2720
      %v2774 = vunpack.c.h.b16 %v2720
      %v2775 = vpack.c.b16 %v2741, %v2739
      %v2776 = vpack.c.b16 %v2742, %v2740
      %v2777 = vpack.c.b16 %v2745, %v2743
      %v2778 = vpack.c.b16 %v2746, %v2744
      %v2779 = vpack.c.b16 %v2749, %v2747
      %v2780 = vpack.c.b16 %v2750, %v2748
      %v2781 = vpack.c.b16 %v2753, %v2751
      %v2782 = vpack.c.b16 %v2754, %v2752
      %v2783 = vpack.c.b16 %v2757, %v2755
      %v2784 = vpack.c.b16 %v2758, %v2756
      %v2785 = vpack.c.b16 %v2761, %v2759
      %v2786 = vpack.c.b16 %v2762, %v2760
      %v2787 = vpack.c.b16 %v2765, %v2763
      %v2788 = vpack.c.b16 %v2766, %v2764
      %v2789 = vpack.c.b16 %v2769, %v2767
      %v2790 = vpack.c.b16 %v2770, %v2768
      %v2791 = vpack.c.b16 %v2773, %v2771
      %v2792 = vpack.c.b16 %v2774, %v2772
      %2811 = vmatprep.subr.bf16.mxu0 %v2790
      %2812 = vmatpush1.bf16.msra.mxu0 %v2789
      %2813 = vmatprep.subr.bf16.mxu0 %v2788
      %2814 = vmatpush1.bf16.msra.mxu0 %v2787
      %2815 = vmatprep.subr.bf16.mxu0 %v2786
      %2816 = vmatpush1.bf16.msra.mxu0 %v2785
      %2817 = vmatprep.subr.bf16.mxu0 %v2784
      %2818 = vmatpush1.bf16.msra.mxu0 %v2783
      %2819 = vmatprep.subr.bf16.mxu0 %v2782
      %2820 = vmatpush1.bf16.msra.mxu0 %v2781
      %2821 = vmatprep.subr.bf16.mxu0 %v2780
      %2822 = vmatpush1.bf16.msra.mxu0 %v2779
      %2823 = vmatprep.subr.bf16.mxu0 %v2778
      %2824 = vmatpush1.bf16.msra.mxu0 %v2777
      %2825 = vmatprep.subr.bf16.mxu0 %v2776
      %2826 = vmatpush1.bf16.msra.mxu0 %v2775
      %2827 = vmatprep.subr.bf16.mxu0 0
      %2828 = vmatpush2.bf16.msra.mxu0 0
      %2829 = vmatprep.subr.bf16.mxu0 0
      %2830 = vmatpush2.bf16.msra.mxu0 0
      %2831 = vmatprep.subr.bf16.mxu0 0
      %2832 = vmatpush2.bf16.msra.mxu0 0
      %2833 = vmatprep.subr.bf16.mxu0 0
      %2834 = vmatpush2.bf16.msra.mxu0 0
      %2835 = vmatprep.subr.bf16.mxu0 0
      %2836 = vmatpush2.bf16.msra.mxu0 0
      %2837 = vmatprep.subr.bf16.mxu0 0
      %2838 = vmatpush2.bf16.msra.mxu0 0
      %2839 = vmatprep.subr.bf16.mxu0 0
      %2840 = vmatpush2.bf16.msra.mxu0 0
      %2841 = vmatprep.subr.bf16.mxu0 %v2792
      %2842 = vmatpush2.bf16.msra.mxu0 %v2791
      %2843 = vmatprep.mubr.bf16.mxu0 %v330
      %2844 = vmatmul.mubr.bf16.gmra.mxu0 %v235
      %v2845 = vpop.f32.mrf.mxu0
      %v2846 = vadd.f32 0.0, %v2845
      %v2847 = vpop.f32.mrf.mxu0
      %v2848 = vadd.f32 0.0, %v2847
      %v2849 = vpop.f32.mrf.mxu0
      %v2850 = vadd.f32 0.0, %v2849
      %v2851 = vpop.f32.mrf.mxu0
      %v2852 = vadd.f32 0.0, %v2851
      %2853 = vdwg.mxu0
      %v2872 = vunpack.c.l.b16 %v2685
      %v2873 = vunpack.c.h.b16 %v2685
      %v2874 = vunpack.c.l.b16 %v2686
      %v2875 = vunpack.c.h.b16 %v2686
      %v2876 = vunpack.c.l.b16 %v2687
      %v2877 = vunpack.c.h.b16 %v2687
      %v2878 = vunpack.c.l.b16 %v2688
      %v2879 = vunpack.c.h.b16 %v2688
      %v2880 = vunpack.c.l.b16 %v2689
      %v2881 = vunpack.c.h.b16 %v2689
      %v2882 = vunpack.c.l.b16 %v2690
      %v2883 = vunpack.c.h.b16 %v2690
      %v2884 = vunpack.c.l.b16 %v2691
      %v2885 = vunpack.c.h.b16 %v2691
      %v2886 = vunpack.c.l.b16 %v2692
      %v2887 = vunpack.c.h.b16 %v2692
      %v2888 = vunpack.c.l.b16 %v2693
      %v2889 = vunpack.c.h.b16 %v2693
      %v2890 = vunpack.c.l.b16 %v2694
      %v2891 = vunpack.c.h.b16 %v2694
      %v2892 = vunpack.c.l.b16 %v2695
      %v2893 = vunpack.c.h.b16 %v2695
      %v2894 = vunpack.c.l.b16 %v2696
      %v2895 = vunpack.c.h.b16 %v2696
      %v2896 = vunpack.c.l.b16 %v2697
      %v2897 = vunpack.c.h.b16 %v2697
      %v2898 = vunpack.c.l.b16 %v2698
      %v2899 = vunpack.c.h.b16 %v2698
      %v2900 = vunpack.c.l.b16 %v2699
      %v2901 = vunpack.c.h.b16 %v2699
      %v2902 = vunpack.c.l.b16 %v2700
      %v2903 = vunpack.c.h.b16 %v2700
      %v2904 = vunpack.c.l.b16 %v2701
      %v2905 = vunpack.c.h.b16 %v2701
      %v2906 = vunpack.c.l.b16 %v2702
      %v2907 = vunpack.c.h.b16 %v2702
      %v2908 = vpack.c.b16 %v2874, %v2872
      %v2909 = vpack.c.b16 %v2875, %v2873
      %v2910 = vpack.c.b16 %v2878, %v2876
      %v2911 = vpack.c.b16 %v2879, %v2877
      %v2912 = vpack.c.b16 %v2882, %v2880
      %v2913 = vpack.c.b16 %v2883, %v2881
      %v2914 = vpack.c.b16 %v2886, %v2884
      %v2915 = vpack.c.b16 %v2887, %v2885
      %v2916 = vpack.c.b16 %v2890, %v2888
      %v2917 = vpack.c.b16 %v2891, %v2889
      %v2918 = vpack.c.b16 %v2894, %v2892
      %v2919 = vpack.c.b16 %v2895, %v2893
      %v2920 = vpack.c.b16 %v2898, %v2896
      %v2921 = vpack.c.b16 %v2899, %v2897
      %v2922 = vpack.c.b16 %v2902, %v2900
      %v2923 = vpack.c.b16 %v2903, %v2901
      %v2924 = vpack.c.b16 %v2906, %v2904
      %v2925 = vpack.c.b16 %v2907, %v2905
      %2944 = vmatprep.subr.bf16.mxu0 %v2923
      %2945 = vmatpush1.bf16.msra.mxu0 %v2922
      %2946 = vmatprep.subr.bf16.mxu0 %v2921
      %2947 = vmatpush1.bf16.msra.mxu0 %v2920
      %2948 = vmatprep.subr.bf16.mxu0 %v2919
      %2949 = vmatpush1.bf16.msra.mxu0 %v2918
      %2950 = vmatprep.subr.bf16.mxu0 %v2917
      %2951 = vmatpush1.bf16.msra.mxu0 %v2916
      %2952 = vmatprep.subr.bf16.mxu0 %v2915
      %2953 = vmatpush1.bf16.msra.mxu0 %v2914
      %2954 = vmatprep.subr.bf16.mxu0 %v2913
      %2955 = vmatpush1.bf16.msra.mxu0 %v2912
      %2956 = vmatprep.subr.bf16.mxu0 %v2911
      %2957 = vmatpush1.bf16.msra.mxu0 %v2910
      %2958 = vmatprep.subr.bf16.mxu0 %v2909
      %2959 = vmatpush1.bf16.msra.mxu0 %v2908
      %2960 = vmatprep.subr.bf16.mxu0 0
      %2961 = vmatpush2.bf16.msra.mxu0 0
      %2962 = vmatprep.subr.bf16.mxu0 0
      %2963 = vmatpush2.bf16.msra.mxu0 0
      %2964 = vmatprep.subr.bf16.mxu0 0
      %2965 = vmatpush2.bf16.msra.mxu0 0
      %2966 = vmatprep.subr.bf16.mxu0 0
      %2967 = vmatpush2.bf16.msra.mxu0 0
      %2968 = vmatprep.subr.bf16.mxu0 0
      %2969 = vmatpush2.bf16.msra.mxu0 0
      %2970 = vmatprep.subr.bf16.mxu0 0
      %2971 = vmatpush2.bf16.msra.mxu0 0
      %2972 = vmatprep.subr.bf16.mxu0 0
      %2973 = vmatpush2.bf16.msra.mxu0 0
      %2974 = vmatprep.subr.bf16.mxu0 %v2925
      %2975 = vmatpush2.bf16.msra.mxu0 %v2924
      %2976 = vmatprep.mubr.bf16.mxu0 %v475
      %2977 = vmatmul.mubr.bf16.gmra.mxu0 %v381
      %v2978 = vpop.f32.mrf.mxu0
      %v2979 = vadd.f32 %v2846, %v2978
      %v2980 = vpop.f32.mrf.mxu0
      %v2981 = vadd.f32 %v2848, %v2980
      %v2982 = vpop.f32.mrf.mxu0
      %v2983 = vadd.f32 %v2850, %v2982
      %v2984 = vpop.f32.mrf.mxu0
      %v2985 = vadd.f32 %v2852, %v2984
      %2986 = vdwg.mxu0
      %v2987 = vld [vmem:[%s173 + $0x38] sm:$0xff]
      %v2988 = vld [vmem:[%s173 + $0x88] sm:$0xff]
      %v2989 = vld [vmem:[%s173 + $0xd8] sm:$0xff]
      %v2990 = vld [vmem:[%s173 + $0x128] sm:$0xff]
      %v2991 = vld [vmem:[%s173 + $0x178] sm:$0xff]
      %v2992 = vld [vmem:[%s173 + $0x1c8] sm:$0xff]
      %v2993 = vld [vmem:[%s173 + $0x218] sm:$0xff]
      %v2994 = vld [vmem:[%s173 + $0x268] sm:$0xff]
      %v2995 = vld [vmem:[%s173 + $0x2b8] sm:$0xff]
      %v2996 = vld [vmem:[%s173 + $0x308] sm:$0xff]
      %v2997 = vld [vmem:[%s173 + $0x358] sm:$0xff]
      %v2998 = vld [vmem:[%s173 + $0x3a8] sm:$0xff]
      %v2999 = vld [vmem:[%s173 + $0x3f8] sm:$0xff]
      %v3000 = vld [vmem:[%s173 + $0x448] sm:$0xff]
      %v3001 = vld [vmem:[%s173 + $0x498] sm:$0xff]
      %v3002 = vld [vmem:[%s173 + $0x4e8] sm:$0xff]
      %v3003 = vld [vmem:[%s173 + $0x538] sm:$0xff]
      %v3004 = vld [vmem:[%s173 + $0x588] sm:$0xff]
      %v3023 = vunpack.c.l.b16 %v2987
      %v3024 = vunpack.c.h.b16 %v2987
      %v3025 = vunpack.c.l.b16 %v2988
      %v3026 = vunpack.c.h.b16 %v2988
      %v3027 = vunpack.c.l.b16 %v2989
      %v3028 = vunpack.c.h.b16 %v2989
      %v3029 = vunpack.c.l.b16 %v2990
      %v3030 = vunpack.c.h.b16 %v2990
      %v3031 = vunpack.c.l.b16 %v2991
      %v3032 = vunpack.c.h.b16 %v2991
      %v3033 = vunpack.c.l.b16 %v2992
      %v3034 = vunpack.c.h.b16 %v2992
      %v3035 = vunpack.c.l.b16 %v2993
      %v3036 = vunpack.c.h.b16 %v2993
      %v3037 = vunpack.c.l.b16 %v2994
      %v3038 = vunpack.c.h.b16 %v2994
      %v3039 = vunpack.c.l.b16 %v2995
      %v3040 = vunpack.c.h.b16 %v2995
      %v3041 = vunpack.c.l.b16 %v2996
      %v3042 = vunpack.c.h.b16 %v2996
      %v3043 = vunpack.c.l.b16 %v2997
      %v3044 = vunpack.c.h.b16 %v2997
      %v3045 = vunpack.c.l.b16 %v2998
      %v3046 = vunpack.c.h.b16 %v2998
      %v3047 = vunpack.c.l.b16 %v2999
      %v3048 = vunpack.c.h.b16 %v2999
      %v3049 = vunpack.c.l.b16 %v3000
      %v3050 = vunpack.c.h.b16 %v3000
      %v3051 = vunpack.c.l.b16 %v3001
      %v3052 = vunpack.c.h.b16 %v3001
      %v3053 = vunpack.c.l.b16 %v3002
      %v3054 = vunpack.c.h.b16 %v3002
      %v3055 = vunpack.c.l.b16 %v3003
      %v3056 = vunpack.c.h.b16 %v3003
      %v3057 = vunpack.c.l.b16 %v3004
      %v3058 = vunpack.c.h.b16 %v3004
      %v3059 = vpack.c.b16 %v3025, %v3023
      %v3060 = vpack.c.b16 %v3026, %v3024
      %v3061 = vpack.c.b16 %v3029, %v3027
      %v3062 = vpack.c.b16 %v3030, %v3028
      %v3063 = vpack.c.b16 %v3033, %v3031
      %v3064 = vpack.c.b16 %v3034, %v3032
      %v3065 = vpack.c.b16 %v3037, %v3035
      %v3066 = vpack.c.b16 %v3038, %v3036
      %v3067 = vpack.c.b16 %v3041, %v3039
      %v3068 = vpack.c.b16 %v3042, %v3040
      %v3069 = vpack.c.b16 %v3045, %v3043
      %v3070 = vpack.c.b16 %v3046, %v3044
      %v3071 = vpack.c.b16 %v3049, %v3047
      %v3072 = vpack.c.b16 %v3050, %v3048
      %v3073 = vpack.c.b16 %v3053, %v3051
      %v3074 = vpack.c.b16 %v3054, %v3052
      %v3075 = vpack.c.b16 %v3057, %v3055
      %v3076 = vpack.c.b16 %v3058, %v3056
      %3095 = vmatprep.subr.bf16.mxu0 %v3074
      %3096 = vmatpush1.bf16.msra.mxu0 %v3073
      %3097 = vmatprep.subr.bf16.mxu0 %v3072
      %3098 = vmatpush1.bf16.msra.mxu0 %v3071
      %3099 = vmatprep.subr.bf16.mxu0 %v3070
      %3100 = vmatpush1.bf16.msra.mxu0 %v3069
      %3101 = vmatprep.subr.bf16.mxu0 %v3068
      %3102 = vmatpush1.bf16.msra.mxu0 %v3067
      %3103 = vmatprep.subr.bf16.mxu0 %v3066
      %3104 = vmatpush1.bf16.msra.mxu0 %v3065
      %3105 = vmatprep.subr.bf16.mxu0 %v3064
      %3106 = vmatpush1.bf16.msra.mxu0 %v3063
      %3107 = vmatprep.subr.bf16.mxu0 %v3062
      %3108 = vmatpush1.bf16.msra.mxu0 %v3061
      %3109 = vmatprep.subr.bf16.mxu0 %v3060
      %3110 = vmatpush1.bf16.msra.mxu0 %v3059
      %3111 = vmatprep.subr.bf16.mxu0 0
      %3112 = vmatpush2.bf16.msra.mxu0 0
      %3113 = vmatprep.subr.bf16.mxu0 0
      %3114 = vmatpush2.bf16.msra.mxu0 0
      %3115 = vmatprep.subr.bf16.mxu0 0
      %3116 = vmatpush2.bf16.msra.mxu0 0
      %3117 = vmatprep.subr.bf16.mxu0 0
      %3118 = vmatpush2.bf16.msra.mxu0 0
      %3119 = vmatprep.subr.bf16.mxu0 0
      %3120 = vmatpush2.bf16.msra.mxu0 0
      %3121 = vmatprep.subr.bf16.mxu0 0
      %3122 = vmatpush2.bf16.msra.mxu0 0
      %3123 = vmatprep.subr.bf16.mxu0 0
      %3124 = vmatpush2.bf16.msra.mxu0 0
      %3125 = vmatprep.subr.bf16.mxu0 %v3076
      %3126 = vmatpush2.bf16.msra.mxu0 %v3075
      %3127 = vmatprep.mubr.bf16.mxu0 %v638
      %3128 = vmatmul.mubr.bf16.gmra.mxu0 %v544
      %v3129 = vpop.f32.mrf.mxu0
      %v3130 = vadd.f32 0.0, %v3129
      %v3131 = vpop.f32.mrf.mxu0
      %v3132 = vadd.f32 0.0, %v3131
      %v3133 = vpop.f32.mrf.mxu0
      %v3134 = vadd.f32 0.0, %v3133
      %v3135 = vpop.f32.mrf.mxu0
      %v3136 = vadd.f32 0.0, %v3135
      %3137 = vdwg.mxu0
      %v3138 = vadd.f32 %v2979, %v3130
      %v3139 = vadd.f32 %v2981, %v3132
      %v3140 = vadd.f32 %v2983, %v3134
      %v3141 = vadd.f32 %v2985, %v3136
      %v3142 = vpack.c.bf16 %v3140, %v3138
      %v3143 = vpack.c.bf16 %v3141, %v3139
      %v3146 = vunpack.c.l.b16 %v3142
      %v3147 = vunpack.c.l.b16 %v3143
      %v3148 = vunpack.c.h.b16 %v3142
      %v3149 = vunpack.c.h.b16 %v3143
      %v3150 = vpack.c.b16 %v3147, %v3146
      %v3151 = vpack.c.b16 %v3149, %v3148
      %3154 = vst [vmem:[%s178 + $0x28] sm:$0xff] %v3150
      %3155 = vst [vmem:[%s178 + $0x68] sm:$0xff] %v3151
      %v3156 = vadd.f32 %v3138, %v3139
      %3157 = vadd.xlane.f32.xlu0 %v3156
      %v3158 = vpop.xlane.xlu0 %3157
      %v3159 = vadd.f32 %v3140, %v3141
      %3160 = vadd.xlane.f32.xlu0 %v3159
      %v3161 = vpop.xlane.xlu0 %3160
      %v3162 = vadd.f32 %v2671, %v3158
      %v3163 = vadd.f32 %v2672, %v3161
      %v3164 = vmul.f32 %v3138, %v3138
      %v3165 = vmul.f32 %v3139, %v3139
      %v3166 = vmul.f32 %v3140, %v3140
      %v3167 = vmul.f32 %v3141, %v3141
      %v3168 = vadd.f32 %v3164, %v3165
      %3169 = vadd.xlane.f32.xlu0 %v3168
      %v3170 = vpop.xlane.xlu0 %3169
      %v3171 = vadd.f32 %v3166, %v3167
      %3172 = vadd.xlane.f32.xlu0 %v3171
      %v3173 = vpop.xlane.xlu0 %3172
      %v3174 = vadd.f32 %v2683, %v3170
      %v3175 = vadd.f32 %v2684, %v3173
      %v3176 = vld [vmem:[%s173 + $0x30] sm:$0xff]
      %v3177 = vld [vmem:[%s173 + $0x80] sm:$0xff]
      %v3178 = vld [vmem:[%s173 + $0xd0] sm:$0xff]
      %v3179 = vld [vmem:[%s173 + $0x120] sm:$0xff]
      %v3180 = vld [vmem:[%s173 + $0x170] sm:$0xff]
      %v3181 = vld [vmem:[%s173 + $0x1c0] sm:$0xff]
      %v3182 = vld [vmem:[%s173 + $0x210] sm:$0xff]
      %v3183 = vld [vmem:[%s173 + $0x260] sm:$0xff]
      %v3184 = vld [vmem:[%s173 + $0x2b0] sm:$0xff]
      %v3185 = vld [vmem:[%s173 + $0x300] sm:$0xff]
      %v3186 = vld [vmem:[%s173 + $0x350] sm:$0xff]
      %v3187 = vld [vmem:[%s173 + $0x3a0] sm:$0xff]
      %v3188 = vld [vmem:[%s173 + $0x3f0] sm:$0xff]
      %v3189 = vld [vmem:[%s173 + $0x440] sm:$0xff]
      %v3190 = vld [vmem:[%s173 + $0x490] sm:$0xff]
      %v3191 = vld [vmem:[%s173 + $0x4e0] sm:$0xff]
      %v3192 = vld [vmem:[%s173 + $0x530] sm:$0xff]
      %v3193 = vld [vmem:[%s173 + $0x580] sm:$0xff]
      %v3194 = vld [vmem:[%s173 + $0x38] sm:$0xff]
      %v3195 = vld [vmem:[%s173 + $0x88] sm:$0xff]
      %v3196 = vld [vmem:[%s173 + $0xd8] sm:$0xff]
      %v3197 = vld [vmem:[%s173 + $0x128] sm:$0xff]
      %v3198 = vld [vmem:[%s173 + $0x178] sm:$0xff]
      %v3199 = vld [vmem:[%s173 + $0x1c8] sm:$0xff]
      %v3200 = vld [vmem:[%s173 + $0x218] sm:$0xff]
      %v3201 = vld [vmem:[%s173 + $0x268] sm:$0xff]
      %v3202 = vld [vmem:[%s173 + $0x2b8] sm:$0xff]
      %v3203 = vld [vmem:[%s173 + $0x308] sm:$0xff]
      %v3204 = vld [vmem:[%s173 + $0x358] sm:$0xff]
      %v3205 = vld [vmem:[%s173 + $0x3a8] sm:$0xff]
      %v3206 = vld [vmem:[%s173 + $0x3f8] sm:$0xff]
      %v3207 = vld [vmem:[%s173 + $0x448] sm:$0xff]
      %v3208 = vld [vmem:[%s173 + $0x498] sm:$0xff]
      %v3209 = vld [vmem:[%s173 + $0x4e8] sm:$0xff]
      %v3210 = vld [vmem:[%s173 + $0x538] sm:$0xff]
      %v3211 = vld [vmem:[%s173 + $0x588] sm:$0xff]
      %v3230 = vunpack.c.l.b16 %v3194
      %v3231 = vunpack.c.h.b16 %v3194
      %v3232 = vunpack.c.l.b16 %v3195
      %v3233 = vunpack.c.h.b16 %v3195
      %v3234 = vunpack.c.l.b16 %v3196
      %v3235 = vunpack.c.h.b16 %v3196
      %v3236 = vunpack.c.l.b16 %v3197
      %v3237 = vunpack.c.h.b16 %v3197
      %v3238 = vunpack.c.l.b16 %v3198
      %v3239 = vunpack.c.h.b16 %v3198
      %v3240 = vunpack.c.l.b16 %v3199
      %v3241 = vunpack.c.h.b16 %v3199
      %v3242 = vunpack.c.l.b16 %v3200
      %v3243 = vunpack.c.h.b16 %v3200
      %v3244 = vunpack.c.l.b16 %v3201
      %v3245 = vunpack.c.h.b16 %v3201
      %v3246 = vunpack.c.l.b16 %v3202
      %v3247 = vunpack.c.h.b16 %v3202
      %v3248 = vunpack.c.l.b16 %v3203
      %v3249 = vunpack.c.h.b16 %v3203
      %v3250 = vunpack.c.l.b16 %v3204
      %v3251 = vunpack.c.h.b16 %v3204
      %v3252 = vunpack.c.l.b16 %v3205
      %v3253 = vunpack.c.h.b16 %v3205
      %v3254 = vunpack.c.l.b16 %v3206
      %v3255 = vunpack.c.h.b16 %v3206
      %v3256 = vunpack.c.l.b16 %v3207
      %v3257 = vunpack.c.h.b16 %v3207
      %v3258 = vunpack.c.l.b16 %v3208
      %v3259 = vunpack.c.h.b16 %v3208
      %v3260 = vunpack.c.l.b16 %v3209
      %v3261 = vunpack.c.h.b16 %v3209
      %v3262 = vunpack.c.l.b16 %v3210
      %v3263 = vunpack.c.h.b16 %v3210
      %v3264 = vunpack.c.l.b16 %v3211
      %v3265 = vunpack.c.h.b16 %v3211
      %v3266 = vpack.c.b16 %v3232, %v3230
      %v3267 = vpack.c.b16 %v3233, %v3231
      %v3268 = vpack.c.b16 %v3236, %v3234
      %v3269 = vpack.c.b16 %v3237, %v3235
      %v3270 = vpack.c.b16 %v3240, %v3238
      %v3271 = vpack.c.b16 %v3241, %v3239
      %v3272 = vpack.c.b16 %v3244, %v3242
      %v3273 = vpack.c.b16 %v3245, %v3243
      %v3274 = vpack.c.b16 %v3248, %v3246
      %v3275 = vpack.c.b16 %v3249, %v3247
      %v3276 = vpack.c.b16 %v3252, %v3250
      %v3277 = vpack.c.b16 %v3253, %v3251
      %v3278 = vpack.c.b16 %v3256, %v3254
      %v3279 = vpack.c.b16 %v3257, %v3255
      %v3280 = vpack.c.b16 %v3260, %v3258
      %v3281 = vpack.c.b16 %v3261, %v3259
      %v3282 = vpack.c.b16 %v3264, %v3262
      %v3283 = vpack.c.b16 %v3265, %v3263
      %3302 = vmatprep.subr.bf16.mxu0 %v3281
      %3303 = vmatpush1.bf16.msra.mxu0 %v3280
      %3304 = vmatprep.subr.bf16.mxu0 %v3279
      %3305 = vmatpush1.bf16.msra.mxu0 %v3278
      %3306 = vmatprep.subr.bf16.mxu0 %v3277
      %3307 = vmatpush1.bf16.msra.mxu0 %v3276
      %3308 = vmatprep.subr.bf16.mxu0 %v3275
      %3309 = vmatpush1.bf16.msra.mxu0 %v3274
      %3310 = vmatprep.subr.bf16.mxu0 %v3273
      %3311 = vmatpush1.bf16.msra.mxu0 %v3272
      %3312 = vmatprep.subr.bf16.mxu0 %v3271
      %3313 = vmatpush1.bf16.msra.mxu0 %v3270
      %3314 = vmatprep.subr.bf16.mxu0 %v3269
      %3315 = vmatpush1.bf16.msra.mxu0 %v3268
      %3316 = vmatprep.subr.bf16.mxu0 %v3267
      %3317 = vmatpush1.bf16.msra.mxu0 %v3266
      %3318 = vmatprep.subr.bf16.mxu0 0
      %3319 = vmatpush2.bf16.msra.mxu0 0
      %3320 = vmatprep.subr.bf16.mxu0 0
      %3321 = vmatpush2.bf16.msra.mxu0 0
      %3322 = vmatprep.subr.bf16.mxu0 0
      %3323 = vmatpush2.bf16.msra.mxu0 0
      %3324 = vmatprep.subr.bf16.mxu0 0
      %3325 = vmatpush2.bf16.msra.mxu0 0
      %3326 = vmatprep.subr.bf16.mxu0 0
      %3327 = vmatpush2.bf16.msra.mxu0 0
      %3328 = vmatprep.subr.bf16.mxu0 0
      %3329 = vmatpush2.bf16.msra.mxu0 0
      %3330 = vmatprep.subr.bf16.mxu0 0
      %3331 = vmatpush2.bf16.msra.mxu0 0
      %3332 = vmatprep.subr.bf16.mxu0 %v3283
      %3333 = vmatpush2.bf16.msra.mxu0 %v3282
      %3334 = vmatprep.mubr.bf16.mxu0 %v330
      %3335 = vmatmul.mubr.bf16.gmra.mxu0 %v235
      %v3336 = vpop.f32.mrf.mxu0
      %v3337 = vadd.f32 0.0, %v3336
      %v3338 = vpop.f32.mrf.mxu0
      %v3339 = vadd.f32 0.0, %v3338
      %v3340 = vpop.f32.mrf.mxu0
      %v3341 = vadd.f32 0.0, %v3340
      %v3342 = vpop.f32.mrf.mxu0
      %v3343 = vadd.f32 0.0, %v3342
      %3344 = vdwg.mxu0
      %v3363 = vunpack.c.l.b16 %v3176
      %v3364 = vunpack.c.h.b16 %v3176
      %v3365 = vunpack.c.l.b16 %v3177
      %v3366 = vunpack.c.h.b16 %v3177
      %v3367 = vunpack.c.l.b16 %v3178
      %v3368 = vunpack.c.h.b16 %v3178
      %v3369 = vunpack.c.l.b16 %v3179
      %v3370 = vunpack.c.h.b16 %v3179
      %v3371 = vunpack.c.l.b16 %v3180
      %v3372 = vunpack.c.h.b16 %v3180
      %v3373 = vunpack.c.l.b16 %v3181
      %v3374 = vunpack.c.h.b16 %v3181
      %v3375 = vunpack.c.l.b16 %v3182
      %v3376 = vunpack.c.h.b16 %v3182
      %v3377 = vunpack.c.l.b16 %v3183
      %v3378 = vunpack.c.h.b16 %v3183
      %v3379 = vunpack.c.l.b16 %v3184
      %v3380 = vunpack.c.h.b16 %v3184
      %v3381 = vunpack.c.l.b16 %v3185
      %v3382 = vunpack.c.h.b16 %v3185
      %v3383 = vunpack.c.l.b16 %v3186
      %v3384 = vunpack.c.h.b16 %v3186
      %v3385 = vunpack.c.l.b16 %v3187
      %v3386 = vunpack.c.h.b16 %v3187
      %v3387 = vunpack.c.l.b16 %v3188
      %v3388 = vunpack.c.h.b16 %v3188
      %v3389 = vunpack.c.l.b16 %v3189
      %v3390 = vunpack.c.h.b16 %v3189
      %v3391 = vunpack.c.l.b16 %v3190
      %v3392 = vunpack.c.h.b16 %v3190
      %v3393 = vunpack.c.l.b16 %v3191
      %v3394 = vunpack.c.h.b16 %v3191
      %v3395 = vunpack.c.l.b16 %v3192
      %v3396 = vunpack.c.h.b16 %v3192
      %v3397 = vunpack.c.l.b16 %v3193
      %v3398 = vunpack.c.h.b16 %v3193
      %v3399 = vpack.c.b16 %v3365, %v3363
      %v3400 = vpack.c.b16 %v3366, %v3364
      %v3401 = vpack.c.b16 %v3369, %v3367
      %v3402 = vpack.c.b16 %v3370, %v3368
      %v3403 = vpack.c.b16 %v3373, %v3371
      %v3404 = vpack.c.b16 %v3374, %v3372
      %v3405 = vpack.c.b16 %v3377, %v3375
      %v3406 = vpack.c.b16 %v3378, %v3376
      %v3407 = vpack.c.b16 %v3381, %v3379
      %v3408 = vpack.c.b16 %v3382, %v3380
      %v3409 = vpack.c.b16 %v3385, %v3383
      %v3410 = vpack.c.b16 %v3386, %v3384
      %v3411 = vpack.c.b16 %v3389, %v3387
      %v3412 = vpack.c.b16 %v3390, %v3388
      %v3413 = vpack.c.b16 %v3393, %v3391
      %v3414 = vpack.c.b16 %v3394, %v3392
      %v3415 = vpack.c.b16 %v3397, %v3395
      %v3416 = vpack.c.b16 %v3398, %v3396
      %3435 = vmatprep.subr.bf16.mxu0 %v3414
      %3436 = vmatpush1.bf16.msra.mxu0 %v3413
      %3437 = vmatprep.subr.bf16.mxu0 %v3412
      %3438 = vmatpush1.bf16.msra.mxu0 %v3411
      %3439 = vmatprep.subr.bf16.mxu0 %v3410
      %3440 = vmatpush1.bf16.msra.mxu0 %v3409
      %3441 = vmatprep.subr.bf16.mxu0 %v3408
      %3442 = vmatpush1.bf16.msra.mxu0 %v3407
      %3443 = vmatprep.subr.bf16.mxu0 %v3406
      %3444 = vmatpush1.bf16.msra.mxu0 %v3405
      %3445 = vmatprep.subr.bf16.mxu0 %v3404
      %3446 = vmatpush1.bf16.msra.mxu0 %v3403
      %3447 = vmatprep.subr.bf16.mxu0 %v3402
      %3448 = vmatpush1.bf16.msra.mxu0 %v3401
      %3449 = vmatprep.subr.bf16.mxu0 %v3400
      %3450 = vmatpush1.bf16.msra.mxu0 %v3399
      %3451 = vmatprep.subr.bf16.mxu0 0
      %3452 = vmatpush2.bf16.msra.mxu0 0
      %3453 = vmatprep.subr.bf16.mxu0 0
      %3454 = vmatpush2.bf16.msra.mxu0 0
      %3455 = vmatprep.subr.bf16.mxu0 0
      %3456 = vmatpush2.bf16.msra.mxu0 0
      %3457 = vmatprep.subr.bf16.mxu0 0
      %3458 = vmatpush2.bf16.msra.mxu0 0
      %3459 = vmatprep.subr.bf16.mxu0 0
      %3460 = vmatpush2.bf16.msra.mxu0 0
      %3461 = vmatprep.subr.bf16.mxu0 0
      %3462 = vmatpush2.bf16.msra.mxu0 0
      %3463 = vmatprep.subr.bf16.mxu0 0
      %3464 = vmatpush2.bf16.msra.mxu0 0
      %3465 = vmatprep.subr.bf16.mxu0 %v3416
      %3466 = vmatpush2.bf16.msra.mxu0 %v3415
      %3467 = vmatprep.mubr.bf16.mxu0 %v475
      %3468 = vmatmul.mubr.bf16.gmra.mxu0 %v381
      %v3469 = vpop.f32.mrf.mxu0
      %v3470 = vadd.f32 %v3337, %v3469
      %v3471 = vpop.f32.mrf.mxu0
      %v3472 = vadd.f32 %v3339, %v3471
      %v3473 = vpop.f32.mrf.mxu0
      %v3474 = vadd.f32 %v3341, %v3473
      %v3475 = vpop.f32.mrf.mxu0
      %v3476 = vadd.f32 %v3343, %v3475
      %3477 = vdwg.mxu0
      %v3478 = vld [vmem:[%s173 + $0x40] sm:$0xff]
      %v3479 = vld [vmem:[%s173 + $0x90] sm:$0xff]
      %v3480 = vld [vmem:[%s173 + $0xe0] sm:$0xff]
      %v3481 = vld [vmem:[%s173 + $0x130] sm:$0xff]
      %v3482 = vld [vmem:[%s173 + $0x180] sm:$0xff]
      %v3483 = vld [vmem:[%s173 + $0x1d0] sm:$0xff]
      %v3484 = vld [vmem:[%s173 + $0x220] sm:$0xff]
      %v3485 = vld [vmem:[%s173 + $0x270] sm:$0xff]
      %v3486 = vld [vmem:[%s173 + $0x2c0] sm:$0xff]
      %v3487 = vld [vmem:[%s173 + $0x310] sm:$0xff]
      %v3488 = vld [vmem:[%s173 + $0x360] sm:$0xff]
      %v3489 = vld [vmem:[%s173 + $0x3b0] sm:$0xff]
      %v3490 = vld [vmem:[%s173 + $0x400] sm:$0xff]
      %v3491 = vld [vmem:[%s173 + $0x450] sm:$0xff]
      %v3492 = vld [vmem:[%s173 + $0x4a0] sm:$0xff]
      %v3493 = vld [vmem:[%s173 + $0x4f0] sm:$0xff]
      %v3494 = vld [vmem:[%s173 + $0x540] sm:$0xff]
      %v3495 = vld [vmem:[%s173 + $0x590] sm:$0xff]
      %v3514 = vunpack.c.l.b16 %v3478
      %v3515 = vunpack.c.h.b16 %v3478
      %v3516 = vunpack.c.l.b16 %v3479
      %v3517 = vunpack.c.h.b16 %v3479
      %v3518 = vunpack.c.l.b16 %v3480
      %v3519 = vunpack.c.h.b16 %v3480
      %v3520 = vunpack.c.l.b16 %v3481
      %v3521 = vunpack.c.h.b16 %v3481
      %v3522 = vunpack.c.l.b16 %v3482
      %v3523 = vunpack.c.h.b16 %v3482
      %v3524 = vunpack.c.l.b16 %v3483
      %v3525 = vunpack.c.h.b16 %v3483
      %v3526 = vunpack.c.l.b16 %v3484
      %v3527 = vunpack.c.h.b16 %v3484
      %v3528 = vunpack.c.l.b16 %v3485
      %v3529 = vunpack.c.h.b16 %v3485
      %v3530 = vunpack.c.l.b16 %v3486
      %v3531 = vunpack.c.h.b16 %v3486
      %v3532 = vunpack.c.l.b16 %v3487
      %v3533 = vunpack.c.h.b16 %v3487
      %v3534 = vunpack.c.l.b16 %v3488
      %v3535 = vunpack.c.h.b16 %v3488
      %v3536 = vunpack.c.l.b16 %v3489
      %v3537 = vunpack.c.h.b16 %v3489
      %v3538 = vunpack.c.l.b16 %v3490
      %v3539 = vunpack.c.h.b16 %v3490
      %v3540 = vunpack.c.l.b16 %v3491
      %v3541 = vunpack.c.h.b16 %v3491
      %v3542 = vunpack.c.l.b16 %v3492
      %v3543 = vunpack.c.h.b16 %v3492
      %v3544 = vunpack.c.l.b16 %v3493
      %v3545 = vunpack.c.h.b16 %v3493
      %v3546 = vunpack.c.l.b16 %v3494
      %v3547 = vunpack.c.h.b16 %v3494
      %v3548 = vunpack.c.l.b16 %v3495
      %v3549 = vunpack.c.h.b16 %v3495
      %v3550 = vpack.c.b16 %v3516, %v3514
      %v3551 = vpack.c.b16 %v3517, %v3515
      %v3552 = vpack.c.b16 %v3520, %v3518
      %v3553 = vpack.c.b16 %v3521, %v3519
      %v3554 = vpack.c.b16 %v3524, %v3522
      %v3555 = vpack.c.b16 %v3525, %v3523
      %v3556 = vpack.c.b16 %v3528, %v3526
      %v3557 = vpack.c.b16 %v3529, %v3527
      %v3558 = vpack.c.b16 %v3532, %v3530
      %v3559 = vpack.c.b16 %v3533, %v3531
      %v3560 = vpack.c.b16 %v3536, %v3534
      %v3561 = vpack.c.b16 %v3537, %v3535
      %v3562 = vpack.c.b16 %v3540, %v3538
      %v3563 = vpack.c.b16 %v3541, %v3539
      %v3564 = vpack.c.b16 %v3544, %v3542
      %v3565 = vpack.c.b16 %v3545, %v3543
      %v3566 = vpack.c.b16 %v3548, %v3546
      %v3567 = vpack.c.b16 %v3549, %v3547
      %3586 = vmatprep.subr.bf16.mxu0 %v3565
      %3587 = vmatpush1.bf16.msra.mxu0 %v3564
      %3588 = vmatprep.subr.bf16.mxu0 %v3563
      %3589 = vmatpush1.bf16.msra.mxu0 %v3562
      %3590 = vmatprep.subr.bf16.mxu0 %v3561
      %3591 = vmatpush1.bf16.msra.mxu0 %v3560
      %3592 = vmatprep.subr.bf16.mxu0 %v3559
      %3593 = vmatpush1.bf16.msra.mxu0 %v3558
      %3594 = vmatprep.subr.bf16.mxu0 %v3557
      %3595 = vmatpush1.bf16.msra.mxu0 %v3556
      %3596 = vmatprep.subr.bf16.mxu0 %v3555
      %3597 = vmatpush1.bf16.msra.mxu0 %v3554
      %3598 = vmatprep.subr.bf16.mxu0 %v3553
      %3599 = vmatpush1.bf16.msra.mxu0 %v3552
      %3600 = vmatprep.subr.bf16.mxu0 %v3551
      %3601 = vmatpush1.bf16.msra.mxu0 %v3550
      %3602 = vmatprep.subr.bf16.mxu0 0
      %3603 = vmatpush2.bf16.msra.mxu0 0
      %3604 = vmatprep.subr.bf16.mxu0 0
      %3605 = vmatpush2.bf16.msra.mxu0 0
      %3606 = vmatprep.subr.bf16.mxu0 0
      %3607 = vmatpush2.bf16.msra.mxu0 0
      %3608 = vmatprep.subr.bf16.mxu0 0
      %3609 = vmatpush2.bf16.msra.mxu0 0
      %3610 = vmatprep.subr.bf16.mxu0 0
      %3611 = vmatpush2.bf16.msra.mxu0 0
      %3612 = vmatprep.subr.bf16.mxu0 0
      %3613 = vmatpush2.bf16.msra.mxu0 0
      %3614 = vmatprep.subr.bf16.mxu0 0
      %3615 = vmatpush2.bf16.msra.mxu0 0
      %3616 = vmatprep.subr.bf16.mxu0 %v3567
      %3617 = vmatpush2.bf16.msra.mxu0 %v3566
      %3618 = vmatprep.mubr.bf16.mxu0 %v638
      %3619 = vmatmul.mubr.bf16.gmra.mxu0 %v544
      %v3620 = vpop.f32.mrf.mxu0
      %v3621 = vadd.f32 0.0, %v3620
      %v3622 = vpop.f32.mrf.mxu0
      %v3623 = vadd.f32 0.0, %v3622
      %v3624 = vpop.f32.mrf.mxu0
      %v3625 = vadd.f32 0.0, %v3624
      %v3626 = vpop.f32.mrf.mxu0
      %v3627 = vadd.f32 0.0, %v3626
      %3628 = vdwg.mxu0
      %v3629 = vadd.f32 %v3470, %v3621
      %v3630 = vadd.f32 %v3472, %v3623
      %v3631 = vadd.f32 %v3474, %v3625
      %v3632 = vadd.f32 %v3476, %v3627
      %v3633 = vpack.c.bf16 %v3631, %v3629
      %v3634 = vpack.c.bf16 %v3632, %v3630
      %v3637 = vunpack.c.l.b16 %v3633
      %v3638 = vunpack.c.l.b16 %v3634
      %v3639 = vunpack.c.h.b16 %v3633
      %v3640 = vunpack.c.h.b16 %v3634
      %v3641 = vpack.c.b16 %v3638, %v3637
      %v3642 = vpack.c.b16 %v3640, %v3639
      %3645 = vst [vmem:[%s178 + $0x30] sm:$0xff] %v3641
      %3646 = vst [vmem:[%s178 + $0x70] sm:$0xff] %v3642
      %v3647 = vadd.f32 %v3629, %v3630
      %3648 = vadd.xlane.f32.xlu0 %v3647
      %v3649 = vpop.xlane.xlu0 %3648
      %v3650 = vadd.f32 %v3631, %v3632
      %3651 = vadd.xlane.f32.xlu0 %v3650
      %v3652 = vpop.xlane.xlu0 %3651
      %v3653 = vadd.f32 %v3162, %v3649
      %v3654 = vadd.f32 %v3163, %v3652
      %v3655 = vmul.f32 %v3629, %v3629
      %v3656 = vmul.f32 %v3630, %v3630
      %v3657 = vmul.f32 %v3631, %v3631
      %v3658 = vmul.f32 %v3632, %v3632
      %v3659 = vadd.f32 %v3655, %v3656
      %3660 = vadd.xlane.f32.xlu0 %v3659
      %v3661 = vpop.xlane.xlu0 %3660
      %v3662 = vadd.f32 %v3657, %v3658
      %3663 = vadd.xlane.f32.xlu0 %v3662
      %v3664 = vpop.xlane.xlu0 %3663
      %v3665 = vadd.f32 %v3174, %v3661
      %v3666 = vadd.f32 %v3175, %v3664
      %v3667 = vld [vmem:[%s173 + $0x38] sm:$0xff]
      %v3668 = vld [vmem:[%s173 + $0x88] sm:$0xff]
      %v3669 = vld [vmem:[%s173 + $0xd8] sm:$0xff]
      %v3670 = vld [vmem:[%s173 + $0x128] sm:$0xff]
      %v3671 = vld [vmem:[%s173 + $0x178] sm:$0xff]
      %v3672 = vld [vmem:[%s173 + $0x1c8] sm:$0xff]
      %v3673 = vld [vmem:[%s173 + $0x218] sm:$0xff]
      %v3674 = vld [vmem:[%s173 + $0x268] sm:$0xff]
      %v3675 = vld [vmem:[%s173 + $0x2b8] sm:$0xff]
      %v3676 = vld [vmem:[%s173 + $0x308] sm:$0xff]
      %v3677 = vld [vmem:[%s173 + $0x358] sm:$0xff]
      %v3678 = vld [vmem:[%s173 + $0x3a8] sm:$0xff]
      %v3679 = vld [vmem:[%s173 + $0x3f8] sm:$0xff]
      %v3680 = vld [vmem:[%s173 + $0x448] sm:$0xff]
      %v3681 = vld [vmem:[%s173 + $0x498] sm:$0xff]
      %v3682 = vld [vmem:[%s173 + $0x4e8] sm:$0xff]
      %v3683 = vld [vmem:[%s173 + $0x538] sm:$0xff]
      %v3684 = vld [vmem:[%s173 + $0x588] sm:$0xff]
      %v3685 = vld [vmem:[%s173 + $0x40] sm:$0xff]
      %v3686 = vld [vmem:[%s173 + $0x90] sm:$0xff]
      %v3687 = vld [vmem:[%s173 + $0xe0] sm:$0xff]
      %v3688 = vld [vmem:[%s173 + $0x130] sm:$0xff]
      %v3689 = vld [vmem:[%s173 + $0x180] sm:$0xff]
      %v3690 = vld [vmem:[%s173 + $0x1d0] sm:$0xff]
      %v3691 = vld [vmem:[%s173 + $0x220] sm:$0xff]
      %v3692 = vld [vmem:[%s173 + $0x270] sm:$0xff]
      %v3693 = vld [vmem:[%s173 + $0x2c0] sm:$0xff]
      %v3694 = vld [vmem:[%s173 + $0x310] sm:$0xff]
      %v3695 = vld [vmem:[%s173 + $0x360] sm:$0xff]
      %v3696 = vld [vmem:[%s173 + $0x3b0] sm:$0xff]
      %v3697 = vld [vmem:[%s173 + $0x400] sm:$0xff]
      %v3698 = vld [vmem:[%s173 + $0x450] sm:$0xff]
      %v3699 = vld [vmem:[%s173 + $0x4a0] sm:$0xff]
      %v3700 = vld [vmem:[%s173 + $0x4f0] sm:$0xff]
      %v3701 = vld [vmem:[%s173 + $0x540] sm:$0xff]
      %v3702 = vld [vmem:[%s173 + $0x590] sm:$0xff]
      %v3721 = vunpack.c.l.b16 %v3685
      %v3722 = vunpack.c.h.b16 %v3685
      %v3723 = vunpack.c.l.b16 %v3686
      %v3724 = vunpack.c.h.b16 %v3686
      %v3725 = vunpack.c.l.b16 %v3687
      %v3726 = vunpack.c.h.b16 %v3687
      %v3727 = vunpack.c.l.b16 %v3688
      %v3728 = vunpack.c.h.b16 %v3688
      %v3729 = vunpack.c.l.b16 %v3689
      %v3730 = vunpack.c.h.b16 %v3689
      %v3731 = vunpack.c.l.b16 %v3690
      %v3732 = vunpack.c.h.b16 %v3690
      %v3733 = vunpack.c.l.b16 %v3691
      %v3734 = vunpack.c.h.b16 %v3691
      %v3735 = vunpack.c.l.b16 %v3692
      %v3736 = vunpack.c.h.b16 %v3692
      %v3737 = vunpack.c.l.b16 %v3693
      %v3738 = vunpack.c.h.b16 %v3693
      %v3739 = vunpack.c.l.b16 %v3694
      %v3740 = vunpack.c.h.b16 %v3694
      %v3741 = vunpack.c.l.b16 %v3695
      %v3742 = vunpack.c.h.b16 %v3695
      %v3743 = vunpack.c.l.b16 %v3696
      %v3744 = vunpack.c.h.b16 %v3696
      %v3745 = vunpack.c.l.b16 %v3697
      %v3746 = vunpack.c.h.b16 %v3697
      %v3747 = vunpack.c.l.b16 %v3698
      %v3748 = vunpack.c.h.b16 %v3698
      %v3749 = vunpack.c.l.b16 %v3699
      %v3750 = vunpack.c.h.b16 %v3699
      %v3751 = vunpack.c.l.b16 %v3700
      %v3752 = vunpack.c.h.b16 %v3700
      %v3753 = vunpack.c.l.b16 %v3701
      %v3754 = vunpack.c.h.b16 %v3701
      %v3755 = vunpack.c.l.b16 %v3702
      %v3756 = vunpack.c.h.b16 %v3702
      %v3757 = vpack.c.b16 %v3723, %v3721
      %v3758 = vpack.c.b16 %v3724, %v3722
      %v3759 = vpack.c.b16 %v3727, %v3725
      %v3760 = vpack.c.b16 %v3728, %v3726
      %v3761 = vpack.c.b16 %v3731, %v3729
      %v3762 = vpack.c.b16 %v3732, %v3730
      %v3763 = vpack.c.b16 %v3735, %v3733
      %v3764 = vpack.c.b16 %v3736, %v3734
      %v3765 = vpack.c.b16 %v3739, %v3737
      %v3766 = vpack.c.b16 %v3740, %v3738
      %v3767 = vpack.c.b16 %v3743, %v3741
      %v3768 = vpack.c.b16 %v3744, %v3742
      %v3769 = vpack.c.b16 %v3747, %v3745
      %v3770 = vpack.c.b16 %v3748, %v3746
      %v3771 = vpack.c.b16 %v3751, %v3749
      %v3772 = vpack.c.b16 %v3752, %v3750
      %v3773 = vpack.c.b16 %v3755, %v3753
      %v3774 = vpack.c.b16 %v3756, %v3754
      %3793 = vmatprep.subr.bf16.mxu0 %v3772
      %3794 = vmatpush1.bf16.msra.mxu0 %v3771
      %3795 = vmatprep.subr.bf16.mxu0 %v3770
      %3796 = vmatpush1.bf16.msra.mxu0 %v3769
      %3797 = vmatprep.subr.bf16.mxu0 %v3768
      %3798 = vmatpush1.bf16.msra.mxu0 %v3767
      %3799 = vmatprep.subr.bf16.mxu0 %v3766
      %3800 = vmatpush1.bf16.msra.mxu0 %v3765
      %3801 = vmatprep.subr.bf16.mxu0 %v3764
      %3802 = vmatpush1.bf16.msra.mxu0 %v3763
      %3803 = vmatprep.subr.bf16.mxu0 %v3762
      %3804 = vmatpush1.bf16.msra.mxu0 %v3761
      %3805 = vmatprep.subr.bf16.mxu0 %v3760
      %3806 = vmatpush1.bf16.msra.mxu0 %v3759
      %3807 = vmatprep.subr.bf16.mxu0 %v3758
      %3808 = vmatpush1.bf16.msra.mxu0 %v3757
      %3809 = vmatprep.subr.bf16.mxu0 0
      %3810 = vmatpush2.bf16.msra.mxu0 0
      %3811 = vmatprep.subr.bf16.mxu0 0
      %3812 = vmatpush2.bf16.msra.mxu0 0
      %3813 = vmatprep.subr.bf16.mxu0 0
      %3814 = vmatpush2.bf16.msra.mxu0 0
      %3815 = vmatprep.subr.bf16.mxu0 0
      %3816 = vmatpush2.bf16.msra.mxu0 0
      %3817 = vmatprep.subr.bf16.mxu0 0
      %3818 = vmatpush2.bf16.msra.mxu0 0
      %3819 = vmatprep.subr.bf16.mxu0 0
      %3820 = vmatpush2.bf16.msra.mxu0 0
      %3821 = vmatprep.subr.bf16.mxu0 0
      %3822 = vmatpush2.bf16.msra.mxu0 0
      %3823 = vmatprep.subr.bf16.mxu0 %v3774
      %3824 = vmatpush2.bf16.msra.mxu0 %v3773
      %3825 = vmatprep.mubr.bf16.mxu0 %v330
      %3826 = vmatmul.mubr.bf16.gmra.mxu0 %v235
      %v3827 = vpop.f32.mrf.mxu0
      %v3828 = vadd.f32 0.0, %v3827
      %v3829 = vpop.f32.mrf.mxu0
      %v3830 = vadd.f32 0.0, %v3829
      %v3831 = vpop.f32.mrf.mxu0
      %v3832 = vadd.f32 0.0, %v3831
      %v3833 = vpop.f32.mrf.mxu0
      %v3834 = vadd.f32 0.0, %v3833
      %3835 = vdwg.mxu0
      %v3854 = vunpack.c.l.b16 %v3667
      %v3855 = vunpack.c.h.b16 %v3667
      %v3856 = vunpack.c.l.b16 %v3668
      %v3857 = vunpack.c.h.b16 %v3668
      %v3858 = vunpack.c.l.b16 %v3669
      %v3859 = vunpack.c.h.b16 %v3669
      %v3860 = vunpack.c.l.b16 %v3670
      %v3861 = vunpack.c.h.b16 %v3670
      %v3862 = vunpack.c.l.b16 %v3671
      %v3863 = vunpack.c.h.b16 %v3671
      %v3864 = vunpack.c.l.b16 %v3672
      %v3865 = vunpack.c.h.b16 %v3672
      %v3866 = vunpack.c.l.b16 %v3673
      %v3867 = vunpack.c.h.b16 %v3673
      %v3868 = vunpack.c.l.b16 %v3674
      %v3869 = vunpack.c.h.b16 %v3674
      %v3870 = vunpack.c.l.b16 %v3675
      %v3871 = vunpack.c.h.b16 %v3675
      %v3872 = vunpack.c.l.b16 %v3676
      %v3873 = vunpack.c.h.b16 %v3676
      %v3874 = vunpack.c.l.b16 %v3677
      %v3875 = vunpack.c.h.b16 %v3677
      %v3876 = vunpack.c.l.b16 %v3678
      %v3877 = vunpack.c.h.b16 %v3678
      %v3878 = vunpack.c.l.b16 %v3679
      %v3879 = vunpack.c.h.b16 %v3679
      %v3880 = vunpack.c.l.b16 %v3680
      %v3881 = vunpack.c.h.b16 %v3680
      %v3882 = vunpack.c.l.b16 %v3681
      %v3883 = vunpack.c.h.b16 %v3681
      %v3884 = vunpack.c.l.b16 %v3682
      %v3885 = vunpack.c.h.b16 %v3682
      %v3886 = vunpack.c.l.b16 %v3683
      %v3887 = vunpack.c.h.b16 %v3683
      %v3888 = vunpack.c.l.b16 %v3684
      %v3889 = vunpack.c.h.b16 %v3684
      %v3890 = vpack.c.b16 %v3856, %v3854
      %v3891 = vpack.c.b16 %v3857, %v3855
      %v3892 = vpack.c.b16 %v3860, %v3858
      %v3893 = vpack.c.b16 %v3861, %v3859
      %v3894 = vpack.c.b16 %v3864, %v3862
      %v3895 = vpack.c.b16 %v3865, %v3863
      %v3896 = vpack.c.b16 %v3868, %v3866
      %v3897 = vpack.c.b16 %v3869, %v3867
      %v3898 = vpack.c.b16 %v3872, %v3870
      %v3899 = vpack.c.b16 %v3873, %v3871
      %v3900 = vpack.c.b16 %v3876, %v3874
      %v3901 = vpack.c.b16 %v3877, %v3875
      %v3902 = vpack.c.b16 %v3880, %v3878
      %v3903 = vpack.c.b16 %v3881, %v3879
      %v3904 = vpack.c.b16 %v3884, %v3882
      %v3905 = vpack.c.b16 %v3885, %v3883
      %v3906 = vpack.c.b16 %v3888, %v3886
      %v3907 = vpack.c.b16 %v3889, %v3887
      %3926 = vmatprep.subr.bf16.mxu0 %v3905
      %3927 = vmatpush1.bf16.msra.mxu0 %v3904
      %3928 = vmatprep.subr.bf16.mxu0 %v3903
      %3929 = vmatpush1.bf16.msra.mxu0 %v3902
      %3930 = vmatprep.subr.bf16.mxu0 %v3901
      %3931 = vmatpush1.bf16.msra.mxu0 %v3900
      %3932 = vmatprep.subr.bf16.mxu0 %v3899
      %3933 = vmatpush1.bf16.msra.mxu0 %v3898
      %3934 = vmatprep.subr.bf16.mxu0 %v3897
      %3935 = vmatpush1.bf16.msra.mxu0 %v3896
      %3936 = vmatprep.subr.bf16.mxu0 %v3895
      %3937 = vmatpush1.bf16.msra.mxu0 %v3894
      %3938 = vmatprep.subr.bf16.mxu0 %v3893
      %3939 = vmatpush1.bf16.msra.mxu0 %v3892
      %3940 = vmatprep.subr.bf16.mxu0 %v3891
      %3941 = vmatpush1.bf16.msra.mxu0 %v3890
      %3942 = vmatprep.subr.bf16.mxu0 0
      %3943 = vmatpush2.bf16.msra.mxu0 0
      %3944 = vmatprep.subr.bf16.mxu0 0
      %3945 = vmatpush2.bf16.msra.mxu0 0
      %3946 = vmatprep.subr.bf16.mxu0 0
      %3947 = vmatpush2.bf16.msra.mxu0 0
      %3948 = vmatprep.subr.bf16.mxu0 0
      %3949 = vmatpush2.bf16.msra.mxu0 0
      %3950 = vmatprep.subr.bf16.mxu0 0
      %3951 = vmatpush2.bf16.msra.mxu0 0
      %3952 = vmatprep.subr.bf16.mxu0 0
      %3953 = vmatpush2.bf16.msra.mxu0 0
      %3954 = vmatprep.subr.bf16.mxu0 0
      %3955 = vmatpush2.bf16.msra.mxu0 0
      %3956 = vmatprep.subr.bf16.mxu0 %v3907
      %3957 = vmatpush2.bf16.msra.mxu0 %v3906
      %3958 = vmatprep.mubr.bf16.mxu0 %v475
      %3959 = vmatmul.mubr.bf16.gmra.mxu0 %v381
      %v3960 = vpop.f32.mrf.mxu0
      %v3961 = vadd.f32 %v3828, %v3960
      %v3962 = vpop.f32.mrf.mxu0
      %v3963 = vadd.f32 %v3830, %v3962
      %v3964 = vpop.f32.mrf.mxu0
      %v3965 = vadd.f32 %v3832, %v3964
      %v3966 = vpop.f32.mrf.mxu0
      %v3967 = vadd.f32 %v3834, %v3966
      %3968 = vdwg.mxu0
      %v3969 = vld [vmem:[%s173 + $0x48] sm:$0xff]
      %v3970 = vld [vmem:[%s173 + $0x98] sm:$0xff]
      %v3971 = vld [vmem:[%s173 + $0xe8] sm:$0xff]
      %v3972 = vld [vmem:[%s173 + $0x138] sm:$0xff]
      %v3973 = vld [vmem:[%s173 + $0x188] sm:$0xff]
      %v3974 = vld [vmem:[%s173 + $0x1d8] sm:$0xff]
      %v3975 = vld [vmem:[%s173 + $0x228] sm:$0xff]
      %v3976 = vld [vmem:[%s173 + $0x278] sm:$0xff]
      %v3977 = vld [vmem:[%s173 + $0x2c8] sm:$0xff]
      %v3978 = vld [vmem:[%s173 + $0x318] sm:$0xff]
      %v3979 = vld [vmem:[%s173 + $0x368] sm:$0xff]
      %v3980 = vld [vmem:[%s173 + $0x3b8] sm:$0xff]
      %v3981 = vld [vmem:[%s173 + $0x408] sm:$0xff]
      %v3982 = vld [vmem:[%s173 + $0x458] sm:$0xff]
      %v3983 = vld [vmem:[%s173 + $0x4a8] sm:$0xff]
      %v3984 = vld [vmem:[%s173 + $0x4f8] sm:$0xff]
      %v3985 = vld [vmem:[%s173 + $0x548] sm:$0xff]
      %v3986 = vld [vmem:[%s173 + $0x598] sm:$0xff]
      %v4005 = vunpack.c.l.b16 %v3969
      %v4006 = vunpack.c.h.b16 %v3969
      %v4007 = vunpack.c.l.b16 %v3970
      %v4008 = vunpack.c.h.b16 %v3970
      %v4009 = vunpack.c.l.b16 %v3971
      %v4010 = vunpack.c.h.b16 %v3971
      %v4011 = vunpack.c.l.b16 %v3972
      %v4012 = vunpack.c.h.b16 %v3972
      %v4013 = vunpack.c.l.b16 %v3973
      %v4014 = vunpack.c.h.b16 %v3973
      %v4015 = vunpack.c.l.b16 %v3974
      %v4016 = vunpack.c.h.b16 %v3974
      %v4017 = vunpack.c.l.b16 %v3975
      %v4018 = vunpack.c.h.b16 %v3975
      %v4019 = vunpack.c.l.b16 %v3976
      %v4020 = vunpack.c.h.b16 %v3976
      %v4021 = vunpack.c.l.b16 %v3977
      %v4022 = vunpack.c.h.b16 %v3977
      %v4023 = vunpack.c.l.b16 %v3978
      %v4024 = vunpack.c.h.b16 %v3978
      %v4025 = vunpack.c.l.b16 %v3979
      %v4026 = vunpack.c.h.b16 %v3979
      %v4027 = vunpack.c.l.b16 %v3980
      %v4028 = vunpack.c.h.b16 %v3980
      %v4029 = vunpack.c.l.b16 %v3981
      %v4030 = vunpack.c.h.b16 %v3981
      %v4031 = vunpack.c.l.b16 %v3982
      %v4032 = vunpack.c.h.b16 %v3982
      %v4033 = vunpack.c.l.b16 %v3983
      %v4034 = vunpack.c.h.b16 %v3983
      %v4035 = vunpack.c.l.b16 %v3984
      %v4036 = vunpack.c.h.b16 %v3984
      %v4037 = vunpack.c.l.b16 %v3985
      %v4038 = vunpack.c.h.b16 %v3985
      %v4039 = vunpack.c.l.b16 %v3986
      %v4040 = vunpack.c.h.b16 %v3986
      %v4041 = vpack.c.b16 %v4007, %v4005
      %v4042 = vpack.c.b16 %v4008, %v4006
      %v4043 = vpack.c.b16 %v4011, %v4009
      %v4044 = vpack.c.b16 %v4012, %v4010
      %v4045 = vpack.c.b16 %v4015, %v4013
      %v4046 = vpack.c.b16 %v4016, %v4014
      %v4047 = vpack.c.b16 %v4019, %v4017
      %v4048 = vpack.c.b16 %v4020, %v4018
      %v4049 = vpack.c.b16 %v4023, %v4021
      %v4050 = vpack.c.b16 %v4024, %v4022
      %v4051 = vpack.c.b16 %v4027, %v4025
      %v4052 = vpack.c.b16 %v4028, %v4026
      %v4053 = vpack.c.b16 %v4031, %v4029
      %v4054 = vpack.c.b16 %v4032, %v4030
      %v4055 = vpack.c.b16 %v4035, %v4033
      %v4056 = vpack.c.b16 %v4036, %v4034
      %v4057 = vpack.c.b16 %v4039, %v4037
      %v4058 = vpack.c.b16 %v4040, %v4038
      %4077 = vmatprep.subr.bf16.mxu0 %v4056
      %4078 = vmatpush1.bf16.msra.mxu0 %v4055
      %4079 = vmatprep.subr.bf16.mxu0 %v4054
      %4080 = vmatpush1.bf16.msra.mxu0 %v4053
      %4081 = vmatprep.subr.bf16.mxu0 %v4052
      %4082 = vmatpush1.bf16.msra.mxu0 %v4051
      %4083 = vmatprep.subr.bf16.mxu0 %v4050
      %4084 = vmatpush1.bf16.msra.mxu0 %v4049
      %4085 = vmatprep.subr.bf16.mxu0 %v4048
      %4086 = vmatpush1.bf16.msra.mxu0 %v4047
      %4087 = vmatprep.subr.bf16.mxu0 %v4046
      %4088 = vmatpush1.bf16.msra.mxu0 %v4045
      %4089 = vmatprep.subr.bf16.mxu0 %v4044
      %4090 = vmatpush1.bf16.msra.mxu0 %v4043
      %4091 = vmatprep.subr.bf16.mxu0 %v4042
      %4092 = vmatpush1.bf16.msra.mxu0 %v4041
      %4093 = vmatprep.subr.bf16.mxu0 0
      %4094 = vmatpush2.bf16.msra.mxu0 0
      %4095 = vmatprep.subr.bf16.mxu0 0
      %4096 = vmatpush2.bf16.msra.mxu0 0
      %4097 = vmatprep.subr.bf16.mxu0 0
      %4098 = vmatpush2.bf16.msra.mxu0 0
      %4099 = vmatprep.subr.bf16.mxu0 0
      %4100 = vmatpush2.bf16.msra.mxu0 0
      %4101 = vmatprep.subr.bf16.mxu0 0
      %4102 = vmatpush2.bf16.msra.mxu0 0
      %4103 = vmatprep.subr.bf16.mxu0 0
      %4104 = vmatpush2.bf16.msra.mxu0 0
      %4105 = vmatprep.subr.bf16.mxu0 0
      %4106 = vmatpush2.bf16.msra.mxu0 0
      %4107 = vmatprep.subr.bf16.mxu0 %v4058
      %4108 = vmatpush2.bf16.msra.mxu0 %v4057
      %4109 = vmatprep.mubr.bf16.mxu0 %v638
      %4110 = vmatmul.mubr.bf16.gmra.mxu0 %v544
      %v4111 = vpop.f32.mrf.mxu0
      %v4112 = vadd.f32 0.0, %v4111
      %v4113 = vpop.f32.mrf.mxu0
      %v4114 = vadd.f32 0.0, %v4113
      %v4115 = vpop.f32.mrf.mxu0
      %v4116 = vadd.f32 0.0, %v4115
      %v4117 = vpop.f32.mrf.mxu0
      %v4118 = vadd.f32 0.0, %v4117
      %4119 = vdwg.mxu0
      %v4120 = vadd.f32 %v3961, %v4112
      %v4121 = vadd.f32 %v3963, %v4114
      %v4122 = vadd.f32 %v3965, %v4116
      %v4123 = vadd.f32 %v3967, %v4118
      %v4124 = vpack.c.bf16 %v4122, %v4120
      %v4125 = vpack.c.bf16 %v4123, %v4121
      %v4128 = vunpack.c.l.b16 %v4124
      %v4129 = vunpack.c.l.b16 %v4125
      %v4130 = vunpack.c.h.b16 %v4124
      %v4131 = vunpack.c.h.b16 %v4125
      %v4132 = vpack.c.b16 %v4129, %v4128
      %v4133 = vpack.c.b16 %v4131, %v4130
      %4136 = vst [vmem:[%s178 + $0x38] sm:$0xff] %v4132
      %4137 = vst [vmem:[%s178 + $0x78] sm:$0xff] %v4133
      %v4138 = vadd.f32 %v4120, %v4121
      %4139 = vadd.xlane.f32.xlu0 %v4138
      %v4140 = vpop.xlane.xlu0 %4139
      %v4141 = vadd.f32 %v4122, %v4123
      %4142 = vadd.xlane.f32.xlu0 %v4141
      %v4143 = vpop.xlane.xlu0 %4142
      %v4144 = vadd.f32 %v3653, %v4140
      %v4145 = vadd.f32 %v3654, %v4143
      %v4146 = vmul.f32 %v4120, %v4120
      %v4147 = vmul.f32 %v4121, %v4121
      %v4148 = vmul.f32 %v4122, %v4122
      %v4149 = vmul.f32 %v4123, %v4123
      %v4150 = vadd.f32 %v4146, %v4147
      %4151 = vadd.xlane.f32.xlu0 %v4150
      %v4152 = vpop.xlane.xlu0 %4151
      %v4153 = vadd.f32 %v4148, %v4149
      %4154 = vadd.xlane.f32.xlu0 %v4153
      %v4155 = vpop.xlane.xlu0 %4154
      %v4156 = vadd.f32 %v3665, %v4152
      %v4157 = vadd.f32 %v3666, %v4155
      %4158 = vst [vmem:[%s183] sm:$0xff] %v4144
      %4159 = vst [vmem:[%s183 + $0x8] sm:$0xff] %v4145
      %4160 = vst [vmem:[%s183 + $0x10] sm:$0xff] %v4156
      %4161 = vst [vmem:[%s183 + $0x18] sm:$0xff] %v4157
      %p4162 = scmp.lt.s32.totalorder %s15, 1
      %s4163 = scalar_select %p4162, %s15, 1
      %s4164 = smul.addr %s4163, 32
      %s4165 = smul.addr %s4164, 4
      %s4166 = scalar_lea.vmem %s2, %s4165
      %p4167 = scmp.lt.s32.totalorder %s15, 1
      %s4168 = scalar_select %p4167, %s15, 1
      %s4169 = smul.addr %s4168, 4
      %s4170 = smul.addr %s4169, 8
      %s4171 = scalar_lea.vmem %s3, %s4170
      // Predicated region
      $region29: #{encoder_block_forward.4} parent=27 // pred_check
        %p4172 = pneg %p80
      $region30: #{encoder_block_forward.4} parent=27 // pred_check_branch
        %4174 = sbr.rel (%p4172) target = $region32
      $region31: #{encoder_block_forward.4} parent=27 // pred_region
        _
      $region32: #{encoder_block_forward.4} parent=27 // pred_fallthru
        _
      // Predicated region
      $region33: #{encoder_block_forward.4} parent=27 // pred_check
        %p4175 = pneg %p106
      $region34: #{encoder_block_forward.4} parent=27 // pred_check_branch
        %4177 = sbr.rel (%p4175) target = $region36
      $region35: #{encoder_block_forward.4} parent=27 // pred_region
        _
      $region36: #{encoder_block_forward.4} parent=27 // pred_fallthru
        _
    $region28: #{encoder_block_forward.4} parent=5 // pred_fallthru
      _
    %p4178 = scmp.le.s32.totalorder 2, %s10
    // Predicated region
    $region37: #{encoder_block_forward.4} parent=5 // pred_check
      %p4179 = pneg %p4178
    $region38: #{encoder_block_forward.4} parent=5 // pred_check_branch
      %4181 = sbr.rel (%p4179) target = $region40
    $region39: #{encoder_block_forward.4} parent=5 // pred_region
      %s4182 = ssub.s32 %s10, 2
      // Predicated region
      $region41: #{encoder_block_forward.4} parent=39 // pred_check
        %p4183 = pneg %p86
      $region42: #{encoder_block_forward.4} parent=39 // pred_check_branch
        %4185 = sbr.rel (%p4183) target = $region44
      $region43: #{encoder_block_forward.4} parent=39 // pred_region
        %p4186 = scmp.lt.s32.totalorder %s16, 1
        %s4187 = scalar_select %p4186, %s16, 1
        %s4188 = smul.addr %s4187, 32
        %s4189 = smul.addr %s4188, 4
        %s4190 = scalar_lea.vmem %s2, %s4189
      $region44: #{encoder_block_forward.4} parent=39 // pred_fallthru
        _
      // Predicated region
      $region45: #{encoder_block_forward.4} parent=39 // pred_check
        %p4191 = pneg %p112
      $region46: #{encoder_block_forward.4} parent=39 // pred_check_branch
        %4193 = sbr.rel (%p4191) target = $region48
      $region47: #{encoder_block_forward.4} parent=39 // pred_region
        %p4194 = scmp.lt.s32.totalorder %s16, 1
        %s4195 = scalar_select %p4194, %s16, 1
        %s4196 = smul.addr %s4195, 4
        %s4197 = smul.addr %s4196, 8
        %s4198 = scalar_lea.vmem %s3, %s4197
      $region48: #{encoder_block_forward.4} parent=39 // pred_fallthru
        _
    $region40: #{encoder_block_forward.4} parent=5 // pred_fallthru
      _
  $region6: #{encoder_block_forward.4} parent=0 // loop_footer
    %s14 = sadd.s32 1, %s10
  $region7: #{encoder_block_forward.4} parent=0 // loop_footer_branch
    %9 = sbr.rel target = $region3
  $region8: #{encoder_block_forward.4} parent=0 // loop_exit
    _

</llo_original>
